<compile_context>
chip_gen: v6e
topology: v6e:2x2x1
jax: 0.10.0
libtpu: 0.0.40
codegen_flags: <defaults>
</compile_context>

<pallas_src>
import functools

import jax
import jax.numpy as jnp
import numpy as np
from jax.experimental import pallas as pl
from jax.experimental.pallas import tpu as pltpu

SLOW_DIM = 2048
FAST_DIM = 256
FEAT_DIM = SLOW_DIM + FAST_DIM   # 2304
BN_EPS = 1e-5
SUBLANE = 8                      # f32 sublane multiple
MAX_BATCH_TILE = 256             # rows per grid step (fills the MXU M dim)


def _ceil_to(x, m):
    return -(-x // m) * m


# ----------------------------------------------------------------------------
# Fused kernel: projection + pf-embedding + fusion + all three heads.
# Everything (features, pf_emb, hidden) stays in VMEM; no concat in HBM.
# ----------------------------------------------------------------------------
def _fused_head_kernel(sp_ref, fp_ref, pf_ref,
                       ws_ref, wf_ref,
                       wpf_ref, bpf_ref,
                       w1_ref, b1_ref,
                       w2_ref, b2_ref,
                       out_ref, x_ref, *, inv_temperature):
    f32 = jnp.float32
    cd = w1_ref.dtype  # matmul compute dtype (bf16 default, f32 optional)

    # ---- backbone stand-in projection: K=3 -> 3 VPU broadcast FMAs (f32) ----
    sp = sp_ref[...]                                   # [BT, 3]
    fp = fp_ref[...]                                   # [BT, 3]
    slow_feat = (sp[:, 0:1] * ws_ref[0:1, :]
                 + sp[:, 1:2] * ws_ref[1:2, :]
                 + sp[:, 2:3] * ws_ref[2:3, :])        # [BT, 2048]
    fast_feat = (fp[:, 0:1] * wf_ref[0:1, :]
                 + fp[:, 1:2] * wf_ref[1:2, :]
                 + fp[:, 2:3] * wf_ref[2:3, :])        # [BT, 256]

    # ---- pf embedding: softmax (f32, exact) -> Linear(+folded BN) -> ReLU ----
    z = pf_ref[...] * inv_temperature
    z = z - jnp.max(z, axis=-1, keepdims=True)
    e = jnp.exp(z)
    p = e / jnp.sum(e, axis=-1, keepdims=True)         # exact; off crit-path
    num_pf = p.shape[-1]
    pf_emb = bpf_ref[...] + p[:, 0:1] * wpf_ref[0:1, :]
    for k in range(1, num_pf):                         # num_pf VPU FMAs, no MXU
        pf_emb = pf_emb + p[:, k:k + 1] * wpf_ref[k:k + 1, :]
    pf_emb = jnp.maximum(pf_emb, 0.0)                  # [BT, pf_emb_dim]
    # Dropout layers are identity in eval mode.

    # ---- stage contiguous fused features (concat eliminated) ----------------
    pf_dim = pf_emb.shape[-1]
    x_ref[:, 0:SLOW_DIM] = slow_feat
    x_ref[:, SLOW_DIM:FEAT_DIM] = fast_feat
    x_ref[:, FEAT_DIM:FEAT_DIM + pf_dim] = pf_emb

    # ---- packed first Linear(+folded BN) + ReLU: single K=2432 MXU pass ------
    h = jnp.dot(x_ref[...].astype(cd), w1_ref[...],
                preferred_element_type=f32) + b1_ref[...]
    h = jnp.maximum(h, 0.0)                            # [BT, 3*head_hidden]

    # ---- packed block-diagonal second Linear -> lane-dense [BT, 128] ---------
    out_ref[...] = (jnp.dot(h.astype(cd), w2_ref[...],
                            preferred_element_type=f32) + b2_ref[...])


# ----------------------------------------------------------------------------
# Wrapper.
# ----------------------------------------------------------------------------
def _pad_rows(x, bp):
    pad = bp - x.shape[0]
    return x if pad == 0 else jnp.pad(x, ((0, pad), (0, 0)))


def _vmem_limit_bytes(kp, bt, fusion_dim):
    def nb(a):
        return int(a.size) * a.dtype.itemsize
    weights = sum(nb(kp[k]) for k in
                  ("ws", "wf", "wpf", "bpf", "w1", "b1", "w2", "b2"))
    # per-tile activations (x scratch, hidden, packed output, small inputs);
    # x2 for double-buffered pipeline copies, plus fixed headroom.
    acts = bt * (fusion_dim * 4 + int(kp["w1"].shape[1]) * 4
                 + kp["out_pad"] * 4 + 64)
    total = weights + 2 * acts + (8 << 20)
    return int(min(max(total, 32 << 20), 64 << 20))


def stage2_forward(frames, pf_logits, kp, temperature=2.0):
    """frames = (slow [B,3,Ts,H,W], fast [B,3,Tf,H,W]); returns (feat, a, b)."""
    slow, fast = frames
    b = slow.shape[0]

    # Backbone stand-in pooling outside the kernel: HBM-bound, XLA already at
    # roofline, and no [B,3,T*H*W] slab has to fit VMEM (v7x = 64 MiB). Frames
    # stay in their native dtype; the reduction accumulates in f32.
    sp = jnp.mean(slow.reshape(b, slow.shape[1], -1), axis=-1, dtype=jnp.float32)
    fp = jnp.mean(fast.reshape(b, fast.shape[1], -1), axis=-1, dtype=jnp.float32)
    pf = pf_logits.astype(jnp.float32)

    bp = _ceil_to(b, SUBLANE)
    if bp > MAX_BATCH_TILE:
        bp = _ceil_to(b, MAX_BATCH_TILE)
        bt = MAX_BATCH_TILE
    else:
        bt = bp
    sp, fp, pf = (_pad_rows(x, bp) for x in (sp, fp, pf))

    fusion_dim = FEAT_DIM + int(kp["wpf"].shape[1])
    grid = (bp // bt,)

    def row_spec(dim):
        return pl.BlockSpec((bt, dim), lambda i: (i, 0))

    def w_spec(arr):
        # Constant block index: weights are DMA'd once and reused across batch
        # tiles (and per TensorCore when the grid is megacore-sharded).
        return pl.BlockSpec(arr.shape, lambda i: (0, 0))

    # TODO(synk): in a serving loop, the weight DMA could additionally be hidden
    # via a cross-call semaphore/VMEM-ref prefetch future (P10); not needed for
    # this self-contained example.
    out = pl.pallas_call(
        functools.partial(_fused_head_kernel,
                          inv_temperature=1.0 / float(temperature)),
        out_shape=jax.ShapeDtypeStruct((bp, kp["out_pad"]), jnp.float32),
        grid=grid,
        in_specs=[row_spec(3), row_spec(3), row_spec(pf.shape[1]),
                  w_spec(kp["ws"]), w_spec(kp["wf"]),
                  w_spec(kp["wpf"]), w_spec(kp["bpf"]),
                  w_spec(kp["w1"]), w_spec(kp["b1"]),
                  w_spec(kp["w2"]), w_spec(kp["b2"])],
        out_specs=row_spec(kp["out_pad"]),
        scratch_shapes=[pltpu.VMEM((bt, fusion_dim), jnp.float32)],
        compiler_params=pltpu.CompilerParams(
            dimension_semantics=("parallel",),
            vmem_limit_bytes=_vmem_limit_bytes(kp, bt, fusion_dim)),
    )(sp, fp, pf,
      kp["ws"], kp["wf"], kp["wpf"], kp["bpf"],
      kp["w1"], kp["b1"], kp["w2"], kp["b2"])

    nf, na, nb = kp["out_dims"]
    return out[:b, :nf], out[:b, nf:nf + na], out[:b, nf + na:nf + na + nb]


# ----------------------------------------------------------------------------
# Host-side parameter prep: fold BatchNorm (real running stats) into the
# Linears, pack the three heads, pad outputs to 128 lanes.  bf16 matmul
# weights are the default on all chips (v5e/v6e/v7x MXUs are bf16-native);
# VPU-path weights (ws/wf/wpf) and all biases stay f32.
# ----------------------------------------------------------------------------
def prepare_params(raw, compute_dtype=jnp.bfloat16):
    def fold(w, bias, m):
        scale = m["gamma"] / jnp.sqrt(m["var"] + BN_EPS)
        return w * scale[None, :], (bias - m["mean"]) * scale + m["beta"]

    pe = raw["pf_emb"]
    wpf, bpf = fold(pe["w"], pe["b"], pe)

    w1s, b1s, w2_blocks, b2s, out_dims = [], [], [], [], []
    for name in ("feat_head", "a_head", "b_head"):
        hp = raw[name]
        w1, b1 = fold(hp["w1"], hp["b1"], hp)
        w1s.append(w1)
        b1s.append(b1)
        w2_blocks.append(hp["w2"])
        b2s.append(hp["b2"])
        out_dims.append(int(hp["w2"].shape[1]))

    head_hidden = int(raw["feat_head"]["w1"].shape[1])
    w1_packed = jnp.concatenate(w1s, axis=1)             # [2432, 3*H]
    b1_packed = jnp.concatenate(b1s, axis=0)[None, :]    # [1, 3*H]

    out_total = sum(out_dims)
    out_pad = max(128, _ceil_to(out_total, 128))
    w2 = jnp.zeros((3 * head_hidden, out_pad), jnp.float32)
    b2 = jnp.zeros((1, out_pad), jnp.float32)
    col = 0
    for i, (blk, b2i, od) in enumerate(zip(w2_blocks, b2s, out_dims)):
        w2 = w2.at[i * head_hidden:(i + 1) * head_hidden, col:col + od].set(blk)
        b2 = b2.at[0, col:col + od].set(b2i)
        col += od

    cd = compute_dtype
    return {
        "ws": raw["ws"].astype(jnp.float32),              # VPU FMA path: f32
        "wf": raw["wf"].astype(jnp.float32),
        "wpf": wpf.astype(jnp.float32),                   # VPU FMA path: f32
        "bpf": bpf[None, :].astype(jnp.float32),
        "w1": w1_packed.astype(cd),
        "b1": b1_packed.astype(jnp.float32),
        "w2": w2.astype(cd),
        "b2": b2.astype(jnp.float32),
        "out_dims": tuple(out_dims),
        "out_pad": int(out_pad),
    }


# ----------------------------------------------------------------------------
# Deterministic raw parameter init (shapes follow the module's __init__),
# including non-trivial BN running statistics.
# ----------------------------------------------------------------------------
def init_params(key, num_pf, num_feat, num_a, num_b, pf_emb_dim=128,
                head_hidden=256):
    fusion_dim = FEAT_DIM + pf_emb_dim
    keys = iter(jax.random.split(key, 64))

    def rnd(shape, scale=0.02):
        return (scale * jax.random.normal(next(keys), shape)).astype(jnp.float32)

    def bn_stats(dim):
        return {
            "gamma": 1.0 + rnd((dim,), 0.1),
            "beta": rnd((dim,), 0.1),
            "mean": rnd((dim,), 0.2),
            "var": jax.random.uniform(next(keys), (dim,), minval=0.5,
                                      maxval=1.5).astype(jnp.float32),
        }

    def head(out_dim):
        d = {"w1": rnd((fusion_dim, head_hidden)), "b1": rnd((head_hidden,))}
        d.update(bn_stats(head_hidden))
        d.update({"w2": rnd((head_hidden, out_dim)), "b2": rnd((out_dim,))})
        return d

    pf = {"w": rnd((num_pf, pf_emb_dim)), "b": rnd((pf_emb_dim,))}
    pf.update(bn_stats(pf_emb_dim))
    return {
        "ws": rnd((3, SLOW_DIM)),
        "wf": rnd((3, FAST_DIM)),
        "pf_emb": pf,
        "feat_head": head(num_feat),
        "a_head": head(num_a),
        "b_head": head(num_b),
    }


# ----------------------------------------------------------------------------
# Pure-JAX reference (unfused: explicit concat + full BatchNorm eval math).
# ----------------------------------------------------------------------------
def reference_forward(frames, pf_logits, raw, temperature=2.0):
    slow, fast = frames
    b = slow.shape[0]
    sp = jnp.mean(slow.reshape(b, 3, -1), axis=-1)
    fp = jnp.mean(fast.reshape(b, 3, -1), axis=-1)
    feats = jnp.concatenate([sp @ raw["ws"], fp @ raw["wf"]], axis=1)

    def bn(y, m):
        return (y - m["mean"]) / jnp.sqrt(m["var"] + BN_EPS) * m["gamma"] + m["beta"]

    pe = raw["pf_emb"]
    p = jax.nn.softmax(pf_logits / temperature, axis=1)
    pf_emb = jnp.maximum(bn(p @ pe["w"] + pe["b"], pe), 0.0)

    x = jnp.concatenate([feats, pf_emb], axis=1)

    def head(hp):
        h = jnp.maximum(bn(x @ hp["w1"] + hp["b1"], hp), 0.0)
        return h @ hp["w2"] + hp["b2"]

    return head(raw["feat_head"]), head(raw["a_head"]), head(raw["b_head"])


if __name__ == "__main__":
    B = 2
    NUM_PF, NUM_FEAT, NUM_A, NUM_B = 6, 9, 5, 4
    T_SLOW, T_FAST, H, W = 4, 16, 16, 16  # fast pathway has alpha=4x frames

    key = jax.random.PRNGKey(0)
    k_slow, k_fast, k_pf, k_params = jax.random.split(key, 4)

    slow = jax.random.normal(k_slow, (B, 3, T_SLOW, H, W), dtype=jnp.float32)
    fast = jax.random.normal(k_fast, (B, 3, T_FAST, H, W), dtype=jnp.float32)
    pf_logits = jax.random.normal(k_pf, (B, NUM_PF), dtype=jnp.float32)

    raw = init_params(k_params, NUM_PF, NUM_FEAT, NUM_A, NUM_B)
    refs = jax.block_until_ready(
        reference_forward((slow, fast), pf_logits, raw, temperature=2.0))

    # Default path: bf16 matmul weights on ALL chips (v5e/v6e/v7x), f32 VPU math.
    kpbf = prepare_params(raw, compute_dtype=jnp.bfloat16)
    fwdbf = jax.jit(lambda fr, pf: stage2_forward(fr, pf, kpbf, temperature=2.0))
    outsbf = jax.block_until_ready(fwdbf((slow, fast), pf_logits))
    for o, r in zip(outsbf, refs):
        np.testing.assert_allclose(np.asarray(o), np.asarray(r),
                                   rtol=3e-2, atol=5e-3)

    # Optional fp32 matmul path — tight tolerance vs. the JAX reference.
    kp32 = prepare_params(raw, compute_dtype=jnp.float32)
    fwd32 = jax.jit(lambda fr, pf: stage2_forward(fr, pf, kp32, temperature=2.0))
    outs32 = jax.block_until_ready(fwd32((slow, fast), pf_logits))
    for o, r in zip(outs32, refs):
        np.testing.assert_allclose(np.asarray(o), np.asarray(r),
                                   rtol=2e-3, atol=2e-4)

    assert outsbf[0].shape == (B, NUM_FEAT)
    assert outsbf[1].shape == (B, NUM_A)
    assert outsbf[2].shape == (B, NUM_B)
    print("KERNEL_OK")
</pallas_src>

<mosaic_0001>
module attributes {stable_mosaic.version = 11 : i64} {
  func.func @_fused_head_kernel(%arg0: i32, %arg1: memref<8x3xf32, #tpu.memory_space<vmem>>, %arg2: memref<8x3xf32, #tpu.memory_space<vmem>>, %arg3: memref<8x6xf32, #tpu.memory_space<vmem>>, %arg4: memref<3x2048xf32, #tpu.memory_space<vmem>>, %arg5: memref<3x256xf32, #tpu.memory_space<vmem>>, %arg6: memref<6x128xf32, #tpu.memory_space<vmem>>, %arg7: memref<1x128xf32, #tpu.memory_space<vmem>>, %arg8: memref<2432x768xbf16, #tpu.memory_space<vmem>>, %arg9: memref<1x768xf32, #tpu.memory_space<vmem>>, %arg10: memref<768x128xbf16, #tpu.memory_space<vmem>>, %arg11: memref<1x128xf32, #tpu.memory_space<vmem>>, %arg12: memref<8x128xf32, #tpu.memory_space<vmem>>, %arg13: memref<8x2432xf32, #tpu.memory_space<vmem>>) attributes {dimension_semantics = [#tpu.dimension_semantics<parallel>], iteration_bounds = array<i64: 1>, scalar_prefetch = 0 : i64, scratch_operands = 1 : i64, tpu.core_type = #tpu.core_type<tc>, window_params = [{transform_indices = @transform_0, window_bounds = array<i64: 8, 3>}, {transform_indices = @transform_1, window_bounds = array<i64: 8, 3>}, {transform_indices = @transform_2, window_bounds = array<i64: 8, 6>}, {pipeline_mode = #tpu.pipeline_mode<synchronous>, transform_indices = @transform_3, window_bounds = array<i64: 3, 2048>}, {pipeline_mode = #tpu.pipeline_mode<synchronous>, transform_indices = @transform_4, window_bounds = array<i64: 3, 256>}, {pipeline_mode = #tpu.pipeline_mode<synchronous>, transform_indices = @transform_5, window_bounds = array<i64: 6, 128>}, {pipeline_mode = #tpu.pipeline_mode<synchronous>, transform_indices = @transform_6, window_bounds = array<i64: 1, 128>}, {pipeline_mode = #tpu.pipeline_mode<synchronous>, transform_indices = @transform_7, window_bounds = array<i64: 2432, 768>}, {pipeline_mode = #tpu.pipeline_mode<synchronous>, transform_indices = @transform_8, window_bounds = array<i64: 1, 768>}, {pipeline_mode = #tpu.pipeline_mode<synchronous>, transform_indices = @transform_9, window_bounds = array<i64: 768, 128>}, {pipeline_mode = #tpu.pipeline_mode<synchronous>, transform_indices = @transform_10, window_bounds = array<i64: 1, 128>}, {transform_indices = @transform_11, window_bounds = array<i64: 8, 128>}]} {
    %c0 = arith.constant 0 : index
    %c0_0 = arith.constant 0 : index
    %0 = vector.load %arg1[%c0, %c0_0] : memref<8x3xf32, #tpu.memory_space<vmem>>, vector<8x3xf32>
    %c0_1 = arith.constant 0 : index
    %c0_2 = arith.constant 0 : index
    %1 = vector.load %arg2[%c0_1, %c0_2] : memref<8x3xf32, #tpu.memory_space<vmem>>, vector<8x3xf32>
    %2 = vector.extract_strided_slice %0 {offsets = [0, 0], sizes = [8, 1], strides = [1, 1]} : vector<8x3xf32> to vector<8x1xf32>
    %c0_3 = arith.constant 0 : index
    %c0_4 = arith.constant 0 : index
    %3 = vector.load %arg4[%c0_3, %c0_4] : memref<3x2048xf32, #tpu.memory_space<vmem>>, vector<1x2048xf32>
    %4 = vector.broadcast %2 : vector<8x1xf32> to vector<8x2048xf32>
    %5 = vector.broadcast %3 : vector<1x2048xf32> to vector<8x2048xf32>
    %6 = arith.mulf %4, %5 : vector<8x2048xf32>
    %7 = vector.extract_strided_slice %0 {offsets = [0, 1], sizes = [8, 1], strides = [1, 1]} : vector<8x3xf32> to vector<8x1xf32>
    %c1 = arith.constant 1 : index
    %c0_5 = arith.constant 0 : index
    %8 = vector.load %arg4[%c1, %c0_5] : memref<3x2048xf32, #tpu.memory_space<vmem>>, vector<1x2048xf32>
    %9 = vector.broadcast %7 : vector<8x1xf32> to vector<8x2048xf32>
    %10 = vector.broadcast %8 : vector<1x2048xf32> to vector<8x2048xf32>
    %11 = arith.mulf %9, %10 : vector<8x2048xf32>
    %12 = arith.addf %6, %11 : vector<8x2048xf32>
    %13 = vector.extract_strided_slice %0 {offsets = [0, 2], sizes = [8, 1], strides = [1, 1]} : vector<8x3xf32> to vector<8x1xf32>
    %c2 = arith.constant 2 : index
    %c0_6 = arith.constant 0 : index
    %14 = vector.load %arg4[%c2, %c0_6] : memref<3x2048xf32, #tpu.memory_space<vmem>>, vector<1x2048xf32>
    %15 = vector.broadcast %13 : vector<8x1xf32> to vector<8x2048xf32>
    %16 = vector.broadcast %14 : vector<1x2048xf32> to vector<8x2048xf32>
    %17 = arith.mulf %15, %16 : vector<8x2048xf32>
    %18 = arith.addf %12, %17 : vector<8x2048xf32>
    %19 = vector.extract_strided_slice %1 {offsets = [0, 0], sizes = [8, 1], strides = [1, 1]} : vector<8x3xf32> to vector<8x1xf32>
    %c0_7 = arith.constant 0 : index
    %c0_8 = arith.constant 0 : index
    %20 = vector.load %arg5[%c0_7, %c0_8] : memref<3x256xf32, #tpu.memory_space<vmem>>, vector<1x256xf32>
    %21 = vector.broadcast %19 : vector<8x1xf32> to vector<8x256xf32>
    %22 = vector.broadcast %20 : vector<1x256xf32> to vector<8x256xf32>
    %23 = arith.mulf %21, %22 : vector<8x256xf32>
    %24 = vector.extract_strided_slice %1 {offsets = [0, 1], sizes = [8, 1], strides = [1, 1]} : vector<8x3xf32> to vector<8x1xf32>
    %c1_9 = arith.constant 1 : index
    %c0_10 = arith.constant 0 : index
    %25 = vector.load %arg5[%c1_9, %c0_10] : memref<3x256xf32, #tpu.memory_space<vmem>>, vector<1x256xf32>
    %26 = vector.broadcast %24 : vector<8x1xf32> to vector<8x256xf32>
    %27 = vector.broadcast %25 : vector<1x256xf32> to vector<8x256xf32>
    %28 = arith.mulf %26, %27 : vector<8x256xf32>
    %29 = arith.addf %23, %28 : vector<8x256xf32>
    %30 = vector.extract_strided_slice %1 {offsets = [0, 2], sizes = [8, 1], strides = [1, 1]} : vector<8x3xf32> to vector<8x1xf32>
    %c2_11 = arith.constant 2 : index
    %c0_12 = arith.constant 0 : index
    %31 = vector.load %arg5[%c2_11, %c0_12] : memref<3x256xf32, #tpu.memory_space<vmem>>, vector<1x256xf32>
    %32 = vector.broadcast %30 : vector<8x1xf32> to vector<8x256xf32>
    %33 = vector.broadcast %31 : vector<1x256xf32> to vector<8x256xf32>
    %34 = arith.mulf %32, %33 : vector<8x256xf32>
    %35 = arith.addf %29, %34 : vector<8x256xf32>
    %c0_13 = arith.constant 0 : index
    %c0_14 = arith.constant 0 : index
    %36 = vector.load %arg3[%c0_13, %c0_14] : memref<8x6xf32, #tpu.memory_space<vmem>>, vector<8x6xf32>
    %cst = arith.constant 5.000000e-01 : f32
    %37 = vector.broadcast %cst : f32 to vector<8x6xf32>
    %38 = arith.mulf %36, %37 : vector<8x6xf32>
    %cst_15 = arith.constant dense<0xFF800000> : vector<8xf32>
    %39 = vector.multi_reduction <maximumf>, %38, %cst_15 [1] : vector<8x6xf32> to vector<8xf32>
    %40 = vector.shape_cast %39 : vector<8xf32> to vector<8x1xf32>
    %41 = vector.broadcast %40 : vector<8x1xf32> to vector<8x6xf32>
    %42 = arith.subf %38, %41 : vector<8x6xf32>
    %43 = math.exp %42 : vector<8x6xf32>
    %cst_16 = arith.constant dense<0.000000e+00> : vector<8xf32>
    %44 = vector.multi_reduction <add>, %43, %cst_16 [1] : vector<8x6xf32> to vector<8xf32>
    %45 = vector.shape_cast %44 : vector<8xf32> to vector<8x1xf32>
    %46 = vector.broadcast %45 : vector<8x1xf32> to vector<8x6xf32>
    %47 = arith.divf %43, %46 : vector<8x6xf32>
    %c0_17 = arith.constant 0 : index
    %c0_18 = arith.constant 0 : index
    %48 = vector.load %arg7[%c0_17, %c0_18] : memref<1x128xf32, #tpu.memory_space<vmem>>, vector<1x128xf32>
    %49 = vector.extract_strided_slice %47 {offsets = [0, 0], sizes = [8, 1], strides = [1, 1]} : vector<8x6xf32> to vector<8x1xf32>
    %c0_19 = arith.constant 0 : index
    %c0_20 = arith.constant 0 : index
    %50 = vector.load %arg6[%c0_19, %c0_20] : memref<6x128xf32, #tpu.memory_space<vmem>>, vector<1x128xf32>
    %51 = vector.broadcast %49 : vector<8x1xf32> to vector<8x128xf32>
    %52 = vector.broadcast %50 : vector<1x128xf32> to vector<8x128xf32>
    %53 = arith.mulf %51, %52 : vector<8x128xf32>
    %54 = vector.broadcast %48 : vector<1x128xf32> to vector<8x128xf32>
    %55 = arith.addf %54, %53 : vector<8x128xf32>
    %56 = vector.extract_strided_slice %47 {offsets = [0, 1], sizes = [8, 1], strides = [1, 1]} : vector<8x6xf32> to vector<8x1xf32>
    %c1_21 = arith.constant 1 : index
    %c0_22 = arith.constant 0 : index
    %57 = vector.load %arg6[%c1_21, %c0_22] : memref<6x128xf32, #tpu.memory_space<vmem>>, vector<1x128xf32>
    %58 = vector.broadcast %56 : vector<8x1xf32> to vector<8x128xf32>
    %59 = vector.broadcast %57 : vector<1x128xf32> to vector<8x128xf32>
    %60 = arith.mulf %58, %59 : vector<8x128xf32>
    %61 = arith.addf %55, %60 : vector<8x128xf32>
    %62 = vector.extract_strided_slice %47 {offsets = [0, 2], sizes = [8, 1], strides = [1, 1]} : vector<8x6xf32> to vector<8x1xf32>
    %c2_23 = arith.constant 2 : index
    %c0_24 = arith.constant 0 : index
    %63 = vector.load %arg6[%c2_23, %c0_24] : memref<6x128xf32, #tpu.memory_space<vmem>>, vector<1x128xf32>
    %64 = vector.broadcast %62 : vector<8x1xf32> to vector<8x128xf32>
    %65 = vector.broadcast %63 : vector<1x128xf32> to vector<8x128xf32>
    %66 = arith.mulf %64, %65 : vector<8x128xf32>
    %67 = arith.addf %61, %66 : vector<8x128xf32>
    %68 = vector.extract_strided_slice %47 {offsets = [0, 3], sizes = [8, 1], strides = [1, 1]} : vector<8x6xf32> to vector<8x1xf32>
    %c3 = arith.constant 3 : index
    %c0_25 = arith.constant 0 : index
    %69 = vector.load %arg6[%c3, %c0_25] : memref<6x128xf32, #tpu.memory_space<vmem>>, vector<1x128xf32>
    %70 = vector.broadcast %68 : vector<8x1xf32> to vector<8x128xf32>
    %71 = vector.broadcast %69 : vector<1x128xf32> to vector<8x128xf32>
    %72 = arith.mulf %70, %71 : vector<8x128xf32>
    %73 = arith.addf %67, %72 : vector<8x128xf32>
    %74 = vector.extract_strided_slice %47 {offsets = [0, 4], sizes = [8, 1], strides = [1, 1]} : vector<8x6xf32> to vector<8x1xf32>
    %c4 = arith.constant 4 : index
    %c0_26 = arith.constant 0 : index
    %75 = vector.load %arg6[%c4, %c0_26] : memref<6x128xf32, #tpu.memory_space<vmem>>, vector<1x128xf32>
    %76 = vector.broadcast %74 : vector<8x1xf32> to vector<8x128xf32>
    %77 = vector.broadcast %75 : vector<1x128xf32> to vector<8x128xf32>
    %78 = arith.mulf %76, %77 : vector<8x128xf32>
    %79 = arith.addf %73, %78 : vector<8x128xf32>
    %80 = vector.extract_strided_slice %47 {offsets = [0, 5], sizes = [8, 1], strides = [1, 1]} : vector<8x6xf32> to vector<8x1xf32>
    %c5 = arith.constant 5 : index
    %c0_27 = arith.constant 0 : index
    %81 = vector.load %arg6[%c5, %c0_27] : memref<6x128xf32, #tpu.memory_space<vmem>>, vector<1x128xf32>
    %82 = vector.broadcast %80 : vector<8x1xf32> to vector<8x128xf32>
    %83 = vector.broadcast %81 : vector<1x128xf32> to vector<8x128xf32>
    %84 = arith.mulf %82, %83 : vector<8x128xf32>
    %85 = arith.addf %79, %84 : vector<8x128xf32>
    %cst_28 = arith.constant 0.000000e+00 : f32
    %86 = vector.broadcast %cst_28 : f32 to vector<8x128xf32>
    %87 = arith.maximumf %85, %86 : vector<8x128xf32>
    %c0_29 = arith.constant 0 : index
    %c0_30 = arith.constant 0 : index
    %88 = vector.load %arg13[%c0_29, %c0_30] : memref<8x2432xf32, #tpu.memory_space<vmem>>, vector<8x2048xf32>
    tpu.vector_store %arg13[%c0_29, %c0_30], %18 {strides = array<i32>} : memref<8x2432xf32, #tpu.memory_space<vmem>>, vector<8x2048xf32>,
    %c0_31 = arith.constant 0 : index
    %c2048 = arith.constant 2048 : index
    %89 = vector.load %arg13[%c0_31, %c2048] : memref<8x2432xf32, #tpu.memory_space<vmem>>, vector<8x256xf32>
    tpu.vector_store %arg13[%c0_31, %c2048], %35 {strides = array<i32>} : memref<8x2432xf32, #tpu.memory_space<vmem>>, vector<8x256xf32>,
    %c0_32 = arith.constant 0 : index
    %c2304 = arith.constant 2304 : index
    %90 = vector.load %arg13[%c0_32, %c2304] : memref<8x2432xf32, #tpu.memory_space<vmem>>, vector<8x128xf32>
    tpu.vector_store %arg13[%c0_32, %c2304], %87 {strides = array<i32>} : memref<8x2432xf32, #tpu.memory_space<vmem>>, vector<8x128xf32>,
    %c0_33 = arith.constant 0 : index
    %c0_34 = arith.constant 0 : index
    %91 = vector.load %arg13[%c0_33, %c0_34] : memref<8x2432xf32, #tpu.memory_space<vmem>>, vector<8x2432xf32>
    %92 = arith.truncf %91 : vector<8x2432xf32> to vector<8x2432xbf16>
    %c0_35 = arith.constant 0 : index
    %c0_36 = arith.constant 0 : index
    %93 = vector.load %arg8[%c0_35, %c0_36] : memref<2432x768xbf16, #tpu.memory_space<vmem>>, vector<2432x768xbf16>
    %cst_37 = arith.constant dense<0.000000e+00> : vector<8x768xf32>
    %94 = tpu.matmul %92, %93, %cst_37 {dimension_numbers = #tpu.dot_dimension_numbers<[1], [0], [0], [1], [0, 0, 1, 1], [], []>} : vector<8x2432xbf16>, vector<2432x768xbf16>, vector<8x768xf32> -> vector<8x768xf32>
    %c0_38 = arith.constant 0 : index
    %c0_39 = arith.constant 0 : index
    %95 = vector.load %arg9[%c0_38, %c0_39] : memref<1x768xf32, #tpu.memory_space<vmem>>, vector<1x768xf32>
    %96 = vector.broadcast %95 : vector<1x768xf32> to vector<8x768xf32>
    %97 = arith.addf %94, %96 : vector<8x768xf32>
    %cst_40 = arith.constant 0.000000e+00 : f32
    %98 = vector.broadcast %cst_40 : f32 to vector<8x768xf32>
    %99 = arith.maximumf %97, %98 : vector<8x768xf32>
    %100 = arith.truncf %99 : vector<8x768xf32> to vector<8x768xbf16>
    %c0_41 = arith.constant 0 : index
    %c0_42 = arith.constant 0 : index
    %101 = vector.load %arg10[%c0_41, %c0_42] : memref<768x128xbf16, #tpu.memory_space<vmem>>, vector<768x128xbf16>
    %cst_43 = arith.constant dense<0.000000e+00> : vector<8x128xf32>
    %102 = tpu.matmul %100, %101, %cst_43 {dimension_numbers = #tpu.dot_dimension_numbers<[1], [0], [0], [1], [0, 0, 1, 1], [], []>} : vector<8x768xbf16>, vector<768x128xbf16>, vector<8x128xf32> -> vector<8x128xf32>
    %c0_44 = arith.constant 0 : index
    %c0_45 = arith.constant 0 : index
    %103 = vector.load %arg11[%c0_44, %c0_45] : memref<1x128xf32, #tpu.memory_space<vmem>>, vector<1x128xf32>
    %104 = vector.broadcast %103 : vector<1x128xf32> to vector<8x128xf32>
    %105 = arith.addf %102, %104 : vector<8x128xf32>
    %c0_46 = arith.constant 0 : index
    %c0_47 = arith.constant 0 : index
    %106 = vector.load %arg12[%c0_46, %c0_47] : memref<8x128xf32, #tpu.memory_space<vmem>>, vector<8x128xf32>
    tpu.vector_store %arg12[%c0_46, %c0_47], %105 {strides = array<i32>} : memref<8x128xf32, #tpu.memory_space<vmem>>, vector<8x128xf32>,
    return
  }
  func.func @transform_0(%arg0: i32) -> (i32, i32) {
    %c0_i32 = arith.constant 0 : i32
    %c0_i32_0 = arith.constant 0 : i32
    return %arg0, %c0_i32 : i32, i32
  }
  func.func @transform_1(%arg0: i32) -> (i32, i32) {
    %c0_i32 = arith.constant 0 : i32
    %c0_i32_0 = arith.constant 0 : i32
    return %arg0, %c0_i32 : i32, i32
  }
  func.func @transform_2(%arg0: i32) -> (i32, i32) {
    %c0_i32 = arith.constant 0 : i32
    %c0_i32_0 = arith.constant 0 : i32
    return %arg0, %c0_i32 : i32, i32
  }
  func.func @transform_3(%arg0: i32) -> (i32, i32) {
    %c0_i32 = arith.constant 0 : i32
    %c0_i32_0 = arith.constant 0 : i32
    %c0_i32_1 = arith.constant 0 : i32
    return %c0_i32, %c0_i32_0 : i32, i32
  }
  func.func @transform_4(%arg0: i32) -> (i32, i32) {
    %c0_i32 = arith.constant 0 : i32
    %c0_i32_0 = arith.constant 0 : i32
    %c0_i32_1 = arith.constant 0 : i32
    return %c0_i32, %c0_i32_0 : i32, i32
  }
  func.func @transform_5(%arg0: i32) -> (i32, i32) {
    %c0_i32 = arith.constant 0 : i32
    %c0_i32_0 = arith.constant 0 : i32
    %c0_i32_1 = arith.constant 0 : i32
    return %c0_i32, %c0_i32_0 : i32, i32
  }
  func.func @transform_6(%arg0: i32) -> (i32, i32) {
    %c0_i32 = arith.constant 0 : i32
    %c0_i32_0 = arith.constant 0 : i32
    %c0_i32_1 = arith.constant 0 : i32
    return %c0_i32, %c0_i32_0 : i32, i32
  }
  func.func @transform_7(%arg0: i32) -> (i32, i32) {
    %c0_i32 = arith.constant 0 : i32
    %c0_i32_0 = arith.constant 0 : i32
    %c0_i32_1 = arith.constant 0 : i32
    return %c0_i32, %c0_i32_0 : i32, i32
  }
  func.func @transform_8(%arg0: i32) -> (i32, i32) {
    %c0_i32 = arith.constant 0 : i32
    %c0_i32_0 = arith.constant 0 : i32
    %c0_i32_1 = arith.constant 0 : i32
    return %c0_i32, %c0_i32_0 : i32, i32
  }
  func.func @transform_9(%arg0: i32) -> (i32, i32) {
    %c0_i32 = arith.constant 0 : i32
    %c0_i32_0 = arith.constant 0 : i32
    %c0_i32_1 = arith.constant 0 : i32
    return %c0_i32, %c0_i32_0 : i32, i32
  }
  func.func @transform_10(%arg0: i32) -> (i32, i32) {
    %c0_i32 = arith.constant 0 : i32
    %c0_i32_0 = arith.constant 0 : i32
    %c0_i32_1 = arith.constant 0 : i32
    return %c0_i32, %c0_i32_0 : i32, i32
  }
  func.func @transform_11(%arg0: i32) -> (i32, i32) {
    %c0_i32 = arith.constant 0 : i32
    %c0_i32_0 = arith.constant 0 : i32
    return %arg0, %c0_i32 : i32, i32
  }
}

</mosaic_0001>

<llo_original>
// kernel: _lambda_.1
$region0: #{_lambda_.1}
  #allocation0 [shape = 'u32[]', space=smem, size = 0x4, offset = 0x4, fixed_abs, tag = 'smem constant byte address 0x4 - core index']
  #allocation1 [shape = 'u32[144,128]{1,0:T(1,128)}', space=vmem, size = 0x12000, scoped, tag = 'internal scratch']
  #allocation2 [shape = 'f32[8,2432]{1,0:T(8,128)}', space=vmem, size = 0x13000, scoped, tag = 'scratch operand']
  %s0 = inlined_call_operand.vmem [shape: f32[8,3], index: 0, kind: input, shape index: {}]
  %s1 = inlined_call_operand.vmem [shape: f32[8,3], index: 1, kind: input, shape index: {}]
  %s2 = inlined_call_operand.vmem [shape: f32[8,6], index: 2, kind: input, shape index: {}]
  %s3 = inlined_call_operand.hbm [shape: f32[3,2048], index: 3, kind: input, shape index: {}]
  %s4 = inlined_call_operand.hbm [shape: f32[3,256], index: 4, kind: input, shape index: {}]
  %s5 = inlined_call_operand.hbm [shape: f32[6,128], index: 5, kind: input, shape index: {}]
  %s6 = inlined_call_operand.hbm [shape: f32[1,128], index: 6, kind: input, shape index: {}]
  %s7 = inlined_call_operand.hbm [shape: bf16[2432,768], index: 7, kind: input, shape index: {}]
  %s8 = inlined_call_operand.hbm [shape: f32[1,768], index: 8, kind: input, shape index: {}]
  %s9 = inlined_call_operand.hbm [shape: bf16[768,128], index: 9, kind: input, shape index: {}]
  %s10 = inlined_call_operand.hbm [shape: f32[1,128], index: 10, kind: input, shape index: {}]
  %s11 = inlined_call_operand.vmem [shape: f32[8,128], index: 11, kind: output, shape index: {}]
  %s12 = sld [smem:[#allocation0]]
  $region86: #{_lambda_.1} parent=0
    _
  %s14 = ssub.s32 1, %s12
  %s15 = scalar_select 0, %s14, %s12
  $region1: #{_lambda_.1} parent=0
    #allocation3 [shape = 'u8[32768]{0}', space=vmem, size = 0x8000, scoped, tag = 'input window, operand 3, single buffered']
    #allocation4 [shape = 's32[1]{0}', space=sflag, size = 0x4, scoped, tag = 'scoped memory for _lambda_.1']
    #allocation5 [shape = 'u8[4096]{0}', space=vmem, size = 0x1000, scoped, tag = 'input window, operand 4, single buffered']
    #allocation6 [shape = 's32[1]{0}', space=sflag, size = 0x4, scoped, tag = 'scoped memory for _lambda_.1']
    #allocation7 [shape = 'u8[4096]{0}', space=vmem, size = 0x1000, scoped, tag = 'input window, operand 5, single buffered']
    #allocation8 [shape = 'u8[512]{0}', space=vmem, size = 0x400, scoped, tag = 'input window, operand 6, single buffered']
    #allocation9 [shape = 's32[1]{0}', space=sflag, size = 0x4, scoped, tag = 'scoped memory for _lambda_.1']
    #allocation10 [shape = 'u8[3735552]{0}', space=vmem, size = 0x390000, scoped, tag = 'input window, operand 7, single buffered']
    #allocation11 [shape = 'u8[3072]{0}', space=vmem, size = 0xc00, scoped, tag = 'input window, operand 8, single buffered']
    #allocation12 [shape = 's32[1]{0}', space=sflag, size = 0x4, scoped, tag = 'scoped memory for _lambda_.1']
    #allocation13 [shape = 'u8[196608]{0}', space=vmem, size = 0x30000, scoped, tag = 'input window, operand 9, single buffered']
    #allocation14 [shape = 'u8[512]{0}', space=vmem, size = 0x400, scoped, tag = 'input window, operand 10, single buffered']
    #allocation15 [shape = 's32[1]{0}', space=sflag, size = 0x4, scoped, tag = 'scoped memory for _lambda_.1']
    %16 = vsyncpa [#allocation4], 0
    %17 = vsyncpa [#allocation6], 0
    %18 = vsyncpa [#allocation9], 0
    %19 = vsyncpa [#allocation12], 0
    %20 = vsyncpa [#allocation15], 0
    // Predicated region
    $region2: #{_lambda_.1} parent=1 // pred_check
      _
    $region3: #{_lambda_.1} parent=1 // pred_check_branch
      %22 = sbr.rel (0) target = $region5
    $region4: #{_lambda_.1} parent=1 // pred_region
      _
    $region5: #{_lambda_.1} parent=1 // pred_fallthru
      _
    // Predicated region
    $region6: #{_lambda_.1} parent=1 // pred_check
      _
    $region7: #{_lambda_.1} parent=1 // pred_check_branch
      %24 = sbr.rel (0) target = $region9
    $region8: #{_lambda_.1} parent=1 // pred_region
      _
    $region9: #{_lambda_.1} parent=1 // pred_fallthru
      _
    // Predicated region
    $region10: #{_lambda_.1} parent=1 // pred_check
      _
    $region11: #{_lambda_.1} parent=1 // pred_check_branch
      %26 = sbr.rel (0) target = $region13
    $region12: #{_lambda_.1} parent=1 // pred_region
      _
    $region13: #{_lambda_.1} parent=1 // pred_fallthru
      _
    // Predicated region
    $region14: #{_lambda_.1} parent=1 // pred_check
      _
    $region15: #{_lambda_.1} parent=1 // pred_check_branch
      %28 = sbr.rel (0) target = $region17
    $region16: #{_lambda_.1} parent=1 // pred_region
      %s30 = ssub.s32 1024, 1024
      %31 = vsyncadd [#allocation4], %s30
      %s33 = sshll.u32 [#allocation3], 4
      %s34 = int_to_ptr.vmem [resolvable:$true] %s33
      %36 = dma.hbm_to_vmem [thread:$0]  %s3, 1024, %s34, [#allocation4]
    $region17: #{_lambda_.1} parent=1 // pred_fallthru
      _
    // Predicated region
    $region18: #{_lambda_.1} parent=1 // pred_check
      _
    $region19: #{_lambda_.1} parent=1 // pred_check_branch
      %38 = sbr.rel (0) target = $region21
    $region20: #{_lambda_.1} parent=1 // pred_region
      %s40 = ssub.s32 128, 128
      %41 = vsyncadd [#allocation6], %s40
      %s43 = sshll.u32 [#allocation5], 4
      %s44 = int_to_ptr.vmem [resolvable:$true] %s43
      %46 = dma.hbm_to_vmem [thread:$0]  %s4, 128, %s44, [#allocation6]
    $region21: #{_lambda_.1} parent=1 // pred_fallthru
      _
    // Predicated region
    $region22: #{_lambda_.1} parent=1 // pred_check
      _
    $region23: #{_lambda_.1} parent=1 // pred_check_branch
      %48 = sbr.rel (0) target = $region25
    $region24: #{_lambda_.1} parent=1 // pred_region
      %s50 = ssub.s32 128, 128
      %51 = vsyncadd [#allocation6], %s50
      %s53 = sshll.u32 [#allocation7], 4
      %s54 = int_to_ptr.vmem [resolvable:$true] %s53
      %56 = dma.hbm_to_vmem [thread:$0]  %s5, 128, %s54, [#allocation6]
    $region25: #{_lambda_.1} parent=1 // pred_fallthru
      _
    // Predicated region
    $region26: #{_lambda_.1} parent=1 // pred_check
      _
    $region27: #{_lambda_.1} parent=1 // pred_check_branch
      %58 = sbr.rel (0) target = $region29
    $region28: #{_lambda_.1} parent=1 // pred_region
      %s60 = ssub.s32 16, 16
      %61 = vsyncadd [#allocation9], %s60
      %s63 = sshll.u32 [#allocation8], 4
      %s64 = int_to_ptr.vmem [resolvable:$true] %s63
      %66 = dma.hbm_to_vmem [thread:$0]  %s6, 16, %s64, [#allocation9]
    $region29: #{_lambda_.1} parent=1 // pred_fallthru
      _
    // Predicated region
    $region30: #{_lambda_.1} parent=1 // pred_check
      _
    $region31: #{_lambda_.1} parent=1 // pred_check_branch
      %68 = sbr.rel (0) target = $region33
    $region32: #{_lambda_.1} parent=1 // pred_region
      %s70 = ssub.s32 116736, 116736
      %71 = vsyncadd [#allocation9], %s70
      %s72 = sshll.u32 [#allocation10], 4
      %s73 = int_to_ptr.vmem [resolvable:$true] %s72
      %78 = dma.hbm_to_vmem [thread:$0]  %s7, 116736, %s73, [#allocation9], 384, 384, 24
    $region33: #{_lambda_.1} parent=1 // pred_fallthru
      _
    // Predicated region
    $region34: #{_lambda_.1} parent=1 // pred_check
      _
    $region35: #{_lambda_.1} parent=1 // pred_check_branch
      %80 = sbr.rel (0) target = $region37
    $region36: #{_lambda_.1} parent=1 // pred_region
      %s82 = ssub.s32 96, 96
      %83 = vsyncadd [#allocation12], %s82
      %s85 = sshll.u32 [#allocation11], 4
      %s86 = int_to_ptr.vmem [resolvable:$true] %s85
      %88 = dma.hbm_to_vmem [thread:$0]  %s8, 96, %s86, [#allocation12]
    $region37: #{_lambda_.1} parent=1 // pred_fallthru
      _
    // Predicated region
    $region38: #{_lambda_.1} parent=1 // pred_check
      _
    $region39: #{_lambda_.1} parent=1 // pred_check_branch
      %90 = sbr.rel (0) target = $region41
    $region40: #{_lambda_.1} parent=1 // pred_region
      %s92 = ssub.s32 6144, 6144
      %93 = vsyncadd [#allocation12], %s92
      %s94 = sshll.u32 [#allocation13], 4
      %s95 = int_to_ptr.vmem [resolvable:$true] %s94
      %100 = dma.hbm_to_vmem [thread:$0]  %s9, 6144, %s95, [#allocation12], 64, 64, 4
    $region41: #{_lambda_.1} parent=1 // pred_fallthru
      _
    // Predicated region
    $region42: #{_lambda_.1} parent=1 // pred_check
      _
    $region43: #{_lambda_.1} parent=1 // pred_check_branch
      %102 = sbr.rel (0) target = $region45
    $region44: #{_lambda_.1} parent=1 // pred_region
      %s104 = ssub.s32 16, 16
      %105 = vsyncadd [#allocation15], %s104
      %s107 = sshll.u32 [#allocation14], 4
      %s108 = int_to_ptr.vmem [resolvable:$true] %s107
      %110 = dma.hbm_to_vmem [thread:$0]  %s10, 16, %s108, [#allocation15]
    $region45: #{_lambda_.1} parent=1 // pred_fallthru
      _
    // Predicated region
    $region46: #{_lambda_.1} parent=1 // pred_check
      _
    $region47: #{_lambda_.1} parent=1 // pred_check_branch
      %112 = sbr.rel (0) target = $region49
    $region48: #{_lambda_.1} parent=1 // pred_region
      %113 = dma.done [#allocation4], 1024
    $region49: #{_lambda_.1} parent=1 // pred_fallthru
      _
    // Predicated region
    $region50: #{_lambda_.1} parent=1 // pred_check
      _
    $region51: #{_lambda_.1} parent=1 // pred_check_branch
      %115 = sbr.rel (0) target = $region53
    $region52: #{_lambda_.1} parent=1 // pred_region
      %116 = dma.done [#allocation6], 128
    $region53: #{_lambda_.1} parent=1 // pred_fallthru
      _
    // Predicated region
    $region54: #{_lambda_.1} parent=1 // pred_check
      _
    $region55: #{_lambda_.1} parent=1 // pred_check_branch
      %118 = sbr.rel (0) target = $region57
    $region56: #{_lambda_.1} parent=1 // pred_region
      %119 = dma.done [#allocation6], 128
    $region57: #{_lambda_.1} parent=1 // pred_fallthru
      _
    // Predicated region
    $region58: #{_lambda_.1} parent=1 // pred_check
      _
    $region59: #{_lambda_.1} parent=1 // pred_check_branch
      %121 = sbr.rel (0) target = $region61
    $region60: #{_lambda_.1} parent=1 // pred_region
      %122 = dma.done [#allocation9], 16
    $region61: #{_lambda_.1} parent=1 // pred_fallthru
      _
    // Predicated region
    $region62: #{_lambda_.1} parent=1 // pred_check
      _
    $region63: #{_lambda_.1} parent=1 // pred_check_branch
      %124 = sbr.rel (0) target = $region65
    $region64: #{_lambda_.1} parent=1 // pred_region
      %125 = dma.done [#allocation9], 116736
    $region65: #{_lambda_.1} parent=1 // pred_fallthru
      _
    // Predicated region
    $region66: #{_lambda_.1} parent=1 // pred_check
      _
    $region67: #{_lambda_.1} parent=1 // pred_check_branch
      %127 = sbr.rel (0) target = $region69
    $region68: #{_lambda_.1} parent=1 // pred_region
      %128 = dma.done [#allocation12], 96
    $region69: #{_lambda_.1} parent=1 // pred_fallthru
      _
    // Predicated region
    $region70: #{_lambda_.1} parent=1 // pred_check
      _
    $region71: #{_lambda_.1} parent=1 // pred_check_branch
      %130 = sbr.rel (0) target = $region73
    $region72: #{_lambda_.1} parent=1 // pred_region
      %131 = dma.done [#allocation12], 6144
    $region73: #{_lambda_.1} parent=1 // pred_fallthru
      _
    // Predicated region
    $region74: #{_lambda_.1} parent=1 // pred_check
      _
    $region75: #{_lambda_.1} parent=1 // pred_check_branch
      %133 = sbr.rel (0) target = $region77
    $region76: #{_lambda_.1} parent=1 // pred_region
      %134 = dma.done [#allocation15], 16
    $region77: #{_lambda_.1} parent=1 // pred_fallthru
      _
    %v136 = vld [vmem:[%s0] sm:$0xff]
    %v137 = vld [vmem:[%s1] sm:$0xff]
    %v138 = vld [vmem:[#allocation3] ss:$4 sm:$0xff]
    %s139 = scalar_lea.vmem [#allocation3], 32
    %v140 = vld [vmem:[%s139] ss:$4 sm:$0xff]
    %142 = vset.pattern.permute.xlu0 0
    %143 = vperm.xlu0 %142, %v136
    %v144 = vpop.permute.xlu0 %143
    %v148 = vlaneseq
    %v149 = vshrl.u32 %v148, 7
    %v150 = vsub.s32 0, %v149
    %v151 = vrot.slane %v138, %v150
    %v152 = vlaneseq
    %v153 = vshrl.u32 %v152, 7
    %v154 = vsub.s32 1, %v153
    %v155 = vrot.slane %v138, %v154
    %v156 = vlaneseq
    %v157 = vshrl.u32 %v156, 7
    %v158 = vsub.s32 2, %v157
    %v159 = vrot.slane %v138, %v158
    %v160 = vlaneseq
    %v161 = vshrl.u32 %v160, 7
    %v162 = vsub.s32 3, %v161
    %v163 = vrot.slane %v138, %v162
    %v164 = vlaneseq
    %v165 = vshrl.u32 %v164, 7
    %v166 = vsub.s32 4, %v165
    %v167 = vrot.slane %v138, %v166
    %v168 = vlaneseq
    %v169 = vshrl.u32 %v168, 7
    %v170 = vsub.s32 5, %v169
    %v171 = vrot.slane %v138, %v170
    %v172 = vlaneseq
    %v173 = vshrl.u32 %v172, 7
    %v174 = vsub.s32 6, %v173
    %v175 = vrot.slane %v138, %v174
    %v176 = vlaneseq
    %v177 = vshrl.u32 %v176, 7
    %v178 = vsub.s32 7, %v177
    %v179 = vrot.slane %v138, %v178
    %v180 = vlaneseq
    %v181 = vshrl.u32 %v180, 7
    %v182 = vsub.s32 0, %v181
    %v183 = vrot.slane %v140, %v182
    %v184 = vlaneseq
    %v185 = vshrl.u32 %v184, 7
    %v186 = vsub.s32 1, %v185
    %v187 = vrot.slane %v140, %v186
    %v188 = vlaneseq
    %v189 = vshrl.u32 %v188, 7
    %v190 = vsub.s32 2, %v189
    %v191 = vrot.slane %v140, %v190
    %v192 = vlaneseq
    %v193 = vshrl.u32 %v192, 7
    %v194 = vsub.s32 3, %v193
    %v195 = vrot.slane %v140, %v194
    %v196 = vlaneseq
    %v197 = vshrl.u32 %v196, 7
    %v198 = vsub.s32 4, %v197
    %v199 = vrot.slane %v140, %v198
    %v200 = vlaneseq
    %v201 = vshrl.u32 %v200, 7
    %v202 = vsub.s32 5, %v201
    %v203 = vrot.slane %v140, %v202
    %v204 = vlaneseq
    %v205 = vshrl.u32 %v204, 7
    %v206 = vsub.s32 6, %v205
    %v207 = vrot.slane %v140, %v206
    %v208 = vlaneseq
    %v209 = vshrl.u32 %v208, 7
    %v210 = vsub.s32 7, %v209
    %v211 = vrot.slane %v140, %v210
    %v228 = vmul.f32 %v144, %v151
    %v229 = vmul.f32 %v144, %v155
    %v230 = vmul.f32 %v144, %v159
    %v231 = vmul.f32 %v144, %v163
    %v232 = vmul.f32 %v144, %v167
    %v233 = vmul.f32 %v144, %v171
    %v234 = vmul.f32 %v144, %v175
    %v235 = vmul.f32 %v144, %v179
    %v236 = vmul.f32 %v144, %v183
    %v237 = vmul.f32 %v144, %v187
    %v238 = vmul.f32 %v144, %v191
    %v239 = vmul.f32 %v144, %v195
    %v240 = vmul.f32 %v144, %v199
    %v241 = vmul.f32 %v144, %v203
    %v242 = vmul.f32 %v144, %v207
    %v243 = vmul.f32 %v144, %v211
    %s244 = scalar_lea.vmem [#allocation3], 1
    %v245 = vld [vmem:[%s244] ss:$4 sm:$0xff]
    %s246 = scalar_lea.vmem [#allocation3], 33
    %v247 = vld [vmem:[%s246] ss:$4 sm:$0xff]
    %248 = vset.pattern.permute.xlu0 1
    %249 = vperm.xlu0 %248, %v136
    %v250 = vpop.permute.xlu0 %249
    %v254 = vlaneseq
    %v255 = vshrl.u32 %v254, 7
    %v256 = vsub.s32 0, %v255
    %v257 = vrot.slane %v245, %v256
    %v258 = vlaneseq
    %v259 = vshrl.u32 %v258, 7
    %v260 = vsub.s32 1, %v259
    %v261 = vrot.slane %v245, %v260
    %v262 = vlaneseq
    %v263 = vshrl.u32 %v262, 7
    %v264 = vsub.s32 2, %v263
    %v265 = vrot.slane %v245, %v264
    %v266 = vlaneseq
    %v267 = vshrl.u32 %v266, 7
    %v268 = vsub.s32 3, %v267
    %v269 = vrot.slane %v245, %v268
    %v270 = vlaneseq
    %v271 = vshrl.u32 %v270, 7
    %v272 = vsub.s32 4, %v271
    %v273 = vrot.slane %v245, %v272
    %v274 = vlaneseq
    %v275 = vshrl.u32 %v274, 7
    %v276 = vsub.s32 5, %v275
    %v277 = vrot.slane %v245, %v276
    %v278 = vlaneseq
    %v279 = vshrl.u32 %v278, 7
    %v280 = vsub.s32 6, %v279
    %v281 = vrot.slane %v245, %v280
    %v282 = vlaneseq
    %v283 = vshrl.u32 %v282, 7
    %v284 = vsub.s32 7, %v283
    %v285 = vrot.slane %v245, %v284
    %v286 = vlaneseq
    %v287 = vshrl.u32 %v286, 7
    %v288 = vsub.s32 0, %v287
    %v289 = vrot.slane %v247, %v288
    %v290 = vlaneseq
    %v291 = vshrl.u32 %v290, 7
    %v292 = vsub.s32 1, %v291
    %v293 = vrot.slane %v247, %v292
    %v294 = vlaneseq
    %v295 = vshrl.u32 %v294, 7
    %v296 = vsub.s32 2, %v295
    %v297 = vrot.slane %v247, %v296
    %v298 = vlaneseq
    %v299 = vshrl.u32 %v298, 7
    %v300 = vsub.s32 3, %v299
    %v301 = vrot.slane %v247, %v300
    %v302 = vlaneseq
    %v303 = vshrl.u32 %v302, 7
    %v304 = vsub.s32 4, %v303
    %v305 = vrot.slane %v247, %v304
    %v306 = vlaneseq
    %v307 = vshrl.u32 %v306, 7
    %v308 = vsub.s32 5, %v307
    %v309 = vrot.slane %v247, %v308
    %v310 = vlaneseq
    %v311 = vshrl.u32 %v310, 7
    %v312 = vsub.s32 6, %v311
    %v313 = vrot.slane %v247, %v312
    %v314 = vlaneseq
    %v315 = vshrl.u32 %v314, 7
    %v316 = vsub.s32 7, %v315
    %v317 = vrot.slane %v247, %v316
    %v334 = vmul.f32 %v250, %v257
    %v335 = vmul.f32 %v250, %v261
    %v336 = vmul.f32 %v250, %v265
    %v337 = vmul.f32 %v250, %v269
    %v338 = vmul.f32 %v250, %v273
    %v339 = vmul.f32 %v250, %v277
    %v340 = vmul.f32 %v250, %v281
    %v341 = vmul.f32 %v250, %v285
    %v342 = vmul.f32 %v250, %v289
    %v343 = vmul.f32 %v250, %v293
    %v344 = vmul.f32 %v250, %v297
    %v345 = vmul.f32 %v250, %v301
    %v346 = vmul.f32 %v250, %v305
    %v347 = vmul.f32 %v250, %v309
    %v348 = vmul.f32 %v250, %v313
    %v349 = vmul.f32 %v250, %v317
    %v350 = vadd.f32 %v228, %v334
    %v351 = vadd.f32 %v229, %v335
    %v352 = vadd.f32 %v230, %v336
    %v353 = vadd.f32 %v231, %v337
    %v354 = vadd.f32 %v232, %v338
    %v355 = vadd.f32 %v233, %v339
    %v356 = vadd.f32 %v234, %v340
    %v357 = vadd.f32 %v235, %v341
    %v358 = vadd.f32 %v236, %v342
    %v359 = vadd.f32 %v237, %v343
    %v360 = vadd.f32 %v238, %v344
    %v361 = vadd.f32 %v239, %v345
    %v362 = vadd.f32 %v240, %v346
    %v363 = vadd.f32 %v241, %v347
    %v364 = vadd.f32 %v242, %v348
    %v365 = vadd.f32 %v243, %v349
    %s366 = scalar_lea.vmem [#allocation3], 2
    %v367 = vld [vmem:[%s366] ss:$4 sm:$0xff]
    %s368 = scalar_lea.vmem [#allocation3], 34
    %v369 = vld [vmem:[%s368] ss:$4 sm:$0xff]
    %370 = vset.pattern.permute.xlu0 2
    %371 = vperm.xlu0 %370, %v136
    %v372 = vpop.permute.xlu0 %371
    %v376 = vlaneseq
    %v377 = vshrl.u32 %v376, 7
    %v378 = vsub.s32 0, %v377
    %v379 = vrot.slane %v367, %v378
    %v380 = vlaneseq
    %v381 = vshrl.u32 %v380, 7
    %v382 = vsub.s32 1, %v381
    %v383 = vrot.slane %v367, %v382
    %v384 = vlaneseq
    %v385 = vshrl.u32 %v384, 7
    %v386 = vsub.s32 2, %v385
    %v387 = vrot.slane %v367, %v386
    %v388 = vlaneseq
    %v389 = vshrl.u32 %v388, 7
    %v390 = vsub.s32 3, %v389
    %v391 = vrot.slane %v367, %v390
    %v392 = vlaneseq
    %v393 = vshrl.u32 %v392, 7
    %v394 = vsub.s32 4, %v393
    %v395 = vrot.slane %v367, %v394
    %v396 = vlaneseq
    %v397 = vshrl.u32 %v396, 7
    %v398 = vsub.s32 5, %v397
    %v399 = vrot.slane %v367, %v398
    %v400 = vlaneseq
    %v401 = vshrl.u32 %v400, 7
    %v402 = vsub.s32 6, %v401
    %v403 = vrot.slane %v367, %v402
    %v404 = vlaneseq
    %v405 = vshrl.u32 %v404, 7
    %v406 = vsub.s32 7, %v405
    %v407 = vrot.slane %v367, %v406
    %v408 = vlaneseq
    %v409 = vshrl.u32 %v408, 7
    %v410 = vsub.s32 0, %v409
    %v411 = vrot.slane %v369, %v410
    %v412 = vlaneseq
    %v413 = vshrl.u32 %v412, 7
    %v414 = vsub.s32 1, %v413
    %v415 = vrot.slane %v369, %v414
    %v416 = vlaneseq
    %v417 = vshrl.u32 %v416, 7
    %v418 = vsub.s32 2, %v417
    %v419 = vrot.slane %v369, %v418
    %v420 = vlaneseq
    %v421 = vshrl.u32 %v420, 7
    %v422 = vsub.s32 3, %v421
    %v423 = vrot.slane %v369, %v422
    %v424 = vlaneseq
    %v425 = vshrl.u32 %v424, 7
    %v426 = vsub.s32 4, %v425
    %v427 = vrot.slane %v369, %v426
    %v428 = vlaneseq
    %v429 = vshrl.u32 %v428, 7
    %v430 = vsub.s32 5, %v429
    %v431 = vrot.slane %v369, %v430
    %v432 = vlaneseq
    %v433 = vshrl.u32 %v432, 7
    %v434 = vsub.s32 6, %v433
    %v435 = vrot.slane %v369, %v434
    %v436 = vlaneseq
    %v437 = vshrl.u32 %v436, 7
    %v438 = vsub.s32 7, %v437
    %v439 = vrot.slane %v369, %v438
    %v456 = vmul.f32 %v372, %v379
    %v457 = vmul.f32 %v372, %v383
    %v458 = vmul.f32 %v372, %v387
    %v459 = vmul.f32 %v372, %v391
    %v460 = vmul.f32 %v372, %v395
    %v461 = vmul.f32 %v372, %v399
    %v462 = vmul.f32 %v372, %v403
    %v463 = vmul.f32 %v372, %v407
    %v464 = vmul.f32 %v372, %v411
    %v465 = vmul.f32 %v372, %v415
    %v466 = vmul.f32 %v372, %v419
    %v467 = vmul.f32 %v372, %v423
    %v468 = vmul.f32 %v372, %v427
    %v469 = vmul.f32 %v372, %v431
    %v470 = vmul.f32 %v372, %v435
    %v471 = vmul.f32 %v372, %v439
    %v472 = vadd.f32 %v350, %v456
    %v473 = vadd.f32 %v351, %v457
    %v474 = vadd.f32 %v352, %v458
    %v475 = vadd.f32 %v353, %v459
    %v476 = vadd.f32 %v354, %v460
    %v477 = vadd.f32 %v355, %v461
    %v478 = vadd.f32 %v356, %v462
    %v479 = vadd.f32 %v357, %v463
    %v480 = vadd.f32 %v358, %v464
    %v481 = vadd.f32 %v359, %v465
    %v482 = vadd.f32 %v360, %v466
    %v483 = vadd.f32 %v361, %v467
    %v484 = vadd.f32 %v362, %v468
    %v485 = vadd.f32 %v363, %v469
    %v486 = vadd.f32 %v364, %v470
    %v487 = vadd.f32 %v365, %v471
    %v488 = vld [vmem:[#allocation5] ss:$4 sm:$0x3]
    %490 = vset.pattern.permute.xlu0 0
    %491 = vperm.xlu0 %490, %v137
    %v492 = vpop.permute.xlu0 %491
    %v495 = vlaneseq
    %v496 = vshrl.u32 %v495, 7
    %v497 = vsub.s32 0, %v496
    %v498 = vrot.slane %v488, %v497
    %v499 = vlaneseq
    %v500 = vshrl.u32 %v499, 7
    %v501 = vsub.s32 1, %v500
    %v502 = vrot.slane %v488, %v501
    %v505 = vmul.f32 %v492, %v498
    %v506 = vmul.f32 %v492, %v502
    %s507 = scalar_lea.vmem [#allocation5], 1
    %v508 = vld [vmem:[%s507] ss:$4 sm:$0x3]
    %509 = vset.pattern.permute.xlu0 1
    %510 = vperm.xlu0 %509, %v137
    %v511 = vpop.permute.xlu0 %510
    %v514 = vlaneseq
    %v515 = vshrl.u32 %v514, 7
    %v516 = vsub.s32 0, %v515
    %v517 = vrot.slane %v508, %v516
    %v518 = vlaneseq
    %v519 = vshrl.u32 %v518, 7
    %v520 = vsub.s32 1, %v519
    %v521 = vrot.slane %v508, %v520
    %v524 = vmul.f32 %v511, %v517
    %v525 = vmul.f32 %v511, %v521
    %v526 = vadd.f32 %v505, %v524
    %v527 = vadd.f32 %v506, %v525
    %s528 = scalar_lea.vmem [#allocation5], 2
    %v529 = vld [vmem:[%s528] ss:$4 sm:$0x3]
    %530 = vset.pattern.permute.xlu0 2
    %531 = vperm.xlu0 %530, %v137
    %v532 = vpop.permute.xlu0 %531
    %v535 = vlaneseq
    %v536 = vshrl.u32 %v535, 7
    %v537 = vsub.s32 0, %v536
    %v538 = vrot.slane %v529, %v537
    %v539 = vlaneseq
    %v540 = vshrl.u32 %v539, 7
    %v541 = vsub.s32 1, %v540
    %v542 = vrot.slane %v529, %v541
    %v545 = vmul.f32 %v532, %v538
    %v546 = vmul.f32 %v532, %v542
    %v547 = vadd.f32 %v526, %v545
    %v548 = vadd.f32 %v527, %v546
    %v549 = vld [vmem:[%s2] sm:$0xff]
    %v550 = vmul.f32 %v549, 0.5
    %vm551 = vcmask 48128
    %v552 = vsel %vm551, %v550, -inf
    %553 = vmax.xlane.f32.xlu0 %v552
    %v554 = vpop.xlane.xlu0 %553
    %v555 = vsub.f32 %v550, %v554
    %v556 = vmul.f32 %v555, 1.442695
    %v557 = vpow.pop %v556
    %v558 = vsel %vm551, %v557, 0.0
    %559 = vadd.xlane.f32.xlu0 %v558
    %v560 = vpop.xlane.xlu0 %559
    %v561 = vrcp.pop %v560
    %v562 = vmul.f32 %v557, %v561
    %v563 = vld [vmem:[#allocation8] sm:$0x1]
    %v564 = vld [vmem:[#allocation7] sm:$0x1]
    %566 = vset.pattern.permute.xlu0 0
    %567 = vperm.xlu0 %566, %v562
    %v568 = vpop.permute.xlu0 %567
    %v570 = vlaneseq
    %v571 = vshrl.u32 %v570, 7
    %v572 = vsub.s32 0, %v571
    %v573 = vrot.slane %v564, %v572
    %v574 = vmul.f32 %v568, %v573
    %v576 = vlaneseq
    %v577 = vshrl.u32 %v576, 7
    %v578 = vsub.s32 0, %v577
    %v579 = vrot.slane %v563, %v578
    %v581 = vadd.f32 %v579, %v574
    %v582 = vld [vmem:[#allocation7 + $0x1] sm:$0x1]
    %583 = vset.pattern.permute.xlu0 1
    %584 = vperm.xlu0 %583, %v562
    %v585 = vpop.permute.xlu0 %584
    %v587 = vlaneseq
    %v588 = vshrl.u32 %v587, 7
    %v589 = vsub.s32 0, %v588
    %v590 = vrot.slane %v582, %v589
    %v591 = vmul.f32 %v585, %v590
    %v592 = vadd.f32 %v581, %v591
    %v593 = vld [vmem:[#allocation7 + $0x2] sm:$0x1]
    %594 = vset.pattern.permute.xlu0 2
    %595 = vperm.xlu0 %594, %v562
    %v596 = vpop.permute.xlu0 %595
    %v598 = vlaneseq
    %v599 = vshrl.u32 %v598, 7
    %v600 = vsub.s32 0, %v599
    %v601 = vrot.slane %v593, %v600
    %v602 = vmul.f32 %v596, %v601
    %v603 = vadd.f32 %v592, %v602
    %v604 = vld [vmem:[#allocation7 + $0x3] sm:$0x1]
    %605 = vset.pattern.permute.xlu0 3
    %606 = vperm.xlu0 %605, %v562
    %v607 = vpop.permute.xlu0 %606
    %v609 = vlaneseq
    %v610 = vshrl.u32 %v609, 7
    %v611 = vsub.s32 0, %v610
    %v612 = vrot.slane %v604, %v611
    %v613 = vmul.f32 %v607, %v612
    %v614 = vadd.f32 %v603, %v613
    %v615 = vld [vmem:[#allocation7 + $0x4] sm:$0x1]
    %616 = vset.pattern.permute.xlu0 4
    %617 = vperm.xlu0 %616, %v562
    %v618 = vpop.permute.xlu0 %617
    %v620 = vlaneseq
    %v621 = vshrl.u32 %v620, 7
    %v622 = vsub.s32 0, %v621
    %v623 = vrot.slane %v615, %v622
    %v624 = vmul.f32 %v618, %v623
    %v625 = vadd.f32 %v614, %v624
    %v626 = vld [vmem:[#allocation7 + $0x5] sm:$0x1]
    %627 = vset.pattern.permute.xlu0 5
    %628 = vperm.xlu0 %627, %v562
    %v629 = vpop.permute.xlu0 %628
    %v631 = vlaneseq
    %v632 = vshrl.u32 %v631, 7
    %v633 = vsub.s32 0, %v632
    %v634 = vrot.slane %v626, %v633
    %v635 = vmul.f32 %v629, %v634
    %v636 = vadd.f32 %v625, %v635
    %v637 = vmax.f32 %v636, 0.0
    %638 = vst [vmem:[#allocation2] sm:$0xff] %v472
    %639 = vst [vmem:[#allocation2 + $0x8] sm:$0xff] %v473
    %640 = vst [vmem:[#allocation2 + $0x10] sm:$0xff] %v474
    %641 = vst [vmem:[#allocation2 + $0x18] sm:$0xff] %v475
    %642 = vst [vmem:[#allocation2 + $0x20] sm:$0xff] %v476
    %643 = vst [vmem:[#allocation2 + $0x28] sm:$0xff] %v477
    %644 = vst [vmem:[#allocation2 + $0x30] sm:$0xff] %v478
    %645 = vst [vmem:[#allocation2 + $0x38] sm:$0xff] %v479
    %646 = vst [vmem:[#allocation2 + $0x40] sm:$0xff] %v480
    %647 = vst [vmem:[#allocation2 + $0x48] sm:$0xff] %v481
    %648 = vst [vmem:[#allocation2 + $0x50] sm:$0xff] %v482
    %649 = vst [vmem:[#allocation2 + $0x58] sm:$0xff] %v483
    %650 = vst [vmem:[#allocation2 + $0x60] sm:$0xff] %v484
    %651 = vst [vmem:[#allocation2 + $0x68] sm:$0xff] %v485
    %652 = vst [vmem:[#allocation2 + $0x70] sm:$0xff] %v486
    %653 = vst [vmem:[#allocation2 + $0x78] sm:$0xff] %v487
    %654 = vst [vmem:[#allocation2 + $0x80] sm:$0xff] %v547
    %655 = vst [vmem:[#allocation2 + $0x88] sm:$0xff] %v548
    %656 = vst [vmem:[#allocation2 + $0x90] sm:$0xff] %v637
    %v657 = vld [vmem:[#allocation2] sm:$0xff]
    %v658 = vld [vmem:[#allocation2 + $0x8] sm:$0xff]
    %v659 = vld [vmem:[#allocation2 + $0x10] sm:$0xff]
    %v660 = vld [vmem:[#allocation2 + $0x18] sm:$0xff]
    %v661 = vld [vmem:[#allocation2 + $0x20] sm:$0xff]
    %v662 = vld [vmem:[#allocation2 + $0x28] sm:$0xff]
    %v663 = vld [vmem:[#allocation2 + $0x30] sm:$0xff]
    %v664 = vld [vmem:[#allocation2 + $0x38] sm:$0xff]
    %v665 = vld [vmem:[#allocation2 + $0x40] sm:$0xff]
    %v666 = vld [vmem:[#allocation2 + $0x48] sm:$0xff]
    %v667 = vld [vmem:[#allocation2 + $0x50] sm:$0xff]
    %v668 = vld [vmem:[#allocation2 + $0x58] sm:$0xff]
    %v669 = vld [vmem:[#allocation2 + $0x60] sm:$0xff]
    %v670 = vld [vmem:[#allocation2 + $0x68] sm:$0xff]
    %v671 = vld [vmem:[#allocation2 + $0x70] sm:$0xff]
    %v672 = vld [vmem:[#allocation2 + $0x78] sm:$0xff]
    %v673 = vld [vmem:[#allocation2 + $0x80] sm:$0xff]
    %v674 = vld [vmem:[#allocation2 + $0x88] sm:$0xff]
    %v675 = vld [vmem:[#allocation2 + $0x90] sm:$0xff]
    %v676 = vpack.c.bf16 %v657, %v657
    %v677 = vpack.c.bf16 %v658, %v658
    %v678 = vpack.c.bf16 %v659, %v659
    %v679 = vpack.c.bf16 %v660, %v660
    %v680 = vpack.c.bf16 %v661, %v661
    %v681 = vpack.c.bf16 %v662, %v662
    %v682 = vpack.c.bf16 %v663, %v663
    %v683 = vpack.c.bf16 %v664, %v664
    %v684 = vpack.c.bf16 %v665, %v665
    %v685 = vpack.c.bf16 %v666, %v666
    %v686 = vpack.c.bf16 %v667, %v667
    %v687 = vpack.c.bf16 %v668, %v668
    %v688 = vpack.c.bf16 %v669, %v669
    %v689 = vpack.c.bf16 %v670, %v670
    %v690 = vpack.c.bf16 %v671, %v671
    %v691 = vpack.c.bf16 %v672, %v672
    %v692 = vpack.c.bf16 %v673, %v673
    %v693 = vpack.c.bf16 %v674, %v674
    %v694 = vpack.c.bf16 %v675, %v675
    %v695 = vld [vmem:[#allocation10] sm:$0xff]
    %v696 = vld [vmem:[#allocation10 + $0x8] sm:$0xff]
    %v697 = vld [vmem:[#allocation10 + $0x10] sm:$0xff]
    %v698 = vld [vmem:[#allocation10 + $0x18] sm:$0xff]
    %v699 = vld [vmem:[#allocation10 + $0x20] sm:$0xff]
    %v700 = vld [vmem:[#allocation10 + $0x28] sm:$0xff]
    %v701 = vld [vmem:[#allocation10 + $0x30] sm:$0xff]
    %v702 = vld [vmem:[#allocation10 + $0x38] sm:$0xff]
    %v703 = vld [vmem:[#allocation10 + $0x40] sm:$0xff]
    %v704 = vld [vmem:[#allocation10 + $0x48] sm:$0xff]
    %v705 = vld [vmem:[#allocation10 + $0x50] sm:$0xff]
    %v706 = vld [vmem:[#allocation10 + $0x58] sm:$0xff]
    %v707 = vld [vmem:[#allocation10 + $0x60] sm:$0xff]
    %v708 = vld [vmem:[#allocation10 + $0x68] sm:$0xff]
    %v709 = vld [vmem:[#allocation10 + $0x70] sm:$0xff]
    %v710 = vld [vmem:[#allocation10 + $0x78] sm:$0xff]
    %v711 = vld [vmem:[#allocation10 + $0x80] sm:$0xff]
    %v712 = vld [vmem:[#allocation10 + $0x88] sm:$0xff]
    %v713 = vld [vmem:[#allocation10 + $0x90] sm:$0xff]
    %v714 = vld [vmem:[#allocation10 + $0x98] sm:$0xff]
    %v715 = vld [vmem:[#allocation10 + $0xa0] sm:$0xff]
    %v716 = vld [vmem:[#allocation10 + $0xa8] sm:$0xff]
    %v717 = vld [vmem:[#allocation10 + $0xb0] sm:$0xff]
    %v718 = vld [vmem:[#allocation10 + $0xb8] sm:$0xff]
    %v719 = vld [vmem:[#allocation10 + $0xc0] sm:$0xff]
    %v720 = vld [vmem:[#allocation10 + $0xc8] sm:$0xff]
    %v721 = vld [vmem:[#allocation10 + $0xd0] sm:$0xff]
    %v722 = vld [vmem:[#allocation10 + $0xd8] sm:$0xff]
    %v723 = vld [vmem:[#allocation10 + $0xe0] sm:$0xff]
    %v724 = vld [vmem:[#allocation10 + $0xe8] sm:$0xff]
    %v725 = vld [vmem:[#allocation10 + $0xf0] sm:$0xff]
    %v726 = vld [vmem:[#allocation10 + $0xf8] sm:$0xff]
    %v727 = vld [vmem:[#allocation10 + $0x100] sm:$0xff]
    %v728 = vld [vmem:[#allocation10 + $0x108] sm:$0xff]
    %v729 = vld [vmem:[#allocation10 + $0x110] sm:$0xff]
    %v730 = vld [vmem:[#allocation10 + $0x118] sm:$0xff]
    %v731 = vld [vmem:[#allocation10 + $0x120] sm:$0xff]
    %v732 = vld [vmem:[#allocation10 + $0x128] sm:$0xff]
    %v733 = vld [vmem:[#allocation10 + $0x130] sm:$0xff]
    %v734 = vld [vmem:[#allocation10 + $0x138] sm:$0xff]
    %v735 = vld [vmem:[#allocation10 + $0x140] sm:$0xff]
    %v736 = vld [vmem:[#allocation10 + $0x148] sm:$0xff]
    %v737 = vld [vmem:[#allocation10 + $0x150] sm:$0xff]
    %v738 = vld [vmem:[#allocation10 + $0x158] sm:$0xff]
    %v739 = vld [vmem:[#allocation10 + $0x160] sm:$0xff]
    %v740 = vld [vmem:[#allocation10 + $0x168] sm:$0xff]
    %v741 = vld [vmem:[#allocation10 + $0x170] sm:$0xff]
    %v742 = vld [vmem:[#allocation10 + $0x178] sm:$0xff]
    %v743 = vld [vmem:[#allocation10 + $0x180] sm:$0xff]
    %v744 = vld [vmem:[#allocation10 + $0x188] sm:$0xff]
    %v745 = vld [vmem:[#allocation10 + $0x190] sm:$0xff]
    %v746 = vld [vmem:[#allocation10 + $0x198] sm:$0xff]
    %v747 = vld [vmem:[#allocation10 + $0x1a0] sm:$0xff]
    %v748 = vld [vmem:[#allocation10 + $0x1a8] sm:$0xff]
    %v749 = vld [vmem:[#allocation10 + $0x1b0] sm:$0xff]
    %v750 = vld [vmem:[#allocation10 + $0x1b8] sm:$0xff]
    %v751 = vld [vmem:[#allocation10 + $0x1c0] sm:$0xff]
    %v752 = vld [vmem:[#allocation10 + $0x1c8] sm:$0xff]
    %v753 = vld [vmem:[#allocation10 + $0x1d0] sm:$0xff]
    %v754 = vld [vmem:[#allocation10 + $0x1d8] sm:$0xff]
    %v755 = vld [vmem:[#allocation10 + $0x1e0] sm:$0xff]
    %v756 = vld [vmem:[#allocation10 + $0x1e8] sm:$0xff]
    %v757 = vld [vmem:[#allocation10 + $0x1f0] sm:$0xff]
    %v758 = vld [vmem:[#allocation10 + $0x1f8] sm:$0xff]
    %v759 = vld [vmem:[#allocation10 + $0x200] sm:$0xff]
    %v760 = vld [vmem:[#allocation10 + $0x208] sm:$0xff]
    %v761 = vld [vmem:[#allocation10 + $0x210] sm:$0xff]
    %v762 = vld [vmem:[#allocation10 + $0x218] sm:$0xff]
    %v763 = vld [vmem:[#allocation10 + $0x220] sm:$0xff]
    %v764 = vld [vmem:[#allocation10 + $0x228] sm:$0xff]
    %v765 = vld [vmem:[#allocation10 + $0x230] sm:$0xff]
    %v766 = vld [vmem:[#allocation10 + $0x238] sm:$0xff]
    %v767 = vld [vmem:[#allocation10 + $0x240] sm:$0xff]
    %v768 = vld [vmem:[#allocation10 + $0x248] sm:$0xff]
    %v769 = vld [vmem:[#allocation10 + $0x250] sm:$0xff]
    %v770 = vld [vmem:[#allocation10 + $0x258] sm:$0xff]
    %v771 = vld [vmem:[#allocation10 + $0x260] sm:$0xff]
    %v772 = vld [vmem:[#allocation10 + $0x268] sm:$0xff]
    %v773 = vld [vmem:[#allocation10 + $0x270] sm:$0xff]
    %v774 = vld [vmem:[#allocation10 + $0x278] sm:$0xff]
    %v775 = vld [vmem:[#allocation10 + $0x280] sm:$0xff]
    %v776 = vld [vmem:[#allocation10 + $0x288] sm:$0xff]
    %v777 = vld [vmem:[#allocation10 + $0x290] sm:$0xff]
    %v778 = vld [vmem:[#allocation10 + $0x298] sm:$0xff]
    %v779 = vld [vmem:[#allocation10 + $0x2a0] sm:$0xff]
    %v780 = vld [vmem:[#allocation10 + $0x2a8] sm:$0xff]
    %v781 = vld [vmem:[#allocation10 + $0x2b0] sm:$0xff]
    %v782 = vld [vmem:[#allocation10 + $0x2b8] sm:$0xff]
    %v783 = vld [vmem:[#allocation10 + $0x2c0] sm:$0xff]
    %v784 = vld [vmem:[#allocation10 + $0x2c8] sm:$0xff]
    %v785 = vld [vmem:[#allocation10 + $0x2d0] sm:$0xff]
    %v786 = vld [vmem:[#allocation10 + $0x2d8] sm:$0xff]
    %v787 = vld [vmem:[#allocation10 + $0x2e0] sm:$0xff]
    %v788 = vld [vmem:[#allocation10 + $0x2e8] sm:$0xff]
    %v789 = vld [vmem:[#allocation10 + $0x2f0] sm:$0xff]
    %v790 = vld [vmem:[#allocation10 + $0x2f8] sm:$0xff]
    %v791 = vld [vmem:[#allocation10 + $0x300] sm:$0xff]
    %v792 = vld [vmem:[#allocation10 + $0x308] sm:$0xff]
    %v793 = vld [vmem:[#allocation10 + $0x310] sm:$0xff]
    %v794 = vld [vmem:[#allocation10 + $0x318] sm:$0xff]
    %v795 = vld [vmem:[#allocation10 + $0x320] sm:$0xff]
    %v796 = vld [vmem:[#allocation10 + $0x328] sm:$0xff]
    %v797 = vld [vmem:[#allocation10 + $0x330] sm:$0xff]
    %v798 = vld [vmem:[#allocation10 + $0x338] sm:$0xff]
    %v799 = vld [vmem:[#allocation10 + $0x340] sm:$0xff]
    %v800 = vld [vmem:[#allocation10 + $0x348] sm:$0xff]
    %v801 = vld [vmem:[#allocation10 + $0x350] sm:$0xff]
    %v802 = vld [vmem:[#allocation10 + $0x358] sm:$0xff]
    %v803 = vld [vmem:[#allocation10 + $0x360] sm:$0xff]
    %v804 = vld [vmem:[#allocation10 + $0x368] sm:$0xff]
    %v805 = vld [vmem:[#allocation10 + $0x370] sm:$0xff]
    %v806 = vld [vmem:[#allocation10 + $0x378] sm:$0xff]
    %v807 = vld [vmem:[#allocation10 + $0x380] sm:$0xff]
    %v808 = vld [vmem:[#allocation10 + $0x388] sm:$0xff]
    %v809 = vld [vmem:[#allocation10 + $0x390] sm:$0xff]
    %v810 = vld [vmem:[#allocation10 + $0x398] sm:$0xff]
    %v811 = vld [vmem:[#allocation10 + $0x3a0] sm:$0xff]
    %v812 = vld [vmem:[#allocation10 + $0x3a8] sm:$0xff]
    %v813 = vld [vmem:[#allocation10 + $0x3b0] sm:$0xff]
    %v814 = vld [vmem:[#allocation10 + $0x3b8] sm:$0xff]
    %v815 = vld [vmem:[#allocation10 + $0x3c0] sm:$0xff]
    %v816 = vld [vmem:[#allocation10 + $0x3c8] sm:$0xff]
    %v817 = vld [vmem:[#allocation10 + $0x3d0] sm:$0xff]
    %v818 = vld [vmem:[#allocation10 + $0x3d8] sm:$0xff]
    %v819 = vld [vmem:[#allocation10 + $0x3e0] sm:$0xff]
    %v820 = vld [vmem:[#allocation10 + $0x3e8] sm:$0xff]
    %v821 = vld [vmem:[#allocation10 + $0x3f0] sm:$0xff]
    %v822 = vld [vmem:[#allocation10 + $0x3f8] sm:$0xff]
    %v823 = vld [vmem:[#allocation10 + $0x400] sm:$0xff]
    %v824 = vld [vmem:[#allocation10 + $0x408] sm:$0xff]
    %v825 = vld [vmem:[#allocation10 + $0x410] sm:$0xff]
    %v826 = vld [vmem:[#allocation10 + $0x418] sm:$0xff]
    %v827 = vld [vmem:[#allocation10 + $0x420] sm:$0xff]
    %v828 = vld [vmem:[#allocation10 + $0x428] sm:$0xff]
    %v829 = vld [vmem:[#allocation10 + $0x430] sm:$0xff]
    %v830 = vld [vmem:[#allocation10 + $0x438] sm:$0xff]
    %v831 = vld [vmem:[#allocation10 + $0x440] sm:$0xff]
    %v832 = vld [vmem:[#allocation10 + $0x448] sm:$0xff]
    %v833 = vld [vmem:[#allocation10 + $0x450] sm:$0xff]
    %v834 = vld [vmem:[#allocation10 + $0x458] sm:$0xff]
    %v835 = vld [vmem:[#allocation10 + $0x460] sm:$0xff]
    %v836 = vld [vmem:[#allocation10 + $0x468] sm:$0xff]
    %v837 = vld [vmem:[#allocation10 + $0x470] sm:$0xff]
    %v838 = vld [vmem:[#allocation10 + $0x478] sm:$0xff]
    %v839 = vld [vmem:[#allocation10 + $0x480] sm:$0xff]
    %v840 = vld [vmem:[#allocation10 + $0x488] sm:$0xff]
    %v841 = vld [vmem:[#allocation10 + $0x490] sm:$0xff]
    %v842 = vld [vmem:[#allocation10 + $0x498] sm:$0xff]
    %v843 = vld [vmem:[#allocation10 + $0x4a0] sm:$0xff]
    %v844 = vld [vmem:[#allocation10 + $0x4a8] sm:$0xff]
    %v845 = vld [vmem:[#allocation10 + $0x4b0] sm:$0xff]
    %v846 = vld [vmem:[#allocation10 + $0x4b8] sm:$0xff]
    %v847 = vld [vmem:[#allocation10 + $0x4c0] sm:$0xff]
    %v848 = vld [vmem:[#allocation10 + $0x4c8] sm:$0xff]
    %v849 = vld [vmem:[#allocation10 + $0x4d0] sm:$0xff]
    %v850 = vld [vmem:[#allocation10 + $0x4d8] sm:$0xff]
    %v851 = vld [vmem:[#allocation10 + $0x4e0] sm:$0xff]
    %v852 = vld [vmem:[#allocation10 + $0x4e8] sm:$0xff]
    %v853 = vld [vmem:[#allocation10 + $0x4f0] sm:$0xff]
    %v854 = vld [vmem:[#allocation10 + $0x4f8] sm:$0xff]
    %v855 = vld [vmem:[#allocation10 + $0x500] sm:$0xff]
    %v856 = vld [vmem:[#allocation10 + $0x508] sm:$0xff]
    %v857 = vld [vmem:[#allocation10 + $0x510] sm:$0xff]
    %v858 = vld [vmem:[#allocation10 + $0x518] sm:$0xff]
    %v859 = vld [vmem:[#allocation10 + $0x520] sm:$0xff]
    %v860 = vld [vmem:[#allocation10 + $0x528] sm:$0xff]
    %v861 = vld [vmem:[#allocation10 + $0x530] sm:$0xff]
    %v862 = vld [vmem:[#allocation10 + $0x538] sm:$0xff]
    %v863 = vld [vmem:[#allocation10 + $0x540] sm:$0xff]
    %v864 = vld [vmem:[#allocation10 + $0x548] sm:$0xff]
    %v865 = vld [vmem:[#allocation10 + $0x550] sm:$0xff]
    %v866 = vld [vmem:[#allocation10 + $0x558] sm:$0xff]
    %v867 = vld [vmem:[#allocation10 + $0x560] sm:$0xff]
    %v868 = vld [vmem:[#allocation10 + $0x568] sm:$0xff]
    %v869 = vld [vmem:[#allocation10 + $0x570] sm:$0xff]
    %v870 = vld [vmem:[#allocation10 + $0x578] sm:$0xff]
    %v871 = vld [vmem:[#allocation10 + $0x580] sm:$0xff]
    %v872 = vld [vmem:[#allocation10 + $0x588] sm:$0xff]
    %v873 = vld [vmem:[#allocation10 + $0x590] sm:$0xff]
    %v874 = vld [vmem:[#allocation10 + $0x598] sm:$0xff]
    %v875 = vld [vmem:[#allocation10 + $0x5a0] sm:$0xff]
    %v876 = vld [vmem:[#allocation10 + $0x5a8] sm:$0xff]
    %v877 = vld [vmem:[#allocation10 + $0x5b0] sm:$0xff]
    %v878 = vld [vmem:[#allocation10 + $0x5b8] sm:$0xff]
    %v879 = vld [vmem:[#allocation10 + $0x5c0] sm:$0xff]
    %v880 = vld [vmem:[#allocation10 + $0x5c8] sm:$0xff]
    %v881 = vld [vmem:[#allocation10 + $0x5d0] sm:$0xff]
    %v882 = vld [vmem:[#allocation10 + $0x5d8] sm:$0xff]
    %v883 = vld [vmem:[#allocation10 + $0x5e0] sm:$0xff]
    %v884 = vld [vmem:[#allocation10 + $0x5e8] sm:$0xff]
    %v885 = vld [vmem:[#allocation10 + $0x5f0] sm:$0xff]
    %v886 = vld [vmem:[#allocation10 + $0x5f8] sm:$0xff]
    %v887 = vld [vmem:[#allocation10 + $0x600] sm:$0xff]
    %v888 = vld [vmem:[#allocation10 + $0x608] sm:$0xff]
    %v889 = vld [vmem:[#allocation10 + $0x610] sm:$0xff]
    %v890 = vld [vmem:[#allocation10 + $0x618] sm:$0xff]
    %v891 = vld [vmem:[#allocation10 + $0x620] sm:$0xff]
    %v892 = vld [vmem:[#allocation10 + $0x628] sm:$0xff]
    %v893 = vld [vmem:[#allocation10 + $0x630] sm:$0xff]
    %v894 = vld [vmem:[#allocation10 + $0x638] sm:$0xff]
    %v895 = vld [vmem:[#allocation10 + $0x640] sm:$0xff]
    %v896 = vld [vmem:[#allocation10 + $0x648] sm:$0xff]
    %v897 = vld [vmem:[#allocation10 + $0x650] sm:$0xff]
    %v898 = vld [vmem:[#allocation10 + $0x658] sm:$0xff]
    %v899 = vld [vmem:[#allocation10 + $0x660] sm:$0xff]
    %v900 = vld [vmem:[#allocation10 + $0x668] sm:$0xff]
    %v901 = vld [vmem:[#allocation10 + $0x670] sm:$0xff]
    %v902 = vld [vmem:[#allocation10 + $0x678] sm:$0xff]
    %v903 = vld [vmem:[#allocation10 + $0x680] sm:$0xff]
    %v904 = vld [vmem:[#allocation10 + $0x688] sm:$0xff]
    %v905 = vld [vmem:[#allocation10 + $0x690] sm:$0xff]
    %v906 = vld [vmem:[#allocation10 + $0x698] sm:$0xff]
    %v907 = vld [vmem:[#allocation10 + $0x6a0] sm:$0xff]
    %v908 = vld [vmem:[#allocation10 + $0x6a8] sm:$0xff]
    %v909 = vld [vmem:[#allocation10 + $0x6b0] sm:$0xff]
    %v910 = vld [vmem:[#allocation10 + $0x6b8] sm:$0xff]
    %v911 = vld [vmem:[#allocation10 + $0x6c0] sm:$0xff]
    %v912 = vld [vmem:[#allocation10 + $0x6c8] sm:$0xff]
    %v913 = vld [vmem:[#allocation10 + $0x6d0] sm:$0xff]
    %v914 = vld [vmem:[#allocation10 + $0x6d8] sm:$0xff]
    %v915 = vld [vmem:[#allocation10 + $0x6e0] sm:$0xff]
    %v916 = vld [vmem:[#allocation10 + $0x6e8] sm:$0xff]
    %v917 = vld [vmem:[#allocation10 + $0x6f0] sm:$0xff]
    %v918 = vld [vmem:[#allocation10 + $0x6f8] sm:$0xff]
    %v919 = vld [vmem:[#allocation10 + $0x700] sm:$0xff]
    %v920 = vld [vmem:[#allocation10 + $0x708] sm:$0xff]
    %v921 = vld [vmem:[#allocation10 + $0x710] sm:$0xff]
    %v922 = vld [vmem:[#allocation10 + $0x718] sm:$0xff]
    %v923 = vld [vmem:[#allocation10 + $0x720] sm:$0xff]
    %v924 = vld [vmem:[#allocation10 + $0x728] sm:$0xff]
    %v925 = vld [vmem:[#allocation10 + $0x730] sm:$0xff]
    %v926 = vld [vmem:[#allocation10 + $0x738] sm:$0xff]
    %v927 = vld [vmem:[#allocation10 + $0x740] sm:$0xff]
    %v928 = vld [vmem:[#allocation10 + $0x748] sm:$0xff]
    %v929 = vld [vmem:[#allocation10 + $0x750] sm:$0xff]
    %v930 = vld [vmem:[#allocation10 + $0x758] sm:$0xff]
    %v931 = vld [vmem:[#allocation10 + $0x760] sm:$0xff]
    %v932 = vld [vmem:[#allocation10 + $0x768] sm:$0xff]
    %v933 = vld [vmem:[#allocation10 + $0x770] sm:$0xff]
    %v934 = vld [vmem:[#allocation10 + $0x778] sm:$0xff]
    %v935 = vld [vmem:[#allocation10 + $0x780] sm:$0xff]
    %v936 = vld [vmem:[#allocation10 + $0x788] sm:$0xff]
    %v937 = vld [vmem:[#allocation10 + $0x790] sm:$0xff]
    %v938 = vld [vmem:[#allocation10 + $0x798] sm:$0xff]
    %v939 = vld [vmem:[#allocation10 + $0x7a0] sm:$0xff]
    %v940 = vld [vmem:[#allocation10 + $0x7a8] sm:$0xff]
    %v941 = vld [vmem:[#allocation10 + $0x7b0] sm:$0xff]
    %v942 = vld [vmem:[#allocation10 + $0x7b8] sm:$0xff]
    %v943 = vld [vmem:[#allocation10 + $0x7c0] sm:$0xff]
    %v944 = vld [vmem:[#allocation10 + $0x7c8] sm:$0xff]
    %v945 = vld [vmem:[#allocation10 + $0x7d0] sm:$0xff]
    %v946 = vld [vmem:[#allocation10 + $0x7d8] sm:$0xff]
    %v947 = vld [vmem:[#allocation10 + $0x7e0] sm:$0xff]
    %v948 = vld [vmem:[#allocation10 + $0x7e8] sm:$0xff]
    %v949 = vld [vmem:[#allocation10 + $0x7f0] sm:$0xff]
    %v950 = vld [vmem:[#allocation10 + $0x7f8] sm:$0xff]
    %v951 = vld [vmem:[#allocation10 + $0x800] sm:$0xff]
    %v952 = vld [vmem:[#allocation10 + $0x808] sm:$0xff]
    %v953 = vld [vmem:[#allocation10 + $0x810] sm:$0xff]
    %v954 = vld [vmem:[#allocation10 + $0x818] sm:$0xff]
    %v955 = vld [vmem:[#allocation10 + $0x820] sm:$0xff]
    %v956 = vld [vmem:[#allocation10 + $0x828] sm:$0xff]
    %v957 = vld [vmem:[#allocation10 + $0x830] sm:$0xff]
    %v958 = vld [vmem:[#allocation10 + $0x838] sm:$0xff]
    %v959 = vld [vmem:[#allocation10 + $0x840] sm:$0xff]
    %v960 = vld [vmem:[#allocation10 + $0x848] sm:$0xff]
    %v961 = vld [vmem:[#allocation10 + $0x850] sm:$0xff]
    %v962 = vld [vmem:[#allocation10 + $0x858] sm:$0xff]
    %v963 = vld [vmem:[#allocation10 + $0x860] sm:$0xff]
    %v964 = vld [vmem:[#allocation10 + $0x868] sm:$0xff]
    %v965 = vld [vmem:[#allocation10 + $0x870] sm:$0xff]
    %v966 = vld [vmem:[#allocation10 + $0x878] sm:$0xff]
    %v967 = vld [vmem:[#allocation10 + $0x880] sm:$0xff]
    %v968 = vld [vmem:[#allocation10 + $0x888] sm:$0xff]
    %v969 = vld [vmem:[#allocation10 + $0x890] sm:$0xff]
    %v970 = vld [vmem:[#allocation10 + $0x898] sm:$0xff]
    %v971 = vld [vmem:[#allocation10 + $0x8a0] sm:$0xff]
    %v972 = vld [vmem:[#allocation10 + $0x8a8] sm:$0xff]
    %v973 = vld [vmem:[#allocation10 + $0x8b0] sm:$0xff]
    %v974 = vld [vmem:[#allocation10 + $0x8b8] sm:$0xff]
    %v975 = vld [vmem:[#allocation10 + $0x8c0] sm:$0xff]
    %v976 = vld [vmem:[#allocation10 + $0x8c8] sm:$0xff]
    %v977 = vld [vmem:[#allocation10 + $0x8d0] sm:$0xff]
    %v978 = vld [vmem:[#allocation10 + $0x8d8] sm:$0xff]
    %v979 = vld [vmem:[#allocation10 + $0x8e0] sm:$0xff]
    %v980 = vld [vmem:[#allocation10 + $0x8e8] sm:$0xff]
    %v981 = vld [vmem:[#allocation10 + $0x8f0] sm:$0xff]
    %v982 = vld [vmem:[#allocation10 + $0x8f8] sm:$0xff]
    %v983 = vld [vmem:[#allocation10 + $0x900] sm:$0xff]
    %v984 = vld [vmem:[#allocation10 + $0x908] sm:$0xff]
    %v985 = vld [vmem:[#allocation10 + $0x910] sm:$0xff]
    %v986 = vld [vmem:[#allocation10 + $0x918] sm:$0xff]
    %v987 = vld [vmem:[#allocation10 + $0x920] sm:$0xff]
    %v988 = vld [vmem:[#allocation10 + $0x928] sm:$0xff]
    %v989 = vld [vmem:[#allocation10 + $0x930] sm:$0xff]
    %v990 = vld [vmem:[#allocation10 + $0x938] sm:$0xff]
    %v991 = vld [vmem:[#allocation10 + $0x940] sm:$0xff]
    %v992 = vld [vmem:[#allocation10 + $0x948] sm:$0xff]
    %v993 = vld [vmem:[#allocation10 + $0x950] sm:$0xff]
    %v994 = vld [vmem:[#allocation10 + $0x958] sm:$0xff]
    %v995 = vld [vmem:[#allocation10 + $0x960] sm:$0xff]
    %v996 = vld [vmem:[#allocation10 + $0x968] sm:$0xff]
    %v997 = vld [vmem:[#allocation10 + $0x970] sm:$0xff]
    %v998 = vld [vmem:[#allocation10 + $0x978] sm:$0xff]
    %v999 = vld [vmem:[#allocation10 + $0x980] sm:$0xff]
    %v1000 = vld [vmem:[#allocation10 + $0x988] sm:$0xff]
    %v1001 = vld [vmem:[#allocation10 + $0x990] sm:$0xff]
    %v1002 = vld [vmem:[#allocation10 + $0x998] sm:$0xff]
    %v1003 = vld [vmem:[#allocation10 + $0x9a0] sm:$0xff]
    %v1004 = vld [vmem:[#allocation10 + $0x9a8] sm:$0xff]
    %v1005 = vld [vmem:[#allocation10 + $0x9b0] sm:$0xff]
    %v1006 = vld [vmem:[#allocation10 + $0x9b8] sm:$0xff]
    %v1007 = vld [vmem:[#allocation10 + $0x9c0] sm:$0xff]
    %v1008 = vld [vmem:[#allocation10 + $0x9c8] sm:$0xff]
    %v1009 = vld [vmem:[#allocation10 + $0x9d0] sm:$0xff]
    %v1010 = vld [vmem:[#allocation10 + $0x9d8] sm:$0xff]
    %v1011 = vld [vmem:[#allocation10 + $0x9e0] sm:$0xff]
    %v1012 = vld [vmem:[#allocation10 + $0x9e8] sm:$0xff]
    %v1013 = vld [vmem:[#allocation10 + $0x9f0] sm:$0xff]
    %v1014 = vld [vmem:[#allocation10 + $0x9f8] sm:$0xff]
    %v1015 = vld [vmem:[#allocation10 + $0xa00] sm:$0xff]
    %v1016 = vld [vmem:[#allocation10 + $0xa08] sm:$0xff]
    %v1017 = vld [vmem:[#allocation10 + $0xa10] sm:$0xff]
    %v1018 = vld [vmem:[#allocation10 + $0xa18] sm:$0xff]
    %v1019 = vld [vmem:[#allocation10 + $0xa20] sm:$0xff]
    %v1020 = vld [vmem:[#allocation10 + $0xa28] sm:$0xff]
    %v1021 = vld [vmem:[#allocation10 + $0xa30] sm:$0xff]
    %v1022 = vld [vmem:[#allocation10 + $0xa38] sm:$0xff]
    %v1023 = vld [vmem:[#allocation10 + $0xa40] sm:$0xff]
    %v1024 = vld [vmem:[#allocation10 + $0xa48] sm:$0xff]
    %v1025 = vld [vmem:[#allocation10 + $0xa50] sm:$0xff]
    %v1026 = vld [vmem:[#allocation10 + $0xa58] sm:$0xff]
    %v1027 = vld [vmem:[#allocation10 + $0xa60] sm:$0xff]
    %v1028 = vld [vmem:[#allocation10 + $0xa68] sm:$0xff]
    %v1029 = vld [vmem:[#allocation10 + $0xa70] sm:$0xff]
    %v1030 = vld [vmem:[#allocation10 + $0xa78] sm:$0xff]
    %v1031 = vld [vmem:[#allocation10 + $0xa80] sm:$0xff]
    %v1032 = vld [vmem:[#allocation10 + $0xa88] sm:$0xff]
    %v1033 = vld [vmem:[#allocation10 + $0xa90] sm:$0xff]
    %v1034 = vld [vmem:[#allocation10 + $0xa98] sm:$0xff]
    %v1035 = vld [vmem:[#allocation10 + $0xaa0] sm:$0xff]
    %v1036 = vld [vmem:[#allocation10 + $0xaa8] sm:$0xff]
    %v1037 = vld [vmem:[#allocation10 + $0xab0] sm:$0xff]
    %v1038 = vld [vmem:[#allocation10 + $0xab8] sm:$0xff]
    %v1039 = vld [vmem:[#allocation10 + $0xac0] sm:$0xff]
    %v1040 = vld [vmem:[#allocation10 + $0xac8] sm:$0xff]
    %v1041 = vld [vmem:[#allocation10 + $0xad0] sm:$0xff]
    %v1042 = vld [vmem:[#allocation10 + $0xad8] sm:$0xff]
    %v1043 = vld [vmem:[#allocation10 + $0xae0] sm:$0xff]
    %v1044 = vld [vmem:[#allocation10 + $0xae8] sm:$0xff]
    %v1045 = vld [vmem:[#allocation10 + $0xaf0] sm:$0xff]
    %v1046 = vld [vmem:[#allocation10 + $0xaf8] sm:$0xff]
    %v1047 = vld [vmem:[#allocation10 + $0xb00] sm:$0xff]
    %v1048 = vld [vmem:[#allocation10 + $0xb08] sm:$0xff]
    %v1049 = vld [vmem:[#allocation10 + $0xb10] sm:$0xff]
    %v1050 = vld [vmem:[#allocation10 + $0xb18] sm:$0xff]
    %v1051 = vld [vmem:[#allocation10 + $0xb20] sm:$0xff]
    %v1052 = vld [vmem:[#allocation10 + $0xb28] sm:$0xff]
    %v1053 = vld [vmem:[#allocation10 + $0xb30] sm:$0xff]
    %v1054 = vld [vmem:[#allocation10 + $0xb38] sm:$0xff]
    %v1055 = vld [vmem:[#allocation10 + $0xb40] sm:$0xff]
    %v1056 = vld [vmem:[#allocation10 + $0xb48] sm:$0xff]
    %v1057 = vld [vmem:[#allocation10 + $0xb50] sm:$0xff]
    %v1058 = vld [vmem:[#allocation10 + $0xb58] sm:$0xff]
    %v1059 = vld [vmem:[#allocation10 + $0xb60] sm:$0xff]
    %v1060 = vld [vmem:[#allocation10 + $0xb68] sm:$0xff]
    %v1061 = vld [vmem:[#allocation10 + $0xb70] sm:$0xff]
    %v1062 = vld [vmem:[#allocation10 + $0xb78] sm:$0xff]
    %v1063 = vld [vmem:[#allocation10 + $0xb80] sm:$0xff]
    %v1064 = vld [vmem:[#allocation10 + $0xb88] sm:$0xff]
    %v1065 = vld [vmem:[#allocation10 + $0xb90] sm:$0xff]
    %v1066 = vld [vmem:[#allocation10 + $0xb98] sm:$0xff]
    %v1067 = vld [vmem:[#allocation10 + $0xba0] sm:$0xff]
    %v1068 = vld [vmem:[#allocation10 + $0xba8] sm:$0xff]
    %v1069 = vld [vmem:[#allocation10 + $0xbb0] sm:$0xff]
    %v1070 = vld [vmem:[#allocation10 + $0xbb8] sm:$0xff]
    %v1071 = vld [vmem:[#allocation10 + $0xbc0] sm:$0xff]
    %v1072 = vld [vmem:[#allocation10 + $0xbc8] sm:$0xff]
    %v1073 = vld [vmem:[#allocation10 + $0xbd0] sm:$0xff]
    %v1074 = vld [vmem:[#allocation10 + $0xbd8] sm:$0xff]
    %v1075 = vld [vmem:[#allocation10 + $0xbe0] sm:$0xff]
    %v1076 = vld [vmem:[#allocation10 + $0xbe8] sm:$0xff]
    %v1077 = vld [vmem:[#allocation10 + $0xbf0] sm:$0xff]
    %v1078 = vld [vmem:[#allocation10 + $0xbf8] sm:$0xff]
    %v1079 = vld [vmem:[#allocation10 + $0xc00] sm:$0xff]
    %v1080 = vld [vmem:[#allocation10 + $0xc08] sm:$0xff]
    %v1081 = vld [vmem:[#allocation10 + $0xc10] sm:$0xff]
    %v1082 = vld [vmem:[#allocation10 + $0xc18] sm:$0xff]
    %v1083 = vld [vmem:[#allocation10 + $0xc20] sm:$0xff]
    %v1084 = vld [vmem:[#allocation10 + $0xc28] sm:$0xff]
    %v1085 = vld [vmem:[#allocation10 + $0xc30] sm:$0xff]
    %v1086 = vld [vmem:[#allocation10 + $0xc38] sm:$0xff]
    %v1087 = vld [vmem:[#allocation10 + $0xc40] sm:$0xff]
    %v1088 = vld [vmem:[#allocation10 + $0xc48] sm:$0xff]
    %v1089 = vld [vmem:[#allocation10 + $0xc50] sm:$0xff]
    %v1090 = vld [vmem:[#allocation10 + $0xc58] sm:$0xff]
    %v1091 = vld [vmem:[#allocation10 + $0xc60] sm:$0xff]
    %v1092 = vld [vmem:[#allocation10 + $0xc68] sm:$0xff]
    %v1093 = vld [vmem:[#allocation10 + $0xc70] sm:$0xff]
    %v1094 = vld [vmem:[#allocation10 + $0xc78] sm:$0xff]
    %v1095 = vld [vmem:[#allocation10 + $0xc80] sm:$0xff]
    %v1096 = vld [vmem:[#allocation10 + $0xc88] sm:$0xff]
    %v1097 = vld [vmem:[#allocation10 + $0xc90] sm:$0xff]
    %v1098 = vld [vmem:[#allocation10 + $0xc98] sm:$0xff]
    %v1099 = vld [vmem:[#allocation10 + $0xca0] sm:$0xff]
    %v1100 = vld [vmem:[#allocation10 + $0xca8] sm:$0xff]
    %v1101 = vld [vmem:[#allocation10 + $0xcb0] sm:$0xff]
    %v1102 = vld [vmem:[#allocation10 + $0xcb8] sm:$0xff]
    %v1103 = vld [vmem:[#allocation10 + $0xcc0] sm:$0xff]
    %v1104 = vld [vmem:[#allocation10 + $0xcc8] sm:$0xff]
    %v1105 = vld [vmem:[#allocation10 + $0xcd0] sm:$0xff]
    %v1106 = vld [vmem:[#allocation10 + $0xcd8] sm:$0xff]
    %v1107 = vld [vmem:[#allocation10 + $0xce0] sm:$0xff]
    %v1108 = vld [vmem:[#allocation10 + $0xce8] sm:$0xff]
    %v1109 = vld [vmem:[#allocation10 + $0xcf0] sm:$0xff]
    %v1110 = vld [vmem:[#allocation10 + $0xcf8] sm:$0xff]
    %v1111 = vld [vmem:[#allocation10 + $0xd00] sm:$0xff]
    %v1112 = vld [vmem:[#allocation10 + $0xd08] sm:$0xff]
    %v1113 = vld [vmem:[#allocation10 + $0xd10] sm:$0xff]
    %v1114 = vld [vmem:[#allocation10 + $0xd18] sm:$0xff]
    %v1115 = vld [vmem:[#allocation10 + $0xd20] sm:$0xff]
    %v1116 = vld [vmem:[#allocation10 + $0xd28] sm:$0xff]
    %v1117 = vld [vmem:[#allocation10 + $0xd30] sm:$0xff]
    %v1118 = vld [vmem:[#allocation10 + $0xd38] sm:$0xff]
    %v1119 = vld [vmem:[#allocation10 + $0xd40] sm:$0xff]
    %v1120 = vld [vmem:[#allocation10 + $0xd48] sm:$0xff]
    %v1121 = vld [vmem:[#allocation10 + $0xd50] sm:$0xff]
    %v1122 = vld [vmem:[#allocation10 + $0xd58] sm:$0xff]
    %v1123 = vld [vmem:[#allocation10 + $0xd60] sm:$0xff]
    %v1124 = vld [vmem:[#allocation10 + $0xd68] sm:$0xff]
    %v1125 = vld [vmem:[#allocation10 + $0xd70] sm:$0xff]
    %v1126 = vld [vmem:[#allocation10 + $0xd78] sm:$0xff]
    %v1127 = vld [vmem:[#allocation10 + $0xd80] sm:$0xff]
    %v1128 = vld [vmem:[#allocation10 + $0xd88] sm:$0xff]
    %v1129 = vld [vmem:[#allocation10 + $0xd90] sm:$0xff]
    %v1130 = vld [vmem:[#allocation10 + $0xd98] sm:$0xff]
    %v1131 = vld [vmem:[#allocation10 + $0xda0] sm:$0xff]
    %v1132 = vld [vmem:[#allocation10 + $0xda8] sm:$0xff]
    %v1133 = vld [vmem:[#allocation10 + $0xdb0] sm:$0xff]
    %v1134 = vld [vmem:[#allocation10 + $0xdb8] sm:$0xff]
    %v1135 = vld [vmem:[#allocation10 + $0xdc0] sm:$0xff]
    %v1136 = vld [vmem:[#allocation10 + $0xdc8] sm:$0xff]
    %v1137 = vld [vmem:[#allocation10 + $0xdd0] sm:$0xff]
    %v1138 = vld [vmem:[#allocation10 + $0xdd8] sm:$0xff]
    %v1139 = vld [vmem:[#allocation10 + $0xde0] sm:$0xff]
    %v1140 = vld [vmem:[#allocation10 + $0xde8] sm:$0xff]
    %v1141 = vld [vmem:[#allocation10 + $0xdf0] sm:$0xff]
    %v1142 = vld [vmem:[#allocation10 + $0xdf8] sm:$0xff]
    %v1143 = vld [vmem:[#allocation10 + $0xe00] sm:$0xff]
    %v1144 = vld [vmem:[#allocation10 + $0xe08] sm:$0xff]
    %v1145 = vld [vmem:[#allocation10 + $0xe10] sm:$0xff]
    %v1146 = vld [vmem:[#allocation10 + $0xe18] sm:$0xff]
    %v1147 = vld [vmem:[#allocation10 + $0xe20] sm:$0xff]
    %v1148 = vld [vmem:[#allocation10 + $0xe28] sm:$0xff]
    %v1149 = vld [vmem:[#allocation10 + $0xe30] sm:$0xff]
    %v1150 = vld [vmem:[#allocation10 + $0xe38] sm:$0xff]
    %v1151 = vld [vmem:[#allocation10 + $0xe40] sm:$0xff]
    %v1152 = vld [vmem:[#allocation10 + $0xe48] sm:$0xff]
    %v1153 = vld [vmem:[#allocation10 + $0xe50] sm:$0xff]
    %v1154 = vld [vmem:[#allocation10 + $0xe58] sm:$0xff]
    %v1155 = vld [vmem:[#allocation10 + $0xe60] sm:$0xff]
    %v1156 = vld [vmem:[#allocation10 + $0xe68] sm:$0xff]
    %v1157 = vld [vmem:[#allocation10 + $0xe70] sm:$0xff]
    %v1158 = vld [vmem:[#allocation10 + $0xe78] sm:$0xff]
    %v1159 = vld [vmem:[#allocation10 + $0xe80] sm:$0xff]
    %v1160 = vld [vmem:[#allocation10 + $0xe88] sm:$0xff]
    %v1161 = vld [vmem:[#allocation10 + $0xe90] sm:$0xff]
    %v1162 = vld [vmem:[#allocation10 + $0xe98] sm:$0xff]
    %v1163 = vld [vmem:[#allocation10 + $0xea0] sm:$0xff]
    %v1164 = vld [vmem:[#allocation10 + $0xea8] sm:$0xff]
    %v1165 = vld [vmem:[#allocation10 + $0xeb0] sm:$0xff]
    %v1166 = vld [vmem:[#allocation10 + $0xeb8] sm:$0xff]
    %v1167 = vld [vmem:[#allocation10 + $0xec0] sm:$0xff]
    %v1168 = vld [vmem:[#allocation10 + $0xec8] sm:$0xff]
    %v1169 = vld [vmem:[#allocation10 + $0xed0] sm:$0xff]
    %v1170 = vld [vmem:[#allocation10 + $0xed8] sm:$0xff]
    %v1171 = vld [vmem:[#allocation10 + $0xee0] sm:$0xff]
    %v1172 = vld [vmem:[#allocation10 + $0xee8] sm:$0xff]
    %v1173 = vld [vmem:[#allocation10 + $0xef0] sm:$0xff]
    %v1174 = vld [vmem:[#allocation10 + $0xef8] sm:$0xff]
    %v1175 = vld [vmem:[#allocation10 + $0xf00] sm:$0xff]
    %v1176 = vld [vmem:[#allocation10 + $0xf08] sm:$0xff]
    %v1177 = vld [vmem:[#allocation10 + $0xf10] sm:$0xff]
    %v1178 = vld [vmem:[#allocation10 + $0xf18] sm:$0xff]
    %v1179 = vld [vmem:[#allocation10 + $0xf20] sm:$0xff]
    %v1180 = vld [vmem:[#allocation10 + $0xf28] sm:$0xff]
    %v1181 = vld [vmem:[#allocation10 + $0xf30] sm:$0xff]
    %v1182 = vld [vmem:[#allocation10 + $0xf38] sm:$0xff]
    %v1183 = vld [vmem:[#allocation10 + $0xf40] sm:$0xff]
    %v1184 = vld [vmem:[#allocation10 + $0xf48] sm:$0xff]
    %v1185 = vld [vmem:[#allocation10 + $0xf50] sm:$0xff]
    %v1186 = vld [vmem:[#allocation10 + $0xf58] sm:$0xff]
    %v1187 = vld [vmem:[#allocation10 + $0xf60] sm:$0xff]
    %v1188 = vld [vmem:[#allocation10 + $0xf68] sm:$0xff]
    %v1189 = vld [vmem:[#allocation10 + $0xf70] sm:$0xff]
    %v1190 = vld [vmem:[#allocation10 + $0xf78] sm:$0xff]
    %v1191 = vld [vmem:[#allocation10 + $0xf80] sm:$0xff]
    %v1192 = vld [vmem:[#allocation10 + $0xf88] sm:$0xff]
    %v1193 = vld [vmem:[#allocation10 + $0xf90] sm:$0xff]
    %v1194 = vld [vmem:[#allocation10 + $0xf98] sm:$0xff]
    %v1195 = vld [vmem:[#allocation10 + $0xfa0] sm:$0xff]
    %v1196 = vld [vmem:[#allocation10 + $0xfa8] sm:$0xff]
    %v1197 = vld [vmem:[#allocation10 + $0xfb0] sm:$0xff]
    %v1198 = vld [vmem:[#allocation10 + $0xfb8] sm:$0xff]
    %v1199 = vld [vmem:[#allocation10 + $0xfc0] sm:$0xff]
    %v1200 = vld [vmem:[#allocation10 + $0xfc8] sm:$0xff]
    %v1201 = vld [vmem:[#allocation10 + $0xfd0] sm:$0xff]
    %v1202 = vld [vmem:[#allocation10 + $0xfd8] sm:$0xff]
    %v1203 = vld [vmem:[#allocation10 + $0xfe0] sm:$0xff]
    %v1204 = vld [vmem:[#allocation10 + $0xfe8] sm:$0xff]
    %v1205 = vld [vmem:[#allocation10 + $0xff0] sm:$0xff]
    %v1206 = vld [vmem:[#allocation10 + $0xff8] sm:$0xff]
    %v1207 = vld [vmem:[#allocation10 + $0x1000] sm:$0xff]
    %v1208 = vld [vmem:[#allocation10 + $0x1008] sm:$0xff]
    %v1209 = vld [vmem:[#allocation10 + $0x1010] sm:$0xff]
    %v1210 = vld [vmem:[#allocation10 + $0x1018] sm:$0xff]
    %v1211 = vld [vmem:[#allocation10 + $0x1020] sm:$0xff]
    %v1212 = vld [vmem:[#allocation10 + $0x1028] sm:$0xff]
    %v1213 = vld [vmem:[#allocation10 + $0x1030] sm:$0xff]
    %v1214 = vld [vmem:[#allocation10 + $0x1038] sm:$0xff]
    %v1215 = vld [vmem:[#allocation10 + $0x1040] sm:$0xff]
    %v1216 = vld [vmem:[#allocation10 + $0x1048] sm:$0xff]
    %v1217 = vld [vmem:[#allocation10 + $0x1050] sm:$0xff]
    %v1218 = vld [vmem:[#allocation10 + $0x1058] sm:$0xff]
    %v1219 = vld [vmem:[#allocation10 + $0x1060] sm:$0xff]
    %v1220 = vld [vmem:[#allocation10 + $0x1068] sm:$0xff]
    %v1221 = vld [vmem:[#allocation10 + $0x1070] sm:$0xff]
    %v1222 = vld [vmem:[#allocation10 + $0x1078] sm:$0xff]
    %v1223 = vld [vmem:[#allocation10 + $0x1080] sm:$0xff]
    %v1224 = vld [vmem:[#allocation10 + $0x1088] sm:$0xff]
    %v1225 = vld [vmem:[#allocation10 + $0x1090] sm:$0xff]
    %v1226 = vld [vmem:[#allocation10 + $0x1098] sm:$0xff]
    %v1227 = vld [vmem:[#allocation10 + $0x10a0] sm:$0xff]
    %v1228 = vld [vmem:[#allocation10 + $0x10a8] sm:$0xff]
    %v1229 = vld [vmem:[#allocation10 + $0x10b0] sm:$0xff]
    %v1230 = vld [vmem:[#allocation10 + $0x10b8] sm:$0xff]
    %v1231 = vld [vmem:[#allocation10 + $0x10c0] sm:$0xff]
    %v1232 = vld [vmem:[#allocation10 + $0x10c8] sm:$0xff]
    %v1233 = vld [vmem:[#allocation10 + $0x10d0] sm:$0xff]
    %v1234 = vld [vmem:[#allocation10 + $0x10d8] sm:$0xff]
    %v1235 = vld [vmem:[#allocation10 + $0x10e0] sm:$0xff]
    %v1236 = vld [vmem:[#allocation10 + $0x10e8] sm:$0xff]
    %v1237 = vld [vmem:[#allocation10 + $0x10f0] sm:$0xff]
    %v1238 = vld [vmem:[#allocation10 + $0x10f8] sm:$0xff]
    %v1239 = vld [vmem:[#allocation10 + $0x1100] sm:$0xff]
    %v1240 = vld [vmem:[#allocation10 + $0x1108] sm:$0xff]
    %v1241 = vld [vmem:[#allocation10 + $0x1110] sm:$0xff]
    %v1242 = vld [vmem:[#allocation10 + $0x1118] sm:$0xff]
    %v1243 = vld [vmem:[#allocation10 + $0x1120] sm:$0xff]
    %v1244 = vld [vmem:[#allocation10 + $0x1128] sm:$0xff]
    %v1245 = vld [vmem:[#allocation10 + $0x1130] sm:$0xff]
    %v1246 = vld [vmem:[#allocation10 + $0x1138] sm:$0xff]
    %v1247 = vld [vmem:[#allocation10 + $0x1140] sm:$0xff]
    %v1248 = vld [vmem:[#allocation10 + $0x1148] sm:$0xff]
    %v1249 = vld [vmem:[#allocation10 + $0x1150] sm:$0xff]
    %v1250 = vld [vmem:[#allocation10 + $0x1158] sm:$0xff]
    %v1251 = vld [vmem:[#allocation10 + $0x1160] sm:$0xff]
    %v1252 = vld [vmem:[#allocation10 + $0x1168] sm:$0xff]
    %v1253 = vld [vmem:[#allocation10 + $0x1170] sm:$0xff]
    %v1254 = vld [vmem:[#allocation10 + $0x1178] sm:$0xff]
    %v1255 = vld [vmem:[#allocation10 + $0x1180] sm:$0xff]
    %v1256 = vld [vmem:[#allocation10 + $0x1188] sm:$0xff]
    %v1257 = vld [vmem:[#allocation10 + $0x1190] sm:$0xff]
    %v1258 = vld [vmem:[#allocation10 + $0x1198] sm:$0xff]
    %v1259 = vld [vmem:[#allocation10 + $0x11a0] sm:$0xff]
    %v1260 = vld [vmem:[#allocation10 + $0x11a8] sm:$0xff]
    %v1261 = vld [vmem:[#allocation10 + $0x11b0] sm:$0xff]
    %v1262 = vld [vmem:[#allocation10 + $0x11b8] sm:$0xff]
    %v1263 = vld [vmem:[#allocation10 + $0x11c0] sm:$0xff]
    %v1264 = vld [vmem:[#allocation10 + $0x11c8] sm:$0xff]
    %v1265 = vld [vmem:[#allocation10 + $0x11d0] sm:$0xff]
    %v1266 = vld [vmem:[#allocation10 + $0x11d8] sm:$0xff]
    %v1267 = vld [vmem:[#allocation10 + $0x11e0] sm:$0xff]
    %v1268 = vld [vmem:[#allocation10 + $0x11e8] sm:$0xff]
    %v1269 = vld [vmem:[#allocation10 + $0x11f0] sm:$0xff]
    %v1270 = vld [vmem:[#allocation10 + $0x11f8] sm:$0xff]
    %v1271 = vld [vmem:[#allocation10 + $0x1200] sm:$0xff]
    %v1272 = vld [vmem:[#allocation10 + $0x1208] sm:$0xff]
    %v1273 = vld [vmem:[#allocation10 + $0x1210] sm:$0xff]
    %v1274 = vld [vmem:[#allocation10 + $0x1218] sm:$0xff]
    %v1275 = vld [vmem:[#allocation10 + $0x1220] sm:$0xff]
    %v1276 = vld [vmem:[#allocation10 + $0x1228] sm:$0xff]
    %v1277 = vld [vmem:[#allocation10 + $0x1230] sm:$0xff]
    %v1278 = vld [vmem:[#allocation10 + $0x1238] sm:$0xff]
    %v1279 = vld [vmem:[#allocation10 + $0x1240] sm:$0xff]
    %v1280 = vld [vmem:[#allocation10 + $0x1248] sm:$0xff]
    %v1281 = vld [vmem:[#allocation10 + $0x1250] sm:$0xff]
    %v1282 = vld [vmem:[#allocation10 + $0x1258] sm:$0xff]
    %v1283 = vld [vmem:[#allocation10 + $0x1260] sm:$0xff]
    %v1284 = vld [vmem:[#allocation10 + $0x1268] sm:$0xff]
    %v1285 = vld [vmem:[#allocation10 + $0x1270] sm:$0xff]
    %v1286 = vld [vmem:[#allocation10 + $0x1278] sm:$0xff]
    %v1287 = vld [vmem:[#allocation10 + $0x1280] sm:$0xff]
    %v1288 = vld [vmem:[#allocation10 + $0x1288] sm:$0xff]
    %v1289 = vld [vmem:[#allocation10 + $0x1290] sm:$0xff]
    %v1290 = vld [vmem:[#allocation10 + $0x1298] sm:$0xff]
    %v1291 = vld [vmem:[#allocation10 + $0x12a0] sm:$0xff]
    %v1292 = vld [vmem:[#allocation10 + $0x12a8] sm:$0xff]
    %v1293 = vld [vmem:[#allocation10 + $0x12b0] sm:$0xff]
    %v1294 = vld [vmem:[#allocation10 + $0x12b8] sm:$0xff]
    %v1295 = vld [vmem:[#allocation10 + $0x12c0] sm:$0xff]
    %v1296 = vld [vmem:[#allocation10 + $0x12c8] sm:$0xff]
    %v1297 = vld [vmem:[#allocation10 + $0x12d0] sm:$0xff]
    %v1298 = vld [vmem:[#allocation10 + $0x12d8] sm:$0xff]
    %v1299 = vld [vmem:[#allocation10 + $0x12e0] sm:$0xff]
    %v1300 = vld [vmem:[#allocation10 + $0x12e8] sm:$0xff]
    %v1301 = vld [vmem:[#allocation10 + $0x12f0] sm:$0xff]
    %v1302 = vld [vmem:[#allocation10 + $0x12f8] sm:$0xff]
    %v1303 = vld [vmem:[#allocation10 + $0x1300] sm:$0xff]
    %v1304 = vld [vmem:[#allocation10 + $0x1308] sm:$0xff]
    %v1305 = vld [vmem:[#allocation10 + $0x1310] sm:$0xff]
    %v1306 = vld [vmem:[#allocation10 + $0x1318] sm:$0xff]
    %v1307 = vld [vmem:[#allocation10 + $0x1320] sm:$0xff]
    %v1308 = vld [vmem:[#allocation10 + $0x1328] sm:$0xff]
    %v1309 = vld [vmem:[#allocation10 + $0x1330] sm:$0xff]
    %v1310 = vld [vmem:[#allocation10 + $0x1338] sm:$0xff]
    %v1311 = vld [vmem:[#allocation10 + $0x1340] sm:$0xff]
    %v1312 = vld [vmem:[#allocation10 + $0x1348] sm:$0xff]
    %v1313 = vld [vmem:[#allocation10 + $0x1350] sm:$0xff]
    %v1314 = vld [vmem:[#allocation10 + $0x1358] sm:$0xff]
    %v1315 = vld [vmem:[#allocation10 + $0x1360] sm:$0xff]
    %v1316 = vld [vmem:[#allocation10 + $0x1368] sm:$0xff]
    %v1317 = vld [vmem:[#allocation10 + $0x1370] sm:$0xff]
    %v1318 = vld [vmem:[#allocation10 + $0x1378] sm:$0xff]
    %v1319 = vld [vmem:[#allocation10 + $0x1380] sm:$0xff]
    %v1320 = vld [vmem:[#allocation10 + $0x1388] sm:$0xff]
    %v1321 = vld [vmem:[#allocation10 + $0x1390] sm:$0xff]
    %v1322 = vld [vmem:[#allocation10 + $0x1398] sm:$0xff]
    %v1323 = vld [vmem:[#allocation10 + $0x13a0] sm:$0xff]
    %v1324 = vld [vmem:[#allocation10 + $0x13a8] sm:$0xff]
    %v1325 = vld [vmem:[#allocation10 + $0x13b0] sm:$0xff]
    %v1326 = vld [vmem:[#allocation10 + $0x13b8] sm:$0xff]
    %v1327 = vld [vmem:[#allocation10 + $0x13c0] sm:$0xff]
    %v1328 = vld [vmem:[#allocation10 + $0x13c8] sm:$0xff]
    %v1329 = vld [vmem:[#allocation10 + $0x13d0] sm:$0xff]
    %v1330 = vld [vmem:[#allocation10 + $0x13d8] sm:$0xff]
    %v1331 = vld [vmem:[#allocation10 + $0x13e0] sm:$0xff]
    %v1332 = vld [vmem:[#allocation10 + $0x13e8] sm:$0xff]
    %v1333 = vld [vmem:[#allocation10 + $0x13f0] sm:$0xff]
    %v1334 = vld [vmem:[#allocation10 + $0x13f8] sm:$0xff]
    %v1335 = vld [vmem:[#allocation10 + $0x1400] sm:$0xff]
    %v1336 = vld [vmem:[#allocation10 + $0x1408] sm:$0xff]
    %v1337 = vld [vmem:[#allocation10 + $0x1410] sm:$0xff]
    %v1338 = vld [vmem:[#allocation10 + $0x1418] sm:$0xff]
    %v1339 = vld [vmem:[#allocation10 + $0x1420] sm:$0xff]
    %v1340 = vld [vmem:[#allocation10 + $0x1428] sm:$0xff]
    %v1341 = vld [vmem:[#allocation10 + $0x1430] sm:$0xff]
    %v1342 = vld [vmem:[#allocation10 + $0x1438] sm:$0xff]
    %v1343 = vld [vmem:[#allocation10 + $0x1440] sm:$0xff]
    %v1344 = vld [vmem:[#allocation10 + $0x1448] sm:$0xff]
    %v1345 = vld [vmem:[#allocation10 + $0x1450] sm:$0xff]
    %v1346 = vld [vmem:[#allocation10 + $0x1458] sm:$0xff]
    %v1347 = vld [vmem:[#allocation10 + $0x1460] sm:$0xff]
    %v1348 = vld [vmem:[#allocation10 + $0x1468] sm:$0xff]
    %v1349 = vld [vmem:[#allocation10 + $0x1470] sm:$0xff]
    %v1350 = vld [vmem:[#allocation10 + $0x1478] sm:$0xff]
    %v1351 = vld [vmem:[#allocation10 + $0x1480] sm:$0xff]
    %v1352 = vld [vmem:[#allocation10 + $0x1488] sm:$0xff]
    %v1353 = vld [vmem:[#allocation10 + $0x1490] sm:$0xff]
    %v1354 = vld [vmem:[#allocation10 + $0x1498] sm:$0xff]
    %v1355 = vld [vmem:[#allocation10 + $0x14a0] sm:$0xff]
    %v1356 = vld [vmem:[#allocation10 + $0x14a8] sm:$0xff]
    %v1357 = vld [vmem:[#allocation10 + $0x14b0] sm:$0xff]
    %v1358 = vld [vmem:[#allocation10 + $0x14b8] sm:$0xff]
    %v1359 = vld [vmem:[#allocation10 + $0x14c0] sm:$0xff]
    %v1360 = vld [vmem:[#allocation10 + $0x14c8] sm:$0xff]
    %v1361 = vld [vmem:[#allocation10 + $0x14d0] sm:$0xff]
    %v1362 = vld [vmem:[#allocation10 + $0x14d8] sm:$0xff]
    %v1363 = vld [vmem:[#allocation10 + $0x14e0] sm:$0xff]
    %v1364 = vld [vmem:[#allocation10 + $0x14e8] sm:$0xff]
    %v1365 = vld [vmem:[#allocation10 + $0x14f0] sm:$0xff]
    %v1366 = vld [vmem:[#allocation10 + $0x14f8] sm:$0xff]
    %v1367 = vld [vmem:[#allocation10 + $0x1500] sm:$0xff]
    %v1368 = vld [vmem:[#allocation10 + $0x1508] sm:$0xff]
    %v1369 = vld [vmem:[#allocation10 + $0x1510] sm:$0xff]
    %v1370 = vld [vmem:[#allocation10 + $0x1518] sm:$0xff]
    %v1371 = vld [vmem:[#allocation10 + $0x1520] sm:$0xff]
    %v1372 = vld [vmem:[#allocation10 + $0x1528] sm:$0xff]
    %v1373 = vld [vmem:[#allocation10 + $0x1530] sm:$0xff]
    %v1374 = vld [vmem:[#allocation10 + $0x1538] sm:$0xff]
    %v1375 = vld [vmem:[#allocation10 + $0x1540] sm:$0xff]
    %v1376 = vld [vmem:[#allocation10 + $0x1548] sm:$0xff]
    %v1377 = vld [vmem:[#allocation10 + $0x1550] sm:$0xff]
    %v1378 = vld [vmem:[#allocation10 + $0x1558] sm:$0xff]
    %v1379 = vld [vmem:[#allocation10 + $0x1560] sm:$0xff]
    %v1380 = vld [vmem:[#allocation10 + $0x1568] sm:$0xff]
    %v1381 = vld [vmem:[#allocation10 + $0x1570] sm:$0xff]
    %v1382 = vld [vmem:[#allocation10 + $0x1578] sm:$0xff]
    %v1383 = vld [vmem:[#allocation10 + $0x1580] sm:$0xff]
    %v1384 = vld [vmem:[#allocation10 + $0x1588] sm:$0xff]
    %v1385 = vld [vmem:[#allocation10 + $0x1590] sm:$0xff]
    %v1386 = vld [vmem:[#allocation10 + $0x1598] sm:$0xff]
    %v1387 = vld [vmem:[#allocation10 + $0x15a0] sm:$0xff]
    %v1388 = vld [vmem:[#allocation10 + $0x15a8] sm:$0xff]
    %v1389 = vld [vmem:[#allocation10 + $0x15b0] sm:$0xff]
    %v1390 = vld [vmem:[#allocation10 + $0x15b8] sm:$0xff]
    %v1391 = vld [vmem:[#allocation10 + $0x15c0] sm:$0xff]
    %v1392 = vld [vmem:[#allocation10 + $0x15c8] sm:$0xff]
    %v1393 = vld [vmem:[#allocation10 + $0x15d0] sm:$0xff]
    %v1394 = vld [vmem:[#allocation10 + $0x15d8] sm:$0xff]
    %v1395 = vld [vmem:[#allocation10 + $0x15e0] sm:$0xff]
    %v1396 = vld [vmem:[#allocation10 + $0x15e8] sm:$0xff]
    %v1397 = vld [vmem:[#allocation10 + $0x15f0] sm:$0xff]
    %v1398 = vld [vmem:[#allocation10 + $0x15f8] sm:$0xff]
    %v1399 = vld [vmem:[#allocation10 + $0x1600] sm:$0xff]
    %v1400 = vld [vmem:[#allocation10 + $0x1608] sm:$0xff]
    %v1401 = vld [vmem:[#allocation10 + $0x1610] sm:$0xff]
    %v1402 = vld [vmem:[#allocation10 + $0x1618] sm:$0xff]
    %v1403 = vld [vmem:[#allocation10 + $0x1620] sm:$0xff]
    %v1404 = vld [vmem:[#allocation10 + $0x1628] sm:$0xff]
    %v1405 = vld [vmem:[#allocation10 + $0x1630] sm:$0xff]
    %v1406 = vld [vmem:[#allocation10 + $0x1638] sm:$0xff]
    %v1407 = vld [vmem:[#allocation10 + $0x1640] sm:$0xff]
    %v1408 = vld [vmem:[#allocation10 + $0x1648] sm:$0xff]
    %v1409 = vld [vmem:[#allocation10 + $0x1650] sm:$0xff]
    %v1410 = vld [vmem:[#allocation10 + $0x1658] sm:$0xff]
    %v1411 = vld [vmem:[#allocation10 + $0x1660] sm:$0xff]
    %v1412 = vld [vmem:[#allocation10 + $0x1668] sm:$0xff]
    %v1413 = vld [vmem:[#allocation10 + $0x1670] sm:$0xff]
    %v1414 = vld [vmem:[#allocation10 + $0x1678] sm:$0xff]
    %v1415 = vld [vmem:[#allocation10 + $0x1680] sm:$0xff]
    %v1416 = vld [vmem:[#allocation10 + $0x1688] sm:$0xff]
    %v1417 = vld [vmem:[#allocation10 + $0x1690] sm:$0xff]
    %v1418 = vld [vmem:[#allocation10 + $0x1698] sm:$0xff]
    %v1419 = vld [vmem:[#allocation10 + $0x16a0] sm:$0xff]
    %v1420 = vld [vmem:[#allocation10 + $0x16a8] sm:$0xff]
    %v1421 = vld [vmem:[#allocation10 + $0x16b0] sm:$0xff]
    %v1422 = vld [vmem:[#allocation10 + $0x16b8] sm:$0xff]
    %v1423 = vld [vmem:[#allocation10 + $0x16c0] sm:$0xff]
    %v1424 = vld [vmem:[#allocation10 + $0x16c8] sm:$0xff]
    %v1425 = vld [vmem:[#allocation10 + $0x16d0] sm:$0xff]
    %v1426 = vld [vmem:[#allocation10 + $0x16d8] sm:$0xff]
    %v1427 = vld [vmem:[#allocation10 + $0x16e0] sm:$0xff]
    %v1428 = vld [vmem:[#allocation10 + $0x16e8] sm:$0xff]
    %v1429 = vld [vmem:[#allocation10 + $0x16f0] sm:$0xff]
    %v1430 = vld [vmem:[#allocation10 + $0x16f8] sm:$0xff]
    %v1431 = vld [vmem:[#allocation10 + $0x1700] sm:$0xff]
    %v1432 = vld [vmem:[#allocation10 + $0x1708] sm:$0xff]
    %v1433 = vld [vmem:[#allocation10 + $0x1710] sm:$0xff]
    %v1434 = vld [vmem:[#allocation10 + $0x1718] sm:$0xff]
    %v1435 = vld [vmem:[#allocation10 + $0x1720] sm:$0xff]
    %v1436 = vld [vmem:[#allocation10 + $0x1728] sm:$0xff]
    %v1437 = vld [vmem:[#allocation10 + $0x1730] sm:$0xff]
    %v1438 = vld [vmem:[#allocation10 + $0x1738] sm:$0xff]
    %v1439 = vld [vmem:[#allocation10 + $0x1740] sm:$0xff]
    %v1440 = vld [vmem:[#allocation10 + $0x1748] sm:$0xff]
    %v1441 = vld [vmem:[#allocation10 + $0x1750] sm:$0xff]
    %v1442 = vld [vmem:[#allocation10 + $0x1758] sm:$0xff]
    %v1443 = vld [vmem:[#allocation10 + $0x1760] sm:$0xff]
    %v1444 = vld [vmem:[#allocation10 + $0x1768] sm:$0xff]
    %v1445 = vld [vmem:[#allocation10 + $0x1770] sm:$0xff]
    %v1446 = vld [vmem:[#allocation10 + $0x1778] sm:$0xff]
    %v1447 = vld [vmem:[#allocation10 + $0x1780] sm:$0xff]
    %v1448 = vld [vmem:[#allocation10 + $0x1788] sm:$0xff]
    %v1449 = vld [vmem:[#allocation10 + $0x1790] sm:$0xff]
    %v1450 = vld [vmem:[#allocation10 + $0x1798] sm:$0xff]
    %v1451 = vld [vmem:[#allocation10 + $0x17a0] sm:$0xff]
    %v1452 = vld [vmem:[#allocation10 + $0x17a8] sm:$0xff]
    %v1453 = vld [vmem:[#allocation10 + $0x17b0] sm:$0xff]
    %v1454 = vld [vmem:[#allocation10 + $0x17b8] sm:$0xff]
    %v1455 = vld [vmem:[#allocation10 + $0x17c0] sm:$0xff]
    %v1456 = vld [vmem:[#allocation10 + $0x17c8] sm:$0xff]
    %v1457 = vld [vmem:[#allocation10 + $0x17d0] sm:$0xff]
    %v1458 = vld [vmem:[#allocation10 + $0x17d8] sm:$0xff]
    %v1459 = vld [vmem:[#allocation10 + $0x17e0] sm:$0xff]
    %v1460 = vld [vmem:[#allocation10 + $0x17e8] sm:$0xff]
    %v1461 = vld [vmem:[#allocation10 + $0x17f0] sm:$0xff]
    %v1462 = vld [vmem:[#allocation10 + $0x17f8] sm:$0xff]
    %v1463 = vld [vmem:[#allocation10 + $0x1800] sm:$0xff]
    %v1464 = vld [vmem:[#allocation10 + $0x1808] sm:$0xff]
    %v1465 = vld [vmem:[#allocation10 + $0x1810] sm:$0xff]
    %v1466 = vld [vmem:[#allocation10 + $0x1818] sm:$0xff]
    %v1467 = vld [vmem:[#allocation10 + $0x1820] sm:$0xff]
    %v1468 = vld [vmem:[#allocation10 + $0x1828] sm:$0xff]
    %v1469 = vld [vmem:[#allocation10 + $0x1830] sm:$0xff]
    %v1470 = vld [vmem:[#allocation10 + $0x1838] sm:$0xff]
    %v1471 = vld [vmem:[#allocation10 + $0x1840] sm:$0xff]
    %v1472 = vld [vmem:[#allocation10 + $0x1848] sm:$0xff]
    %v1473 = vld [vmem:[#allocation10 + $0x1850] sm:$0xff]
    %v1474 = vld [vmem:[#allocation10 + $0x1858] sm:$0xff]
    %v1475 = vld [vmem:[#allocation10 + $0x1860] sm:$0xff]
    %v1476 = vld [vmem:[#allocation10 + $0x1868] sm:$0xff]
    %v1477 = vld [vmem:[#allocation10 + $0x1870] sm:$0xff]
    %v1478 = vld [vmem:[#allocation10 + $0x1878] sm:$0xff]
    %v1479 = vld [vmem:[#allocation10 + $0x1880] sm:$0xff]
    %v1480 = vld [vmem:[#allocation10 + $0x1888] sm:$0xff]
    %v1481 = vld [vmem:[#allocation10 + $0x1890] sm:$0xff]
    %v1482 = vld [vmem:[#allocation10 + $0x1898] sm:$0xff]
    %v1483 = vld [vmem:[#allocation10 + $0x18a0] sm:$0xff]
    %v1484 = vld [vmem:[#allocation10 + $0x18a8] sm:$0xff]
    %v1485 = vld [vmem:[#allocation10 + $0x18b0] sm:$0xff]
    %v1486 = vld [vmem:[#allocation10 + $0x18b8] sm:$0xff]
    %v1487 = vld [vmem:[#allocation10 + $0x18c0] sm:$0xff]
    %v1488 = vld [vmem:[#allocation10 + $0x18c8] sm:$0xff]
    %v1489 = vld [vmem:[#allocation10 + $0x18d0] sm:$0xff]
    %v1490 = vld [vmem:[#allocation10 + $0x18d8] sm:$0xff]
    %v1491 = vld [vmem:[#allocation10 + $0x18e0] sm:$0xff]
    %v1492 = vld [vmem:[#allocation10 + $0x18e8] sm:$0xff]
    %v1493 = vld [vmem:[#allocation10 + $0x18f0] sm:$0xff]
    %v1494 = vld [vmem:[#allocation10 + $0x18f8] sm:$0xff]
    %v1495 = vld [vmem:[#allocation10 + $0x1900] sm:$0xff]
    %v1496 = vld [vmem:[#allocation10 + $0x1908] sm:$0xff]
    %v1497 = vld [vmem:[#allocation10 + $0x1910] sm:$0xff]
    %v1498 = vld [vmem:[#allocation10 + $0x1918] sm:$0xff]
    %v1499 = vld [vmem:[#allocation10 + $0x1920] sm:$0xff]
    %v1500 = vld [vmem:[#allocation10 + $0x1928] sm:$0xff]
    %v1501 = vld [vmem:[#allocation10 + $0x1930] sm:$0xff]
    %v1502 = vld [vmem:[#allocation10 + $0x1938] sm:$0xff]
    %v1503 = vld [vmem:[#allocation10 + $0x1940] sm:$0xff]
    %v1504 = vld [vmem:[#allocation10 + $0x1948] sm:$0xff]
    %v1505 = vld [vmem:[#allocation10 + $0x1950] sm:$0xff]
    %v1506 = vld [vmem:[#allocation10 + $0x1958] sm:$0xff]
    %v1507 = vld [vmem:[#allocation10 + $0x1960] sm:$0xff]
    %v1508 = vld [vmem:[#allocation10 + $0x1968] sm:$0xff]
    %v1509 = vld [vmem:[#allocation10 + $0x1970] sm:$0xff]
    %v1510 = vld [vmem:[#allocation10 + $0x1978] sm:$0xff]
    %v1511 = vld [vmem:[#allocation10 + $0x1980] sm:$0xff]
    %v1512 = vld [vmem:[#allocation10 + $0x1988] sm:$0xff]
    %v1513 = vld [vmem:[#allocation10 + $0x1990] sm:$0xff]
    %v1514 = vld [vmem:[#allocation10 + $0x1998] sm:$0xff]
    %v1515 = vld [vmem:[#allocation10 + $0x19a0] sm:$0xff]
    %v1516 = vld [vmem:[#allocation10 + $0x19a8] sm:$0xff]
    %v1517 = vld [vmem:[#allocation10 + $0x19b0] sm:$0xff]
    %v1518 = vld [vmem:[#allocation10 + $0x19b8] sm:$0xff]
    %v1519 = vld [vmem:[#allocation10 + $0x19c0] sm:$0xff]
    %v1520 = vld [vmem:[#allocation10 + $0x19c8] sm:$0xff]
    %v1521 = vld [vmem:[#allocation10 + $0x19d0] sm:$0xff]
    %v1522 = vld [vmem:[#allocation10 + $0x19d8] sm:$0xff]
    %v1523 = vld [vmem:[#allocation10 + $0x19e0] sm:$0xff]
    %v1524 = vld [vmem:[#allocation10 + $0x19e8] sm:$0xff]
    %v1525 = vld [vmem:[#allocation10 + $0x19f0] sm:$0xff]
    %v1526 = vld [vmem:[#allocation10 + $0x19f8] sm:$0xff]
    %v1527 = vld [vmem:[#allocation10 + $0x1a00] sm:$0xff]
    %v1528 = vld [vmem:[#allocation10 + $0x1a08] sm:$0xff]
    %v1529 = vld [vmem:[#allocation10 + $0x1a10] sm:$0xff]
    %v1530 = vld [vmem:[#allocation10 + $0x1a18] sm:$0xff]
    %v1531 = vld [vmem:[#allocation10 + $0x1a20] sm:$0xff]
    %v1532 = vld [vmem:[#allocation10 + $0x1a28] sm:$0xff]
    %v1533 = vld [vmem:[#allocation10 + $0x1a30] sm:$0xff]
    %v1534 = vld [vmem:[#allocation10 + $0x1a38] sm:$0xff]
    %v1535 = vld [vmem:[#allocation10 + $0x1a40] sm:$0xff]
    %v1536 = vld [vmem:[#allocation10 + $0x1a48] sm:$0xff]
    %v1537 = vld [vmem:[#allocation10 + $0x1a50] sm:$0xff]
    %v1538 = vld [vmem:[#allocation10 + $0x1a58] sm:$0xff]
    %v1539 = vld [vmem:[#allocation10 + $0x1a60] sm:$0xff]
    %v1540 = vld [vmem:[#allocation10 + $0x1a68] sm:$0xff]
    %v1541 = vld [vmem:[#allocation10 + $0x1a70] sm:$0xff]
    %v1542 = vld [vmem:[#allocation10 + $0x1a78] sm:$0xff]
    %v1543 = vld [vmem:[#allocation10 + $0x1a80] sm:$0xff]
    %v1544 = vld [vmem:[#allocation10 + $0x1a88] sm:$0xff]
    %v1545 = vld [vmem:[#allocation10 + $0x1a90] sm:$0xff]
    %v1546 = vld [vmem:[#allocation10 + $0x1a98] sm:$0xff]
    %v1547 = vld [vmem:[#allocation10 + $0x1aa0] sm:$0xff]
    %v1548 = vld [vmem:[#allocation10 + $0x1aa8] sm:$0xff]
    %v1549 = vld [vmem:[#allocation10 + $0x1ab0] sm:$0xff]
    %v1550 = vld [vmem:[#allocation10 + $0x1ab8] sm:$0xff]
    %v1551 = vld [vmem:[#allocation10 + $0x1ac0] sm:$0xff]
    %v1552 = vld [vmem:[#allocation10 + $0x1ac8] sm:$0xff]
    %v1553 = vld [vmem:[#allocation10 + $0x1ad0] sm:$0xff]
    %v1554 = vld [vmem:[#allocation10 + $0x1ad8] sm:$0xff]
    %v1555 = vld [vmem:[#allocation10 + $0x1ae0] sm:$0xff]
    %v1556 = vld [vmem:[#allocation10 + $0x1ae8] sm:$0xff]
    %v1557 = vld [vmem:[#allocation10 + $0x1af0] sm:$0xff]
    %v1558 = vld [vmem:[#allocation10 + $0x1af8] sm:$0xff]
    %v1559 = vld [vmem:[#allocation10 + $0x1b00] sm:$0xff]
    %v1560 = vld [vmem:[#allocation10 + $0x1b08] sm:$0xff]
    %v1561 = vld [vmem:[#allocation10 + $0x1b10] sm:$0xff]
    %v1562 = vld [vmem:[#allocation10 + $0x1b18] sm:$0xff]
    %v1563 = vld [vmem:[#allocation10 + $0x1b20] sm:$0xff]
    %v1564 = vld [vmem:[#allocation10 + $0x1b28] sm:$0xff]
    %v1565 = vld [vmem:[#allocation10 + $0x1b30] sm:$0xff]
    %v1566 = vld [vmem:[#allocation10 + $0x1b38] sm:$0xff]
    %v1567 = vld [vmem:[#allocation10 + $0x1b40] sm:$0xff]
    %v1568 = vld [vmem:[#allocation10 + $0x1b48] sm:$0xff]
    %v1569 = vld [vmem:[#allocation10 + $0x1b50] sm:$0xff]
    %v1570 = vld [vmem:[#allocation10 + $0x1b58] sm:$0xff]
    %v1571 = vld [vmem:[#allocation10 + $0x1b60] sm:$0xff]
    %v1572 = vld [vmem:[#allocation10 + $0x1b68] sm:$0xff]
    %v1573 = vld [vmem:[#allocation10 + $0x1b70] sm:$0xff]
    %v1574 = vld [vmem:[#allocation10 + $0x1b78] sm:$0xff]
    %v1575 = vld [vmem:[#allocation10 + $0x1b80] sm:$0xff]
    %v1576 = vld [vmem:[#allocation10 + $0x1b88] sm:$0xff]
    %v1577 = vld [vmem:[#allocation10 + $0x1b90] sm:$0xff]
    %v1578 = vld [vmem:[#allocation10 + $0x1b98] sm:$0xff]
    %v1579 = vld [vmem:[#allocation10 + $0x1ba0] sm:$0xff]
    %v1580 = vld [vmem:[#allocation10 + $0x1ba8] sm:$0xff]
    %v1581 = vld [vmem:[#allocation10 + $0x1bb0] sm:$0xff]
    %v1582 = vld [vmem:[#allocation10 + $0x1bb8] sm:$0xff]
    %v1583 = vld [vmem:[#allocation10 + $0x1bc0] sm:$0xff]
    %v1584 = vld [vmem:[#allocation10 + $0x1bc8] sm:$0xff]
    %v1585 = vld [vmem:[#allocation10 + $0x1bd0] sm:$0xff]
    %v1586 = vld [vmem:[#allocation10 + $0x1bd8] sm:$0xff]
    %v1587 = vld [vmem:[#allocation10 + $0x1be0] sm:$0xff]
    %v1588 = vld [vmem:[#allocation10 + $0x1be8] sm:$0xff]
    %v1589 = vld [vmem:[#allocation10 + $0x1bf0] sm:$0xff]
    %v1590 = vld [vmem:[#allocation10 + $0x1bf8] sm:$0xff]
    %v1591 = vld [vmem:[#allocation10 + $0x1c00] sm:$0xff]
    %v1592 = vld [vmem:[#allocation10 + $0x1c08] sm:$0xff]
    %v1593 = vld [vmem:[#allocation10 + $0x1c10] sm:$0xff]
    %v1594 = vld [vmem:[#allocation10 + $0x1c18] sm:$0xff]
    %v1595 = vld [vmem:[#allocation10 + $0x1c20] sm:$0xff]
    %v1596 = vld [vmem:[#allocation10 + $0x1c28] sm:$0xff]
    %v1597 = vld [vmem:[#allocation10 + $0x1c30] sm:$0xff]
    %v1598 = vld [vmem:[#allocation10 + $0x1c38] sm:$0xff]
    %v1599 = vld [vmem:[#allocation10 + $0x1c40] sm:$0xff]
    %v1600 = vld [vmem:[#allocation10 + $0x1c48] sm:$0xff]
    %v1601 = vld [vmem:[#allocation10 + $0x1c50] sm:$0xff]
    %v1602 = vld [vmem:[#allocation10 + $0x1c58] sm:$0xff]
    %v1603 = vld [vmem:[#allocation10 + $0x1c60] sm:$0xff]
    %v1604 = vld [vmem:[#allocation10 + $0x1c68] sm:$0xff]
    %v1605 = vld [vmem:[#allocation10 + $0x1c70] sm:$0xff]
    %v1606 = vld [vmem:[#allocation10 + $0x1c78] sm:$0xff]
    %v1607 = vld [vmem:[#allocation11] sm:$0x3f]
    %v1609 = vlaneseq
    %v1610 = vshrl.u32 %v1609, 7
    %v1611 = vsub.s32 0, %v1610
    %v1612 = vrot.slane %v1607, %v1611
    %v1613 = vlaneseq
    %v1614 = vshrl.u32 %v1613, 7
    %v1615 = vsub.s32 1, %v1614
    %v1616 = vrot.slane %v1607, %v1615
    %v1617 = vlaneseq
    %v1618 = vshrl.u32 %v1617, 7
    %v1619 = vsub.s32 2, %v1618
    %v1620 = vrot.slane %v1607, %v1619
    %v1621 = vlaneseq
    %v1622 = vshrl.u32 %v1621, 7
    %v1623 = vsub.s32 3, %v1622
    %v1624 = vrot.slane %v1607, %v1623
    %v1625 = vlaneseq
    %v1626 = vshrl.u32 %v1625, 7
    %v1627 = vsub.s32 4, %v1626
    %v1628 = vrot.slane %v1607, %v1627
    %v1629 = vlaneseq
    %v1630 = vshrl.u32 %v1629, 7
    %v1631 = vsub.s32 5, %v1630
    %v1632 = vrot.slane %v1607, %v1631
    %v2551 = vunpack.c.l.b16 %v695
    %v2552 = vunpack.c.h.b16 %v695
    %v2553 = vunpack.c.l.b16 %v696
    %v2554 = vunpack.c.h.b16 %v696
    %v2555 = vunpack.c.l.b16 %v697
    %v2556 = vunpack.c.h.b16 %v697
    %v2557 = vunpack.c.l.b16 %v698
    %v2558 = vunpack.c.h.b16 %v698
    %v2559 = vunpack.c.l.b16 %v699
    %v2560 = vunpack.c.h.b16 %v699
    %v2561 = vunpack.c.l.b16 %v700
    %v2562 = vunpack.c.h.b16 %v700
    %v2563 = vunpack.c.l.b16 %v701
    %v2564 = vunpack.c.h.b16 %v701
    %v2565 = vunpack.c.l.b16 %v702
    %v2566 = vunpack.c.h.b16 %v702
    %v2567 = vunpack.c.l.b16 %v703
    %v2568 = vunpack.c.h.b16 %v703
    %v2569 = vunpack.c.l.b16 %v704
    %v2570 = vunpack.c.h.b16 %v704
    %v2571 = vunpack.c.l.b16 %v705
    %v2572 = vunpack.c.h.b16 %v705
    %v2573 = vunpack.c.l.b16 %v706
    %v2574 = vunpack.c.h.b16 %v706
    %v2575 = vunpack.c.l.b16 %v707
    %v2576 = vunpack.c.h.b16 %v707
    %v2577 = vunpack.c.l.b16 %v708
    %v2578 = vunpack.c.h.b16 %v708
    %v2579 = vunpack.c.l.b16 %v709
    %v2580 = vunpack.c.h.b16 %v709
    %v2581 = vunpack.c.l.b16 %v710
    %v2582 = vunpack.c.h.b16 %v710
    %v2583 = vunpack.c.l.b16 %v711
    %v2584 = vunpack.c.h.b16 %v711
    %v2585 = vunpack.c.l.b16 %v712
    %v2586 = vunpack.c.h.b16 %v712
    %v2587 = vunpack.c.l.b16 %v713
    %v2588 = vunpack.c.h.b16 %v713
    %v2589 = vunpack.c.l.b16 %v714
    %v2590 = vunpack.c.h.b16 %v714
    %v2591 = vunpack.c.l.b16 %v715
    %v2592 = vunpack.c.h.b16 %v715
    %v2593 = vunpack.c.l.b16 %v716
    %v2594 = vunpack.c.h.b16 %v716
    %v2595 = vunpack.c.l.b16 %v717
    %v2596 = vunpack.c.h.b16 %v717
    %v2597 = vunpack.c.l.b16 %v718
    %v2598 = vunpack.c.h.b16 %v718
    %v2599 = vunpack.c.l.b16 %v719
    %v2600 = vunpack.c.h.b16 %v719
    %v2601 = vunpack.c.l.b16 %v720
    %v2602 = vunpack.c.h.b16 %v720
    %v2603 = vunpack.c.l.b16 %v721
    %v2604 = vunpack.c.h.b16 %v721
    %v2605 = vunpack.c.l.b16 %v722
    %v2606 = vunpack.c.h.b16 %v722
    %v2607 = vunpack.c.l.b16 %v723
    %v2608 = vunpack.c.h.b16 %v723
    %v2609 = vunpack.c.l.b16 %v724
    %v2610 = vunpack.c.h.b16 %v724
    %v2611 = vunpack.c.l.b16 %v725
    %v2612 = vunpack.c.h.b16 %v725
    %v2613 = vunpack.c.l.b16 %v726
    %v2614 = vunpack.c.h.b16 %v726
    %v2615 = vunpack.c.l.b16 %v727
    %v2616 = vunpack.c.h.b16 %v727
    %v2617 = vunpack.c.l.b16 %v728
    %v2618 = vunpack.c.h.b16 %v728
    %v2619 = vunpack.c.l.b16 %v729
    %v2620 = vunpack.c.h.b16 %v729
    %v2621 = vunpack.c.l.b16 %v730
    %v2622 = vunpack.c.h.b16 %v730
    %v2623 = vunpack.c.l.b16 %v731
    %v2624 = vunpack.c.h.b16 %v731
    %v2625 = vunpack.c.l.b16 %v732
    %v2626 = vunpack.c.h.b16 %v732
    %v2627 = vunpack.c.l.b16 %v733
    %v2628 = vunpack.c.h.b16 %v733
    %v2629 = vunpack.c.l.b16 %v734
    %v2630 = vunpack.c.h.b16 %v734
    %v2631 = vunpack.c.l.b16 %v735
    %v2632 = vunpack.c.h.b16 %v735
    %v2633 = vunpack.c.l.b16 %v736
    %v2634 = vunpack.c.h.b16 %v736
    %v2635 = vunpack.c.l.b16 %v737
    %v2636 = vunpack.c.h.b16 %v737
    %v2637 = vunpack.c.l.b16 %v738
    %v2638 = vunpack.c.h.b16 %v738
    %v2639 = vunpack.c.l.b16 %v739
    %v2640 = vunpack.c.h.b16 %v739
    %v2641 = vunpack.c.l.b16 %v740
    %v2642 = vunpack.c.h.b16 %v740
    %v2643 = vunpack.c.l.b16 %v741
    %v2644 = vunpack.c.h.b16 %v741
    %v2645 = vunpack.c.l.b16 %v742
    %v2646 = vunpack.c.h.b16 %v742
    %v2647 = vunpack.c.l.b16 %v743
    %v2648 = vunpack.c.h.b16 %v743
    %v2649 = vunpack.c.l.b16 %v744
    %v2650 = vunpack.c.h.b16 %v744
    %v2651 = vunpack.c.l.b16 %v745
    %v2652 = vunpack.c.h.b16 %v745
    %v2653 = vunpack.c.l.b16 %v746
    %v2654 = vunpack.c.h.b16 %v746
    %v2655 = vunpack.c.l.b16 %v747
    %v2656 = vunpack.c.h.b16 %v747
    %v2657 = vunpack.c.l.b16 %v748
    %v2658 = vunpack.c.h.b16 %v748
    %v2659 = vunpack.c.l.b16 %v749
    %v2660 = vunpack.c.h.b16 %v749
    %v2661 = vunpack.c.l.b16 %v750
    %v2662 = vunpack.c.h.b16 %v750
    %v2663 = vunpack.c.l.b16 %v751
    %v2664 = vunpack.c.h.b16 %v751
    %v2665 = vunpack.c.l.b16 %v752
    %v2666 = vunpack.c.h.b16 %v752
    %v2667 = vunpack.c.l.b16 %v753
    %v2668 = vunpack.c.h.b16 %v753
    %v2669 = vunpack.c.l.b16 %v754
    %v2670 = vunpack.c.h.b16 %v754
    %v2671 = vunpack.c.l.b16 %v755
    %v2672 = vunpack.c.h.b16 %v755
    %v2673 = vunpack.c.l.b16 %v756
    %v2674 = vunpack.c.h.b16 %v756
    %v2675 = vunpack.c.l.b16 %v757
    %v2676 = vunpack.c.h.b16 %v757
    %v2677 = vunpack.c.l.b16 %v758
    %v2678 = vunpack.c.h.b16 %v758
    %v2679 = vunpack.c.l.b16 %v759
    %v2680 = vunpack.c.h.b16 %v759
    %v2681 = vunpack.c.l.b16 %v760
    %v2682 = vunpack.c.h.b16 %v760
    %v2683 = vunpack.c.l.b16 %v761
    %v2684 = vunpack.c.h.b16 %v761
    %v2685 = vunpack.c.l.b16 %v762
    %v2686 = vunpack.c.h.b16 %v762
    %v2687 = vunpack.c.l.b16 %v763
    %v2688 = vunpack.c.h.b16 %v763
    %v2689 = vunpack.c.l.b16 %v764
    %v2690 = vunpack.c.h.b16 %v764
    %v2691 = vunpack.c.l.b16 %v765
    %v2692 = vunpack.c.h.b16 %v765
    %v2693 = vunpack.c.l.b16 %v766
    %v2694 = vunpack.c.h.b16 %v766
    %v2695 = vunpack.c.l.b16 %v767
    %v2696 = vunpack.c.h.b16 %v767
    %v2697 = vunpack.c.l.b16 %v768
    %v2698 = vunpack.c.h.b16 %v768
    %v2699 = vunpack.c.l.b16 %v769
    %v2700 = vunpack.c.h.b16 %v769
    %v2701 = vunpack.c.l.b16 %v770
    %v2702 = vunpack.c.h.b16 %v770
    %v2703 = vunpack.c.l.b16 %v771
    %v2704 = vunpack.c.h.b16 %v771
    %v2705 = vunpack.c.l.b16 %v772
    %v2706 = vunpack.c.h.b16 %v772
    %v2707 = vunpack.c.l.b16 %v773
    %v2708 = vunpack.c.h.b16 %v773
    %v2709 = vunpack.c.l.b16 %v774
    %v2710 = vunpack.c.h.b16 %v774
    %v2711 = vunpack.c.l.b16 %v775
    %v2712 = vunpack.c.h.b16 %v775
    %v2713 = vunpack.c.l.b16 %v776
    %v2714 = vunpack.c.h.b16 %v776
    %v2715 = vunpack.c.l.b16 %v777
    %v2716 = vunpack.c.h.b16 %v777
    %v2717 = vunpack.c.l.b16 %v778
    %v2718 = vunpack.c.h.b16 %v778
    %v2719 = vunpack.c.l.b16 %v779
    %v2720 = vunpack.c.h.b16 %v779
    %v2721 = vunpack.c.l.b16 %v780
    %v2722 = vunpack.c.h.b16 %v780
    %v2723 = vunpack.c.l.b16 %v781
    %v2724 = vunpack.c.h.b16 %v781
    %v2725 = vunpack.c.l.b16 %v782
    %v2726 = vunpack.c.h.b16 %v782
    %v2727 = vunpack.c.l.b16 %v783
    %v2728 = vunpack.c.h.b16 %v783
    %v2729 = vunpack.c.l.b16 %v784
    %v2730 = vunpack.c.h.b16 %v784
    %v2731 = vunpack.c.l.b16 %v785
    %v2732 = vunpack.c.h.b16 %v785
    %v2733 = vunpack.c.l.b16 %v786
    %v2734 = vunpack.c.h.b16 %v786
    %v2735 = vunpack.c.l.b16 %v787
    %v2736 = vunpack.c.h.b16 %v787
    %v2737 = vunpack.c.l.b16 %v788
    %v2738 = vunpack.c.h.b16 %v788
    %v2739 = vunpack.c.l.b16 %v789
    %v2740 = vunpack.c.h.b16 %v789
    %v2741 = vunpack.c.l.b16 %v790
    %v2742 = vunpack.c.h.b16 %v790
    %v2743 = vunpack.c.l.b16 %v791
    %v2744 = vunpack.c.h.b16 %v791
    %v2745 = vunpack.c.l.b16 %v792
    %v2746 = vunpack.c.h.b16 %v792
    %v2747 = vunpack.c.l.b16 %v793
    %v2748 = vunpack.c.h.b16 %v793
    %v2749 = vunpack.c.l.b16 %v794
    %v2750 = vunpack.c.h.b16 %v794
    %v2751 = vunpack.c.l.b16 %v795
    %v2752 = vunpack.c.h.b16 %v795
    %v2753 = vunpack.c.l.b16 %v796
    %v2754 = vunpack.c.h.b16 %v796
    %v2755 = vunpack.c.l.b16 %v797
    %v2756 = vunpack.c.h.b16 %v797
    %v2757 = vunpack.c.l.b16 %v798
    %v2758 = vunpack.c.h.b16 %v798
    %v2759 = vunpack.c.l.b16 %v799
    %v2760 = vunpack.c.h.b16 %v799
    %v2761 = vunpack.c.l.b16 %v800
    %v2762 = vunpack.c.h.b16 %v800
    %v2763 = vunpack.c.l.b16 %v801
    %v2764 = vunpack.c.h.b16 %v801
    %v2765 = vunpack.c.l.b16 %v802
    %v2766 = vunpack.c.h.b16 %v802
    %v2767 = vunpack.c.l.b16 %v803
    %v2768 = vunpack.c.h.b16 %v803
    %v2769 = vunpack.c.l.b16 %v804
    %v2770 = vunpack.c.h.b16 %v804
    %v2771 = vunpack.c.l.b16 %v805
    %v2772 = vunpack.c.h.b16 %v805
    %v2773 = vunpack.c.l.b16 %v806
    %v2774 = vunpack.c.h.b16 %v806
    %v2775 = vunpack.c.l.b16 %v807
    %v2776 = vunpack.c.h.b16 %v807
    %v2777 = vunpack.c.l.b16 %v808
    %v2778 = vunpack.c.h.b16 %v808
    %v2779 = vunpack.c.l.b16 %v809
    %v2780 = vunpack.c.h.b16 %v809
    %v2781 = vunpack.c.l.b16 %v810
    %v2782 = vunpack.c.h.b16 %v810
    %v2783 = vunpack.c.l.b16 %v811
    %v2784 = vunpack.c.h.b16 %v811
    %v2785 = vunpack.c.l.b16 %v812
    %v2786 = vunpack.c.h.b16 %v812
    %v2787 = vunpack.c.l.b16 %v813
    %v2788 = vunpack.c.h.b16 %v813
    %v2789 = vunpack.c.l.b16 %v814
    %v2790 = vunpack.c.h.b16 %v814
    %v2791 = vunpack.c.l.b16 %v815
    %v2792 = vunpack.c.h.b16 %v815
    %v2793 = vunpack.c.l.b16 %v816
    %v2794 = vunpack.c.h.b16 %v816
    %v2795 = vunpack.c.l.b16 %v817
    %v2796 = vunpack.c.h.b16 %v817
    %v2797 = vunpack.c.l.b16 %v818
    %v2798 = vunpack.c.h.b16 %v818
    %v2799 = vunpack.c.l.b16 %v819
    %v2800 = vunpack.c.h.b16 %v819
    %v2801 = vunpack.c.l.b16 %v820
    %v2802 = vunpack.c.h.b16 %v820
    %v2803 = vunpack.c.l.b16 %v821
    %v2804 = vunpack.c.h.b16 %v821
    %v2805 = vunpack.c.l.b16 %v822
    %v2806 = vunpack.c.h.b16 %v822
    %v2807 = vunpack.c.l.b16 %v823
    %v2808 = vunpack.c.h.b16 %v823
    %v2809 = vunpack.c.l.b16 %v824
    %v2810 = vunpack.c.h.b16 %v824
    %v2811 = vunpack.c.l.b16 %v825
    %v2812 = vunpack.c.h.b16 %v825
    %v2813 = vunpack.c.l.b16 %v826
    %v2814 = vunpack.c.h.b16 %v826
    %v2815 = vunpack.c.l.b16 %v827
    %v2816 = vunpack.c.h.b16 %v827
    %v2817 = vunpack.c.l.b16 %v828
    %v2818 = vunpack.c.h.b16 %v828
    %v2819 = vunpack.c.l.b16 %v829
    %v2820 = vunpack.c.h.b16 %v829
    %v2821 = vunpack.c.l.b16 %v830
    %v2822 = vunpack.c.h.b16 %v830
    %v2823 = vunpack.c.l.b16 %v831
    %v2824 = vunpack.c.h.b16 %v831
    %v2825 = vunpack.c.l.b16 %v832
    %v2826 = vunpack.c.h.b16 %v832
    %v2827 = vunpack.c.l.b16 %v833
    %v2828 = vunpack.c.h.b16 %v833
    %v2829 = vunpack.c.l.b16 %v834
    %v2830 = vunpack.c.h.b16 %v834
    %v2831 = vunpack.c.l.b16 %v835
    %v2832 = vunpack.c.h.b16 %v835
    %v2833 = vunpack.c.l.b16 %v836
    %v2834 = vunpack.c.h.b16 %v836
    %v2835 = vunpack.c.l.b16 %v837
    %v2836 = vunpack.c.h.b16 %v837
    %v2837 = vunpack.c.l.b16 %v838
    %v2838 = vunpack.c.h.b16 %v838
    %v2839 = vunpack.c.l.b16 %v839
    %v2840 = vunpack.c.h.b16 %v839
    %v2841 = vunpack.c.l.b16 %v840
    %v2842 = vunpack.c.h.b16 %v840
    %v2843 = vunpack.c.l.b16 %v841
    %v2844 = vunpack.c.h.b16 %v841
    %v2845 = vunpack.c.l.b16 %v842
    %v2846 = vunpack.c.h.b16 %v842
    %v2847 = vunpack.c.l.b16 %v843
    %v2848 = vunpack.c.h.b16 %v843
    %v2849 = vunpack.c.l.b16 %v844
    %v2850 = vunpack.c.h.b16 %v844
    %v2851 = vunpack.c.l.b16 %v845
    %v2852 = vunpack.c.h.b16 %v845
    %v2853 = vunpack.c.l.b16 %v846
    %v2854 = vunpack.c.h.b16 %v846
    %v2855 = vunpack.c.l.b16 %v847
    %v2856 = vunpack.c.h.b16 %v847
    %v2857 = vunpack.c.l.b16 %v848
    %v2858 = vunpack.c.h.b16 %v848
    %v2859 = vunpack.c.l.b16 %v849
    %v2860 = vunpack.c.h.b16 %v849
    %v2861 = vunpack.c.l.b16 %v850
    %v2862 = vunpack.c.h.b16 %v850
    %v2863 = vunpack.c.l.b16 %v851
    %v2864 = vunpack.c.h.b16 %v851
    %v2865 = vunpack.c.l.b16 %v852
    %v2866 = vunpack.c.h.b16 %v852
    %v2867 = vunpack.c.l.b16 %v853
    %v2868 = vunpack.c.h.b16 %v853
    %v2869 = vunpack.c.l.b16 %v854
    %v2870 = vunpack.c.h.b16 %v854
    %v2871 = vunpack.c.l.b16 %v855
    %v2872 = vunpack.c.h.b16 %v855
    %v2873 = vunpack.c.l.b16 %v856
    %v2874 = vunpack.c.h.b16 %v856
    %v2875 = vunpack.c.l.b16 %v857
    %v2876 = vunpack.c.h.b16 %v857
    %v2877 = vunpack.c.l.b16 %v858
    %v2878 = vunpack.c.h.b16 %v858
    %v2879 = vunpack.c.l.b16 %v859
    %v2880 = vunpack.c.h.b16 %v859
    %v2881 = vunpack.c.l.b16 %v860
    %v2882 = vunpack.c.h.b16 %v860
    %v2883 = vunpack.c.l.b16 %v861
    %v2884 = vunpack.c.h.b16 %v861
    %v2885 = vunpack.c.l.b16 %v862
    %v2886 = vunpack.c.h.b16 %v862
    %v2887 = vunpack.c.l.b16 %v863
    %v2888 = vunpack.c.h.b16 %v863
    %v2889 = vunpack.c.l.b16 %v864
    %v2890 = vunpack.c.h.b16 %v864
    %v2891 = vunpack.c.l.b16 %v865
    %v2892 = vunpack.c.h.b16 %v865
    %v2893 = vunpack.c.l.b16 %v866
    %v2894 = vunpack.c.h.b16 %v866
    %v2895 = vunpack.c.l.b16 %v867
    %v2896 = vunpack.c.h.b16 %v867
    %v2897 = vunpack.c.l.b16 %v868
    %v2898 = vunpack.c.h.b16 %v868
    %v2899 = vunpack.c.l.b16 %v869
    %v2900 = vunpack.c.h.b16 %v869
    %v2901 = vunpack.c.l.b16 %v870
    %v2902 = vunpack.c.h.b16 %v870
    %v2903 = vunpack.c.l.b16 %v871
    %v2904 = vunpack.c.h.b16 %v871
    %v2905 = vunpack.c.l.b16 %v872
    %v2906 = vunpack.c.h.b16 %v872
    %v2907 = vunpack.c.l.b16 %v873
    %v2908 = vunpack.c.h.b16 %v873
    %v2909 = vunpack.c.l.b16 %v874
    %v2910 = vunpack.c.h.b16 %v874
    %v2911 = vunpack.c.l.b16 %v875
    %v2912 = vunpack.c.h.b16 %v875
    %v2913 = vunpack.c.l.b16 %v876
    %v2914 = vunpack.c.h.b16 %v876
    %v2915 = vunpack.c.l.b16 %v877
    %v2916 = vunpack.c.h.b16 %v877
    %v2917 = vunpack.c.l.b16 %v878
    %v2918 = vunpack.c.h.b16 %v878
    %v2919 = vunpack.c.l.b16 %v879
    %v2920 = vunpack.c.h.b16 %v879
    %v2921 = vunpack.c.l.b16 %v880
    %v2922 = vunpack.c.h.b16 %v880
    %v2923 = vunpack.c.l.b16 %v881
    %v2924 = vunpack.c.h.b16 %v881
    %v2925 = vunpack.c.l.b16 %v882
    %v2926 = vunpack.c.h.b16 %v882
    %v2927 = vunpack.c.l.b16 %v883
    %v2928 = vunpack.c.h.b16 %v883
    %v2929 = vunpack.c.l.b16 %v884
    %v2930 = vunpack.c.h.b16 %v884
    %v2931 = vunpack.c.l.b16 %v885
    %v2932 = vunpack.c.h.b16 %v885
    %v2933 = vunpack.c.l.b16 %v886
    %v2934 = vunpack.c.h.b16 %v886
    %v2935 = vunpack.c.l.b16 %v887
    %v2936 = vunpack.c.h.b16 %v887
    %v2937 = vunpack.c.l.b16 %v888
    %v2938 = vunpack.c.h.b16 %v888
    %v2939 = vunpack.c.l.b16 %v889
    %v2940 = vunpack.c.h.b16 %v889
    %v2941 = vunpack.c.l.b16 %v890
    %v2942 = vunpack.c.h.b16 %v890
    %v2943 = vunpack.c.l.b16 %v891
    %v2944 = vunpack.c.h.b16 %v891
    %v2945 = vunpack.c.l.b16 %v892
    %v2946 = vunpack.c.h.b16 %v892
    %v2947 = vunpack.c.l.b16 %v893
    %v2948 = vunpack.c.h.b16 %v893
    %v2949 = vunpack.c.l.b16 %v894
    %v2950 = vunpack.c.h.b16 %v894
    %v2951 = vunpack.c.l.b16 %v895
    %v2952 = vunpack.c.h.b16 %v895
    %v2953 = vunpack.c.l.b16 %v896
    %v2954 = vunpack.c.h.b16 %v896
    %v2955 = vunpack.c.l.b16 %v897
    %v2956 = vunpack.c.h.b16 %v897
    %v2957 = vunpack.c.l.b16 %v898
    %v2958 = vunpack.c.h.b16 %v898
    %v2959 = vunpack.c.l.b16 %v899
    %v2960 = vunpack.c.h.b16 %v899
    %v2961 = vunpack.c.l.b16 %v900
    %v2962 = vunpack.c.h.b16 %v900
    %v2963 = vunpack.c.l.b16 %v901
    %v2964 = vunpack.c.h.b16 %v901
    %v2965 = vunpack.c.l.b16 %v902
    %v2966 = vunpack.c.h.b16 %v902
    %v2967 = vunpack.c.l.b16 %v903
    %v2968 = vunpack.c.h.b16 %v903
    %v2969 = vunpack.c.l.b16 %v904
    %v2970 = vunpack.c.h.b16 %v904
    %v2971 = vunpack.c.l.b16 %v905
    %v2972 = vunpack.c.h.b16 %v905
    %v2973 = vunpack.c.l.b16 %v906
    %v2974 = vunpack.c.h.b16 %v906
    %v2975 = vunpack.c.l.b16 %v907
    %v2976 = vunpack.c.h.b16 %v907
    %v2977 = vunpack.c.l.b16 %v908
    %v2978 = vunpack.c.h.b16 %v908
    %v2979 = vunpack.c.l.b16 %v909
    %v2980 = vunpack.c.h.b16 %v909
    %v2981 = vunpack.c.l.b16 %v910
    %v2982 = vunpack.c.h.b16 %v910
    %v2983 = vunpack.c.l.b16 %v911
    %v2984 = vunpack.c.h.b16 %v911
    %v2985 = vunpack.c.l.b16 %v912
    %v2986 = vunpack.c.h.b16 %v912
    %v2987 = vunpack.c.l.b16 %v913
    %v2988 = vunpack.c.h.b16 %v913
    %v2989 = vunpack.c.l.b16 %v914
    %v2990 = vunpack.c.h.b16 %v914
    %v2991 = vunpack.c.l.b16 %v915
    %v2992 = vunpack.c.h.b16 %v915
    %v2993 = vunpack.c.l.b16 %v916
    %v2994 = vunpack.c.h.b16 %v916
    %v2995 = vunpack.c.l.b16 %v917
    %v2996 = vunpack.c.h.b16 %v917
    %v2997 = vunpack.c.l.b16 %v918
    %v2998 = vunpack.c.h.b16 %v918
    %v2999 = vunpack.c.l.b16 %v919
    %v3000 = vunpack.c.h.b16 %v919
    %v3001 = vunpack.c.l.b16 %v920
    %v3002 = vunpack.c.h.b16 %v920
    %v3003 = vunpack.c.l.b16 %v921
    %v3004 = vunpack.c.h.b16 %v921
    %v3005 = vunpack.c.l.b16 %v922
    %v3006 = vunpack.c.h.b16 %v922
    %v3007 = vunpack.c.l.b16 %v923
    %v3008 = vunpack.c.h.b16 %v923
    %v3009 = vunpack.c.l.b16 %v924
    %v3010 = vunpack.c.h.b16 %v924
    %v3011 = vunpack.c.l.b16 %v925
    %v3012 = vunpack.c.h.b16 %v925
    %v3013 = vunpack.c.l.b16 %v926
    %v3014 = vunpack.c.h.b16 %v926
    %v3015 = vunpack.c.l.b16 %v927
    %v3016 = vunpack.c.h.b16 %v927
    %v3017 = vunpack.c.l.b16 %v928
    %v3018 = vunpack.c.h.b16 %v928
    %v3019 = vunpack.c.l.b16 %v929
    %v3020 = vunpack.c.h.b16 %v929
    %v3021 = vunpack.c.l.b16 %v930
    %v3022 = vunpack.c.h.b16 %v930
    %v3023 = vunpack.c.l.b16 %v931
    %v3024 = vunpack.c.h.b16 %v931
    %v3025 = vunpack.c.l.b16 %v932
    %v3026 = vunpack.c.h.b16 %v932
    %v3027 = vunpack.c.l.b16 %v933
    %v3028 = vunpack.c.h.b16 %v933
    %v3029 = vunpack.c.l.b16 %v934
    %v3030 = vunpack.c.h.b16 %v934
    %v3031 = vunpack.c.l.b16 %v935
    %v3032 = vunpack.c.h.b16 %v935
    %v3033 = vunpack.c.l.b16 %v936
    %v3034 = vunpack.c.h.b16 %v936
    %v3035 = vunpack.c.l.b16 %v937
    %v3036 = vunpack.c.h.b16 %v937
    %v3037 = vunpack.c.l.b16 %v938
    %v3038 = vunpack.c.h.b16 %v938
    %v3039 = vunpack.c.l.b16 %v939
    %v3040 = vunpack.c.h.b16 %v939
    %v3041 = vunpack.c.l.b16 %v940
    %v3042 = vunpack.c.h.b16 %v940
    %v3043 = vunpack.c.l.b16 %v941
    %v3044 = vunpack.c.h.b16 %v941
    %v3045 = vunpack.c.l.b16 %v942
    %v3046 = vunpack.c.h.b16 %v942
    %v3047 = vunpack.c.l.b16 %v943
    %v3048 = vunpack.c.h.b16 %v943
    %v3049 = vunpack.c.l.b16 %v944
    %v3050 = vunpack.c.h.b16 %v944
    %v3051 = vunpack.c.l.b16 %v945
    %v3052 = vunpack.c.h.b16 %v945
    %v3053 = vunpack.c.l.b16 %v946
    %v3054 = vunpack.c.h.b16 %v946
    %v3055 = vunpack.c.l.b16 %v947
    %v3056 = vunpack.c.h.b16 %v947
    %v3057 = vunpack.c.l.b16 %v948
    %v3058 = vunpack.c.h.b16 %v948
    %v3059 = vunpack.c.l.b16 %v949
    %v3060 = vunpack.c.h.b16 %v949
    %v3061 = vunpack.c.l.b16 %v950
    %v3062 = vunpack.c.h.b16 %v950
    %v3063 = vunpack.c.l.b16 %v951
    %v3064 = vunpack.c.h.b16 %v951
    %v3065 = vunpack.c.l.b16 %v952
    %v3066 = vunpack.c.h.b16 %v952
    %v3067 = vunpack.c.l.b16 %v953
    %v3068 = vunpack.c.h.b16 %v953
    %v3069 = vunpack.c.l.b16 %v954
    %v3070 = vunpack.c.h.b16 %v954
    %v3071 = vunpack.c.l.b16 %v955
    %v3072 = vunpack.c.h.b16 %v955
    %v3073 = vunpack.c.l.b16 %v956
    %v3074 = vunpack.c.h.b16 %v956
    %v3075 = vunpack.c.l.b16 %v957
    %v3076 = vunpack.c.h.b16 %v957
    %v3077 = vunpack.c.l.b16 %v958
    %v3078 = vunpack.c.h.b16 %v958
    %v3079 = vunpack.c.l.b16 %v959
    %v3080 = vunpack.c.h.b16 %v959
    %v3081 = vunpack.c.l.b16 %v960
    %v3082 = vunpack.c.h.b16 %v960
    %v3083 = vunpack.c.l.b16 %v961
    %v3084 = vunpack.c.h.b16 %v961
    %v3085 = vunpack.c.l.b16 %v962
    %v3086 = vunpack.c.h.b16 %v962
    %v3087 = vunpack.c.l.b16 %v963
    %v3088 = vunpack.c.h.b16 %v963
    %v3089 = vunpack.c.l.b16 %v964
    %v3090 = vunpack.c.h.b16 %v964
    %v3091 = vunpack.c.l.b16 %v965
    %v3092 = vunpack.c.h.b16 %v965
    %v3093 = vunpack.c.l.b16 %v966
    %v3094 = vunpack.c.h.b16 %v966
    %v3095 = vunpack.c.l.b16 %v967
    %v3096 = vunpack.c.h.b16 %v967
    %v3097 = vunpack.c.l.b16 %v968
    %v3098 = vunpack.c.h.b16 %v968
    %v3099 = vunpack.c.l.b16 %v969
    %v3100 = vunpack.c.h.b16 %v969
    %v3101 = vunpack.c.l.b16 %v970
    %v3102 = vunpack.c.h.b16 %v970
    %v3103 = vunpack.c.l.b16 %v971
    %v3104 = vunpack.c.h.b16 %v971
    %v3105 = vunpack.c.l.b16 %v972
    %v3106 = vunpack.c.h.b16 %v972
    %v3107 = vunpack.c.l.b16 %v973
    %v3108 = vunpack.c.h.b16 %v973
    %v3109 = vunpack.c.l.b16 %v974
    %v3110 = vunpack.c.h.b16 %v974
    %v3111 = vunpack.c.l.b16 %v975
    %v3112 = vunpack.c.h.b16 %v975
    %v3113 = vunpack.c.l.b16 %v976
    %v3114 = vunpack.c.h.b16 %v976
    %v3115 = vunpack.c.l.b16 %v977
    %v3116 = vunpack.c.h.b16 %v977
    %v3117 = vunpack.c.l.b16 %v978
    %v3118 = vunpack.c.h.b16 %v978
    %v3119 = vunpack.c.l.b16 %v979
    %v3120 = vunpack.c.h.b16 %v979
    %v3121 = vunpack.c.l.b16 %v980
    %v3122 = vunpack.c.h.b16 %v980
    %v3123 = vunpack.c.l.b16 %v981
    %v3124 = vunpack.c.h.b16 %v981
    %v3125 = vunpack.c.l.b16 %v982
    %v3126 = vunpack.c.h.b16 %v982
    %v3127 = vunpack.c.l.b16 %v983
    %v3128 = vunpack.c.h.b16 %v983
    %v3129 = vunpack.c.l.b16 %v984
    %v3130 = vunpack.c.h.b16 %v984
    %v3131 = vunpack.c.l.b16 %v985
    %v3132 = vunpack.c.h.b16 %v985
    %v3133 = vunpack.c.l.b16 %v986
    %v3134 = vunpack.c.h.b16 %v986
    %v3135 = vunpack.c.l.b16 %v987
    %v3136 = vunpack.c.h.b16 %v987
    %v3137 = vunpack.c.l.b16 %v988
    %v3138 = vunpack.c.h.b16 %v988
    %v3139 = vunpack.c.l.b16 %v989
    %v3140 = vunpack.c.h.b16 %v989
    %v3141 = vunpack.c.l.b16 %v990
    %v3142 = vunpack.c.h.b16 %v990
    %v3143 = vunpack.c.l.b16 %v991
    %v3144 = vunpack.c.h.b16 %v991
    %v3145 = vunpack.c.l.b16 %v992
    %v3146 = vunpack.c.h.b16 %v992
    %v3147 = vunpack.c.l.b16 %v993
    %v3148 = vunpack.c.h.b16 %v993
    %v3149 = vunpack.c.l.b16 %v994
    %v3150 = vunpack.c.h.b16 %v994
    %v3151 = vunpack.c.l.b16 %v995
    %v3152 = vunpack.c.h.b16 %v995
    %v3153 = vunpack.c.l.b16 %v996
    %v3154 = vunpack.c.h.b16 %v996
    %v3155 = vunpack.c.l.b16 %v997
    %v3156 = vunpack.c.h.b16 %v997
    %v3157 = vunpack.c.l.b16 %v998
    %v3158 = vunpack.c.h.b16 %v998
    %v3159 = vunpack.c.l.b16 %v999
    %v3160 = vunpack.c.h.b16 %v999
    %v3161 = vunpack.c.l.b16 %v1000
    %v3162 = vunpack.c.h.b16 %v1000
    %v3163 = vunpack.c.l.b16 %v1001
    %v3164 = vunpack.c.h.b16 %v1001
    %v3165 = vunpack.c.l.b16 %v1002
    %v3166 = vunpack.c.h.b16 %v1002
    %v3167 = vunpack.c.l.b16 %v1003
    %v3168 = vunpack.c.h.b16 %v1003
    %v3169 = vunpack.c.l.b16 %v1004
    %v3170 = vunpack.c.h.b16 %v1004
    %v3171 = vunpack.c.l.b16 %v1005
    %v3172 = vunpack.c.h.b16 %v1005
    %v3173 = vunpack.c.l.b16 %v1006
    %v3174 = vunpack.c.h.b16 %v1006
    %v3175 = vunpack.c.l.b16 %v1007
    %v3176 = vunpack.c.h.b16 %v1007
    %v3177 = vunpack.c.l.b16 %v1008
    %v3178 = vunpack.c.h.b16 %v1008
    %v3179 = vunpack.c.l.b16 %v1009
    %v3180 = vunpack.c.h.b16 %v1009
    %v3181 = vunpack.c.l.b16 %v1010
    %v3182 = vunpack.c.h.b16 %v1010
    %v3183 = vunpack.c.l.b16 %v1011
    %v3184 = vunpack.c.h.b16 %v1011
    %v3185 = vunpack.c.l.b16 %v1012
    %v3186 = vunpack.c.h.b16 %v1012
    %v3187 = vunpack.c.l.b16 %v1013
    %v3188 = vunpack.c.h.b16 %v1013
    %v3189 = vunpack.c.l.b16 %v1014
    %v3190 = vunpack.c.h.b16 %v1014
    %v3191 = vunpack.c.l.b16 %v1015
    %v3192 = vunpack.c.h.b16 %v1015
    %v3193 = vunpack.c.l.b16 %v1016
    %v3194 = vunpack.c.h.b16 %v1016
    %v3195 = vunpack.c.l.b16 %v1017
    %v3196 = vunpack.c.h.b16 %v1017
    %v3197 = vunpack.c.l.b16 %v1018
    %v3198 = vunpack.c.h.b16 %v1018
    %v3199 = vunpack.c.l.b16 %v1019
    %v3200 = vunpack.c.h.b16 %v1019
    %v3201 = vunpack.c.l.b16 %v1020
    %v3202 = vunpack.c.h.b16 %v1020
    %v3203 = vunpack.c.l.b16 %v1021
    %v3204 = vunpack.c.h.b16 %v1021
    %v3205 = vunpack.c.l.b16 %v1022
    %v3206 = vunpack.c.h.b16 %v1022
    %v3207 = vunpack.c.l.b16 %v1023
    %v3208 = vunpack.c.h.b16 %v1023
    %v3209 = vunpack.c.l.b16 %v1024
    %v3210 = vunpack.c.h.b16 %v1024
    %v3211 = vunpack.c.l.b16 %v1025
    %v3212 = vunpack.c.h.b16 %v1025
    %v3213 = vunpack.c.l.b16 %v1026
    %v3214 = vunpack.c.h.b16 %v1026
    %v3215 = vunpack.c.l.b16 %v1027
    %v3216 = vunpack.c.h.b16 %v1027
    %v3217 = vunpack.c.l.b16 %v1028
    %v3218 = vunpack.c.h.b16 %v1028
    %v3219 = vunpack.c.l.b16 %v1029
    %v3220 = vunpack.c.h.b16 %v1029
    %v3221 = vunpack.c.l.b16 %v1030
    %v3222 = vunpack.c.h.b16 %v1030
    %v3223 = vunpack.c.l.b16 %v1031
    %v3224 = vunpack.c.h.b16 %v1031
    %v3225 = vunpack.c.l.b16 %v1032
    %v3226 = vunpack.c.h.b16 %v1032
    %v3227 = vunpack.c.l.b16 %v1033
    %v3228 = vunpack.c.h.b16 %v1033
    %v3229 = vunpack.c.l.b16 %v1034
    %v3230 = vunpack.c.h.b16 %v1034
    %v3231 = vunpack.c.l.b16 %v1035
    %v3232 = vunpack.c.h.b16 %v1035
    %v3233 = vunpack.c.l.b16 %v1036
    %v3234 = vunpack.c.h.b16 %v1036
    %v3235 = vunpack.c.l.b16 %v1037
    %v3236 = vunpack.c.h.b16 %v1037
    %v3237 = vunpack.c.l.b16 %v1038
    %v3238 = vunpack.c.h.b16 %v1038
    %v3239 = vunpack.c.l.b16 %v1039
    %v3240 = vunpack.c.h.b16 %v1039
    %v3241 = vunpack.c.l.b16 %v1040
    %v3242 = vunpack.c.h.b16 %v1040
    %v3243 = vunpack.c.l.b16 %v1041
    %v3244 = vunpack.c.h.b16 %v1041
    %v3245 = vunpack.c.l.b16 %v1042
    %v3246 = vunpack.c.h.b16 %v1042
    %v3247 = vunpack.c.l.b16 %v1043
    %v3248 = vunpack.c.h.b16 %v1043
    %v3249 = vunpack.c.l.b16 %v1044
    %v3250 = vunpack.c.h.b16 %v1044
    %v3251 = vunpack.c.l.b16 %v1045
    %v3252 = vunpack.c.h.b16 %v1045
    %v3253 = vunpack.c.l.b16 %v1046
    %v3254 = vunpack.c.h.b16 %v1046
    %v3255 = vunpack.c.l.b16 %v1047
    %v3256 = vunpack.c.h.b16 %v1047
    %v3257 = vunpack.c.l.b16 %v1048
    %v3258 = vunpack.c.h.b16 %v1048
    %v3259 = vunpack.c.l.b16 %v1049
    %v3260 = vunpack.c.h.b16 %v1049
    %v3261 = vunpack.c.l.b16 %v1050
    %v3262 = vunpack.c.h.b16 %v1050
    %v3263 = vunpack.c.l.b16 %v1051
    %v3264 = vunpack.c.h.b16 %v1051
    %v3265 = vunpack.c.l.b16 %v1052
    %v3266 = vunpack.c.h.b16 %v1052
    %v3267 = vunpack.c.l.b16 %v1053
    %v3268 = vunpack.c.h.b16 %v1053
    %v3269 = vunpack.c.l.b16 %v1054
    %v3270 = vunpack.c.h.b16 %v1054
    %v3271 = vunpack.c.l.b16 %v1055
    %v3272 = vunpack.c.h.b16 %v1055
    %v3273 = vunpack.c.l.b16 %v1056
    %v3274 = vunpack.c.h.b16 %v1056
    %v3275 = vunpack.c.l.b16 %v1057
    %v3276 = vunpack.c.h.b16 %v1057
    %v3277 = vunpack.c.l.b16 %v1058
    %v3278 = vunpack.c.h.b16 %v1058
    %v3279 = vunpack.c.l.b16 %v1059
    %v3280 = vunpack.c.h.b16 %v1059
    %v3281 = vunpack.c.l.b16 %v1060
    %v3282 = vunpack.c.h.b16 %v1060
    %v3283 = vunpack.c.l.b16 %v1061
    %v3284 = vunpack.c.h.b16 %v1061
    %v3285 = vunpack.c.l.b16 %v1062
    %v3286 = vunpack.c.h.b16 %v1062
    %v3287 = vunpack.c.l.b16 %v1063
    %v3288 = vunpack.c.h.b16 %v1063
    %v3289 = vunpack.c.l.b16 %v1064
    %v3290 = vunpack.c.h.b16 %v1064
    %v3291 = vunpack.c.l.b16 %v1065
    %v3292 = vunpack.c.h.b16 %v1065
    %v3293 = vunpack.c.l.b16 %v1066
    %v3294 = vunpack.c.h.b16 %v1066
    %v3295 = vunpack.c.l.b16 %v1067
    %v3296 = vunpack.c.h.b16 %v1067
    %v3297 = vunpack.c.l.b16 %v1068
    %v3298 = vunpack.c.h.b16 %v1068
    %v3299 = vunpack.c.l.b16 %v1069
    %v3300 = vunpack.c.h.b16 %v1069
    %v3301 = vunpack.c.l.b16 %v1070
    %v3302 = vunpack.c.h.b16 %v1070
    %v3303 = vunpack.c.l.b16 %v1071
    %v3304 = vunpack.c.h.b16 %v1071
    %v3305 = vunpack.c.l.b16 %v1072
    %v3306 = vunpack.c.h.b16 %v1072
    %v3307 = vunpack.c.l.b16 %v1073
    %v3308 = vunpack.c.h.b16 %v1073
    %v3309 = vunpack.c.l.b16 %v1074
    %v3310 = vunpack.c.h.b16 %v1074
    %v3311 = vunpack.c.l.b16 %v1075
    %v3312 = vunpack.c.h.b16 %v1075
    %v3313 = vunpack.c.l.b16 %v1076
    %v3314 = vunpack.c.h.b16 %v1076
    %v3315 = vunpack.c.l.b16 %v1077
    %v3316 = vunpack.c.h.b16 %v1077
    %v3317 = vunpack.c.l.b16 %v1078
    %v3318 = vunpack.c.h.b16 %v1078
    %v3319 = vunpack.c.l.b16 %v1079
    %v3320 = vunpack.c.h.b16 %v1079
    %v3321 = vunpack.c.l.b16 %v1080
    %v3322 = vunpack.c.h.b16 %v1080
    %v3323 = vunpack.c.l.b16 %v1081
    %v3324 = vunpack.c.h.b16 %v1081
    %v3325 = vunpack.c.l.b16 %v1082
    %v3326 = vunpack.c.h.b16 %v1082
    %v3327 = vunpack.c.l.b16 %v1083
    %v3328 = vunpack.c.h.b16 %v1083
    %v3329 = vunpack.c.l.b16 %v1084
    %v3330 = vunpack.c.h.b16 %v1084
    %v3331 = vunpack.c.l.b16 %v1085
    %v3332 = vunpack.c.h.b16 %v1085
    %v3333 = vunpack.c.l.b16 %v1086
    %v3334 = vunpack.c.h.b16 %v1086
    %v3335 = vunpack.c.l.b16 %v1087
    %v3336 = vunpack.c.h.b16 %v1087
    %v3337 = vunpack.c.l.b16 %v1088
    %v3338 = vunpack.c.h.b16 %v1088
    %v3339 = vunpack.c.l.b16 %v1089
    %v3340 = vunpack.c.h.b16 %v1089
    %v3341 = vunpack.c.l.b16 %v1090
    %v3342 = vunpack.c.h.b16 %v1090
    %v3343 = vunpack.c.l.b16 %v1091
    %v3344 = vunpack.c.h.b16 %v1091
    %v3345 = vunpack.c.l.b16 %v1092
    %v3346 = vunpack.c.h.b16 %v1092
    %v3347 = vunpack.c.l.b16 %v1093
    %v3348 = vunpack.c.h.b16 %v1093
    %v3349 = vunpack.c.l.b16 %v1094
    %v3350 = vunpack.c.h.b16 %v1094
    %v3351 = vunpack.c.l.b16 %v1095
    %v3352 = vunpack.c.h.b16 %v1095
    %v3353 = vunpack.c.l.b16 %v1096
    %v3354 = vunpack.c.h.b16 %v1096
    %v3355 = vunpack.c.l.b16 %v1097
    %v3356 = vunpack.c.h.b16 %v1097
    %v3357 = vunpack.c.l.b16 %v1098
    %v3358 = vunpack.c.h.b16 %v1098
    %v3359 = vunpack.c.l.b16 %v1099
    %v3360 = vunpack.c.h.b16 %v1099
    %v3361 = vunpack.c.l.b16 %v1100
    %v3362 = vunpack.c.h.b16 %v1100
    %v3363 = vunpack.c.l.b16 %v1101
    %v3364 = vunpack.c.h.b16 %v1101
    %v3365 = vunpack.c.l.b16 %v1102
    %v3366 = vunpack.c.h.b16 %v1102
    %v3367 = vunpack.c.l.b16 %v1103
    %v3368 = vunpack.c.h.b16 %v1103
    %v3369 = vunpack.c.l.b16 %v1104
    %v3370 = vunpack.c.h.b16 %v1104
    %v3371 = vunpack.c.l.b16 %v1105
    %v3372 = vunpack.c.h.b16 %v1105
    %v3373 = vunpack.c.l.b16 %v1106
    %v3374 = vunpack.c.h.b16 %v1106
    %v3375 = vunpack.c.l.b16 %v1107
    %v3376 = vunpack.c.h.b16 %v1107
    %v3377 = vunpack.c.l.b16 %v1108
    %v3378 = vunpack.c.h.b16 %v1108
    %v3379 = vunpack.c.l.b16 %v1109
    %v3380 = vunpack.c.h.b16 %v1109
    %v3381 = vunpack.c.l.b16 %v1110
    %v3382 = vunpack.c.h.b16 %v1110
    %v3383 = vunpack.c.l.b16 %v1111
    %v3384 = vunpack.c.h.b16 %v1111
    %v3385 = vunpack.c.l.b16 %v1112
    %v3386 = vunpack.c.h.b16 %v1112
    %v3387 = vunpack.c.l.b16 %v1113
    %v3388 = vunpack.c.h.b16 %v1113
    %v3389 = vunpack.c.l.b16 %v1114
    %v3390 = vunpack.c.h.b16 %v1114
    %v3391 = vunpack.c.l.b16 %v1115
    %v3392 = vunpack.c.h.b16 %v1115
    %v3393 = vunpack.c.l.b16 %v1116
    %v3394 = vunpack.c.h.b16 %v1116
    %v3395 = vunpack.c.l.b16 %v1117
    %v3396 = vunpack.c.h.b16 %v1117
    %v3397 = vunpack.c.l.b16 %v1118
    %v3398 = vunpack.c.h.b16 %v1118
    %v3399 = vunpack.c.l.b16 %v1119
    %v3400 = vunpack.c.h.b16 %v1119
    %v3401 = vunpack.c.l.b16 %v1120
    %v3402 = vunpack.c.h.b16 %v1120
    %v3403 = vunpack.c.l.b16 %v1121
    %v3404 = vunpack.c.h.b16 %v1121
    %v3405 = vunpack.c.l.b16 %v1122
    %v3406 = vunpack.c.h.b16 %v1122
    %v3407 = vunpack.c.l.b16 %v1123
    %v3408 = vunpack.c.h.b16 %v1123
    %v3409 = vunpack.c.l.b16 %v1124
    %v3410 = vunpack.c.h.b16 %v1124
    %v3411 = vunpack.c.l.b16 %v1125
    %v3412 = vunpack.c.h.b16 %v1125
    %v3413 = vunpack.c.l.b16 %v1126
    %v3414 = vunpack.c.h.b16 %v1126
    %v3415 = vunpack.c.l.b16 %v1127
    %v3416 = vunpack.c.h.b16 %v1127
    %v3417 = vunpack.c.l.b16 %v1128
    %v3418 = vunpack.c.h.b16 %v1128
    %v3419 = vunpack.c.l.b16 %v1129
    %v3420 = vunpack.c.h.b16 %v1129
    %v3421 = vunpack.c.l.b16 %v1130
    %v3422 = vunpack.c.h.b16 %v1130
    %v3423 = vunpack.c.l.b16 %v1131
    %v3424 = vunpack.c.h.b16 %v1131
    %v3425 = vunpack.c.l.b16 %v1132
    %v3426 = vunpack.c.h.b16 %v1132
    %v3427 = vunpack.c.l.b16 %v1133
    %v3428 = vunpack.c.h.b16 %v1133
    %v3429 = vunpack.c.l.b16 %v1134
    %v3430 = vunpack.c.h.b16 %v1134
    %v3431 = vunpack.c.l.b16 %v1135
    %v3432 = vunpack.c.h.b16 %v1135
    %v3433 = vunpack.c.l.b16 %v1136
    %v3434 = vunpack.c.h.b16 %v1136
    %v3435 = vunpack.c.l.b16 %v1137
    %v3436 = vunpack.c.h.b16 %v1137
    %v3437 = vunpack.c.l.b16 %v1138
    %v3438 = vunpack.c.h.b16 %v1138
    %v3439 = vunpack.c.l.b16 %v1139
    %v3440 = vunpack.c.h.b16 %v1139
    %v3441 = vunpack.c.l.b16 %v1140
    %v3442 = vunpack.c.h.b16 %v1140
    %v3443 = vunpack.c.l.b16 %v1141
    %v3444 = vunpack.c.h.b16 %v1141
    %v3445 = vunpack.c.l.b16 %v1142
    %v3446 = vunpack.c.h.b16 %v1142
    %v3447 = vunpack.c.l.b16 %v1143
    %v3448 = vunpack.c.h.b16 %v1143
    %v3449 = vunpack.c.l.b16 %v1144
    %v3450 = vunpack.c.h.b16 %v1144
    %v3451 = vunpack.c.l.b16 %v1145
    %v3452 = vunpack.c.h.b16 %v1145
    %v3453 = vunpack.c.l.b16 %v1146
    %v3454 = vunpack.c.h.b16 %v1146
    %v3455 = vunpack.c.l.b16 %v1147
    %v3456 = vunpack.c.h.b16 %v1147
    %v3457 = vunpack.c.l.b16 %v1148
    %v3458 = vunpack.c.h.b16 %v1148
    %v3459 = vunpack.c.l.b16 %v1149
    %v3460 = vunpack.c.h.b16 %v1149
    %v3461 = vunpack.c.l.b16 %v1150
    %v3462 = vunpack.c.h.b16 %v1150
    %v3463 = vunpack.c.l.b16 %v1151
    %v3464 = vunpack.c.h.b16 %v1151
    %v3465 = vunpack.c.l.b16 %v1152
    %v3466 = vunpack.c.h.b16 %v1152
    %v3467 = vunpack.c.l.b16 %v1153
    %v3468 = vunpack.c.h.b16 %v1153
    %v3469 = vunpack.c.l.b16 %v1154
    %v3470 = vunpack.c.h.b16 %v1154
    %v3471 = vunpack.c.l.b16 %v1155
    %v3472 = vunpack.c.h.b16 %v1155
    %v3473 = vunpack.c.l.b16 %v1156
    %v3474 = vunpack.c.h.b16 %v1156
    %v3475 = vunpack.c.l.b16 %v1157
    %v3476 = vunpack.c.h.b16 %v1157
    %v3477 = vunpack.c.l.b16 %v1158
    %v3478 = vunpack.c.h.b16 %v1158
    %v3479 = vunpack.c.l.b16 %v1159
    %v3480 = vunpack.c.h.b16 %v1159
    %v3481 = vunpack.c.l.b16 %v1160
    %v3482 = vunpack.c.h.b16 %v1160
    %v3483 = vunpack.c.l.b16 %v1161
    %v3484 = vunpack.c.h.b16 %v1161
    %v3485 = vunpack.c.l.b16 %v1162
    %v3486 = vunpack.c.h.b16 %v1162
    %v3487 = vunpack.c.l.b16 %v1163
    %v3488 = vunpack.c.h.b16 %v1163
    %v3489 = vunpack.c.l.b16 %v1164
    %v3490 = vunpack.c.h.b16 %v1164
    %v3491 = vunpack.c.l.b16 %v1165
    %v3492 = vunpack.c.h.b16 %v1165
    %v3493 = vunpack.c.l.b16 %v1166
    %v3494 = vunpack.c.h.b16 %v1166
    %v3495 = vunpack.c.l.b16 %v1167
    %v3496 = vunpack.c.h.b16 %v1167
    %v3497 = vunpack.c.l.b16 %v1168
    %v3498 = vunpack.c.h.b16 %v1168
    %v3499 = vunpack.c.l.b16 %v1169
    %v3500 = vunpack.c.h.b16 %v1169
    %v3501 = vunpack.c.l.b16 %v1170
    %v3502 = vunpack.c.h.b16 %v1170
    %v3503 = vunpack.c.l.b16 %v1171
    %v3504 = vunpack.c.h.b16 %v1171
    %v3505 = vunpack.c.l.b16 %v1172
    %v3506 = vunpack.c.h.b16 %v1172
    %v3507 = vunpack.c.l.b16 %v1173
    %v3508 = vunpack.c.h.b16 %v1173
    %v3509 = vunpack.c.l.b16 %v1174
    %v3510 = vunpack.c.h.b16 %v1174
    %v3511 = vunpack.c.l.b16 %v1175
    %v3512 = vunpack.c.h.b16 %v1175
    %v3513 = vunpack.c.l.b16 %v1176
    %v3514 = vunpack.c.h.b16 %v1176
    %v3515 = vunpack.c.l.b16 %v1177
    %v3516 = vunpack.c.h.b16 %v1177
    %v3517 = vunpack.c.l.b16 %v1178
    %v3518 = vunpack.c.h.b16 %v1178
    %v3519 = vunpack.c.l.b16 %v1179
    %v3520 = vunpack.c.h.b16 %v1179
    %v3521 = vunpack.c.l.b16 %v1180
    %v3522 = vunpack.c.h.b16 %v1180
    %v3523 = vunpack.c.l.b16 %v1181
    %v3524 = vunpack.c.h.b16 %v1181
    %v3525 = vunpack.c.l.b16 %v1182
    %v3526 = vunpack.c.h.b16 %v1182
    %v3527 = vunpack.c.l.b16 %v1183
    %v3528 = vunpack.c.h.b16 %v1183
    %v3529 = vunpack.c.l.b16 %v1184
    %v3530 = vunpack.c.h.b16 %v1184
    %v3531 = vunpack.c.l.b16 %v1185
    %v3532 = vunpack.c.h.b16 %v1185
    %v3533 = vunpack.c.l.b16 %v1186
    %v3534 = vunpack.c.h.b16 %v1186
    %v3535 = vunpack.c.l.b16 %v1187
    %v3536 = vunpack.c.h.b16 %v1187
    %v3537 = vunpack.c.l.b16 %v1188
    %v3538 = vunpack.c.h.b16 %v1188
    %v3539 = vunpack.c.l.b16 %v1189
    %v3540 = vunpack.c.h.b16 %v1189
    %v3541 = vunpack.c.l.b16 %v1190
    %v3542 = vunpack.c.h.b16 %v1190
    %v3543 = vunpack.c.l.b16 %v1191
    %v3544 = vunpack.c.h.b16 %v1191
    %v3545 = vunpack.c.l.b16 %v1192
    %v3546 = vunpack.c.h.b16 %v1192
    %v3547 = vunpack.c.l.b16 %v1193
    %v3548 = vunpack.c.h.b16 %v1193
    %v3549 = vunpack.c.l.b16 %v1194
    %v3550 = vunpack.c.h.b16 %v1194
    %v3551 = vunpack.c.l.b16 %v1195
    %v3552 = vunpack.c.h.b16 %v1195
    %v3553 = vunpack.c.l.b16 %v1196
    %v3554 = vunpack.c.h.b16 %v1196
    %v3555 = vunpack.c.l.b16 %v1197
    %v3556 = vunpack.c.h.b16 %v1197
    %v3557 = vunpack.c.l.b16 %v1198
    %v3558 = vunpack.c.h.b16 %v1198
    %v3559 = vunpack.c.l.b16 %v1199
    %v3560 = vunpack.c.h.b16 %v1199
    %v3561 = vunpack.c.l.b16 %v1200
    %v3562 = vunpack.c.h.b16 %v1200
    %v3563 = vunpack.c.l.b16 %v1201
    %v3564 = vunpack.c.h.b16 %v1201
    %v3565 = vunpack.c.l.b16 %v1202
    %v3566 = vunpack.c.h.b16 %v1202
    %v3567 = vunpack.c.l.b16 %v1203
    %v3568 = vunpack.c.h.b16 %v1203
    %v3569 = vunpack.c.l.b16 %v1204
    %v3570 = vunpack.c.h.b16 %v1204
    %v3571 = vunpack.c.l.b16 %v1205
    %v3572 = vunpack.c.h.b16 %v1205
    %v3573 = vunpack.c.l.b16 %v1206
    %v3574 = vunpack.c.h.b16 %v1206
    %v3575 = vunpack.c.l.b16 %v1207
    %v3576 = vunpack.c.h.b16 %v1207
    %v3577 = vunpack.c.l.b16 %v1208
    %v3578 = vunpack.c.h.b16 %v1208
    %v3579 = vunpack.c.l.b16 %v1209
    %v3580 = vunpack.c.h.b16 %v1209
    %v3581 = vunpack.c.l.b16 %v1210
    %v3582 = vunpack.c.h.b16 %v1210
    %v3583 = vunpack.c.l.b16 %v1211
    %v3584 = vunpack.c.h.b16 %v1211
    %v3585 = vunpack.c.l.b16 %v1212
    %v3586 = vunpack.c.h.b16 %v1212
    %v3587 = vunpack.c.l.b16 %v1213
    %v3588 = vunpack.c.h.b16 %v1213
    %v3589 = vunpack.c.l.b16 %v1214
    %v3590 = vunpack.c.h.b16 %v1214
    %v3591 = vunpack.c.l.b16 %v1215
    %v3592 = vunpack.c.h.b16 %v1215
    %v3593 = vunpack.c.l.b16 %v1216
    %v3594 = vunpack.c.h.b16 %v1216
    %v3595 = vunpack.c.l.b16 %v1217
    %v3596 = vunpack.c.h.b16 %v1217
    %v3597 = vunpack.c.l.b16 %v1218
    %v3598 = vunpack.c.h.b16 %v1218
    %v3599 = vunpack.c.l.b16 %v1219
    %v3600 = vunpack.c.h.b16 %v1219
    %v3601 = vunpack.c.l.b16 %v1220
    %v3602 = vunpack.c.h.b16 %v1220
    %v3603 = vunpack.c.l.b16 %v1221
    %v3604 = vunpack.c.h.b16 %v1221
    %v3605 = vunpack.c.l.b16 %v1222
    %v3606 = vunpack.c.h.b16 %v1222
    %v3607 = vunpack.c.l.b16 %v1223
    %v3608 = vunpack.c.h.b16 %v1223
    %v3609 = vunpack.c.l.b16 %v1224
    %v3610 = vunpack.c.h.b16 %v1224
    %v3611 = vunpack.c.l.b16 %v1225
    %v3612 = vunpack.c.h.b16 %v1225
    %v3613 = vunpack.c.l.b16 %v1226
    %v3614 = vunpack.c.h.b16 %v1226
    %v3615 = vunpack.c.l.b16 %v1227
    %v3616 = vunpack.c.h.b16 %v1227
    %v3617 = vunpack.c.l.b16 %v1228
    %v3618 = vunpack.c.h.b16 %v1228
    %v3619 = vunpack.c.l.b16 %v1229
    %v3620 = vunpack.c.h.b16 %v1229
    %v3621 = vunpack.c.l.b16 %v1230
    %v3622 = vunpack.c.h.b16 %v1230
    %v3623 = vunpack.c.l.b16 %v1231
    %v3624 = vunpack.c.h.b16 %v1231
    %v3625 = vunpack.c.l.b16 %v1232
    %v3626 = vunpack.c.h.b16 %v1232
    %v3627 = vunpack.c.l.b16 %v1233
    %v3628 = vunpack.c.h.b16 %v1233
    %v3629 = vunpack.c.l.b16 %v1234
    %v3630 = vunpack.c.h.b16 %v1234
    %v3631 = vunpack.c.l.b16 %v1235
    %v3632 = vunpack.c.h.b16 %v1235
    %v3633 = vunpack.c.l.b16 %v1236
    %v3634 = vunpack.c.h.b16 %v1236
    %v3635 = vunpack.c.l.b16 %v1237
    %v3636 = vunpack.c.h.b16 %v1237
    %v3637 = vunpack.c.l.b16 %v1238
    %v3638 = vunpack.c.h.b16 %v1238
    %v3639 = vunpack.c.l.b16 %v1239
    %v3640 = vunpack.c.h.b16 %v1239
    %v3641 = vunpack.c.l.b16 %v1240
    %v3642 = vunpack.c.h.b16 %v1240
    %v3643 = vunpack.c.l.b16 %v1241
    %v3644 = vunpack.c.h.b16 %v1241
    %v3645 = vunpack.c.l.b16 %v1242
    %v3646 = vunpack.c.h.b16 %v1242
    %v3647 = vunpack.c.l.b16 %v1243
    %v3648 = vunpack.c.h.b16 %v1243
    %v3649 = vunpack.c.l.b16 %v1244
    %v3650 = vunpack.c.h.b16 %v1244
    %v3651 = vunpack.c.l.b16 %v1245
    %v3652 = vunpack.c.h.b16 %v1245
    %v3653 = vunpack.c.l.b16 %v1246
    %v3654 = vunpack.c.h.b16 %v1246
    %v3655 = vunpack.c.l.b16 %v1247
    %v3656 = vunpack.c.h.b16 %v1247
    %v3657 = vunpack.c.l.b16 %v1248
    %v3658 = vunpack.c.h.b16 %v1248
    %v3659 = vunpack.c.l.b16 %v1249
    %v3660 = vunpack.c.h.b16 %v1249
    %v3661 = vunpack.c.l.b16 %v1250
    %v3662 = vunpack.c.h.b16 %v1250
    %v3663 = vunpack.c.l.b16 %v1251
    %v3664 = vunpack.c.h.b16 %v1251
    %v3665 = vunpack.c.l.b16 %v1252
    %v3666 = vunpack.c.h.b16 %v1252
    %v3667 = vunpack.c.l.b16 %v1253
    %v3668 = vunpack.c.h.b16 %v1253
    %v3669 = vunpack.c.l.b16 %v1254
    %v3670 = vunpack.c.h.b16 %v1254
    %v3671 = vunpack.c.l.b16 %v1255
    %v3672 = vunpack.c.h.b16 %v1255
    %v3673 = vunpack.c.l.b16 %v1256
    %v3674 = vunpack.c.h.b16 %v1256
    %v3675 = vunpack.c.l.b16 %v1257
    %v3676 = vunpack.c.h.b16 %v1257
    %v3677 = vunpack.c.l.b16 %v1258
    %v3678 = vunpack.c.h.b16 %v1258
    %v3679 = vunpack.c.l.b16 %v1259
    %v3680 = vunpack.c.h.b16 %v1259
    %v3681 = vunpack.c.l.b16 %v1260
    %v3682 = vunpack.c.h.b16 %v1260
    %v3683 = vunpack.c.l.b16 %v1261
    %v3684 = vunpack.c.h.b16 %v1261
    %v3685 = vunpack.c.l.b16 %v1262
    %v3686 = vunpack.c.h.b16 %v1262
    %v3687 = vunpack.c.l.b16 %v1263
    %v3688 = vunpack.c.h.b16 %v1263
    %v3689 = vunpack.c.l.b16 %v1264
    %v3690 = vunpack.c.h.b16 %v1264
    %v3691 = vunpack.c.l.b16 %v1265
    %v3692 = vunpack.c.h.b16 %v1265
    %v3693 = vunpack.c.l.b16 %v1266
    %v3694 = vunpack.c.h.b16 %v1266
    %v3695 = vunpack.c.l.b16 %v1267
    %v3696 = vunpack.c.h.b16 %v1267
    %v3697 = vunpack.c.l.b16 %v1268
    %v3698 = vunpack.c.h.b16 %v1268
    %v3699 = vunpack.c.l.b16 %v1269
    %v3700 = vunpack.c.h.b16 %v1269
    %v3701 = vunpack.c.l.b16 %v1270
    %v3702 = vunpack.c.h.b16 %v1270
    %v3703 = vunpack.c.l.b16 %v1271
    %v3704 = vunpack.c.h.b16 %v1271
    %v3705 = vunpack.c.l.b16 %v1272
    %v3706 = vunpack.c.h.b16 %v1272
    %v3707 = vunpack.c.l.b16 %v1273
    %v3708 = vunpack.c.h.b16 %v1273
    %v3709 = vunpack.c.l.b16 %v1274
    %v3710 = vunpack.c.h.b16 %v1274
    %v3711 = vunpack.c.l.b16 %v1275
    %v3712 = vunpack.c.h.b16 %v1275
    %v3713 = vunpack.c.l.b16 %v1276
    %v3714 = vunpack.c.h.b16 %v1276
    %v3715 = vunpack.c.l.b16 %v1277
    %v3716 = vunpack.c.h.b16 %v1277
    %v3717 = vunpack.c.l.b16 %v1278
    %v3718 = vunpack.c.h.b16 %v1278
    %v3719 = vunpack.c.l.b16 %v1279
    %v3720 = vunpack.c.h.b16 %v1279
    %v3721 = vunpack.c.l.b16 %v1280
    %v3722 = vunpack.c.h.b16 %v1280
    %v3723 = vunpack.c.l.b16 %v1281
    %v3724 = vunpack.c.h.b16 %v1281
    %v3725 = vunpack.c.l.b16 %v1282
    %v3726 = vunpack.c.h.b16 %v1282
    %v3727 = vunpack.c.l.b16 %v1283
    %v3728 = vunpack.c.h.b16 %v1283
    %v3729 = vunpack.c.l.b16 %v1284
    %v3730 = vunpack.c.h.b16 %v1284
    %v3731 = vunpack.c.l.b16 %v1285
    %v3732 = vunpack.c.h.b16 %v1285
    %v3733 = vunpack.c.l.b16 %v1286
    %v3734 = vunpack.c.h.b16 %v1286
    %v3735 = vunpack.c.l.b16 %v1287
    %v3736 = vunpack.c.h.b16 %v1287
    %v3737 = vunpack.c.l.b16 %v1288
    %v3738 = vunpack.c.h.b16 %v1288
    %v3739 = vunpack.c.l.b16 %v1289
    %v3740 = vunpack.c.h.b16 %v1289
    %v3741 = vunpack.c.l.b16 %v1290
    %v3742 = vunpack.c.h.b16 %v1290
    %v3743 = vunpack.c.l.b16 %v1291
    %v3744 = vunpack.c.h.b16 %v1291
    %v3745 = vunpack.c.l.b16 %v1292
    %v3746 = vunpack.c.h.b16 %v1292
    %v3747 = vunpack.c.l.b16 %v1293
    %v3748 = vunpack.c.h.b16 %v1293
    %v3749 = vunpack.c.l.b16 %v1294
    %v3750 = vunpack.c.h.b16 %v1294
    %v3751 = vunpack.c.l.b16 %v1295
    %v3752 = vunpack.c.h.b16 %v1295
    %v3753 = vunpack.c.l.b16 %v1296
    %v3754 = vunpack.c.h.b16 %v1296
    %v3755 = vunpack.c.l.b16 %v1297
    %v3756 = vunpack.c.h.b16 %v1297
    %v3757 = vunpack.c.l.b16 %v1298
    %v3758 = vunpack.c.h.b16 %v1298
    %v3759 = vunpack.c.l.b16 %v1299
    %v3760 = vunpack.c.h.b16 %v1299
    %v3761 = vunpack.c.l.b16 %v1300
    %v3762 = vunpack.c.h.b16 %v1300
    %v3763 = vunpack.c.l.b16 %v1301
    %v3764 = vunpack.c.h.b16 %v1301
    %v3765 = vunpack.c.l.b16 %v1302
    %v3766 = vunpack.c.h.b16 %v1302
    %v3767 = vunpack.c.l.b16 %v1303
    %v3768 = vunpack.c.h.b16 %v1303
    %v3769 = vunpack.c.l.b16 %v1304
    %v3770 = vunpack.c.h.b16 %v1304
    %v3771 = vunpack.c.l.b16 %v1305
    %v3772 = vunpack.c.h.b16 %v1305
    %v3773 = vunpack.c.l.b16 %v1306
    %v3774 = vunpack.c.h.b16 %v1306
    %v3775 = vunpack.c.l.b16 %v1307
    %v3776 = vunpack.c.h.b16 %v1307
    %v3777 = vunpack.c.l.b16 %v1308
    %v3778 = vunpack.c.h.b16 %v1308
    %v3779 = vunpack.c.l.b16 %v1309
    %v3780 = vunpack.c.h.b16 %v1309
    %v3781 = vunpack.c.l.b16 %v1310
    %v3782 = vunpack.c.h.b16 %v1310
    %v3783 = vunpack.c.l.b16 %v1311
    %v3784 = vunpack.c.h.b16 %v1311
    %v3785 = vunpack.c.l.b16 %v1312
    %v3786 = vunpack.c.h.b16 %v1312
    %v3787 = vunpack.c.l.b16 %v1313
    %v3788 = vunpack.c.h.b16 %v1313
    %v3789 = vunpack.c.l.b16 %v1314
    %v3790 = vunpack.c.h.b16 %v1314
    %v3791 = vunpack.c.l.b16 %v1315
    %v3792 = vunpack.c.h.b16 %v1315
    %v3793 = vunpack.c.l.b16 %v1316
    %v3794 = vunpack.c.h.b16 %v1316
    %v3795 = vunpack.c.l.b16 %v1317
    %v3796 = vunpack.c.h.b16 %v1317
    %v3797 = vunpack.c.l.b16 %v1318
    %v3798 = vunpack.c.h.b16 %v1318
    %v3799 = vunpack.c.l.b16 %v1319
    %v3800 = vunpack.c.h.b16 %v1319
    %v3801 = vunpack.c.l.b16 %v1320
    %v3802 = vunpack.c.h.b16 %v1320
    %v3803 = vunpack.c.l.b16 %v1321
    %v3804 = vunpack.c.h.b16 %v1321
    %v3805 = vunpack.c.l.b16 %v1322
    %v3806 = vunpack.c.h.b16 %v1322
    %v3807 = vunpack.c.l.b16 %v1323
    %v3808 = vunpack.c.h.b16 %v1323
    %v3809 = vunpack.c.l.b16 %v1324
    %v3810 = vunpack.c.h.b16 %v1324
    %v3811 = vunpack.c.l.b16 %v1325
    %v3812 = vunpack.c.h.b16 %v1325
    %v3813 = vunpack.c.l.b16 %v1326
    %v3814 = vunpack.c.h.b16 %v1326
    %v3815 = vunpack.c.l.b16 %v1327
    %v3816 = vunpack.c.h.b16 %v1327
    %v3817 = vunpack.c.l.b16 %v1328
    %v3818 = vunpack.c.h.b16 %v1328
    %v3819 = vunpack.c.l.b16 %v1329
    %v3820 = vunpack.c.h.b16 %v1329
    %v3821 = vunpack.c.l.b16 %v1330
    %v3822 = vunpack.c.h.b16 %v1330
    %v3823 = vunpack.c.l.b16 %v1331
    %v3824 = vunpack.c.h.b16 %v1331
    %v3825 = vunpack.c.l.b16 %v1332
    %v3826 = vunpack.c.h.b16 %v1332
    %v3827 = vunpack.c.l.b16 %v1333
    %v3828 = vunpack.c.h.b16 %v1333
    %v3829 = vunpack.c.l.b16 %v1334
    %v3830 = vunpack.c.h.b16 %v1334
    %v3831 = vunpack.c.l.b16 %v1335
    %v3832 = vunpack.c.h.b16 %v1335
    %v3833 = vunpack.c.l.b16 %v1336
    %v3834 = vunpack.c.h.b16 %v1336
    %v3835 = vunpack.c.l.b16 %v1337
    %v3836 = vunpack.c.h.b16 %v1337
    %v3837 = vunpack.c.l.b16 %v1338
    %v3838 = vunpack.c.h.b16 %v1338
    %v3839 = vunpack.c.l.b16 %v1339
    %v3840 = vunpack.c.h.b16 %v1339
    %v3841 = vunpack.c.l.b16 %v1340
    %v3842 = vunpack.c.h.b16 %v1340
    %v3843 = vunpack.c.l.b16 %v1341
    %v3844 = vunpack.c.h.b16 %v1341
    %v3845 = vunpack.c.l.b16 %v1342
    %v3846 = vunpack.c.h.b16 %v1342
    %v3847 = vunpack.c.l.b16 %v1343
    %v3848 = vunpack.c.h.b16 %v1343
    %v3849 = vunpack.c.l.b16 %v1344
    %v3850 = vunpack.c.h.b16 %v1344
    %v3851 = vunpack.c.l.b16 %v1345
    %v3852 = vunpack.c.h.b16 %v1345
    %v3853 = vunpack.c.l.b16 %v1346
    %v3854 = vunpack.c.h.b16 %v1346
    %v3855 = vunpack.c.l.b16 %v1347
    %v3856 = vunpack.c.h.b16 %v1347
    %v3857 = vunpack.c.l.b16 %v1348
    %v3858 = vunpack.c.h.b16 %v1348
    %v3859 = vunpack.c.l.b16 %v1349
    %v3860 = vunpack.c.h.b16 %v1349
    %v3861 = vunpack.c.l.b16 %v1350
    %v3862 = vunpack.c.h.b16 %v1350
    %v3863 = vunpack.c.l.b16 %v1351
    %v3864 = vunpack.c.h.b16 %v1351
    %v3865 = vunpack.c.l.b16 %v1352
    %v3866 = vunpack.c.h.b16 %v1352
    %v3867 = vunpack.c.l.b16 %v1353
    %v3868 = vunpack.c.h.b16 %v1353
    %v3869 = vunpack.c.l.b16 %v1354
    %v3870 = vunpack.c.h.b16 %v1354
    %v3871 = vunpack.c.l.b16 %v1355
    %v3872 = vunpack.c.h.b16 %v1355
    %v3873 = vunpack.c.l.b16 %v1356
    %v3874 = vunpack.c.h.b16 %v1356
    %v3875 = vunpack.c.l.b16 %v1357
    %v3876 = vunpack.c.h.b16 %v1357
    %v3877 = vunpack.c.l.b16 %v1358
    %v3878 = vunpack.c.h.b16 %v1358
    %v3879 = vunpack.c.l.b16 %v1359
    %v3880 = vunpack.c.h.b16 %v1359
    %v3881 = vunpack.c.l.b16 %v1360
    %v3882 = vunpack.c.h.b16 %v1360
    %v3883 = vunpack.c.l.b16 %v1361
    %v3884 = vunpack.c.h.b16 %v1361
    %v3885 = vunpack.c.l.b16 %v1362
    %v3886 = vunpack.c.h.b16 %v1362
    %v3887 = vunpack.c.l.b16 %v1363
    %v3888 = vunpack.c.h.b16 %v1363
    %v3889 = vunpack.c.l.b16 %v1364
    %v3890 = vunpack.c.h.b16 %v1364
    %v3891 = vunpack.c.l.b16 %v1365
    %v3892 = vunpack.c.h.b16 %v1365
    %v3893 = vunpack.c.l.b16 %v1366
    %v3894 = vunpack.c.h.b16 %v1366
    %v3895 = vunpack.c.l.b16 %v1367
    %v3896 = vunpack.c.h.b16 %v1367
    %v3897 = vunpack.c.l.b16 %v1368
    %v3898 = vunpack.c.h.b16 %v1368
    %v3899 = vunpack.c.l.b16 %v1369
    %v3900 = vunpack.c.h.b16 %v1369
    %v3901 = vunpack.c.l.b16 %v1370
    %v3902 = vunpack.c.h.b16 %v1370
    %v3903 = vunpack.c.l.b16 %v1371
    %v3904 = vunpack.c.h.b16 %v1371
    %v3905 = vunpack.c.l.b16 %v1372
    %v3906 = vunpack.c.h.b16 %v1372
    %v3907 = vunpack.c.l.b16 %v1373
    %v3908 = vunpack.c.h.b16 %v1373
    %v3909 = vunpack.c.l.b16 %v1374
    %v3910 = vunpack.c.h.b16 %v1374
    %v3911 = vunpack.c.l.b16 %v1375
    %v3912 = vunpack.c.h.b16 %v1375
    %v3913 = vunpack.c.l.b16 %v1376
    %v3914 = vunpack.c.h.b16 %v1376
    %v3915 = vunpack.c.l.b16 %v1377
    %v3916 = vunpack.c.h.b16 %v1377
    %v3917 = vunpack.c.l.b16 %v1378
    %v3918 = vunpack.c.h.b16 %v1378
    %v3919 = vunpack.c.l.b16 %v1379
    %v3920 = vunpack.c.h.b16 %v1379
    %v3921 = vunpack.c.l.b16 %v1380
    %v3922 = vunpack.c.h.b16 %v1380
    %v3923 = vunpack.c.l.b16 %v1381
    %v3924 = vunpack.c.h.b16 %v1381
    %v3925 = vunpack.c.l.b16 %v1382
    %v3926 = vunpack.c.h.b16 %v1382
    %v3927 = vunpack.c.l.b16 %v1383
    %v3928 = vunpack.c.h.b16 %v1383
    %v3929 = vunpack.c.l.b16 %v1384
    %v3930 = vunpack.c.h.b16 %v1384
    %v3931 = vunpack.c.l.b16 %v1385
    %v3932 = vunpack.c.h.b16 %v1385
    %v3933 = vunpack.c.l.b16 %v1386
    %v3934 = vunpack.c.h.b16 %v1386
    %v3935 = vunpack.c.l.b16 %v1387
    %v3936 = vunpack.c.h.b16 %v1387
    %v3937 = vunpack.c.l.b16 %v1388
    %v3938 = vunpack.c.h.b16 %v1388
    %v3939 = vunpack.c.l.b16 %v1389
    %v3940 = vunpack.c.h.b16 %v1389
    %v3941 = vunpack.c.l.b16 %v1390
    %v3942 = vunpack.c.h.b16 %v1390
    %v3943 = vunpack.c.l.b16 %v1391
    %v3944 = vunpack.c.h.b16 %v1391
    %v3945 = vunpack.c.l.b16 %v1392
    %v3946 = vunpack.c.h.b16 %v1392
    %v3947 = vunpack.c.l.b16 %v1393
    %v3948 = vunpack.c.h.b16 %v1393
    %v3949 = vunpack.c.l.b16 %v1394
    %v3950 = vunpack.c.h.b16 %v1394
    %v3951 = vunpack.c.l.b16 %v1395
    %v3952 = vunpack.c.h.b16 %v1395
    %v3953 = vunpack.c.l.b16 %v1396
    %v3954 = vunpack.c.h.b16 %v1396
    %v3955 = vunpack.c.l.b16 %v1397
    %v3956 = vunpack.c.h.b16 %v1397
    %v3957 = vunpack.c.l.b16 %v1398
    %v3958 = vunpack.c.h.b16 %v1398
    %v3959 = vunpack.c.l.b16 %v1399
    %v3960 = vunpack.c.h.b16 %v1399
    %v3961 = vunpack.c.l.b16 %v1400
    %v3962 = vunpack.c.h.b16 %v1400
    %v3963 = vunpack.c.l.b16 %v1401
    %v3964 = vunpack.c.h.b16 %v1401
    %v3965 = vunpack.c.l.b16 %v1402
    %v3966 = vunpack.c.h.b16 %v1402
    %v3967 = vunpack.c.l.b16 %v1403
    %v3968 = vunpack.c.h.b16 %v1403
    %v3969 = vunpack.c.l.b16 %v1404
    %v3970 = vunpack.c.h.b16 %v1404
    %v3971 = vunpack.c.l.b16 %v1405
    %v3972 = vunpack.c.h.b16 %v1405
    %v3973 = vunpack.c.l.b16 %v1406
    %v3974 = vunpack.c.h.b16 %v1406
    %v3975 = vunpack.c.l.b16 %v1407
    %v3976 = vunpack.c.h.b16 %v1407
    %v3977 = vunpack.c.l.b16 %v1408
    %v3978 = vunpack.c.h.b16 %v1408
    %v3979 = vunpack.c.l.b16 %v1409
    %v3980 = vunpack.c.h.b16 %v1409
    %v3981 = vunpack.c.l.b16 %v1410
    %v3982 = vunpack.c.h.b16 %v1410
    %v3983 = vunpack.c.l.b16 %v1411
    %v3984 = vunpack.c.h.b16 %v1411
    %v3985 = vunpack.c.l.b16 %v1412
    %v3986 = vunpack.c.h.b16 %v1412
    %v3987 = vunpack.c.l.b16 %v1413
    %v3988 = vunpack.c.h.b16 %v1413
    %v3989 = vunpack.c.l.b16 %v1414
    %v3990 = vunpack.c.h.b16 %v1414
    %v3991 = vunpack.c.l.b16 %v1415
    %v3992 = vunpack.c.h.b16 %v1415
    %v3993 = vunpack.c.l.b16 %v1416
    %v3994 = vunpack.c.h.b16 %v1416
    %v3995 = vunpack.c.l.b16 %v1417
    %v3996 = vunpack.c.h.b16 %v1417
    %v3997 = vunpack.c.l.b16 %v1418
    %v3998 = vunpack.c.h.b16 %v1418
    %v3999 = vunpack.c.l.b16 %v1419
    %v4000 = vunpack.c.h.b16 %v1419
    %v4001 = vunpack.c.l.b16 %v1420
    %v4002 = vunpack.c.h.b16 %v1420
    %v4003 = vunpack.c.l.b16 %v1421
    %v4004 = vunpack.c.h.b16 %v1421
    %v4005 = vunpack.c.l.b16 %v1422
    %v4006 = vunpack.c.h.b16 %v1422
    %v4007 = vunpack.c.l.b16 %v1423
    %v4008 = vunpack.c.h.b16 %v1423
    %v4009 = vunpack.c.l.b16 %v1424
    %v4010 = vunpack.c.h.b16 %v1424
    %v4011 = vunpack.c.l.b16 %v1425
    %v4012 = vunpack.c.h.b16 %v1425
    %v4013 = vunpack.c.l.b16 %v1426
    %v4014 = vunpack.c.h.b16 %v1426
    %v4015 = vunpack.c.l.b16 %v1427
    %v4016 = vunpack.c.h.b16 %v1427
    %v4017 = vunpack.c.l.b16 %v1428
    %v4018 = vunpack.c.h.b16 %v1428
    %v4019 = vunpack.c.l.b16 %v1429
    %v4020 = vunpack.c.h.b16 %v1429
    %v4021 = vunpack.c.l.b16 %v1430
    %v4022 = vunpack.c.h.b16 %v1430
    %v4023 = vunpack.c.l.b16 %v1431
    %v4024 = vunpack.c.h.b16 %v1431
    %v4025 = vunpack.c.l.b16 %v1432
    %v4026 = vunpack.c.h.b16 %v1432
    %v4027 = vunpack.c.l.b16 %v1433
    %v4028 = vunpack.c.h.b16 %v1433
    %v4029 = vunpack.c.l.b16 %v1434
    %v4030 = vunpack.c.h.b16 %v1434
    %v4031 = vunpack.c.l.b16 %v1435
    %v4032 = vunpack.c.h.b16 %v1435
    %v4033 = vunpack.c.l.b16 %v1436
    %v4034 = vunpack.c.h.b16 %v1436
    %v4035 = vunpack.c.l.b16 %v1437
    %v4036 = vunpack.c.h.b16 %v1437
    %v4037 = vunpack.c.l.b16 %v1438
    %v4038 = vunpack.c.h.b16 %v1438
    %v4039 = vunpack.c.l.b16 %v1439
    %v4040 = vunpack.c.h.b16 %v1439
    %v4041 = vunpack.c.l.b16 %v1440
    %v4042 = vunpack.c.h.b16 %v1440
    %v4043 = vunpack.c.l.b16 %v1441
    %v4044 = vunpack.c.h.b16 %v1441
    %v4045 = vunpack.c.l.b16 %v1442
    %v4046 = vunpack.c.h.b16 %v1442
    %v4047 = vunpack.c.l.b16 %v1443
    %v4048 = vunpack.c.h.b16 %v1443
    %v4049 = vunpack.c.l.b16 %v1444
    %v4050 = vunpack.c.h.b16 %v1444
    %v4051 = vunpack.c.l.b16 %v1445
    %v4052 = vunpack.c.h.b16 %v1445
    %v4053 = vunpack.c.l.b16 %v1446
    %v4054 = vunpack.c.h.b16 %v1446
    %v4055 = vunpack.c.l.b16 %v1447
    %v4056 = vunpack.c.h.b16 %v1447
    %v4057 = vunpack.c.l.b16 %v1448
    %v4058 = vunpack.c.h.b16 %v1448
    %v4059 = vunpack.c.l.b16 %v1449
    %v4060 = vunpack.c.h.b16 %v1449
    %v4061 = vunpack.c.l.b16 %v1450
    %v4062 = vunpack.c.h.b16 %v1450
    %v4063 = vunpack.c.l.b16 %v1451
    %v4064 = vunpack.c.h.b16 %v1451
    %v4065 = vunpack.c.l.b16 %v1452
    %v4066 = vunpack.c.h.b16 %v1452
    %v4067 = vunpack.c.l.b16 %v1453
    %v4068 = vunpack.c.h.b16 %v1453
    %v4069 = vunpack.c.l.b16 %v1454
    %v4070 = vunpack.c.h.b16 %v1454
    %v4071 = vunpack.c.l.b16 %v1455
    %v4072 = vunpack.c.h.b16 %v1455
    %v4073 = vunpack.c.l.b16 %v1456
    %v4074 = vunpack.c.h.b16 %v1456
    %v4075 = vunpack.c.l.b16 %v1457
    %v4076 = vunpack.c.h.b16 %v1457
    %v4077 = vunpack.c.l.b16 %v1458
    %v4078 = vunpack.c.h.b16 %v1458
    %v4079 = vunpack.c.l.b16 %v1459
    %v4080 = vunpack.c.h.b16 %v1459
    %v4081 = vunpack.c.l.b16 %v1460
    %v4082 = vunpack.c.h.b16 %v1460
    %v4083 = vunpack.c.l.b16 %v1461
    %v4084 = vunpack.c.h.b16 %v1461
    %v4085 = vunpack.c.l.b16 %v1462
    %v4086 = vunpack.c.h.b16 %v1462
    %v4087 = vunpack.c.l.b16 %v1463
    %v4088 = vunpack.c.h.b16 %v1463
    %v4089 = vunpack.c.l.b16 %v1464
    %v4090 = vunpack.c.h.b16 %v1464
    %v4091 = vunpack.c.l.b16 %v1465
    %v4092 = vunpack.c.h.b16 %v1465
    %v4093 = vunpack.c.l.b16 %v1466
    %v4094 = vunpack.c.h.b16 %v1466
    %v4095 = vunpack.c.l.b16 %v1467
    %v4096 = vunpack.c.h.b16 %v1467
    %v4097 = vunpack.c.l.b16 %v1468
    %v4098 = vunpack.c.h.b16 %v1468
    %v4099 = vunpack.c.l.b16 %v1469
    %v4100 = vunpack.c.h.b16 %v1469
    %v4101 = vunpack.c.l.b16 %v1470
    %v4102 = vunpack.c.h.b16 %v1470
    %v4103 = vunpack.c.l.b16 %v1471
    %v4104 = vunpack.c.h.b16 %v1471
    %v4105 = vunpack.c.l.b16 %v1472
    %v4106 = vunpack.c.h.b16 %v1472
    %v4107 = vunpack.c.l.b16 %v1473
    %v4108 = vunpack.c.h.b16 %v1473
    %v4109 = vunpack.c.l.b16 %v1474
    %v4110 = vunpack.c.h.b16 %v1474
    %v4111 = vunpack.c.l.b16 %v1475
    %v4112 = vunpack.c.h.b16 %v1475
    %v4113 = vunpack.c.l.b16 %v1476
    %v4114 = vunpack.c.h.b16 %v1476
    %v4115 = vunpack.c.l.b16 %v1477
    %v4116 = vunpack.c.h.b16 %v1477
    %v4117 = vunpack.c.l.b16 %v1478
    %v4118 = vunpack.c.h.b16 %v1478
    %v4119 = vunpack.c.l.b16 %v1479
    %v4120 = vunpack.c.h.b16 %v1479
    %v4121 = vunpack.c.l.b16 %v1480
    %v4122 = vunpack.c.h.b16 %v1480
    %v4123 = vunpack.c.l.b16 %v1481
    %v4124 = vunpack.c.h.b16 %v1481
    %v4125 = vunpack.c.l.b16 %v1482
    %v4126 = vunpack.c.h.b16 %v1482
    %v4127 = vunpack.c.l.b16 %v1483
    %v4128 = vunpack.c.h.b16 %v1483
    %v4129 = vunpack.c.l.b16 %v1484
    %v4130 = vunpack.c.h.b16 %v1484
    %v4131 = vunpack.c.l.b16 %v1485
    %v4132 = vunpack.c.h.b16 %v1485
    %v4133 = vunpack.c.l.b16 %v1486
    %v4134 = vunpack.c.h.b16 %v1486
    %v4135 = vunpack.c.l.b16 %v1487
    %v4136 = vunpack.c.h.b16 %v1487
    %v4137 = vunpack.c.l.b16 %v1488
    %v4138 = vunpack.c.h.b16 %v1488
    %v4139 = vunpack.c.l.b16 %v1489
    %v4140 = vunpack.c.h.b16 %v1489
    %v4141 = vunpack.c.l.b16 %v1490
    %v4142 = vunpack.c.h.b16 %v1490
    %v4143 = vunpack.c.l.b16 %v1491
    %v4144 = vunpack.c.h.b16 %v1491
    %v4145 = vunpack.c.l.b16 %v1492
    %v4146 = vunpack.c.h.b16 %v1492
    %v4147 = vunpack.c.l.b16 %v1493
    %v4148 = vunpack.c.h.b16 %v1493
    %v4149 = vunpack.c.l.b16 %v1494
    %v4150 = vunpack.c.h.b16 %v1494
    %v4151 = vunpack.c.l.b16 %v1495
    %v4152 = vunpack.c.h.b16 %v1495
    %v4153 = vunpack.c.l.b16 %v1496
    %v4154 = vunpack.c.h.b16 %v1496
    %v4155 = vunpack.c.l.b16 %v1497
    %v4156 = vunpack.c.h.b16 %v1497
    %v4157 = vunpack.c.l.b16 %v1498
    %v4158 = vunpack.c.h.b16 %v1498
    %v4159 = vunpack.c.l.b16 %v1499
    %v4160 = vunpack.c.h.b16 %v1499
    %v4161 = vunpack.c.l.b16 %v1500
    %v4162 = vunpack.c.h.b16 %v1500
    %v4163 = vunpack.c.l.b16 %v1501
    %v4164 = vunpack.c.h.b16 %v1501
    %v4165 = vunpack.c.l.b16 %v1502
    %v4166 = vunpack.c.h.b16 %v1502
    %v4167 = vunpack.c.l.b16 %v1503
    %v4168 = vunpack.c.h.b16 %v1503
    %v4169 = vunpack.c.l.b16 %v1504
    %v4170 = vunpack.c.h.b16 %v1504
    %v4171 = vunpack.c.l.b16 %v1505
    %v4172 = vunpack.c.h.b16 %v1505
    %v4173 = vunpack.c.l.b16 %v1506
    %v4174 = vunpack.c.h.b16 %v1506
    %v4175 = vunpack.c.l.b16 %v1507
    %v4176 = vunpack.c.h.b16 %v1507
    %v4177 = vunpack.c.l.b16 %v1508
    %v4178 = vunpack.c.h.b16 %v1508
    %v4179 = vunpack.c.l.b16 %v1509
    %v4180 = vunpack.c.h.b16 %v1509
    %v4181 = vunpack.c.l.b16 %v1510
    %v4182 = vunpack.c.h.b16 %v1510
    %v4183 = vunpack.c.l.b16 %v1511
    %v4184 = vunpack.c.h.b16 %v1511
    %v4185 = vunpack.c.l.b16 %v1512
    %v4186 = vunpack.c.h.b16 %v1512
    %v4187 = vunpack.c.l.b16 %v1513
    %v4188 = vunpack.c.h.b16 %v1513
    %v4189 = vunpack.c.l.b16 %v1514
    %v4190 = vunpack.c.h.b16 %v1514
    %v4191 = vunpack.c.l.b16 %v1515
    %v4192 = vunpack.c.h.b16 %v1515
    %v4193 = vunpack.c.l.b16 %v1516
    %v4194 = vunpack.c.h.b16 %v1516
    %v4195 = vunpack.c.l.b16 %v1517
    %v4196 = vunpack.c.h.b16 %v1517
    %v4197 = vunpack.c.l.b16 %v1518
    %v4198 = vunpack.c.h.b16 %v1518
    %v4199 = vunpack.c.l.b16 %v1519
    %v4200 = vunpack.c.h.b16 %v1519
    %v4201 = vunpack.c.l.b16 %v1520
    %v4202 = vunpack.c.h.b16 %v1520
    %v4203 = vunpack.c.l.b16 %v1521
    %v4204 = vunpack.c.h.b16 %v1521
    %v4205 = vunpack.c.l.b16 %v1522
    %v4206 = vunpack.c.h.b16 %v1522
    %v4207 = vunpack.c.l.b16 %v1523
    %v4208 = vunpack.c.h.b16 %v1523
    %v4209 = vunpack.c.l.b16 %v1524
    %v4210 = vunpack.c.h.b16 %v1524
    %v4211 = vunpack.c.l.b16 %v1525
    %v4212 = vunpack.c.h.b16 %v1525
    %v4213 = vunpack.c.l.b16 %v1526
    %v4214 = vunpack.c.h.b16 %v1526
    %v4215 = vunpack.c.l.b16 %v1527
    %v4216 = vunpack.c.h.b16 %v1527
    %v4217 = vunpack.c.l.b16 %v1528
    %v4218 = vunpack.c.h.b16 %v1528
    %v4219 = vunpack.c.l.b16 %v1529
    %v4220 = vunpack.c.h.b16 %v1529
    %v4221 = vunpack.c.l.b16 %v1530
    %v4222 = vunpack.c.h.b16 %v1530
    %v4223 = vunpack.c.l.b16 %v1531
    %v4224 = vunpack.c.h.b16 %v1531
    %v4225 = vunpack.c.l.b16 %v1532
    %v4226 = vunpack.c.h.b16 %v1532
    %v4227 = vunpack.c.l.b16 %v1533
    %v4228 = vunpack.c.h.b16 %v1533
    %v4229 = vunpack.c.l.b16 %v1534
    %v4230 = vunpack.c.h.b16 %v1534
    %v4231 = vunpack.c.l.b16 %v1535
    %v4232 = vunpack.c.h.b16 %v1535
    %v4233 = vunpack.c.l.b16 %v1536
    %v4234 = vunpack.c.h.b16 %v1536
    %v4235 = vunpack.c.l.b16 %v1537
    %v4236 = vunpack.c.h.b16 %v1537
    %v4237 = vunpack.c.l.b16 %v1538
    %v4238 = vunpack.c.h.b16 %v1538
    %v4239 = vunpack.c.l.b16 %v1539
    %v4240 = vunpack.c.h.b16 %v1539
    %v4241 = vunpack.c.l.b16 %v1540
    %v4242 = vunpack.c.h.b16 %v1540
    %v4243 = vunpack.c.l.b16 %v1541
    %v4244 = vunpack.c.h.b16 %v1541
    %v4245 = vunpack.c.l.b16 %v1542
    %v4246 = vunpack.c.h.b16 %v1542
    %v4247 = vunpack.c.l.b16 %v1543
    %v4248 = vunpack.c.h.b16 %v1543
    %v4249 = vunpack.c.l.b16 %v1544
    %v4250 = vunpack.c.h.b16 %v1544
    %v4251 = vunpack.c.l.b16 %v1545
    %v4252 = vunpack.c.h.b16 %v1545
    %v4253 = vunpack.c.l.b16 %v1546
    %v4254 = vunpack.c.h.b16 %v1546
    %v4255 = vunpack.c.l.b16 %v1547
    %v4256 = vunpack.c.h.b16 %v1547
    %v4257 = vunpack.c.l.b16 %v1548
    %v4258 = vunpack.c.h.b16 %v1548
    %v4259 = vunpack.c.l.b16 %v1549
    %v4260 = vunpack.c.h.b16 %v1549
    %v4261 = vunpack.c.l.b16 %v1550
    %v4262 = vunpack.c.h.b16 %v1550
    %v4263 = vunpack.c.l.b16 %v1551
    %v4264 = vunpack.c.h.b16 %v1551
    %v4265 = vunpack.c.l.b16 %v1552
    %v4266 = vunpack.c.h.b16 %v1552
    %v4267 = vunpack.c.l.b16 %v1553
    %v4268 = vunpack.c.h.b16 %v1553
    %v4269 = vunpack.c.l.b16 %v1554
    %v4270 = vunpack.c.h.b16 %v1554
    %v4271 = vunpack.c.l.b16 %v1555
    %v4272 = vunpack.c.h.b16 %v1555
    %v4273 = vunpack.c.l.b16 %v1556
    %v4274 = vunpack.c.h.b16 %v1556
    %v4275 = vunpack.c.l.b16 %v1557
    %v4276 = vunpack.c.h.b16 %v1557
    %v4277 = vunpack.c.l.b16 %v1558
    %v4278 = vunpack.c.h.b16 %v1558
    %v4279 = vunpack.c.l.b16 %v1559
    %v4280 = vunpack.c.h.b16 %v1559
    %v4281 = vunpack.c.l.b16 %v1560
    %v4282 = vunpack.c.h.b16 %v1560
    %v4283 = vunpack.c.l.b16 %v1561
    %v4284 = vunpack.c.h.b16 %v1561
    %v4285 = vunpack.c.l.b16 %v1562
    %v4286 = vunpack.c.h.b16 %v1562
    %v4287 = vunpack.c.l.b16 %v1563
    %v4288 = vunpack.c.h.b16 %v1563
    %v4289 = vunpack.c.l.b16 %v1564
    %v4290 = vunpack.c.h.b16 %v1564
    %v4291 = vunpack.c.l.b16 %v1565
    %v4292 = vunpack.c.h.b16 %v1565
    %v4293 = vunpack.c.l.b16 %v1566
    %v4294 = vunpack.c.h.b16 %v1566
    %v4295 = vunpack.c.l.b16 %v1567
    %v4296 = vunpack.c.h.b16 %v1567
    %v4297 = vunpack.c.l.b16 %v1568
    %v4298 = vunpack.c.h.b16 %v1568
    %v4299 = vunpack.c.l.b16 %v1569
    %v4300 = vunpack.c.h.b16 %v1569
    %v4301 = vunpack.c.l.b16 %v1570
    %v4302 = vunpack.c.h.b16 %v1570
    %v4303 = vunpack.c.l.b16 %v1571
    %v4304 = vunpack.c.h.b16 %v1571
    %v4305 = vunpack.c.l.b16 %v1572
    %v4306 = vunpack.c.h.b16 %v1572
    %v4307 = vunpack.c.l.b16 %v1573
    %v4308 = vunpack.c.h.b16 %v1573
    %v4309 = vunpack.c.l.b16 %v1574
    %v4310 = vunpack.c.h.b16 %v1574
    %v4311 = vunpack.c.l.b16 %v1575
    %v4312 = vunpack.c.h.b16 %v1575
    %v4313 = vunpack.c.l.b16 %v1576
    %v4314 = vunpack.c.h.b16 %v1576
    %v4315 = vunpack.c.l.b16 %v1577
    %v4316 = vunpack.c.h.b16 %v1577
    %v4317 = vunpack.c.l.b16 %v1578
    %v4318 = vunpack.c.h.b16 %v1578
    %v4319 = vunpack.c.l.b16 %v1579
    %v4320 = vunpack.c.h.b16 %v1579
    %v4321 = vunpack.c.l.b16 %v1580
    %v4322 = vunpack.c.h.b16 %v1580
    %v4323 = vunpack.c.l.b16 %v1581
    %v4324 = vunpack.c.h.b16 %v1581
    %v4325 = vunpack.c.l.b16 %v1582
    %v4326 = vunpack.c.h.b16 %v1582
    %v4327 = vunpack.c.l.b16 %v1583
    %v4328 = vunpack.c.h.b16 %v1583
    %v4329 = vunpack.c.l.b16 %v1584
    %v4330 = vunpack.c.h.b16 %v1584
    %v4331 = vunpack.c.l.b16 %v1585
    %v4332 = vunpack.c.h.b16 %v1585
    %v4333 = vunpack.c.l.b16 %v1586
    %v4334 = vunpack.c.h.b16 %v1586
    %v4335 = vunpack.c.l.b16 %v1587
    %v4336 = vunpack.c.h.b16 %v1587
    %v4337 = vunpack.c.l.b16 %v1588
    %v4338 = vunpack.c.h.b16 %v1588
    %v4339 = vunpack.c.l.b16 %v1589
    %v4340 = vunpack.c.h.b16 %v1589
    %v4341 = vunpack.c.l.b16 %v1590
    %v4342 = vunpack.c.h.b16 %v1590
    %v4343 = vunpack.c.l.b16 %v1591
    %v4344 = vunpack.c.h.b16 %v1591
    %v4345 = vunpack.c.l.b16 %v1592
    %v4346 = vunpack.c.h.b16 %v1592
    %v4347 = vunpack.c.l.b16 %v1593
    %v4348 = vunpack.c.h.b16 %v1593
    %v4349 = vunpack.c.l.b16 %v1594
    %v4350 = vunpack.c.h.b16 %v1594
    %v4351 = vunpack.c.l.b16 %v1595
    %v4352 = vunpack.c.h.b16 %v1595
    %v4353 = vunpack.c.l.b16 %v1596
    %v4354 = vunpack.c.h.b16 %v1596
    %v4355 = vunpack.c.l.b16 %v1597
    %v4356 = vunpack.c.h.b16 %v1597
    %v4357 = vunpack.c.l.b16 %v1598
    %v4358 = vunpack.c.h.b16 %v1598
    %v4359 = vunpack.c.l.b16 %v1599
    %v4360 = vunpack.c.h.b16 %v1599
    %v4361 = vunpack.c.l.b16 %v1600
    %v4362 = vunpack.c.h.b16 %v1600
    %v4363 = vunpack.c.l.b16 %v1601
    %v4364 = vunpack.c.h.b16 %v1601
    %v4365 = vunpack.c.l.b16 %v1602
    %v4366 = vunpack.c.h.b16 %v1602
    %v4367 = vunpack.c.l.b16 %v1603
    %v4368 = vunpack.c.h.b16 %v1603
    %v4369 = vunpack.c.l.b16 %v1604
    %v4370 = vunpack.c.h.b16 %v1604
    %v4371 = vunpack.c.l.b16 %v1605
    %v4372 = vunpack.c.h.b16 %v1605
    %v4373 = vunpack.c.l.b16 %v1606
    %v4374 = vunpack.c.h.b16 %v1606
    %v4375 = vpack.c.b16 %v2557, %v2551
    %v4376 = vpack.c.b16 %v2558, %v2552
    %v4377 = vpack.c.b16 %v2559, %v2553
    %v4378 = vpack.c.b16 %v2560, %v2554
    %v4379 = vpack.c.b16 %v2561, %v2555
    %v4380 = vpack.c.b16 %v2562, %v2556
    %v4381 = vpack.c.b16 %v2569, %v2563
    %v4382 = vpack.c.b16 %v2570, %v2564
    %v4383 = vpack.c.b16 %v2571, %v2565
    %v4384 = vpack.c.b16 %v2572, %v2566
    %v4385 = vpack.c.b16 %v2573, %v2567
    %v4386 = vpack.c.b16 %v2574, %v2568
    %v4387 = vpack.c.b16 %v2581, %v2575
    %v4388 = vpack.c.b16 %v2582, %v2576
    %v4389 = vpack.c.b16 %v2583, %v2577
    %v4390 = vpack.c.b16 %v2584, %v2578
    %v4391 = vpack.c.b16 %v2585, %v2579
    %v4392 = vpack.c.b16 %v2586, %v2580
    %v4393 = vpack.c.b16 %v2593, %v2587
    %v4394 = vpack.c.b16 %v2594, %v2588
    %v4395 = vpack.c.b16 %v2595, %v2589
    %v4396 = vpack.c.b16 %v2596, %v2590
    %v4397 = vpack.c.b16 %v2597, %v2591
    %v4398 = vpack.c.b16 %v2598, %v2592
    %v4399 = vpack.c.b16 %v2605, %v2599
    %v4400 = vpack.c.b16 %v2606, %v2600
    %v4401 = vpack.c.b16 %v2607, %v2601
    %v4402 = vpack.c.b16 %v2608, %v2602
    %v4403 = vpack.c.b16 %v2609, %v2603
    %v4404 = vpack.c.b16 %v2610, %v2604
    %v4405 = vpack.c.b16 %v2617, %v2611
    %v4406 = vpack.c.b16 %v2618, %v2612
    %v4407 = vpack.c.b16 %v2619, %v2613
    %v4408 = vpack.c.b16 %v2620, %v2614
    %v4409 = vpack.c.b16 %v2621, %v2615
    %v4410 = vpack.c.b16 %v2622, %v2616
    %v4411 = vpack.c.b16 %v2629, %v2623
    %v4412 = vpack.c.b16 %v2630, %v2624
    %v4413 = vpack.c.b16 %v2631, %v2625
    %v4414 = vpack.c.b16 %v2632, %v2626
    %v4415 = vpack.c.b16 %v2633, %v2627
    %v4416 = vpack.c.b16 %v2634, %v2628
    %v4417 = vpack.c.b16 %v2641, %v2635
    %v4418 = vpack.c.b16 %v2642, %v2636
    %v4419 = vpack.c.b16 %v2643, %v2637
    %v4420 = vpack.c.b16 %v2644, %v2638
    %v4421 = vpack.c.b16 %v2645, %v2639
    %v4422 = vpack.c.b16 %v2646, %v2640
    %v4423 = vpack.c.b16 %v2653, %v2647
    %v4424 = vpack.c.b16 %v2654, %v2648
    %v4425 = vpack.c.b16 %v2655, %v2649
    %v4426 = vpack.c.b16 %v2656, %v2650
    %v4427 = vpack.c.b16 %v2657, %v2651
    %v4428 = vpack.c.b16 %v2658, %v2652
    %v4429 = vpack.c.b16 %v2665, %v2659
    %v4430 = vpack.c.b16 %v2666, %v2660
    %v4431 = vpack.c.b16 %v2667, %v2661
    %v4432 = vpack.c.b16 %v2668, %v2662
    %v4433 = vpack.c.b16 %v2669, %v2663
    %v4434 = vpack.c.b16 %v2670, %v2664
    %v4435 = vpack.c.b16 %v2677, %v2671
    %v4436 = vpack.c.b16 %v2678, %v2672
    %v4437 = vpack.c.b16 %v2679, %v2673
    %v4438 = vpack.c.b16 %v2680, %v2674
    %v4439 = vpack.c.b16 %v2681, %v2675
    %v4440 = vpack.c.b16 %v2682, %v2676
    %v4441 = vpack.c.b16 %v2689, %v2683
    %v4442 = vpack.c.b16 %v2690, %v2684
    %v4443 = vpack.c.b16 %v2691, %v2685
    %v4444 = vpack.c.b16 %v2692, %v2686
    %v4445 = vpack.c.b16 %v2693, %v2687
    %v4446 = vpack.c.b16 %v2694, %v2688
    %v4447 = vpack.c.b16 %v2701, %v2695
    %v4448 = vpack.c.b16 %v2702, %v2696
    %v4449 = vpack.c.b16 %v2703, %v2697
    %v4450 = vpack.c.b16 %v2704, %v2698
    %v4451 = vpack.c.b16 %v2705, %v2699
    %v4452 = vpack.c.b16 %v2706, %v2700
    %v4453 = vpack.c.b16 %v2713, %v2707
    %v4454 = vpack.c.b16 %v2714, %v2708
    %v4455 = vpack.c.b16 %v2715, %v2709
    %v4456 = vpack.c.b16 %v2716, %v2710
    %v4457 = vpack.c.b16 %v2717, %v2711
    %v4458 = vpack.c.b16 %v2718, %v2712
    %v4459 = vpack.c.b16 %v2725, %v2719
    %v4460 = vpack.c.b16 %v2726, %v2720
    %v4461 = vpack.c.b16 %v2727, %v2721
    %v4462 = vpack.c.b16 %v2728, %v2722
    %v4463 = vpack.c.b16 %v2729, %v2723
    %v4464 = vpack.c.b16 %v2730, %v2724
    %v4465 = vpack.c.b16 %v2737, %v2731
    %v4466 = vpack.c.b16 %v2738, %v2732
    %v4467 = vpack.c.b16 %v2739, %v2733
    %v4468 = vpack.c.b16 %v2740, %v2734
    %v4469 = vpack.c.b16 %v2741, %v2735
    %v4470 = vpack.c.b16 %v2742, %v2736
    %v4471 = vpack.c.b16 %v2749, %v2743
    %v4472 = vpack.c.b16 %v2750, %v2744
    %v4473 = vpack.c.b16 %v2751, %v2745
    %v4474 = vpack.c.b16 %v2752, %v2746
    %v4475 = vpack.c.b16 %v2753, %v2747
    %v4476 = vpack.c.b16 %v2754, %v2748
    %v4477 = vpack.c.b16 %v2761, %v2755
    %v4478 = vpack.c.b16 %v2762, %v2756
    %v4479 = vpack.c.b16 %v2763, %v2757
    %v4480 = vpack.c.b16 %v2764, %v2758
    %v4481 = vpack.c.b16 %v2765, %v2759
    %v4482 = vpack.c.b16 %v2766, %v2760
    %v4483 = vpack.c.b16 %v2773, %v2767
    %v4484 = vpack.c.b16 %v2774, %v2768
    %v4485 = vpack.c.b16 %v2775, %v2769
    %v4486 = vpack.c.b16 %v2776, %v2770
    %v4487 = vpack.c.b16 %v2777, %v2771
    %v4488 = vpack.c.b16 %v2778, %v2772
    %v4489 = vpack.c.b16 %v2785, %v2779
    %v4490 = vpack.c.b16 %v2786, %v2780
    %v4491 = vpack.c.b16 %v2787, %v2781
    %v4492 = vpack.c.b16 %v2788, %v2782
    %v4493 = vpack.c.b16 %v2789, %v2783
    %v4494 = vpack.c.b16 %v2790, %v2784
    %v4495 = vpack.c.b16 %v2797, %v2791
    %v4496 = vpack.c.b16 %v2798, %v2792
    %v4497 = vpack.c.b16 %v2799, %v2793
    %v4498 = vpack.c.b16 %v2800, %v2794
    %v4499 = vpack.c.b16 %v2801, %v2795
    %v4500 = vpack.c.b16 %v2802, %v2796
    %v4501 = vpack.c.b16 %v2809, %v2803
    %v4502 = vpack.c.b16 %v2810, %v2804
    %v4503 = vpack.c.b16 %v2811, %v2805
    %v4504 = vpack.c.b16 %v2812, %v2806
    %v4505 = vpack.c.b16 %v2813, %v2807
    %v4506 = vpack.c.b16 %v2814, %v2808
    %v4507 = vpack.c.b16 %v2821, %v2815
    %v4508 = vpack.c.b16 %v2822, %v2816
    %v4509 = vpack.c.b16 %v2823, %v2817
    %v4510 = vpack.c.b16 %v2824, %v2818
    %v4511 = vpack.c.b16 %v2825, %v2819
    %v4512 = vpack.c.b16 %v2826, %v2820
    %v4513 = vpack.c.b16 %v2833, %v2827
    %v4514 = vpack.c.b16 %v2834, %v2828
    %v4515 = vpack.c.b16 %v2835, %v2829
    %v4516 = vpack.c.b16 %v2836, %v2830
    %v4517 = vpack.c.b16 %v2837, %v2831
    %v4518 = vpack.c.b16 %v2838, %v2832
    %v4519 = vpack.c.b16 %v2845, %v2839
    %v4520 = vpack.c.b16 %v2846, %v2840
    %v4521 = vpack.c.b16 %v2847, %v2841
    %v4522 = vpack.c.b16 %v2848, %v2842
    %v4523 = vpack.c.b16 %v2849, %v2843
    %v4524 = vpack.c.b16 %v2850, %v2844
    %v4525 = vpack.c.b16 %v2857, %v2851
    %v4526 = vpack.c.b16 %v2858, %v2852
    %v4527 = vpack.c.b16 %v2859, %v2853
    %v4528 = vpack.c.b16 %v2860, %v2854
    %v4529 = vpack.c.b16 %v2861, %v2855
    %v4530 = vpack.c.b16 %v2862, %v2856
    %v4531 = vpack.c.b16 %v2869, %v2863
    %v4532 = vpack.c.b16 %v2870, %v2864
    %v4533 = vpack.c.b16 %v2871, %v2865
    %v4534 = vpack.c.b16 %v2872, %v2866
    %v4535 = vpack.c.b16 %v2873, %v2867
    %v4536 = vpack.c.b16 %v2874, %v2868
    %v4537 = vpack.c.b16 %v2881, %v2875
    %v4538 = vpack.c.b16 %v2882, %v2876
    %v4539 = vpack.c.b16 %v2883, %v2877
    %v4540 = vpack.c.b16 %v2884, %v2878
    %v4541 = vpack.c.b16 %v2885, %v2879
    %v4542 = vpack.c.b16 %v2886, %v2880
    %v4543 = vpack.c.b16 %v2893, %v2887
    %v4544 = vpack.c.b16 %v2894, %v2888
    %v4545 = vpack.c.b16 %v2895, %v2889
    %v4546 = vpack.c.b16 %v2896, %v2890
    %v4547 = vpack.c.b16 %v2897, %v2891
    %v4548 = vpack.c.b16 %v2898, %v2892
    %v4549 = vpack.c.b16 %v2905, %v2899
    %v4550 = vpack.c.b16 %v2906, %v2900
    %v4551 = vpack.c.b16 %v2907, %v2901
    %v4552 = vpack.c.b16 %v2908, %v2902
    %v4553 = vpack.c.b16 %v2909, %v2903
    %v4554 = vpack.c.b16 %v2910, %v2904
    %v4555 = vpack.c.b16 %v2917, %v2911
    %v4556 = vpack.c.b16 %v2918, %v2912
    %v4557 = vpack.c.b16 %v2919, %v2913
    %v4558 = vpack.c.b16 %v2920, %v2914
    %v4559 = vpack.c.b16 %v2921, %v2915
    %v4560 = vpack.c.b16 %v2922, %v2916
    %v4561 = vpack.c.b16 %v2929, %v2923
    %v4562 = vpack.c.b16 %v2930, %v2924
    %v4563 = vpack.c.b16 %v2931, %v2925
    %v4564 = vpack.c.b16 %v2932, %v2926
    %v4565 = vpack.c.b16 %v2933, %v2927
    %v4566 = vpack.c.b16 %v2934, %v2928
    %v4567 = vpack.c.b16 %v2941, %v2935
    %v4568 = vpack.c.b16 %v2942, %v2936
    %v4569 = vpack.c.b16 %v2943, %v2937
    %v4570 = vpack.c.b16 %v2944, %v2938
    %v4571 = vpack.c.b16 %v2945, %v2939
    %v4572 = vpack.c.b16 %v2946, %v2940
    %v4573 = vpack.c.b16 %v2953, %v2947
    %v4574 = vpack.c.b16 %v2954, %v2948
    %v4575 = vpack.c.b16 %v2955, %v2949
    %v4576 = vpack.c.b16 %v2956, %v2950
    %v4577 = vpack.c.b16 %v2957, %v2951
    %v4578 = vpack.c.b16 %v2958, %v2952
    %v4579 = vpack.c.b16 %v2965, %v2959
    %v4580 = vpack.c.b16 %v2966, %v2960
    %v4581 = vpack.c.b16 %v2967, %v2961
    %v4582 = vpack.c.b16 %v2968, %v2962
    %v4583 = vpack.c.b16 %v2969, %v2963
    %v4584 = vpack.c.b16 %v2970, %v2964
    %v4585 = vpack.c.b16 %v2977, %v2971
    %v4586 = vpack.c.b16 %v2978, %v2972
    %v4587 = vpack.c.b16 %v2979, %v2973
    %v4588 = vpack.c.b16 %v2980, %v2974
    %v4589 = vpack.c.b16 %v2981, %v2975
    %v4590 = vpack.c.b16 %v2982, %v2976
    %v4591 = vpack.c.b16 %v2989, %v2983
    %v4592 = vpack.c.b16 %v2990, %v2984
    %v4593 = vpack.c.b16 %v2991, %v2985
    %v4594 = vpack.c.b16 %v2992, %v2986
    %v4595 = vpack.c.b16 %v2993, %v2987
    %v4596 = vpack.c.b16 %v2994, %v2988
    %v4597 = vpack.c.b16 %v3001, %v2995
    %v4598 = vpack.c.b16 %v3002, %v2996
    %v4599 = vpack.c.b16 %v3003, %v2997
    %v4600 = vpack.c.b16 %v3004, %v2998
    %v4601 = vpack.c.b16 %v3005, %v2999
    %v4602 = vpack.c.b16 %v3006, %v3000
    %v4603 = vpack.c.b16 %v3013, %v3007
    %v4604 = vpack.c.b16 %v3014, %v3008
    %v4605 = vpack.c.b16 %v3015, %v3009
    %v4606 = vpack.c.b16 %v3016, %v3010
    %v4607 = vpack.c.b16 %v3017, %v3011
    %v4608 = vpack.c.b16 %v3018, %v3012
    %v4609 = vpack.c.b16 %v3025, %v3019
    %v4610 = vpack.c.b16 %v3026, %v3020
    %v4611 = vpack.c.b16 %v3027, %v3021
    %v4612 = vpack.c.b16 %v3028, %v3022
    %v4613 = vpack.c.b16 %v3029, %v3023
    %v4614 = vpack.c.b16 %v3030, %v3024
    %v4615 = vpack.c.b16 %v3037, %v3031
    %v4616 = vpack.c.b16 %v3038, %v3032
    %v4617 = vpack.c.b16 %v3039, %v3033
    %v4618 = vpack.c.b16 %v3040, %v3034
    %v4619 = vpack.c.b16 %v3041, %v3035
    %v4620 = vpack.c.b16 %v3042, %v3036
    %v4621 = vpack.c.b16 %v3049, %v3043
    %v4622 = vpack.c.b16 %v3050, %v3044
    %v4623 = vpack.c.b16 %v3051, %v3045
    %v4624 = vpack.c.b16 %v3052, %v3046
    %v4625 = vpack.c.b16 %v3053, %v3047
    %v4626 = vpack.c.b16 %v3054, %v3048
    %v4627 = vpack.c.b16 %v3061, %v3055
    %v4628 = vpack.c.b16 %v3062, %v3056
    %v4629 = vpack.c.b16 %v3063, %v3057
    %v4630 = vpack.c.b16 %v3064, %v3058
    %v4631 = vpack.c.b16 %v3065, %v3059
    %v4632 = vpack.c.b16 %v3066, %v3060
    %v4633 = vpack.c.b16 %v3073, %v3067
    %v4634 = vpack.c.b16 %v3074, %v3068
    %v4635 = vpack.c.b16 %v3075, %v3069
    %v4636 = vpack.c.b16 %v3076, %v3070
    %v4637 = vpack.c.b16 %v3077, %v3071
    %v4638 = vpack.c.b16 %v3078, %v3072
    %v4639 = vpack.c.b16 %v3085, %v3079
    %v4640 = vpack.c.b16 %v3086, %v3080
    %v4641 = vpack.c.b16 %v3087, %v3081
    %v4642 = vpack.c.b16 %v3088, %v3082
    %v4643 = vpack.c.b16 %v3089, %v3083
    %v4644 = vpack.c.b16 %v3090, %v3084
    %v4645 = vpack.c.b16 %v3097, %v3091
    %v4646 = vpack.c.b16 %v3098, %v3092
    %v4647 = vpack.c.b16 %v3099, %v3093
    %v4648 = vpack.c.b16 %v3100, %v3094
    %v4649 = vpack.c.b16 %v3101, %v3095
    %v4650 = vpack.c.b16 %v3102, %v3096
    %v4651 = vpack.c.b16 %v3109, %v3103
    %v4652 = vpack.c.b16 %v3110, %v3104
    %v4653 = vpack.c.b16 %v3111, %v3105
    %v4654 = vpack.c.b16 %v3112, %v3106
    %v4655 = vpack.c.b16 %v3113, %v3107
    %v4656 = vpack.c.b16 %v3114, %v3108
    %v4657 = vpack.c.b16 %v3121, %v3115
    %v4658 = vpack.c.b16 %v3122, %v3116
    %v4659 = vpack.c.b16 %v3123, %v3117
    %v4660 = vpack.c.b16 %v3124, %v3118
    %v4661 = vpack.c.b16 %v3125, %v3119
    %v4662 = vpack.c.b16 %v3126, %v3120
    %v4663 = vpack.c.b16 %v3133, %v3127
    %v4664 = vpack.c.b16 %v3134, %v3128
    %v4665 = vpack.c.b16 %v3135, %v3129
    %v4666 = vpack.c.b16 %v3136, %v3130
    %v4667 = vpack.c.b16 %v3137, %v3131
    %v4668 = vpack.c.b16 %v3138, %v3132
    %v4669 = vpack.c.b16 %v3145, %v3139
    %v4670 = vpack.c.b16 %v3146, %v3140
    %v4671 = vpack.c.b16 %v3147, %v3141
    %v4672 = vpack.c.b16 %v3148, %v3142
    %v4673 = vpack.c.b16 %v3149, %v3143
    %v4674 = vpack.c.b16 %v3150, %v3144
    %v4675 = vpack.c.b16 %v3157, %v3151
    %v4676 = vpack.c.b16 %v3158, %v3152
    %v4677 = vpack.c.b16 %v3159, %v3153
    %v4678 = vpack.c.b16 %v3160, %v3154
    %v4679 = vpack.c.b16 %v3161, %v3155
    %v4680 = vpack.c.b16 %v3162, %v3156
    %v4681 = vpack.c.b16 %v3169, %v3163
    %v4682 = vpack.c.b16 %v3170, %v3164
    %v4683 = vpack.c.b16 %v3171, %v3165
    %v4684 = vpack.c.b16 %v3172, %v3166
    %v4685 = vpack.c.b16 %v3173, %v3167
    %v4686 = vpack.c.b16 %v3174, %v3168
    %v4687 = vpack.c.b16 %v3181, %v3175
    %v4688 = vpack.c.b16 %v3182, %v3176
    %v4689 = vpack.c.b16 %v3183, %v3177
    %v4690 = vpack.c.b16 %v3184, %v3178
    %v4691 = vpack.c.b16 %v3185, %v3179
    %v4692 = vpack.c.b16 %v3186, %v3180
    %v4693 = vpack.c.b16 %v3193, %v3187
    %v4694 = vpack.c.b16 %v3194, %v3188
    %v4695 = vpack.c.b16 %v3195, %v3189
    %v4696 = vpack.c.b16 %v3196, %v3190
    %v4697 = vpack.c.b16 %v3197, %v3191
    %v4698 = vpack.c.b16 %v3198, %v3192
    %v4699 = vpack.c.b16 %v3205, %v3199
    %v4700 = vpack.c.b16 %v3206, %v3200
    %v4701 = vpack.c.b16 %v3207, %v3201
    %v4702 = vpack.c.b16 %v3208, %v3202
    %v4703 = vpack.c.b16 %v3209, %v3203
    %v4704 = vpack.c.b16 %v3210, %v3204
    %v4705 = vpack.c.b16 %v3217, %v3211
    %v4706 = vpack.c.b16 %v3218, %v3212
    %v4707 = vpack.c.b16 %v3219, %v3213
    %v4708 = vpack.c.b16 %v3220, %v3214
    %v4709 = vpack.c.b16 %v3221, %v3215
    %v4710 = vpack.c.b16 %v3222, %v3216
    %v4711 = vpack.c.b16 %v3229, %v3223
    %v4712 = vpack.c.b16 %v3230, %v3224
    %v4713 = vpack.c.b16 %v3231, %v3225
    %v4714 = vpack.c.b16 %v3232, %v3226
    %v4715 = vpack.c.b16 %v3233, %v3227
    %v4716 = vpack.c.b16 %v3234, %v3228
    %v4717 = vpack.c.b16 %v3241, %v3235
    %v4718 = vpack.c.b16 %v3242, %v3236
    %v4719 = vpack.c.b16 %v3243, %v3237
    %v4720 = vpack.c.b16 %v3244, %v3238
    %v4721 = vpack.c.b16 %v3245, %v3239
    %v4722 = vpack.c.b16 %v3246, %v3240
    %v4723 = vpack.c.b16 %v3253, %v3247
    %v4724 = vpack.c.b16 %v3254, %v3248
    %v4725 = vpack.c.b16 %v3255, %v3249
    %v4726 = vpack.c.b16 %v3256, %v3250
    %v4727 = vpack.c.b16 %v3257, %v3251
    %v4728 = vpack.c.b16 %v3258, %v3252
    %v4729 = vpack.c.b16 %v3265, %v3259
    %v4730 = vpack.c.b16 %v3266, %v3260
    %v4731 = vpack.c.b16 %v3267, %v3261
    %v4732 = vpack.c.b16 %v3268, %v3262
    %v4733 = vpack.c.b16 %v3269, %v3263
    %v4734 = vpack.c.b16 %v3270, %v3264
    %v4735 = vpack.c.b16 %v3277, %v3271
    %v4736 = vpack.c.b16 %v3278, %v3272
    %v4737 = vpack.c.b16 %v3279, %v3273
    %v4738 = vpack.c.b16 %v3280, %v3274
    %v4739 = vpack.c.b16 %v3281, %v3275
    %v4740 = vpack.c.b16 %v3282, %v3276
    %v4741 = vpack.c.b16 %v3289, %v3283
    %v4742 = vpack.c.b16 %v3290, %v3284
    %v4743 = vpack.c.b16 %v3291, %v3285
    %v4744 = vpack.c.b16 %v3292, %v3286
    %v4745 = vpack.c.b16 %v3293, %v3287
    %v4746 = vpack.c.b16 %v3294, %v3288
    %v4747 = vpack.c.b16 %v3301, %v3295
    %v4748 = vpack.c.b16 %v3302, %v3296
    %v4749 = vpack.c.b16 %v3303, %v3297
    %v4750 = vpack.c.b16 %v3304, %v3298
    %v4751 = vpack.c.b16 %v3305, %v3299
    %v4752 = vpack.c.b16 %v3306, %v3300
    %v4753 = vpack.c.b16 %v3313, %v3307
    %v4754 = vpack.c.b16 %v3314, %v3308
    %v4755 = vpack.c.b16 %v3315, %v3309
    %v4756 = vpack.c.b16 %v3316, %v3310
    %v4757 = vpack.c.b16 %v3317, %v3311
    %v4758 = vpack.c.b16 %v3318, %v3312
    %v4759 = vpack.c.b16 %v3325, %v3319
    %v4760 = vpack.c.b16 %v3326, %v3320
    %v4761 = vpack.c.b16 %v3327, %v3321
    %v4762 = vpack.c.b16 %v3328, %v3322
    %v4763 = vpack.c.b16 %v3329, %v3323
    %v4764 = vpack.c.b16 %v3330, %v3324
    %v4765 = vpack.c.b16 %v3337, %v3331
    %v4766 = vpack.c.b16 %v3338, %v3332
    %v4767 = vpack.c.b16 %v3339, %v3333
    %v4768 = vpack.c.b16 %v3340, %v3334
    %v4769 = vpack.c.b16 %v3341, %v3335
    %v4770 = vpack.c.b16 %v3342, %v3336
    %v4771 = vpack.c.b16 %v3349, %v3343
    %v4772 = vpack.c.b16 %v3350, %v3344
    %v4773 = vpack.c.b16 %v3351, %v3345
    %v4774 = vpack.c.b16 %v3352, %v3346
    %v4775 = vpack.c.b16 %v3353, %v3347
    %v4776 = vpack.c.b16 %v3354, %v3348
    %v4777 = vpack.c.b16 %v3361, %v3355
    %v4778 = vpack.c.b16 %v3362, %v3356
    %v4779 = vpack.c.b16 %v3363, %v3357
    %v4780 = vpack.c.b16 %v3364, %v3358
    %v4781 = vpack.c.b16 %v3365, %v3359
    %v4782 = vpack.c.b16 %v3366, %v3360
    %v4783 = vpack.c.b16 %v3373, %v3367
    %v4784 = vpack.c.b16 %v3374, %v3368
    %v4785 = vpack.c.b16 %v3375, %v3369
    %v4786 = vpack.c.b16 %v3376, %v3370
    %v4787 = vpack.c.b16 %v3377, %v3371
    %v4788 = vpack.c.b16 %v3378, %v3372
    %v4789 = vpack.c.b16 %v3385, %v3379
    %v4790 = vpack.c.b16 %v3386, %v3380
    %v4791 = vpack.c.b16 %v3387, %v3381
    %v4792 = vpack.c.b16 %v3388, %v3382
    %v4793 = vpack.c.b16 %v3389, %v3383
    %v4794 = vpack.c.b16 %v3390, %v3384
    %v4795 = vpack.c.b16 %v3397, %v3391
    %v4796 = vpack.c.b16 %v3398, %v3392
    %v4797 = vpack.c.b16 %v3399, %v3393
    %v4798 = vpack.c.b16 %v3400, %v3394
    %v4799 = vpack.c.b16 %v3401, %v3395
    %v4800 = vpack.c.b16 %v3402, %v3396
    %v4801 = vpack.c.b16 %v3409, %v3403
    %v4802 = vpack.c.b16 %v3410, %v3404
    %v4803 = vpack.c.b16 %v3411, %v3405
    %v4804 = vpack.c.b16 %v3412, %v3406
    %v4805 = vpack.c.b16 %v3413, %v3407
    %v4806 = vpack.c.b16 %v3414, %v3408
    %v4807 = vpack.c.b16 %v3421, %v3415
    %v4808 = vpack.c.b16 %v3422, %v3416
    %v4809 = vpack.c.b16 %v3423, %v3417
    %v4810 = vpack.c.b16 %v3424, %v3418
    %v4811 = vpack.c.b16 %v3425, %v3419
    %v4812 = vpack.c.b16 %v3426, %v3420
    %v4813 = vpack.c.b16 %v3433, %v3427
    %v4814 = vpack.c.b16 %v3434, %v3428
    %v4815 = vpack.c.b16 %v3435, %v3429
    %v4816 = vpack.c.b16 %v3436, %v3430
    %v4817 = vpack.c.b16 %v3437, %v3431
    %v4818 = vpack.c.b16 %v3438, %v3432
    %v4819 = vpack.c.b16 %v3445, %v3439
    %v4820 = vpack.c.b16 %v3446, %v3440
    %v4821 = vpack.c.b16 %v3447, %v3441
    %v4822 = vpack.c.b16 %v3448, %v3442
    %v4823 = vpack.c.b16 %v3449, %v3443
    %v4824 = vpack.c.b16 %v3450, %v3444
    %v4825 = vpack.c.b16 %v3457, %v3451
    %v4826 = vpack.c.b16 %v3458, %v3452
    %v4827 = vpack.c.b16 %v3459, %v3453
    %v4828 = vpack.c.b16 %v3460, %v3454
    %v4829 = vpack.c.b16 %v3461, %v3455
    %v4830 = vpack.c.b16 %v3462, %v3456
    %v4831 = vpack.c.b16 %v3469, %v3463
    %v4832 = vpack.c.b16 %v3470, %v3464
    %v4833 = vpack.c.b16 %v3471, %v3465
    %v4834 = vpack.c.b16 %v3472, %v3466
    %v4835 = vpack.c.b16 %v3473, %v3467
    %v4836 = vpack.c.b16 %v3474, %v3468
    %v4837 = vpack.c.b16 %v3481, %v3475
    %v4838 = vpack.c.b16 %v3482, %v3476
    %v4839 = vpack.c.b16 %v3483, %v3477
    %v4840 = vpack.c.b16 %v3484, %v3478
    %v4841 = vpack.c.b16 %v3485, %v3479
    %v4842 = vpack.c.b16 %v3486, %v3480
    %v4843 = vpack.c.b16 %v3493, %v3487
    %v4844 = vpack.c.b16 %v3494, %v3488
    %v4845 = vpack.c.b16 %v3495, %v3489
    %v4846 = vpack.c.b16 %v3496, %v3490
    %v4847 = vpack.c.b16 %v3497, %v3491
    %v4848 = vpack.c.b16 %v3498, %v3492
    %v4849 = vpack.c.b16 %v3505, %v3499
    %v4850 = vpack.c.b16 %v3506, %v3500
    %v4851 = vpack.c.b16 %v3507, %v3501
    %v4852 = vpack.c.b16 %v3508, %v3502
    %v4853 = vpack.c.b16 %v3509, %v3503
    %v4854 = vpack.c.b16 %v3510, %v3504
    %v4855 = vpack.c.b16 %v3517, %v3511
    %v4856 = vpack.c.b16 %v3518, %v3512
    %v4857 = vpack.c.b16 %v3519, %v3513
    %v4858 = vpack.c.b16 %v3520, %v3514
    %v4859 = vpack.c.b16 %v3521, %v3515
    %v4860 = vpack.c.b16 %v3522, %v3516
    %v4861 = vpack.c.b16 %v3529, %v3523
    %v4862 = vpack.c.b16 %v3530, %v3524
    %v4863 = vpack.c.b16 %v3531, %v3525
    %v4864 = vpack.c.b16 %v3532, %v3526
    %v4865 = vpack.c.b16 %v3533, %v3527
    %v4866 = vpack.c.b16 %v3534, %v3528
    %v4867 = vpack.c.b16 %v3541, %v3535
    %v4868 = vpack.c.b16 %v3542, %v3536
    %v4869 = vpack.c.b16 %v3543, %v3537
    %v4870 = vpack.c.b16 %v3544, %v3538
    %v4871 = vpack.c.b16 %v3545, %v3539
    %v4872 = vpack.c.b16 %v3546, %v3540
    %v4873 = vpack.c.b16 %v3553, %v3547
    %v4874 = vpack.c.b16 %v3554, %v3548
    %v4875 = vpack.c.b16 %v3555, %v3549
    %v4876 = vpack.c.b16 %v3556, %v3550
    %v4877 = vpack.c.b16 %v3557, %v3551
    %v4878 = vpack.c.b16 %v3558, %v3552
    %v4879 = vpack.c.b16 %v3565, %v3559
    %v4880 = vpack.c.b16 %v3566, %v3560
    %v4881 = vpack.c.b16 %v3567, %v3561
    %v4882 = vpack.c.b16 %v3568, %v3562
    %v4883 = vpack.c.b16 %v3569, %v3563
    %v4884 = vpack.c.b16 %v3570, %v3564
    %v4885 = vpack.c.b16 %v3577, %v3571
    %v4886 = vpack.c.b16 %v3578, %v3572
    %v4887 = vpack.c.b16 %v3579, %v3573
    %v4888 = vpack.c.b16 %v3580, %v3574
    %v4889 = vpack.c.b16 %v3581, %v3575
    %v4890 = vpack.c.b16 %v3582, %v3576
    %v4891 = vpack.c.b16 %v3589, %v3583
    %v4892 = vpack.c.b16 %v3590, %v3584
    %v4893 = vpack.c.b16 %v3591, %v3585
    %v4894 = vpack.c.b16 %v3592, %v3586
    %v4895 = vpack.c.b16 %v3593, %v3587
    %v4896 = vpack.c.b16 %v3594, %v3588
    %v4897 = vpack.c.b16 %v3601, %v3595
    %v4898 = vpack.c.b16 %v3602, %v3596
    %v4899 = vpack.c.b16 %v3603, %v3597
    %v4900 = vpack.c.b16 %v3604, %v3598
    %v4901 = vpack.c.b16 %v3605, %v3599
    %v4902 = vpack.c.b16 %v3606, %v3600
    %v4903 = vpack.c.b16 %v3613, %v3607
    %v4904 = vpack.c.b16 %v3614, %v3608
    %v4905 = vpack.c.b16 %v3615, %v3609
    %v4906 = vpack.c.b16 %v3616, %v3610
    %v4907 = vpack.c.b16 %v3617, %v3611
    %v4908 = vpack.c.b16 %v3618, %v3612
    %v4909 = vpack.c.b16 %v3625, %v3619
    %v4910 = vpack.c.b16 %v3626, %v3620
    %v4911 = vpack.c.b16 %v3627, %v3621
    %v4912 = vpack.c.b16 %v3628, %v3622
    %v4913 = vpack.c.b16 %v3629, %v3623
    %v4914 = vpack.c.b16 %v3630, %v3624
    %v4915 = vpack.c.b16 %v3637, %v3631
    %v4916 = vpack.c.b16 %v3638, %v3632
    %v4917 = vpack.c.b16 %v3639, %v3633
    %v4918 = vpack.c.b16 %v3640, %v3634
    %v4919 = vpack.c.b16 %v3641, %v3635
    %v4920 = vpack.c.b16 %v3642, %v3636
    %v4921 = vpack.c.b16 %v3649, %v3643
    %v4922 = vpack.c.b16 %v3650, %v3644
    %v4923 = vpack.c.b16 %v3651, %v3645
    %v4924 = vpack.c.b16 %v3652, %v3646
    %v4925 = vpack.c.b16 %v3653, %v3647
    %v4926 = vpack.c.b16 %v3654, %v3648
    %v4927 = vpack.c.b16 %v3661, %v3655
    %v4928 = vpack.c.b16 %v3662, %v3656
    %v4929 = vpack.c.b16 %v3663, %v3657
    %v4930 = vpack.c.b16 %v3664, %v3658
    %v4931 = vpack.c.b16 %v3665, %v3659
    %v4932 = vpack.c.b16 %v3666, %v3660
    %v4933 = vpack.c.b16 %v3673, %v3667
    %v4934 = vpack.c.b16 %v3674, %v3668
    %v4935 = vpack.c.b16 %v3675, %v3669
    %v4936 = vpack.c.b16 %v3676, %v3670
    %v4937 = vpack.c.b16 %v3677, %v3671
    %v4938 = vpack.c.b16 %v3678, %v3672
    %v4939 = vpack.c.b16 %v3685, %v3679
    %v4940 = vpack.c.b16 %v3686, %v3680
    %v4941 = vpack.c.b16 %v3687, %v3681
    %v4942 = vpack.c.b16 %v3688, %v3682
    %v4943 = vpack.c.b16 %v3689, %v3683
    %v4944 = vpack.c.b16 %v3690, %v3684
    %v4945 = vpack.c.b16 %v3697, %v3691
    %v4946 = vpack.c.b16 %v3698, %v3692
    %v4947 = vpack.c.b16 %v3699, %v3693
    %v4948 = vpack.c.b16 %v3700, %v3694
    %v4949 = vpack.c.b16 %v3701, %v3695
    %v4950 = vpack.c.b16 %v3702, %v3696
    %v4951 = vpack.c.b16 %v3709, %v3703
    %v4952 = vpack.c.b16 %v3710, %v3704
    %v4953 = vpack.c.b16 %v3711, %v3705
    %v4954 = vpack.c.b16 %v3712, %v3706
    %v4955 = vpack.c.b16 %v3713, %v3707
    %v4956 = vpack.c.b16 %v3714, %v3708
    %v4957 = vpack.c.b16 %v3721, %v3715
    %v4958 = vpack.c.b16 %v3722, %v3716
    %v4959 = vpack.c.b16 %v3723, %v3717
    %v4960 = vpack.c.b16 %v3724, %v3718
    %v4961 = vpack.c.b16 %v3725, %v3719
    %v4962 = vpack.c.b16 %v3726, %v3720
    %v4963 = vpack.c.b16 %v3733, %v3727
    %v4964 = vpack.c.b16 %v3734, %v3728
    %v4965 = vpack.c.b16 %v3735, %v3729
    %v4966 = vpack.c.b16 %v3736, %v3730
    %v4967 = vpack.c.b16 %v3737, %v3731
    %v4968 = vpack.c.b16 %v3738, %v3732
    %v4969 = vpack.c.b16 %v3745, %v3739
    %v4970 = vpack.c.b16 %v3746, %v3740
    %v4971 = vpack.c.b16 %v3747, %v3741
    %v4972 = vpack.c.b16 %v3748, %v3742
    %v4973 = vpack.c.b16 %v3749, %v3743
    %v4974 = vpack.c.b16 %v3750, %v3744
    %v4975 = vpack.c.b16 %v3757, %v3751
    %v4976 = vpack.c.b16 %v3758, %v3752
    %v4977 = vpack.c.b16 %v3759, %v3753
    %v4978 = vpack.c.b16 %v3760, %v3754
    %v4979 = vpack.c.b16 %v3761, %v3755
    %v4980 = vpack.c.b16 %v3762, %v3756
    %v4981 = vpack.c.b16 %v3769, %v3763
    %v4982 = vpack.c.b16 %v3770, %v3764
    %v4983 = vpack.c.b16 %v3771, %v3765
    %v4984 = vpack.c.b16 %v3772, %v3766
    %v4985 = vpack.c.b16 %v3773, %v3767
    %v4986 = vpack.c.b16 %v3774, %v3768
    %v4987 = vpack.c.b16 %v3781, %v3775
    %v4988 = vpack.c.b16 %v3782, %v3776
    %v4989 = vpack.c.b16 %v3783, %v3777
    %v4990 = vpack.c.b16 %v3784, %v3778
    %v4991 = vpack.c.b16 %v3785, %v3779
    %v4992 = vpack.c.b16 %v3786, %v3780
    %v4993 = vpack.c.b16 %v3793, %v3787
    %v4994 = vpack.c.b16 %v3794, %v3788
    %v4995 = vpack.c.b16 %v3795, %v3789
    %v4996 = vpack.c.b16 %v3796, %v3790
    %v4997 = vpack.c.b16 %v3797, %v3791
    %v4998 = vpack.c.b16 %v3798, %v3792
    %v4999 = vpack.c.b16 %v3805, %v3799
    %v5000 = vpack.c.b16 %v3806, %v3800
    %v5001 = vpack.c.b16 %v3807, %v3801
    %v5002 = vpack.c.b16 %v3808, %v3802
    %v5003 = vpack.c.b16 %v3809, %v3803
    %v5004 = vpack.c.b16 %v3810, %v3804
    %v5005 = vpack.c.b16 %v3817, %v3811
    %v5006 = vpack.c.b16 %v3818, %v3812
    %v5007 = vpack.c.b16 %v3819, %v3813
    %v5008 = vpack.c.b16 %v3820, %v3814
    %v5009 = vpack.c.b16 %v3821, %v3815
    %v5010 = vpack.c.b16 %v3822, %v3816
    %v5011 = vpack.c.b16 %v3829, %v3823
    %v5012 = vpack.c.b16 %v3830, %v3824
    %v5013 = vpack.c.b16 %v3831, %v3825
    %v5014 = vpack.c.b16 %v3832, %v3826
    %v5015 = vpack.c.b16 %v3833, %v3827
    %v5016 = vpack.c.b16 %v3834, %v3828
    %v5017 = vpack.c.b16 %v3841, %v3835
    %v5018 = vpack.c.b16 %v3842, %v3836
    %v5019 = vpack.c.b16 %v3843, %v3837
    %v5020 = vpack.c.b16 %v3844, %v3838
    %v5021 = vpack.c.b16 %v3845, %v3839
    %v5022 = vpack.c.b16 %v3846, %v3840
    %v5023 = vpack.c.b16 %v3853, %v3847
    %v5024 = vpack.c.b16 %v3854, %v3848
    %v5025 = vpack.c.b16 %v3855, %v3849
    %v5026 = vpack.c.b16 %v3856, %v3850
    %v5027 = vpack.c.b16 %v3857, %v3851
    %v5028 = vpack.c.b16 %v3858, %v3852
    %v5029 = vpack.c.b16 %v3865, %v3859
    %v5030 = vpack.c.b16 %v3866, %v3860
    %v5031 = vpack.c.b16 %v3867, %v3861
    %v5032 = vpack.c.b16 %v3868, %v3862
    %v5033 = vpack.c.b16 %v3869, %v3863
    %v5034 = vpack.c.b16 %v3870, %v3864
    %v5035 = vpack.c.b16 %v3877, %v3871
    %v5036 = vpack.c.b16 %v3878, %v3872
    %v5037 = vpack.c.b16 %v3879, %v3873
    %v5038 = vpack.c.b16 %v3880, %v3874
    %v5039 = vpack.c.b16 %v3881, %v3875
    %v5040 = vpack.c.b16 %v3882, %v3876
    %v5041 = vpack.c.b16 %v3889, %v3883
    %v5042 = vpack.c.b16 %v3890, %v3884
    %v5043 = vpack.c.b16 %v3891, %v3885
    %v5044 = vpack.c.b16 %v3892, %v3886
    %v5045 = vpack.c.b16 %v3893, %v3887
    %v5046 = vpack.c.b16 %v3894, %v3888
    %v5047 = vpack.c.b16 %v3901, %v3895
    %v5048 = vpack.c.b16 %v3902, %v3896
    %v5049 = vpack.c.b16 %v3903, %v3897
    %v5050 = vpack.c.b16 %v3904, %v3898
    %v5051 = vpack.c.b16 %v3905, %v3899
    %v5052 = vpack.c.b16 %v3906, %v3900
    %v5053 = vpack.c.b16 %v3913, %v3907
    %v5054 = vpack.c.b16 %v3914, %v3908
    %v5055 = vpack.c.b16 %v3915, %v3909
    %v5056 = vpack.c.b16 %v3916, %v3910
    %v5057 = vpack.c.b16 %v3917, %v3911
    %v5058 = vpack.c.b16 %v3918, %v3912
    %v5059 = vpack.c.b16 %v3925, %v3919
    %v5060 = vpack.c.b16 %v3926, %v3920
    %v5061 = vpack.c.b16 %v3927, %v3921
    %v5062 = vpack.c.b16 %v3928, %v3922
    %v5063 = vpack.c.b16 %v3929, %v3923
    %v5064 = vpack.c.b16 %v3930, %v3924
    %v5065 = vpack.c.b16 %v3937, %v3931
    %v5066 = vpack.c.b16 %v3938, %v3932
    %v5067 = vpack.c.b16 %v3939, %v3933
    %v5068 = vpack.c.b16 %v3940, %v3934
    %v5069 = vpack.c.b16 %v3941, %v3935
    %v5070 = vpack.c.b16 %v3942, %v3936
    %v5071 = vpack.c.b16 %v3949, %v3943
    %v5072 = vpack.c.b16 %v3950, %v3944
    %v5073 = vpack.c.b16 %v3951, %v3945
    %v5074 = vpack.c.b16 %v3952, %v3946
    %v5075 = vpack.c.b16 %v3953, %v3947
    %v5076 = vpack.c.b16 %v3954, %v3948
    %v5077 = vpack.c.b16 %v3961, %v3955
    %v5078 = vpack.c.b16 %v3962, %v3956
    %v5079 = vpack.c.b16 %v3963, %v3957
    %v5080 = vpack.c.b16 %v3964, %v3958
    %v5081 = vpack.c.b16 %v3965, %v3959
    %v5082 = vpack.c.b16 %v3966, %v3960
    %v5083 = vpack.c.b16 %v3973, %v3967
    %v5084 = vpack.c.b16 %v3974, %v3968
    %v5085 = vpack.c.b16 %v3975, %v3969
    %v5086 = vpack.c.b16 %v3976, %v3970
    %v5087 = vpack.c.b16 %v3977, %v3971
    %v5088 = vpack.c.b16 %v3978, %v3972
    %v5089 = vpack.c.b16 %v3985, %v3979
    %v5090 = vpack.c.b16 %v3986, %v3980
    %v5091 = vpack.c.b16 %v3987, %v3981
    %v5092 = vpack.c.b16 %v3988, %v3982
    %v5093 = vpack.c.b16 %v3989, %v3983
    %v5094 = vpack.c.b16 %v3990, %v3984
    %v5095 = vpack.c.b16 %v3997, %v3991
    %v5096 = vpack.c.b16 %v3998, %v3992
    %v5097 = vpack.c.b16 %v3999, %v3993
    %v5098 = vpack.c.b16 %v4000, %v3994
    %v5099 = vpack.c.b16 %v4001, %v3995
    %v5100 = vpack.c.b16 %v4002, %v3996
    %v5101 = vpack.c.b16 %v4009, %v4003
    %v5102 = vpack.c.b16 %v4010, %v4004
    %v5103 = vpack.c.b16 %v4011, %v4005
    %v5104 = vpack.c.b16 %v4012, %v4006
    %v5105 = vpack.c.b16 %v4013, %v4007
    %v5106 = vpack.c.b16 %v4014, %v4008
    %v5107 = vpack.c.b16 %v4021, %v4015
    %v5108 = vpack.c.b16 %v4022, %v4016
    %v5109 = vpack.c.b16 %v4023, %v4017
    %v5110 = vpack.c.b16 %v4024, %v4018
    %v5111 = vpack.c.b16 %v4025, %v4019
    %v5112 = vpack.c.b16 %v4026, %v4020
    %v5113 = vpack.c.b16 %v4033, %v4027
    %v5114 = vpack.c.b16 %v4034, %v4028
    %v5115 = vpack.c.b16 %v4035, %v4029
    %v5116 = vpack.c.b16 %v4036, %v4030
    %v5117 = vpack.c.b16 %v4037, %v4031
    %v5118 = vpack.c.b16 %v4038, %v4032
    %v5119 = vpack.c.b16 %v4045, %v4039
    %v5120 = vpack.c.b16 %v4046, %v4040
    %v5121 = vpack.c.b16 %v4047, %v4041
    %v5122 = vpack.c.b16 %v4048, %v4042
    %v5123 = vpack.c.b16 %v4049, %v4043
    %v5124 = vpack.c.b16 %v4050, %v4044
    %v5125 = vpack.c.b16 %v4057, %v4051
    %v5126 = vpack.c.b16 %v4058, %v4052
    %v5127 = vpack.c.b16 %v4059, %v4053
    %v5128 = vpack.c.b16 %v4060, %v4054
    %v5129 = vpack.c.b16 %v4061, %v4055
    %v5130 = vpack.c.b16 %v4062, %v4056
    %v5131 = vpack.c.b16 %v4069, %v4063
    %v5132 = vpack.c.b16 %v4070, %v4064
    %v5133 = vpack.c.b16 %v4071, %v4065
    %v5134 = vpack.c.b16 %v4072, %v4066
    %v5135 = vpack.c.b16 %v4073, %v4067
    %v5136 = vpack.c.b16 %v4074, %v4068
    %v5137 = vpack.c.b16 %v4081, %v4075
    %v5138 = vpack.c.b16 %v4082, %v4076
    %v5139 = vpack.c.b16 %v4083, %v4077
    %v5140 = vpack.c.b16 %v4084, %v4078
    %v5141 = vpack.c.b16 %v4085, %v4079
    %v5142 = vpack.c.b16 %v4086, %v4080
    %v5143 = vpack.c.b16 %v4093, %v4087
    %v5144 = vpack.c.b16 %v4094, %v4088
    %v5145 = vpack.c.b16 %v4095, %v4089
    %v5146 = vpack.c.b16 %v4096, %v4090
    %v5147 = vpack.c.b16 %v4097, %v4091
    %v5148 = vpack.c.b16 %v4098, %v4092
    %v5149 = vpack.c.b16 %v4105, %v4099
    %v5150 = vpack.c.b16 %v4106, %v4100
    %v5151 = vpack.c.b16 %v4107, %v4101
    %v5152 = vpack.c.b16 %v4108, %v4102
    %v5153 = vpack.c.b16 %v4109, %v4103
    %v5154 = vpack.c.b16 %v4110, %v4104
    %v5155 = vpack.c.b16 %v4117, %v4111
    %v5156 = vpack.c.b16 %v4118, %v4112
    %v5157 = vpack.c.b16 %v4119, %v4113
    %v5158 = vpack.c.b16 %v4120, %v4114
    %v5159 = vpack.c.b16 %v4121, %v4115
    %v5160 = vpack.c.b16 %v4122, %v4116
    %v5161 = vpack.c.b16 %v4129, %v4123
    %v5162 = vpack.c.b16 %v4130, %v4124
    %v5163 = vpack.c.b16 %v4131, %v4125
    %v5164 = vpack.c.b16 %v4132, %v4126
    %v5165 = vpack.c.b16 %v4133, %v4127
    %v5166 = vpack.c.b16 %v4134, %v4128
    %v5167 = vpack.c.b16 %v4141, %v4135
    %v5168 = vpack.c.b16 %v4142, %v4136
    %v5169 = vpack.c.b16 %v4143, %v4137
    %v5170 = vpack.c.b16 %v4144, %v4138
    %v5171 = vpack.c.b16 %v4145, %v4139
    %v5172 = vpack.c.b16 %v4146, %v4140
    %v5173 = vpack.c.b16 %v4153, %v4147
    %v5174 = vpack.c.b16 %v4154, %v4148
    %v5175 = vpack.c.b16 %v4155, %v4149
    %v5176 = vpack.c.b16 %v4156, %v4150
    %v5177 = vpack.c.b16 %v4157, %v4151
    %v5178 = vpack.c.b16 %v4158, %v4152
    %v5179 = vpack.c.b16 %v4165, %v4159
    %v5180 = vpack.c.b16 %v4166, %v4160
    %v5181 = vpack.c.b16 %v4167, %v4161
    %v5182 = vpack.c.b16 %v4168, %v4162
    %v5183 = vpack.c.b16 %v4169, %v4163
    %v5184 = vpack.c.b16 %v4170, %v4164
    %v5185 = vpack.c.b16 %v4177, %v4171
    %v5186 = vpack.c.b16 %v4178, %v4172
    %v5187 = vpack.c.b16 %v4179, %v4173
    %v5188 = vpack.c.b16 %v4180, %v4174
    %v5189 = vpack.c.b16 %v4181, %v4175
    %v5190 = vpack.c.b16 %v4182, %v4176
    %v5191 = vpack.c.b16 %v4189, %v4183
    %v5192 = vpack.c.b16 %v4190, %v4184
    %v5193 = vpack.c.b16 %v4191, %v4185
    %v5194 = vpack.c.b16 %v4192, %v4186
    %v5195 = vpack.c.b16 %v4193, %v4187
    %v5196 = vpack.c.b16 %v4194, %v4188
    %v5197 = vpack.c.b16 %v4201, %v4195
    %v5198 = vpack.c.b16 %v4202, %v4196
    %v5199 = vpack.c.b16 %v4203, %v4197
    %v5200 = vpack.c.b16 %v4204, %v4198
    %v5201 = vpack.c.b16 %v4205, %v4199
    %v5202 = vpack.c.b16 %v4206, %v4200
    %v5203 = vpack.c.b16 %v4213, %v4207
    %v5204 = vpack.c.b16 %v4214, %v4208
    %v5205 = vpack.c.b16 %v4215, %v4209
    %v5206 = vpack.c.b16 %v4216, %v4210
    %v5207 = vpack.c.b16 %v4217, %v4211
    %v5208 = vpack.c.b16 %v4218, %v4212
    %v5209 = vpack.c.b16 %v4225, %v4219
    %v5210 = vpack.c.b16 %v4226, %v4220
    %v5211 = vpack.c.b16 %v4227, %v4221
    %v5212 = vpack.c.b16 %v4228, %v4222
    %v5213 = vpack.c.b16 %v4229, %v4223
    %v5214 = vpack.c.b16 %v4230, %v4224
    %v5215 = vpack.c.b16 %v4237, %v4231
    %v5216 = vpack.c.b16 %v4238, %v4232
    %v5217 = vpack.c.b16 %v4239, %v4233
    %v5218 = vpack.c.b16 %v4240, %v4234
    %v5219 = vpack.c.b16 %v4241, %v4235
    %v5220 = vpack.c.b16 %v4242, %v4236
    %v5221 = vpack.c.b16 %v4249, %v4243
    %v5222 = vpack.c.b16 %v4250, %v4244
    %v5223 = vpack.c.b16 %v4251, %v4245
    %v5224 = vpack.c.b16 %v4252, %v4246
    %v5225 = vpack.c.b16 %v4253, %v4247
    %v5226 = vpack.c.b16 %v4254, %v4248
    %v5227 = vpack.c.b16 %v4261, %v4255
    %v5228 = vpack.c.b16 %v4262, %v4256
    %v5229 = vpack.c.b16 %v4263, %v4257
    %v5230 = vpack.c.b16 %v4264, %v4258
    %v5231 = vpack.c.b16 %v4265, %v4259
    %v5232 = vpack.c.b16 %v4266, %v4260
    %v5233 = vpack.c.b16 %v4273, %v4267
    %v5234 = vpack.c.b16 %v4274, %v4268
    %v5235 = vpack.c.b16 %v4275, %v4269
    %v5236 = vpack.c.b16 %v4276, %v4270
    %v5237 = vpack.c.b16 %v4277, %v4271
    %v5238 = vpack.c.b16 %v4278, %v4272
    %v5239 = vpack.c.b16 %v4285, %v4279
    %v5240 = vpack.c.b16 %v4286, %v4280
    %v5241 = vpack.c.b16 %v4287, %v4281
    %v5242 = vpack.c.b16 %v4288, %v4282
    %v5243 = vpack.c.b16 %v4289, %v4283
    %v5244 = vpack.c.b16 %v4290, %v4284
    %v5245 = vpack.c.b16 %v4297, %v4291
    %v5246 = vpack.c.b16 %v4298, %v4292
    %v5247 = vpack.c.b16 %v4299, %v4293
    %v5248 = vpack.c.b16 %v4300, %v4294
    %v5249 = vpack.c.b16 %v4301, %v4295
    %v5250 = vpack.c.b16 %v4302, %v4296
    %v5251 = vpack.c.b16 %v4309, %v4303
    %v5252 = vpack.c.b16 %v4310, %v4304
    %v5253 = vpack.c.b16 %v4311, %v4305
    %v5254 = vpack.c.b16 %v4312, %v4306
    %v5255 = vpack.c.b16 %v4313, %v4307
    %v5256 = vpack.c.b16 %v4314, %v4308
    %v5257 = vpack.c.b16 %v4321, %v4315
    %v5258 = vpack.c.b16 %v4322, %v4316
    %v5259 = vpack.c.b16 %v4323, %v4317
    %v5260 = vpack.c.b16 %v4324, %v4318
    %v5261 = vpack.c.b16 %v4325, %v4319
    %v5262 = vpack.c.b16 %v4326, %v4320
    %v5263 = vpack.c.b16 %v4333, %v4327
    %v5264 = vpack.c.b16 %v4334, %v4328
    %v5265 = vpack.c.b16 %v4335, %v4329
    %v5266 = vpack.c.b16 %v4336, %v4330
    %v5267 = vpack.c.b16 %v4337, %v4331
    %v5268 = vpack.c.b16 %v4338, %v4332
    %v5269 = vpack.c.b16 %v4345, %v4339
    %v5270 = vpack.c.b16 %v4346, %v4340
    %v5271 = vpack.c.b16 %v4347, %v4341
    %v5272 = vpack.c.b16 %v4348, %v4342
    %v5273 = vpack.c.b16 %v4349, %v4343
    %v5274 = vpack.c.b16 %v4350, %v4344
    %v5275 = vpack.c.b16 %v4357, %v4351
    %v5276 = vpack.c.b16 %v4358, %v4352
    %v5277 = vpack.c.b16 %v4359, %v4353
    %v5278 = vpack.c.b16 %v4360, %v4354
    %v5279 = vpack.c.b16 %v4361, %v4355
    %v5280 = vpack.c.b16 %v4362, %v4356
    %v5281 = vpack.c.b16 %v4369, %v4363
    %v5282 = vpack.c.b16 %v4370, %v4364
    %v5283 = vpack.c.b16 %v4371, %v4365
    %v5284 = vpack.c.b16 %v4372, %v4366
    %v5285 = vpack.c.b16 %v4373, %v4367
    %v5286 = vpack.c.b16 %v4374, %v4368
    %6199 = vmatprep.subr.bf16.mxu0 %v4418
    %6200 = vmatpush1.bf16.msra.mxu0 %v4417
    %6201 = vmatprep.subr.bf16.mxu0 %v4412
    %6202 = vmatpush1.bf16.msra.mxu0 %v4411
    %6203 = vmatprep.subr.bf16.mxu0 %v4406
    %6204 = vmatpush1.bf16.msra.mxu0 %v4405
    %6205 = vmatprep.subr.bf16.mxu0 %v4400
    %6206 = vmatpush1.bf16.msra.mxu0 %v4399
    %6207 = vmatprep.subr.bf16.mxu0 %v4394
    %6208 = vmatpush1.bf16.msra.mxu0 %v4393
    %6209 = vmatprep.subr.bf16.mxu0 %v4388
    %6210 = vmatpush1.bf16.msra.mxu0 %v4387
    %6211 = vmatprep.subr.bf16.mxu0 %v4382
    %6212 = vmatpush1.bf16.msra.mxu0 %v4381
    %6213 = vmatprep.subr.bf16.mxu0 %v4376
    %6214 = vmatpush1.bf16.msra.mxu0 %v4375
    %6215 = vmatprep.subr.bf16.mxu0 %v4466
    %6216 = vmatpush2.bf16.msra.mxu0 %v4465
    %6217 = vmatprep.subr.bf16.mxu0 %v4460
    %6218 = vmatpush2.bf16.msra.mxu0 %v4459
    %6219 = vmatprep.subr.bf16.mxu0 %v4454
    %6220 = vmatpush2.bf16.msra.mxu0 %v4453
    %6221 = vmatprep.subr.bf16.mxu0 %v4448
    %6222 = vmatpush2.bf16.msra.mxu0 %v4447
    %6223 = vmatprep.subr.bf16.mxu0 %v4442
    %6224 = vmatpush2.bf16.msra.mxu0 %v4441
    %6225 = vmatprep.subr.bf16.mxu0 %v4436
    %6226 = vmatpush2.bf16.msra.mxu0 %v4435
    %6227 = vmatprep.subr.bf16.mxu0 %v4430
    %6228 = vmatpush2.bf16.msra.mxu0 %v4429
    %6229 = vmatprep.subr.bf16.mxu0 %v4424
    %6230 = vmatpush2.bf16.msra.mxu0 %v4423
    %6231 = vmatprep.mubr.bf16.mxu0 %v677
    %6232 = vmatmul.mubr.bf16.gmra.mxu0 %v676
    %v6233 = vpop.f32.mrf.mxu0
    %v6234 = vadd.f32 %v1612, %v6233
    %v6235 = vpop.f32.mrf.mxu0
    %v6236 = vadd.f32 %v1616, %v6235
    %v6237 = vpop.f32.mrf.mxu0
    %v6238 = vpop.f32.mrf.mxu0
    %6239 = vdwg.mxu0
    %6240 = vmatprep.subr.bf16.mxu0 %v4514
    %6241 = vmatpush1.bf16.msra.mxu0 %v4513
    %6242 = vmatprep.subr.bf16.mxu0 %v4508
    %6243 = vmatpush1.bf16.msra.mxu0 %v4507
    %6244 = vmatprep.subr.bf16.mxu0 %v4502
    %6245 = vmatpush1.bf16.msra.mxu0 %v4501
    %6246 = vmatprep.subr.bf16.mxu0 %v4496
    %6247 = vmatpush1.bf16.msra.mxu0 %v4495
    %6248 = vmatprep.subr.bf16.mxu0 %v4490
    %6249 = vmatpush1.bf16.msra.mxu0 %v4489
    %6250 = vmatprep.subr.bf16.mxu0 %v4484
    %6251 = vmatpush1.bf16.msra.mxu0 %v4483
    %6252 = vmatprep.subr.bf16.mxu0 %v4478
    %6253 = vmatpush1.bf16.msra.mxu0 %v4477
    %6254 = vmatprep.subr.bf16.mxu0 %v4472
    %6255 = vmatpush1.bf16.msra.mxu0 %v4471
    %6256 = vmatprep.subr.bf16.mxu0 %v4562
    %6257 = vmatpush2.bf16.msra.mxu0 %v4561
    %6258 = vmatprep.subr.bf16.mxu0 %v4556
    %6259 = vmatpush2.bf16.msra.mxu0 %v4555
    %6260 = vmatprep.subr.bf16.mxu0 %v4550
    %6261 = vmatpush2.bf16.msra.mxu0 %v4549
    %6262 = vmatprep.subr.bf16.mxu0 %v4544
    %6263 = vmatpush2.bf16.msra.mxu0 %v4543
    %6264 = vmatprep.subr.bf16.mxu0 %v4538
    %6265 = vmatpush2.bf16.msra.mxu0 %v4537
    %6266 = vmatprep.subr.bf16.mxu0 %v4532
    %6267 = vmatpush2.bf16.msra.mxu0 %v4531
    %6268 = vmatprep.subr.bf16.mxu0 %v4526
    %6269 = vmatpush2.bf16.msra.mxu0 %v4525
    %6270 = vmatprep.subr.bf16.mxu0 %v4520
    %6271 = vmatpush2.bf16.msra.mxu0 %v4519
    %6272 = vmatprep.mubr.bf16.mxu0 %v679
    %6273 = vmatmul.mubr.bf16.gmra.mxu0 %v678
    %v6274 = vpop.f32.mrf.mxu0
    %v6275 = vadd.f32 %v6234, %v6274
    %v6276 = vpop.f32.mrf.mxu0
    %v6277 = vadd.f32 %v6236, %v6276
    %v6278 = vpop.f32.mrf.mxu0
    %v6279 = vpop.f32.mrf.mxu0
    %6280 = vdwg.mxu0
    %6281 = vmatprep.subr.bf16.mxu0 %v4610
    %6282 = vmatpush1.bf16.msra.mxu0 %v4609
    %6283 = vmatprep.subr.bf16.mxu0 %v4604
    %6284 = vmatpush1.bf16.msra.mxu0 %v4603
    %6285 = vmatprep.subr.bf16.mxu0 %v4598
    %6286 = vmatpush1.bf16.msra.mxu0 %v4597
    %6287 = vmatprep.subr.bf16.mxu0 %v4592
    %6288 = vmatpush1.bf16.msra.mxu0 %v4591
    %6289 = vmatprep.subr.bf16.mxu0 %v4586
    %6290 = vmatpush1.bf16.msra.mxu0 %v4585
    %6291 = vmatprep.subr.bf16.mxu0 %v4580
    %6292 = vmatpush1.bf16.msra.mxu0 %v4579
    %6293 = vmatprep.subr.bf16.mxu0 %v4574
    %6294 = vmatpush1.bf16.msra.mxu0 %v4573
    %6295 = vmatprep.subr.bf16.mxu0 %v4568
    %6296 = vmatpush1.bf16.msra.mxu0 %v4567
    %6297 = vmatprep.subr.bf16.mxu0 %v4658
    %6298 = vmatpush2.bf16.msra.mxu0 %v4657
    %6299 = vmatprep.subr.bf16.mxu0 %v4652
    %6300 = vmatpush2.bf16.msra.mxu0 %v4651
    %6301 = vmatprep.subr.bf16.mxu0 %v4646
    %6302 = vmatpush2.bf16.msra.mxu0 %v4645
    %6303 = vmatprep.subr.bf16.mxu0 %v4640
    %6304 = vmatpush2.bf16.msra.mxu0 %v4639
    %6305 = vmatprep.subr.bf16.mxu0 %v4634
    %6306 = vmatpush2.bf16.msra.mxu0 %v4633
    %6307 = vmatprep.subr.bf16.mxu0 %v4628
    %6308 = vmatpush2.bf16.msra.mxu0 %v4627
    %6309 = vmatprep.subr.bf16.mxu0 %v4622
    %6310 = vmatpush2.bf16.msra.mxu0 %v4621
    %6311 = vmatprep.subr.bf16.mxu0 %v4616
    %6312 = vmatpush2.bf16.msra.mxu0 %v4615
    %6313 = vmatprep.mubr.bf16.mxu0 %v681
    %6314 = vmatmul.mubr.bf16.gmra.mxu0 %v680
    %v6315 = vpop.f32.mrf.mxu0
    %v6316 = vadd.f32 %v6275, %v6315
    %v6317 = vpop.f32.mrf.mxu0
    %v6318 = vadd.f32 %v6277, %v6317
    %v6319 = vpop.f32.mrf.mxu0
    %v6320 = vpop.f32.mrf.mxu0
    %6321 = vdwg.mxu0
    %6322 = vmatprep.subr.bf16.mxu0 %v4706
    %6323 = vmatpush1.bf16.msra.mxu0 %v4705
    %6324 = vmatprep.subr.bf16.mxu0 %v4700
    %6325 = vmatpush1.bf16.msra.mxu0 %v4699
    %6326 = vmatprep.subr.bf16.mxu0 %v4694
    %6327 = vmatpush1.bf16.msra.mxu0 %v4693
    %6328 = vmatprep.subr.bf16.mxu0 %v4688
    %6329 = vmatpush1.bf16.msra.mxu0 %v4687
    %6330 = vmatprep.subr.bf16.mxu0 %v4682
    %6331 = vmatpush1.bf16.msra.mxu0 %v4681
    %6332 = vmatprep.subr.bf16.mxu0 %v4676
    %6333 = vmatpush1.bf16.msra.mxu0 %v4675
    %6334 = vmatprep.subr.bf16.mxu0 %v4670
    %6335 = vmatpush1.bf16.msra.mxu0 %v4669
    %6336 = vmatprep.subr.bf16.mxu0 %v4664
    %6337 = vmatpush1.bf16.msra.mxu0 %v4663
    %6338 = vmatprep.subr.bf16.mxu0 %v4754
    %6339 = vmatpush2.bf16.msra.mxu0 %v4753
    %6340 = vmatprep.subr.bf16.mxu0 %v4748
    %6341 = vmatpush2.bf16.msra.mxu0 %v4747
    %6342 = vmatprep.subr.bf16.mxu0 %v4742
    %6343 = vmatpush2.bf16.msra.mxu0 %v4741
    %6344 = vmatprep.subr.bf16.mxu0 %v4736
    %6345 = vmatpush2.bf16.msra.mxu0 %v4735
    %6346 = vmatprep.subr.bf16.mxu0 %v4730
    %6347 = vmatpush2.bf16.msra.mxu0 %v4729
    %6348 = vmatprep.subr.bf16.mxu0 %v4724
    %6349 = vmatpush2.bf16.msra.mxu0 %v4723
    %6350 = vmatprep.subr.bf16.mxu0 %v4718
    %6351 = vmatpush2.bf16.msra.mxu0 %v4717
    %6352 = vmatprep.subr.bf16.mxu0 %v4712
    %6353 = vmatpush2.bf16.msra.mxu0 %v4711
    %6354 = vmatprep.mubr.bf16.mxu0 %v683
    %6355 = vmatmul.mubr.bf16.gmra.mxu0 %v682
    %v6356 = vpop.f32.mrf.mxu0
    %v6357 = vadd.f32 %v6316, %v6356
    %v6358 = vpop.f32.mrf.mxu0
    %v6359 = vadd.f32 %v6318, %v6358
    %v6360 = vpop.f32.mrf.mxu0
    %v6361 = vpop.f32.mrf.mxu0
    %6362 = vdwg.mxu0
    %6363 = vmatprep.subr.bf16.mxu0 %v4802
    %6364 = vmatpush1.bf16.msra.mxu0 %v4801
    %6365 = vmatprep.subr.bf16.mxu0 %v4796
    %6366 = vmatpush1.bf16.msra.mxu0 %v4795
    %6367 = vmatprep.subr.bf16.mxu0 %v4790
    %6368 = vmatpush1.bf16.msra.mxu0 %v4789
    %6369 = vmatprep.subr.bf16.mxu0 %v4784
    %6370 = vmatpush1.bf16.msra.mxu0 %v4783
    %6371 = vmatprep.subr.bf16.mxu0 %v4778
    %6372 = vmatpush1.bf16.msra.mxu0 %v4777
    %6373 = vmatprep.subr.bf16.mxu0 %v4772
    %6374 = vmatpush1.bf16.msra.mxu0 %v4771
    %6375 = vmatprep.subr.bf16.mxu0 %v4766
    %6376 = vmatpush1.bf16.msra.mxu0 %v4765
    %6377 = vmatprep.subr.bf16.mxu0 %v4760
    %6378 = vmatpush1.bf16.msra.mxu0 %v4759
    %6379 = vmatprep.subr.bf16.mxu0 %v4850
    %6380 = vmatpush2.bf16.msra.mxu0 %v4849
    %6381 = vmatprep.subr.bf16.mxu0 %v4844
    %6382 = vmatpush2.bf16.msra.mxu0 %v4843
    %6383 = vmatprep.subr.bf16.mxu0 %v4838
    %6384 = vmatpush2.bf16.msra.mxu0 %v4837
    %6385 = vmatprep.subr.bf16.mxu0 %v4832
    %6386 = vmatpush2.bf16.msra.mxu0 %v4831
    %6387 = vmatprep.subr.bf16.mxu0 %v4826
    %6388 = vmatpush2.bf16.msra.mxu0 %v4825
    %6389 = vmatprep.subr.bf16.mxu0 %v4820
    %6390 = vmatpush2.bf16.msra.mxu0 %v4819
    %6391 = vmatprep.subr.bf16.mxu0 %v4814
    %6392 = vmatpush2.bf16.msra.mxu0 %v4813
    %6393 = vmatprep.subr.bf16.mxu0 %v4808
    %6394 = vmatpush2.bf16.msra.mxu0 %v4807
    %6395 = vmatprep.mubr.bf16.mxu0 %v685
    %6396 = vmatmul.mubr.bf16.gmra.mxu0 %v684
    %v6397 = vpop.f32.mrf.mxu0
    %v6398 = vadd.f32 %v6357, %v6397
    %v6399 = vpop.f32.mrf.mxu0
    %v6400 = vadd.f32 %v6359, %v6399
    %v6401 = vpop.f32.mrf.mxu0
    %v6402 = vpop.f32.mrf.mxu0
    %6403 = vdwg.mxu0
    %6404 = vmatprep.subr.bf16.mxu0 %v4898
    %6405 = vmatpush1.bf16.msra.mxu0 %v4897
    %6406 = vmatprep.subr.bf16.mxu0 %v4892
    %6407 = vmatpush1.bf16.msra.mxu0 %v4891
    %6408 = vmatprep.subr.bf16.mxu0 %v4886
    %6409 = vmatpush1.bf16.msra.mxu0 %v4885
    %6410 = vmatprep.subr.bf16.mxu0 %v4880
    %6411 = vmatpush1.bf16.msra.mxu0 %v4879
    %6412 = vmatprep.subr.bf16.mxu0 %v4874
    %6413 = vmatpush1.bf16.msra.mxu0 %v4873
    %6414 = vmatprep.subr.bf16.mxu0 %v4868
    %6415 = vmatpush1.bf16.msra.mxu0 %v4867
    %6416 = vmatprep.subr.bf16.mxu0 %v4862
    %6417 = vmatpush1.bf16.msra.mxu0 %v4861
    %6418 = vmatprep.subr.bf16.mxu0 %v4856
    %6419 = vmatpush1.bf16.msra.mxu0 %v4855
    %6420 = vmatprep.subr.bf16.mxu0 %v4946
    %6421 = vmatpush2.bf16.msra.mxu0 %v4945
    %6422 = vmatprep.subr.bf16.mxu0 %v4940
    %6423 = vmatpush2.bf16.msra.mxu0 %v4939
    %6424 = vmatprep.subr.bf16.mxu0 %v4934
    %6425 = vmatpush2.bf16.msra.mxu0 %v4933
    %6426 = vmatprep.subr.bf16.mxu0 %v4928
    %6427 = vmatpush2.bf16.msra.mxu0 %v4927
    %6428 = vmatprep.subr.bf16.mxu0 %v4922
    %6429 = vmatpush2.bf16.msra.mxu0 %v4921
    %6430 = vmatprep.subr.bf16.mxu0 %v4916
    %6431 = vmatpush2.bf16.msra.mxu0 %v4915
    %6432 = vmatprep.subr.bf16.mxu0 %v4910
    %6433 = vmatpush2.bf16.msra.mxu0 %v4909
    %6434 = vmatprep.subr.bf16.mxu0 %v4904
    %6435 = vmatpush2.bf16.msra.mxu0 %v4903
    %6436 = vmatprep.mubr.bf16.mxu0 %v687
    %6437 = vmatmul.mubr.bf16.gmra.mxu0 %v686
    %v6438 = vpop.f32.mrf.mxu0
    %v6439 = vadd.f32 %v6398, %v6438
    %v6440 = vpop.f32.mrf.mxu0
    %v6441 = vadd.f32 %v6400, %v6440
    %v6442 = vpop.f32.mrf.mxu0
    %v6443 = vpop.f32.mrf.mxu0
    %6444 = vdwg.mxu0
    %6445 = vmatprep.subr.bf16.mxu0 %v4994
    %6446 = vmatpush1.bf16.msra.mxu0 %v4993
    %6447 = vmatprep.subr.bf16.mxu0 %v4988
    %6448 = vmatpush1.bf16.msra.mxu0 %v4987
    %6449 = vmatprep.subr.bf16.mxu0 %v4982
    %6450 = vmatpush1.bf16.msra.mxu0 %v4981
    %6451 = vmatprep.subr.bf16.mxu0 %v4976
    %6452 = vmatpush1.bf16.msra.mxu0 %v4975
    %6453 = vmatprep.subr.bf16.mxu0 %v4970
    %6454 = vmatpush1.bf16.msra.mxu0 %v4969
    %6455 = vmatprep.subr.bf16.mxu0 %v4964
    %6456 = vmatpush1.bf16.msra.mxu0 %v4963
    %6457 = vmatprep.subr.bf16.mxu0 %v4958
    %6458 = vmatpush1.bf16.msra.mxu0 %v4957
    %6459 = vmatprep.subr.bf16.mxu0 %v4952
    %6460 = vmatpush1.bf16.msra.mxu0 %v4951
    %6461 = vmatprep.subr.bf16.mxu0 %v5042
    %6462 = vmatpush2.bf16.msra.mxu0 %v5041
    %6463 = vmatprep.subr.bf16.mxu0 %v5036
    %6464 = vmatpush2.bf16.msra.mxu0 %v5035
    %6465 = vmatprep.subr.bf16.mxu0 %v5030
    %6466 = vmatpush2.bf16.msra.mxu0 %v5029
    %6467 = vmatprep.subr.bf16.mxu0 %v5024
    %6468 = vmatpush2.bf16.msra.mxu0 %v5023
    %6469 = vmatprep.subr.bf16.mxu0 %v5018
    %6470 = vmatpush2.bf16.msra.mxu0 %v5017
    %6471 = vmatprep.subr.bf16.mxu0 %v5012
    %6472 = vmatpush2.bf16.msra.mxu0 %v5011
    %6473 = vmatprep.subr.bf16.mxu0 %v5006
    %6474 = vmatpush2.bf16.msra.mxu0 %v5005
    %6475 = vmatprep.subr.bf16.mxu0 %v5000
    %6476 = vmatpush2.bf16.msra.mxu0 %v4999
    %6477 = vmatprep.mubr.bf16.mxu0 %v689
    %6478 = vmatmul.mubr.bf16.gmra.mxu0 %v688
    %v6479 = vpop.f32.mrf.mxu0
    %v6480 = vadd.f32 %v6439, %v6479
    %v6481 = vpop.f32.mrf.mxu0
    %v6482 = vadd.f32 %v6441, %v6481
    %v6483 = vpop.f32.mrf.mxu0
    %v6484 = vpop.f32.mrf.mxu0
    %6485 = vdwg.mxu0
    %6486 = vmatprep.subr.bf16.mxu0 %v5090
    %6487 = vmatpush1.bf16.msra.mxu0 %v5089
    %6488 = vmatprep.subr.bf16.mxu0 %v5084
    %6489 = vmatpush1.bf16.msra.mxu0 %v5083
    %6490 = vmatprep.subr.bf16.mxu0 %v5078
    %6491 = vmatpush1.bf16.msra.mxu0 %v5077
    %6492 = vmatprep.subr.bf16.mxu0 %v5072
    %6493 = vmatpush1.bf16.msra.mxu0 %v5071
    %6494 = vmatprep.subr.bf16.mxu0 %v5066
    %6495 = vmatpush1.bf16.msra.mxu0 %v5065
    %6496 = vmatprep.subr.bf16.mxu0 %v5060
    %6497 = vmatpush1.bf16.msra.mxu0 %v5059
    %6498 = vmatprep.subr.bf16.mxu0 %v5054
    %6499 = vmatpush1.bf16.msra.mxu0 %v5053
    %6500 = vmatprep.subr.bf16.mxu0 %v5048
    %6501 = vmatpush1.bf16.msra.mxu0 %v5047
    %6502 = vmatprep.subr.bf16.mxu0 %v5138
    %6503 = vmatpush2.bf16.msra.mxu0 %v5137
    %6504 = vmatprep.subr.bf16.mxu0 %v5132
    %6505 = vmatpush2.bf16.msra.mxu0 %v5131
    %6506 = vmatprep.subr.bf16.mxu0 %v5126
    %6507 = vmatpush2.bf16.msra.mxu0 %v5125
    %6508 = vmatprep.subr.bf16.mxu0 %v5120
    %6509 = vmatpush2.bf16.msra.mxu0 %v5119
    %6510 = vmatprep.subr.bf16.mxu0 %v5114
    %6511 = vmatpush2.bf16.msra.mxu0 %v5113
    %6512 = vmatprep.subr.bf16.mxu0 %v5108
    %6513 = vmatpush2.bf16.msra.mxu0 %v5107
    %6514 = vmatprep.subr.bf16.mxu0 %v5102
    %6515 = vmatpush2.bf16.msra.mxu0 %v5101
    %6516 = vmatprep.subr.bf16.mxu0 %v5096
    %6517 = vmatpush2.bf16.msra.mxu0 %v5095
    %6518 = vmatprep.mubr.bf16.mxu0 %v691
    %6519 = vmatmul.mubr.bf16.gmra.mxu0 %v690
    %v6520 = vpop.f32.mrf.mxu0
    %v6521 = vadd.f32 %v6480, %v6520
    %v6522 = vpop.f32.mrf.mxu0
    %v6523 = vadd.f32 %v6482, %v6522
    %v6524 = vpop.f32.mrf.mxu0
    %v6525 = vpop.f32.mrf.mxu0
    %6526 = vdwg.mxu0
    %6527 = vmatprep.subr.bf16.mxu0 %v5186
    %6528 = vmatpush1.bf16.msra.mxu0 %v5185
    %6529 = vmatprep.subr.bf16.mxu0 %v5180
    %6530 = vmatpush1.bf16.msra.mxu0 %v5179
    %6531 = vmatprep.subr.bf16.mxu0 %v5174
    %6532 = vmatpush1.bf16.msra.mxu0 %v5173
    %6533 = vmatprep.subr.bf16.mxu0 %v5168
    %6534 = vmatpush1.bf16.msra.mxu0 %v5167
    %6535 = vmatprep.subr.bf16.mxu0 %v5162
    %6536 = vmatpush1.bf16.msra.mxu0 %v5161
    %6537 = vmatprep.subr.bf16.mxu0 %v5156
    %6538 = vmatpush1.bf16.msra.mxu0 %v5155
    %6539 = vmatprep.subr.bf16.mxu0 %v5150
    %6540 = vmatpush1.bf16.msra.mxu0 %v5149
    %6541 = vmatprep.subr.bf16.mxu0 %v5144
    %6542 = vmatpush1.bf16.msra.mxu0 %v5143
    %6543 = vmatprep.subr.bf16.mxu0 %v5234
    %6544 = vmatpush2.bf16.msra.mxu0 %v5233
    %6545 = vmatprep.subr.bf16.mxu0 %v5228
    %6546 = vmatpush2.bf16.msra.mxu0 %v5227
    %6547 = vmatprep.subr.bf16.mxu0 %v5222
    %6548 = vmatpush2.bf16.msra.mxu0 %v5221
    %6549 = vmatprep.subr.bf16.mxu0 %v5216
    %6550 = vmatpush2.bf16.msra.mxu0 %v5215
    %6551 = vmatprep.subr.bf16.mxu0 %v5210
    %6552 = vmatpush2.bf16.msra.mxu0 %v5209
    %6553 = vmatprep.subr.bf16.mxu0 %v5204
    %6554 = vmatpush2.bf16.msra.mxu0 %v5203
    %6555 = vmatprep.subr.bf16.mxu0 %v5198
    %6556 = vmatpush2.bf16.msra.mxu0 %v5197
    %6557 = vmatprep.subr.bf16.mxu0 %v5192
    %6558 = vmatpush2.bf16.msra.mxu0 %v5191
    %6559 = vmatprep.mubr.bf16.mxu0 %v693
    %6560 = vmatmul.mubr.bf16.gmra.mxu0 %v692
    %v6561 = vpop.f32.mrf.mxu0
    %v6562 = vadd.f32 %v6521, %v6561
    %v6563 = vpop.f32.mrf.mxu0
    %v6564 = vadd.f32 %v6523, %v6563
    %v6565 = vpop.f32.mrf.mxu0
    %v6566 = vpop.f32.mrf.mxu0
    %6567 = vdwg.mxu0
    %6568 = vmatprep.subr.bf16.mxu0 %v5282
    %6569 = vmatpush1.bf16.msra.mxu0 %v5281
    %6570 = vmatprep.subr.bf16.mxu0 %v5276
    %6571 = vmatpush1.bf16.msra.mxu0 %v5275
    %6572 = vmatprep.subr.bf16.mxu0 %v5270
    %6573 = vmatpush1.bf16.msra.mxu0 %v5269
    %6574 = vmatprep.subr.bf16.mxu0 %v5264
    %6575 = vmatpush1.bf16.msra.mxu0 %v5263
    %6576 = vmatprep.subr.bf16.mxu0 %v5258
    %6577 = vmatpush1.bf16.msra.mxu0 %v5257
    %6578 = vmatprep.subr.bf16.mxu0 %v5252
    %6579 = vmatpush1.bf16.msra.mxu0 %v5251
    %6580 = vmatprep.subr.bf16.mxu0 %v5246
    %6581 = vmatpush1.bf16.msra.mxu0 %v5245
    %6582 = vmatprep.subr.bf16.mxu0 %v5240
    %6583 = vmatpush1.bf16.msra.mxu0 %v5239
    %6584 = vmatprep.subr.bf16.mxu0 0
    %6585 = vmatpush2.bf16.msra.mxu0 0
    %6586 = vmatprep.subr.bf16.mxu0 0
    %6587 = vmatpush2.bf16.msra.mxu0 0
    %6588 = vmatprep.subr.bf16.mxu0 0
    %6589 = vmatpush2.bf16.msra.mxu0 0
    %6590 = vmatprep.subr.bf16.mxu0 0
    %6591 = vmatpush2.bf16.msra.mxu0 0
    %6592 = vmatprep.subr.bf16.mxu0 0
    %6593 = vmatpush2.bf16.msra.mxu0 0
    %6594 = vmatprep.subr.bf16.mxu0 0
    %6595 = vmatpush2.bf16.msra.mxu0 0
    %6596 = vmatprep.subr.bf16.mxu0 0
    %6597 = vmatpush2.bf16.msra.mxu0 0
    %6598 = vmatprep.subr.bf16.mxu0 0
    %6599 = vmatpush2.bf16.msra.mxu0 0
    %6600 = vmatprep.mubr.bf16.mxu0 0
    %6601 = vmatmul.mubr.bf16.gmra.mxu0 %v694
    %v6602 = vpop.f32.mrf.mxu0
    %v6603 = vadd.f32 %v6562, %v6602
    %v6604 = vpop.f32.mrf.mxu0
    %v6605 = vadd.f32 %v6564, %v6604
    %v6606 = vpop.f32.mrf.mxu0
    %v6607 = vpop.f32.mrf.mxu0
    %6608 = vdwg.mxu0
    %6609 = vmatprep.subr.bf16.mxu0 %v4420
    %6610 = vmatpush1.bf16.msra.mxu0 %v4419
    %6611 = vmatprep.subr.bf16.mxu0 %v4414
    %6612 = vmatpush1.bf16.msra.mxu0 %v4413
    %6613 = vmatprep.subr.bf16.mxu0 %v4408
    %6614 = vmatpush1.bf16.msra.mxu0 %v4407
    %6615 = vmatprep.subr.bf16.mxu0 %v4402
    %6616 = vmatpush1.bf16.msra.mxu0 %v4401
    %6617 = vmatprep.subr.bf16.mxu0 %v4396
    %6618 = vmatpush1.bf16.msra.mxu0 %v4395
    %6619 = vmatprep.subr.bf16.mxu0 %v4390
    %6620 = vmatpush1.bf16.msra.mxu0 %v4389
    %6621 = vmatprep.subr.bf16.mxu0 %v4384
    %6622 = vmatpush1.bf16.msra.mxu0 %v4383
    %6623 = vmatprep.subr.bf16.mxu0 %v4378
    %6624 = vmatpush1.bf16.msra.mxu0 %v4377
    %6625 = vmatprep.subr.bf16.mxu0 %v4468
    %6626 = vmatpush2.bf16.msra.mxu0 %v4467
    %6627 = vmatprep.subr.bf16.mxu0 %v4462
    %6628 = vmatpush2.bf16.msra.mxu0 %v4461
    %6629 = vmatprep.subr.bf16.mxu0 %v4456
    %6630 = vmatpush2.bf16.msra.mxu0 %v4455
    %6631 = vmatprep.subr.bf16.mxu0 %v4450
    %6632 = vmatpush2.bf16.msra.mxu0 %v4449
    %6633 = vmatprep.subr.bf16.mxu0 %v4444
    %6634 = vmatpush2.bf16.msra.mxu0 %v4443
    %6635 = vmatprep.subr.bf16.mxu0 %v4438
    %6636 = vmatpush2.bf16.msra.mxu0 %v4437
    %6637 = vmatprep.subr.bf16.mxu0 %v4432
    %6638 = vmatpush2.bf16.msra.mxu0 %v4431
    %6639 = vmatprep.subr.bf16.mxu0 %v4426
    %6640 = vmatpush2.bf16.msra.mxu0 %v4425
    %6641 = vmatprep.mubr.bf16.mxu0 %v677
    %6642 = vmatmul.mubr.bf16.gmra.mxu0 %v676
    %v6643 = vpop.f32.mrf.mxu0
    %v6644 = vadd.f32 %v1620, %v6643
    %v6645 = vpop.f32.mrf.mxu0
    %v6646 = vadd.f32 %v1624, %v6645
    %v6647 = vpop.f32.mrf.mxu0
    %v6648 = vpop.f32.mrf.mxu0
    %6649 = vdwg.mxu0
    %6650 = vmatprep.subr.bf16.mxu0 %v4516
    %6651 = vmatpush1.bf16.msra.mxu0 %v4515
    %6652 = vmatprep.subr.bf16.mxu0 %v4510
    %6653 = vmatpush1.bf16.msra.mxu0 %v4509
    %6654 = vmatprep.subr.bf16.mxu0 %v4504
    %6655 = vmatpush1.bf16.msra.mxu0 %v4503
    %6656 = vmatprep.subr.bf16.mxu0 %v4498
    %6657 = vmatpush1.bf16.msra.mxu0 %v4497
    %6658 = vmatprep.subr.bf16.mxu0 %v4492
    %6659 = vmatpush1.bf16.msra.mxu0 %v4491
    %6660 = vmatprep.subr.bf16.mxu0 %v4486
    %6661 = vmatpush1.bf16.msra.mxu0 %v4485
    %6662 = vmatprep.subr.bf16.mxu0 %v4480
    %6663 = vmatpush1.bf16.msra.mxu0 %v4479
    %6664 = vmatprep.subr.bf16.mxu0 %v4474
    %6665 = vmatpush1.bf16.msra.mxu0 %v4473
    %6666 = vmatprep.subr.bf16.mxu0 %v4564
    %6667 = vmatpush2.bf16.msra.mxu0 %v4563
    %6668 = vmatprep.subr.bf16.mxu0 %v4558
    %6669 = vmatpush2.bf16.msra.mxu0 %v4557
    %6670 = vmatprep.subr.bf16.mxu0 %v4552
    %6671 = vmatpush2.bf16.msra.mxu0 %v4551
    %6672 = vmatprep.subr.bf16.mxu0 %v4546
    %6673 = vmatpush2.bf16.msra.mxu0 %v4545
    %6674 = vmatprep.subr.bf16.mxu0 %v4540
    %6675 = vmatpush2.bf16.msra.mxu0 %v4539
    %6676 = vmatprep.subr.bf16.mxu0 %v4534
    %6677 = vmatpush2.bf16.msra.mxu0 %v4533
    %6678 = vmatprep.subr.bf16.mxu0 %v4528
    %6679 = vmatpush2.bf16.msra.mxu0 %v4527
    %6680 = vmatprep.subr.bf16.mxu0 %v4522
    %6681 = vmatpush2.bf16.msra.mxu0 %v4521
    %6682 = vmatprep.mubr.bf16.mxu0 %v679
    %6683 = vmatmul.mubr.bf16.gmra.mxu0 %v678
    %v6684 = vpop.f32.mrf.mxu0
    %v6685 = vadd.f32 %v6644, %v6684
    %v6686 = vpop.f32.mrf.mxu0
    %v6687 = vadd.f32 %v6646, %v6686
    %v6688 = vpop.f32.mrf.mxu0
    %v6689 = vpop.f32.mrf.mxu0
    %6690 = vdwg.mxu0
    %6691 = vmatprep.subr.bf16.mxu0 %v4612
    %6692 = vmatpush1.bf16.msra.mxu0 %v4611
    %6693 = vmatprep.subr.bf16.mxu0 %v4606
    %6694 = vmatpush1.bf16.msra.mxu0 %v4605
    %6695 = vmatprep.subr.bf16.mxu0 %v4600
    %6696 = vmatpush1.bf16.msra.mxu0 %v4599
    %6697 = vmatprep.subr.bf16.mxu0 %v4594
    %6698 = vmatpush1.bf16.msra.mxu0 %v4593
    %6699 = vmatprep.subr.bf16.mxu0 %v4588
    %6700 = vmatpush1.bf16.msra.mxu0 %v4587
    %6701 = vmatprep.subr.bf16.mxu0 %v4582
    %6702 = vmatpush1.bf16.msra.mxu0 %v4581
    %6703 = vmatprep.subr.bf16.mxu0 %v4576
    %6704 = vmatpush1.bf16.msra.mxu0 %v4575
    %6705 = vmatprep.subr.bf16.mxu0 %v4570
    %6706 = vmatpush1.bf16.msra.mxu0 %v4569
    %6707 = vmatprep.subr.bf16.mxu0 %v4660
    %6708 = vmatpush2.bf16.msra.mxu0 %v4659
    %6709 = vmatprep.subr.bf16.mxu0 %v4654
    %6710 = vmatpush2.bf16.msra.mxu0 %v4653
    %6711 = vmatprep.subr.bf16.mxu0 %v4648
    %6712 = vmatpush2.bf16.msra.mxu0 %v4647
    %6713 = vmatprep.subr.bf16.mxu0 %v4642
    %6714 = vmatpush2.bf16.msra.mxu0 %v4641
    %6715 = vmatprep.subr.bf16.mxu0 %v4636
    %6716 = vmatpush2.bf16.msra.mxu0 %v4635
    %6717 = vmatprep.subr.bf16.mxu0 %v4630
    %6718 = vmatpush2.bf16.msra.mxu0 %v4629
    %6719 = vmatprep.subr.bf16.mxu0 %v4624
    %6720 = vmatpush2.bf16.msra.mxu0 %v4623
    %6721 = vmatprep.subr.bf16.mxu0 %v4618
    %6722 = vmatpush2.bf16.msra.mxu0 %v4617
    %6723 = vmatprep.mubr.bf16.mxu0 %v681
    %6724 = vmatmul.mubr.bf16.gmra.mxu0 %v680
    %v6725 = vpop.f32.mrf.mxu0
    %v6726 = vadd.f32 %v6685, %v6725
    %v6727 = vpop.f32.mrf.mxu0
    %v6728 = vadd.f32 %v6687, %v6727
    %v6729 = vpop.f32.mrf.mxu0
    %v6730 = vpop.f32.mrf.mxu0
    %6731 = vdwg.mxu0
    %6732 = vmatprep.subr.bf16.mxu0 %v4708
    %6733 = vmatpush1.bf16.msra.mxu0 %v4707
    %6734 = vmatprep.subr.bf16.mxu0 %v4702
    %6735 = vmatpush1.bf16.msra.mxu0 %v4701
    %6736 = vmatprep.subr.bf16.mxu0 %v4696
    %6737 = vmatpush1.bf16.msra.mxu0 %v4695
    %6738 = vmatprep.subr.bf16.mxu0 %v4690
    %6739 = vmatpush1.bf16.msra.mxu0 %v4689
    %6740 = vmatprep.subr.bf16.mxu0 %v4684
    %6741 = vmatpush1.bf16.msra.mxu0 %v4683
    %6742 = vmatprep.subr.bf16.mxu0 %v4678
    %6743 = vmatpush1.bf16.msra.mxu0 %v4677
    %6744 = vmatprep.subr.bf16.mxu0 %v4672
    %6745 = vmatpush1.bf16.msra.mxu0 %v4671
    %6746 = vmatprep.subr.bf16.mxu0 %v4666
    %6747 = vmatpush1.bf16.msra.mxu0 %v4665
    %6748 = vmatprep.subr.bf16.mxu0 %v4756
    %6749 = vmatpush2.bf16.msra.mxu0 %v4755
    %6750 = vmatprep.subr.bf16.mxu0 %v4750
    %6751 = vmatpush2.bf16.msra.mxu0 %v4749
    %6752 = vmatprep.subr.bf16.mxu0 %v4744
    %6753 = vmatpush2.bf16.msra.mxu0 %v4743
    %6754 = vmatprep.subr.bf16.mxu0 %v4738
    %6755 = vmatpush2.bf16.msra.mxu0 %v4737
    %6756 = vmatprep.subr.bf16.mxu0 %v4732
    %6757 = vmatpush2.bf16.msra.mxu0 %v4731
    %6758 = vmatprep.subr.bf16.mxu0 %v4726
    %6759 = vmatpush2.bf16.msra.mxu0 %v4725
    %6760 = vmatprep.subr.bf16.mxu0 %v4720
    %6761 = vmatpush2.bf16.msra.mxu0 %v4719
    %6762 = vmatprep.subr.bf16.mxu0 %v4714
    %6763 = vmatpush2.bf16.msra.mxu0 %v4713
    %6764 = vmatprep.mubr.bf16.mxu0 %v683
    %6765 = vmatmul.mubr.bf16.gmra.mxu0 %v682
    %v6766 = vpop.f32.mrf.mxu0
    %v6767 = vadd.f32 %v6726, %v6766
    %v6768 = vpop.f32.mrf.mxu0
    %v6769 = vadd.f32 %v6728, %v6768
    %v6770 = vpop.f32.mrf.mxu0
    %v6771 = vpop.f32.mrf.mxu0
    %6772 = vdwg.mxu0
    %6773 = vmatprep.subr.bf16.mxu0 %v4804
    %6774 = vmatpush1.bf16.msra.mxu0 %v4803
    %6775 = vmatprep.subr.bf16.mxu0 %v4798
    %6776 = vmatpush1.bf16.msra.mxu0 %v4797
    %6777 = vmatprep.subr.bf16.mxu0 %v4792
    %6778 = vmatpush1.bf16.msra.mxu0 %v4791
    %6779 = vmatprep.subr.bf16.mxu0 %v4786
    %6780 = vmatpush1.bf16.msra.mxu0 %v4785
    %6781 = vmatprep.subr.bf16.mxu0 %v4780
    %6782 = vmatpush1.bf16.msra.mxu0 %v4779
    %6783 = vmatprep.subr.bf16.mxu0 %v4774
    %6784 = vmatpush1.bf16.msra.mxu0 %v4773
    %6785 = vmatprep.subr.bf16.mxu0 %v4768
    %6786 = vmatpush1.bf16.msra.mxu0 %v4767
    %6787 = vmatprep.subr.bf16.mxu0 %v4762
    %6788 = vmatpush1.bf16.msra.mxu0 %v4761
    %6789 = vmatprep.subr.bf16.mxu0 %v4852
    %6790 = vmatpush2.bf16.msra.mxu0 %v4851
    %6791 = vmatprep.subr.bf16.mxu0 %v4846
    %6792 = vmatpush2.bf16.msra.mxu0 %v4845
    %6793 = vmatprep.subr.bf16.mxu0 %v4840
    %6794 = vmatpush2.bf16.msra.mxu0 %v4839
    %6795 = vmatprep.subr.bf16.mxu0 %v4834
    %6796 = vmatpush2.bf16.msra.mxu0 %v4833
    %6797 = vmatprep.subr.bf16.mxu0 %v4828
    %6798 = vmatpush2.bf16.msra.mxu0 %v4827
    %6799 = vmatprep.subr.bf16.mxu0 %v4822
    %6800 = vmatpush2.bf16.msra.mxu0 %v4821
    %6801 = vmatprep.subr.bf16.mxu0 %v4816
    %6802 = vmatpush2.bf16.msra.mxu0 %v4815
    %6803 = vmatprep.subr.bf16.mxu0 %v4810
    %6804 = vmatpush2.bf16.msra.mxu0 %v4809
    %6805 = vmatprep.mubr.bf16.mxu0 %v685
    %6806 = vmatmul.mubr.bf16.gmra.mxu0 %v684
    %v6807 = vpop.f32.mrf.mxu0
    %v6808 = vadd.f32 %v6767, %v6807
    %v6809 = vpop.f32.mrf.mxu0
    %v6810 = vadd.f32 %v6769, %v6809
    %v6811 = vpop.f32.mrf.mxu0
    %v6812 = vpop.f32.mrf.mxu0
    %6813 = vdwg.mxu0
    %6814 = vmatprep.subr.bf16.mxu0 %v4900
    %6815 = vmatpush1.bf16.msra.mxu0 %v4899
    %6816 = vmatprep.subr.bf16.mxu0 %v4894
    %6817 = vmatpush1.bf16.msra.mxu0 %v4893
    %6818 = vmatprep.subr.bf16.mxu0 %v4888
    %6819 = vmatpush1.bf16.msra.mxu0 %v4887
    %6820 = vmatprep.subr.bf16.mxu0 %v4882
    %6821 = vmatpush1.bf16.msra.mxu0 %v4881
    %6822 = vmatprep.subr.bf16.mxu0 %v4876
    %6823 = vmatpush1.bf16.msra.mxu0 %v4875
    %6824 = vmatprep.subr.bf16.mxu0 %v4870
    %6825 = vmatpush1.bf16.msra.mxu0 %v4869
    %6826 = vmatprep.subr.bf16.mxu0 %v4864
    %6827 = vmatpush1.bf16.msra.mxu0 %v4863
    %6828 = vmatprep.subr.bf16.mxu0 %v4858
    %6829 = vmatpush1.bf16.msra.mxu0 %v4857
    %6830 = vmatprep.subr.bf16.mxu0 %v4948
    %6831 = vmatpush2.bf16.msra.mxu0 %v4947
    %6832 = vmatprep.subr.bf16.mxu0 %v4942
    %6833 = vmatpush2.bf16.msra.mxu0 %v4941
    %6834 = vmatprep.subr.bf16.mxu0 %v4936
    %6835 = vmatpush2.bf16.msra.mxu0 %v4935
    %6836 = vmatprep.subr.bf16.mxu0 %v4930
    %6837 = vmatpush2.bf16.msra.mxu0 %v4929
    %6838 = vmatprep.subr.bf16.mxu0 %v4924
    %6839 = vmatpush2.bf16.msra.mxu0 %v4923
    %6840 = vmatprep.subr.bf16.mxu0 %v4918
    %6841 = vmatpush2.bf16.msra.mxu0 %v4917
    %6842 = vmatprep.subr.bf16.mxu0 %v4912
    %6843 = vmatpush2.bf16.msra.mxu0 %v4911
    %6844 = vmatprep.subr.bf16.mxu0 %v4906
    %6845 = vmatpush2.bf16.msra.mxu0 %v4905
    %6846 = vmatprep.mubr.bf16.mxu0 %v687
    %6847 = vmatmul.mubr.bf16.gmra.mxu0 %v686
    %v6848 = vpop.f32.mrf.mxu0
    %v6849 = vadd.f32 %v6808, %v6848
    %v6850 = vpop.f32.mrf.mxu0
    %v6851 = vadd.f32 %v6810, %v6850
    %v6852 = vpop.f32.mrf.mxu0
    %v6853 = vpop.f32.mrf.mxu0
    %6854 = vdwg.mxu0
    %6855 = vmatprep.subr.bf16.mxu0 %v4996
    %6856 = vmatpush1.bf16.msra.mxu0 %v4995
    %6857 = vmatprep.subr.bf16.mxu0 %v4990
    %6858 = vmatpush1.bf16.msra.mxu0 %v4989
    %6859 = vmatprep.subr.bf16.mxu0 %v4984
    %6860 = vmatpush1.bf16.msra.mxu0 %v4983
    %6861 = vmatprep.subr.bf16.mxu0 %v4978
    %6862 = vmatpush1.bf16.msra.mxu0 %v4977
    %6863 = vmatprep.subr.bf16.mxu0 %v4972
    %6864 = vmatpush1.bf16.msra.mxu0 %v4971
    %6865 = vmatprep.subr.bf16.mxu0 %v4966
    %6866 = vmatpush1.bf16.msra.mxu0 %v4965
    %6867 = vmatprep.subr.bf16.mxu0 %v4960
    %6868 = vmatpush1.bf16.msra.mxu0 %v4959
    %6869 = vmatprep.subr.bf16.mxu0 %v4954
    %6870 = vmatpush1.bf16.msra.mxu0 %v4953
    %6871 = vmatprep.subr.bf16.mxu0 %v5044
    %6872 = vmatpush2.bf16.msra.mxu0 %v5043
    %6873 = vmatprep.subr.bf16.mxu0 %v5038
    %6874 = vmatpush2.bf16.msra.mxu0 %v5037
    %6875 = vmatprep.subr.bf16.mxu0 %v5032
    %6876 = vmatpush2.bf16.msra.mxu0 %v5031
    %6877 = vmatprep.subr.bf16.mxu0 %v5026
    %6878 = vmatpush2.bf16.msra.mxu0 %v5025
    %6879 = vmatprep.subr.bf16.mxu0 %v5020
    %6880 = vmatpush2.bf16.msra.mxu0 %v5019
    %6881 = vmatprep.subr.bf16.mxu0 %v5014
    %6882 = vmatpush2.bf16.msra.mxu0 %v5013
    %6883 = vmatprep.subr.bf16.mxu0 %v5008
    %6884 = vmatpush2.bf16.msra.mxu0 %v5007
    %6885 = vmatprep.subr.bf16.mxu0 %v5002
    %6886 = vmatpush2.bf16.msra.mxu0 %v5001
    %6887 = vmatprep.mubr.bf16.mxu0 %v689
    %6888 = vmatmul.mubr.bf16.gmra.mxu0 %v688
    %v6889 = vpop.f32.mrf.mxu0
    %v6890 = vadd.f32 %v6849, %v6889
    %v6891 = vpop.f32.mrf.mxu0
    %v6892 = vadd.f32 %v6851, %v6891
    %v6893 = vpop.f32.mrf.mxu0
    %v6894 = vpop.f32.mrf.mxu0
    %6895 = vdwg.mxu0
    %6896 = vmatprep.subr.bf16.mxu0 %v5092
    %6897 = vmatpush1.bf16.msra.mxu0 %v5091
    %6898 = vmatprep.subr.bf16.mxu0 %v5086
    %6899 = vmatpush1.bf16.msra.mxu0 %v5085
    %6900 = vmatprep.subr.bf16.mxu0 %v5080
    %6901 = vmatpush1.bf16.msra.mxu0 %v5079
    %6902 = vmatprep.subr.bf16.mxu0 %v5074
    %6903 = vmatpush1.bf16.msra.mxu0 %v5073
    %6904 = vmatprep.subr.bf16.mxu0 %v5068
    %6905 = vmatpush1.bf16.msra.mxu0 %v5067
    %6906 = vmatprep.subr.bf16.mxu0 %v5062
    %6907 = vmatpush1.bf16.msra.mxu0 %v5061
    %6908 = vmatprep.subr.bf16.mxu0 %v5056
    %6909 = vmatpush1.bf16.msra.mxu0 %v5055
    %6910 = vmatprep.subr.bf16.mxu0 %v5050
    %6911 = vmatpush1.bf16.msra.mxu0 %v5049
    %6912 = vmatprep.subr.bf16.mxu0 %v5140
    %6913 = vmatpush2.bf16.msra.mxu0 %v5139
    %6914 = vmatprep.subr.bf16.mxu0 %v5134
    %6915 = vmatpush2.bf16.msra.mxu0 %v5133
    %6916 = vmatprep.subr.bf16.mxu0 %v5128
    %6917 = vmatpush2.bf16.msra.mxu0 %v5127
    %6918 = vmatprep.subr.bf16.mxu0 %v5122
    %6919 = vmatpush2.bf16.msra.mxu0 %v5121
    %6920 = vmatprep.subr.bf16.mxu0 %v5116
    %6921 = vmatpush2.bf16.msra.mxu0 %v5115
    %6922 = vmatprep.subr.bf16.mxu0 %v5110
    %6923 = vmatpush2.bf16.msra.mxu0 %v5109
    %6924 = vmatprep.subr.bf16.mxu0 %v5104
    %6925 = vmatpush2.bf16.msra.mxu0 %v5103
    %6926 = vmatprep.subr.bf16.mxu0 %v5098
    %6927 = vmatpush2.bf16.msra.mxu0 %v5097
    %6928 = vmatprep.mubr.bf16.mxu0 %v691
    %6929 = vmatmul.mubr.bf16.gmra.mxu0 %v690
    %v6930 = vpop.f32.mrf.mxu0
    %v6931 = vadd.f32 %v6890, %v6930
    %v6932 = vpop.f32.mrf.mxu0
    %v6933 = vadd.f32 %v6892, %v6932
    %v6934 = vpop.f32.mrf.mxu0
    %v6935 = vpop.f32.mrf.mxu0
    %6936 = vdwg.mxu0
    %6937 = vmatprep.subr.bf16.mxu0 %v5188
    %6938 = vmatpush1.bf16.msra.mxu0 %v5187
    %6939 = vmatprep.subr.bf16.mxu0 %v5182
    %6940 = vmatpush1.bf16.msra.mxu0 %v5181
    %6941 = vmatprep.subr.bf16.mxu0 %v5176
    %6942 = vmatpush1.bf16.msra.mxu0 %v5175
    %6943 = vmatprep.subr.bf16.mxu0 %v5170
    %6944 = vmatpush1.bf16.msra.mxu0 %v5169
    %6945 = vmatprep.subr.bf16.mxu0 %v5164
    %6946 = vmatpush1.bf16.msra.mxu0 %v5163
    %6947 = vmatprep.subr.bf16.mxu0 %v5158
    %6948 = vmatpush1.bf16.msra.mxu0 %v5157
    %6949 = vmatprep.subr.bf16.mxu0 %v5152
    %6950 = vmatpush1.bf16.msra.mxu0 %v5151
    %6951 = vmatprep.subr.bf16.mxu0 %v5146
    %6952 = vmatpush1.bf16.msra.mxu0 %v5145
    %6953 = vmatprep.subr.bf16.mxu0 %v5236
    %6954 = vmatpush2.bf16.msra.mxu0 %v5235
    %6955 = vmatprep.subr.bf16.mxu0 %v5230
    %6956 = vmatpush2.bf16.msra.mxu0 %v5229
    %6957 = vmatprep.subr.bf16.mxu0 %v5224
    %6958 = vmatpush2.bf16.msra.mxu0 %v5223
    %6959 = vmatprep.subr.bf16.mxu0 %v5218
    %6960 = vmatpush2.bf16.msra.mxu0 %v5217
    %6961 = vmatprep.subr.bf16.mxu0 %v5212
    %6962 = vmatpush2.bf16.msra.mxu0 %v5211
    %6963 = vmatprep.subr.bf16.mxu0 %v5206
    %6964 = vmatpush2.bf16.msra.mxu0 %v5205
    %6965 = vmatprep.subr.bf16.mxu0 %v5200
    %6966 = vmatpush2.bf16.msra.mxu0 %v5199
    %6967 = vmatprep.subr.bf16.mxu0 %v5194
    %6968 = vmatpush2.bf16.msra.mxu0 %v5193
    %6969 = vmatprep.mubr.bf16.mxu0 %v693
    %6970 = vmatmul.mubr.bf16.gmra.mxu0 %v692
    %v6971 = vpop.f32.mrf.mxu0
    %v6972 = vadd.f32 %v6931, %v6971
    %v6973 = vpop.f32.mrf.mxu0
    %v6974 = vadd.f32 %v6933, %v6973
    %v6975 = vpop.f32.mrf.mxu0
    %v6976 = vpop.f32.mrf.mxu0
    %6977 = vdwg.mxu0
    %6978 = vmatprep.subr.bf16.mxu0 %v5284
    %6979 = vmatpush1.bf16.msra.mxu0 %v5283
    %6980 = vmatprep.subr.bf16.mxu0 %v5278
    %6981 = vmatpush1.bf16.msra.mxu0 %v5277
    %6982 = vmatprep.subr.bf16.mxu0 %v5272
    %6983 = vmatpush1.bf16.msra.mxu0 %v5271
    %6984 = vmatprep.subr.bf16.mxu0 %v5266
    %6985 = vmatpush1.bf16.msra.mxu0 %v5265
    %6986 = vmatprep.subr.bf16.mxu0 %v5260
    %6987 = vmatpush1.bf16.msra.mxu0 %v5259
    %6988 = vmatprep.subr.bf16.mxu0 %v5254
    %6989 = vmatpush1.bf16.msra.mxu0 %v5253
    %6990 = vmatprep.subr.bf16.mxu0 %v5248
    %6991 = vmatpush1.bf16.msra.mxu0 %v5247
    %6992 = vmatprep.subr.bf16.mxu0 %v5242
    %6993 = vmatpush1.bf16.msra.mxu0 %v5241
    %6994 = vmatprep.subr.bf16.mxu0 0
    %6995 = vmatpush2.bf16.msra.mxu0 0
    %6996 = vmatprep.subr.bf16.mxu0 0
    %6997 = vmatpush2.bf16.msra.mxu0 0
    %6998 = vmatprep.subr.bf16.mxu0 0
    %6999 = vmatpush2.bf16.msra.mxu0 0
    %7000 = vmatprep.subr.bf16.mxu0 0
    %7001 = vmatpush2.bf16.msra.mxu0 0
    %7002 = vmatprep.subr.bf16.mxu0 0
    %7003 = vmatpush2.bf16.msra.mxu0 0
    %7004 = vmatprep.subr.bf16.mxu0 0
    %7005 = vmatpush2.bf16.msra.mxu0 0
    %7006 = vmatprep.subr.bf16.mxu0 0
    %7007 = vmatpush2.bf16.msra.mxu0 0
    %7008 = vmatprep.subr.bf16.mxu0 0
    %7009 = vmatpush2.bf16.msra.mxu0 0
    %7010 = vmatprep.mubr.bf16.mxu0 0
    %7011 = vmatmul.mubr.bf16.gmra.mxu0 %v694
    %v7012 = vpop.f32.mrf.mxu0
    %v7013 = vadd.f32 %v6972, %v7012
    %v7014 = vpop.f32.mrf.mxu0
    %v7015 = vadd.f32 %v6974, %v7014
    %v7016 = vpop.f32.mrf.mxu0
    %v7017 = vpop.f32.mrf.mxu0
    %7018 = vdwg.mxu0
    %7019 = vmatprep.subr.bf16.mxu0 %v4422
    %7020 = vmatpush1.bf16.msra.mxu0 %v4421
    %7021 = vmatprep.subr.bf16.mxu0 %v4416
    %7022 = vmatpush1.bf16.msra.mxu0 %v4415
    %7023 = vmatprep.subr.bf16.mxu0 %v4410
    %7024 = vmatpush1.bf16.msra.mxu0 %v4409
    %7025 = vmatprep.subr.bf16.mxu0 %v4404
    %7026 = vmatpush1.bf16.msra.mxu0 %v4403
    %7027 = vmatprep.subr.bf16.mxu0 %v4398
    %7028 = vmatpush1.bf16.msra.mxu0 %v4397
    %7029 = vmatprep.subr.bf16.mxu0 %v4392
    %7030 = vmatpush1.bf16.msra.mxu0 %v4391
    %7031 = vmatprep.subr.bf16.mxu0 %v4386
    %7032 = vmatpush1.bf16.msra.mxu0 %v4385
    %7033 = vmatprep.subr.bf16.mxu0 %v4380
    %7034 = vmatpush1.bf16.msra.mxu0 %v4379
    %7035 = vmatprep.subr.bf16.mxu0 %v4470
    %7036 = vmatpush2.bf16.msra.mxu0 %v4469
    %7037 = vmatprep.subr.bf16.mxu0 %v4464
    %7038 = vmatpush2.bf16.msra.mxu0 %v4463
    %7039 = vmatprep.subr.bf16.mxu0 %v4458
    %7040 = vmatpush2.bf16.msra.mxu0 %v4457
    %7041 = vmatprep.subr.bf16.mxu0 %v4452
    %7042 = vmatpush2.bf16.msra.mxu0 %v4451
    %7043 = vmatprep.subr.bf16.mxu0 %v4446
    %7044 = vmatpush2.bf16.msra.mxu0 %v4445
    %7045 = vmatprep.subr.bf16.mxu0 %v4440
    %7046 = vmatpush2.bf16.msra.mxu0 %v4439
    %7047 = vmatprep.subr.bf16.mxu0 %v4434
    %7048 = vmatpush2.bf16.msra.mxu0 %v4433
    %7049 = vmatprep.subr.bf16.mxu0 %v4428
    %7050 = vmatpush2.bf16.msra.mxu0 %v4427
    %7051 = vmatprep.mubr.bf16.mxu0 %v677
    %7052 = vmatmul.mubr.bf16.gmra.mxu0 %v676
    %v7053 = vpop.f32.mrf.mxu0
    %v7054 = vadd.f32 %v1628, %v7053
    %v7055 = vpop.f32.mrf.mxu0
    %v7056 = vadd.f32 %v1632, %v7055
    %v7057 = vpop.f32.mrf.mxu0
    %v7058 = vpop.f32.mrf.mxu0
    %7059 = vdwg.mxu0
    %7060 = vmatprep.subr.bf16.mxu0 %v4518
    %7061 = vmatpush1.bf16.msra.mxu0 %v4517
    %7062 = vmatprep.subr.bf16.mxu0 %v4512
    %7063 = vmatpush1.bf16.msra.mxu0 %v4511
    %7064 = vmatprep.subr.bf16.mxu0 %v4506
    %7065 = vmatpush1.bf16.msra.mxu0 %v4505
    %7066 = vmatprep.subr.bf16.mxu0 %v4500
    %7067 = vmatpush1.bf16.msra.mxu0 %v4499
    %7068 = vmatprep.subr.bf16.mxu0 %v4494
    %7069 = vmatpush1.bf16.msra.mxu0 %v4493
    %7070 = vmatprep.subr.bf16.mxu0 %v4488
    %7071 = vmatpush1.bf16.msra.mxu0 %v4487
    %7072 = vmatprep.subr.bf16.mxu0 %v4482
    %7073 = vmatpush1.bf16.msra.mxu0 %v4481
    %7074 = vmatprep.subr.bf16.mxu0 %v4476
    %7075 = vmatpush1.bf16.msra.mxu0 %v4475
    %7076 = vmatprep.subr.bf16.mxu0 %v4566
    %7077 = vmatpush2.bf16.msra.mxu0 %v4565
    %7078 = vmatprep.subr.bf16.mxu0 %v4560
    %7079 = vmatpush2.bf16.msra.mxu0 %v4559
    %7080 = vmatprep.subr.bf16.mxu0 %v4554
    %7081 = vmatpush2.bf16.msra.mxu0 %v4553
    %7082 = vmatprep.subr.bf16.mxu0 %v4548
    %7083 = vmatpush2.bf16.msra.mxu0 %v4547
    %7084 = vmatprep.subr.bf16.mxu0 %v4542
    %7085 = vmatpush2.bf16.msra.mxu0 %v4541
    %7086 = vmatprep.subr.bf16.mxu0 %v4536
    %7087 = vmatpush2.bf16.msra.mxu0 %v4535
    %7088 = vmatprep.subr.bf16.mxu0 %v4530
    %7089 = vmatpush2.bf16.msra.mxu0 %v4529
    %7090 = vmatprep.subr.bf16.mxu0 %v4524
    %7091 = vmatpush2.bf16.msra.mxu0 %v4523
    %7092 = vmatprep.mubr.bf16.mxu0 %v679
    %7093 = vmatmul.mubr.bf16.gmra.mxu0 %v678
    %v7094 = vpop.f32.mrf.mxu0
    %v7095 = vadd.f32 %v7054, %v7094
    %v7096 = vpop.f32.mrf.mxu0
    %v7097 = vadd.f32 %v7056, %v7096
    %v7098 = vpop.f32.mrf.mxu0
    %v7099 = vpop.f32.mrf.mxu0
    %7100 = vdwg.mxu0
    %7101 = vmatprep.subr.bf16.mxu0 %v4614
    %7102 = vmatpush1.bf16.msra.mxu0 %v4613
    %7103 = vmatprep.subr.bf16.mxu0 %v4608
    %7104 = vmatpush1.bf16.msra.mxu0 %v4607
    %7105 = vmatprep.subr.bf16.mxu0 %v4602
    %7106 = vmatpush1.bf16.msra.mxu0 %v4601
    %7107 = vmatprep.subr.bf16.mxu0 %v4596
    %7108 = vmatpush1.bf16.msra.mxu0 %v4595
    %7109 = vmatprep.subr.bf16.mxu0 %v4590
    %7110 = vmatpush1.bf16.msra.mxu0 %v4589
    %7111 = vmatprep.subr.bf16.mxu0 %v4584
    %7112 = vmatpush1.bf16.msra.mxu0 %v4583
    %7113 = vmatprep.subr.bf16.mxu0 %v4578
    %7114 = vmatpush1.bf16.msra.mxu0 %v4577
    %7115 = vmatprep.subr.bf16.mxu0 %v4572
    %7116 = vmatpush1.bf16.msra.mxu0 %v4571
    %7117 = vmatprep.subr.bf16.mxu0 %v4662
    %7118 = vmatpush2.bf16.msra.mxu0 %v4661
    %7119 = vmatprep.subr.bf16.mxu0 %v4656
    %7120 = vmatpush2.bf16.msra.mxu0 %v4655
    %7121 = vmatprep.subr.bf16.mxu0 %v4650
    %7122 = vmatpush2.bf16.msra.mxu0 %v4649
    %7123 = vmatprep.subr.bf16.mxu0 %v4644
    %7124 = vmatpush2.bf16.msra.mxu0 %v4643
    %7125 = vmatprep.subr.bf16.mxu0 %v4638
    %7126 = vmatpush2.bf16.msra.mxu0 %v4637
    %7127 = vmatprep.subr.bf16.mxu0 %v4632
    %7128 = vmatpush2.bf16.msra.mxu0 %v4631
    %7129 = vmatprep.subr.bf16.mxu0 %v4626
    %7130 = vmatpush2.bf16.msra.mxu0 %v4625
    %7131 = vmatprep.subr.bf16.mxu0 %v4620
    %7132 = vmatpush2.bf16.msra.mxu0 %v4619
    %7133 = vmatprep.mubr.bf16.mxu0 %v681
    %7134 = vmatmul.mubr.bf16.gmra.mxu0 %v680
    %v7135 = vpop.f32.mrf.mxu0
    %v7136 = vadd.f32 %v7095, %v7135
    %v7137 = vpop.f32.mrf.mxu0
    %v7138 = vadd.f32 %v7097, %v7137
    %v7139 = vpop.f32.mrf.mxu0
    %v7140 = vpop.f32.mrf.mxu0
    %7141 = vdwg.mxu0
    %7142 = vmatprep.subr.bf16.mxu0 %v4710
    %7143 = vmatpush1.bf16.msra.mxu0 %v4709
    %7144 = vmatprep.subr.bf16.mxu0 %v4704
    %7145 = vmatpush1.bf16.msra.mxu0 %v4703
    %7146 = vmatprep.subr.bf16.mxu0 %v4698
    %7147 = vmatpush1.bf16.msra.mxu0 %v4697
    %7148 = vmatprep.subr.bf16.mxu0 %v4692
    %7149 = vmatpush1.bf16.msra.mxu0 %v4691
    %7150 = vmatprep.subr.bf16.mxu0 %v4686
    %7151 = vmatpush1.bf16.msra.mxu0 %v4685
    %7152 = vmatprep.subr.bf16.mxu0 %v4680
    %7153 = vmatpush1.bf16.msra.mxu0 %v4679
    %7154 = vmatprep.subr.bf16.mxu0 %v4674
    %7155 = vmatpush1.bf16.msra.mxu0 %v4673
    %7156 = vmatprep.subr.bf16.mxu0 %v4668
    %7157 = vmatpush1.bf16.msra.mxu0 %v4667
    %7158 = vmatprep.subr.bf16.mxu0 %v4758
    %7159 = vmatpush2.bf16.msra.mxu0 %v4757
    %7160 = vmatprep.subr.bf16.mxu0 %v4752
    %7161 = vmatpush2.bf16.msra.mxu0 %v4751
    %7162 = vmatprep.subr.bf16.mxu0 %v4746
    %7163 = vmatpush2.bf16.msra.mxu0 %v4745
    %7164 = vmatprep.subr.bf16.mxu0 %v4740
    %7165 = vmatpush2.bf16.msra.mxu0 %v4739
    %7166 = vmatprep.subr.bf16.mxu0 %v4734
    %7167 = vmatpush2.bf16.msra.mxu0 %v4733
    %7168 = vmatprep.subr.bf16.mxu0 %v4728
    %7169 = vmatpush2.bf16.msra.mxu0 %v4727
    %7170 = vmatprep.subr.bf16.mxu0 %v4722
    %7171 = vmatpush2.bf16.msra.mxu0 %v4721
    %7172 = vmatprep.subr.bf16.mxu0 %v4716
    %7173 = vmatpush2.bf16.msra.mxu0 %v4715
    %7174 = vmatprep.mubr.bf16.mxu0 %v683
    %7175 = vmatmul.mubr.bf16.gmra.mxu0 %v682
    %v7176 = vpop.f32.mrf.mxu0
    %v7177 = vadd.f32 %v7136, %v7176
    %v7178 = vpop.f32.mrf.mxu0
    %v7179 = vadd.f32 %v7138, %v7178
    %v7180 = vpop.f32.mrf.mxu0
    %v7181 = vpop.f32.mrf.mxu0
    %7182 = vdwg.mxu0
    %7183 = vmatprep.subr.bf16.mxu0 %v4806
    %7184 = vmatpush1.bf16.msra.mxu0 %v4805
    %7185 = vmatprep.subr.bf16.mxu0 %v4800
    %7186 = vmatpush1.bf16.msra.mxu0 %v4799
    %7187 = vmatprep.subr.bf16.mxu0 %v4794
    %7188 = vmatpush1.bf16.msra.mxu0 %v4793
    %7189 = vmatprep.subr.bf16.mxu0 %v4788
    %7190 = vmatpush1.bf16.msra.mxu0 %v4787
    %7191 = vmatprep.subr.bf16.mxu0 %v4782
    %7192 = vmatpush1.bf16.msra.mxu0 %v4781
    %7193 = vmatprep.subr.bf16.mxu0 %v4776
    %7194 = vmatpush1.bf16.msra.mxu0 %v4775
    %7195 = vmatprep.subr.bf16.mxu0 %v4770
    %7196 = vmatpush1.bf16.msra.mxu0 %v4769
    %7197 = vmatprep.subr.bf16.mxu0 %v4764
    %7198 = vmatpush1.bf16.msra.mxu0 %v4763
    %7199 = vmatprep.subr.bf16.mxu0 %v4854
    %7200 = vmatpush2.bf16.msra.mxu0 %v4853
    %7201 = vmatprep.subr.bf16.mxu0 %v4848
    %7202 = vmatpush2.bf16.msra.mxu0 %v4847
    %7203 = vmatprep.subr.bf16.mxu0 %v4842
    %7204 = vmatpush2.bf16.msra.mxu0 %v4841
    %7205 = vmatprep.subr.bf16.mxu0 %v4836
    %7206 = vmatpush2.bf16.msra.mxu0 %v4835
    %7207 = vmatprep.subr.bf16.mxu0 %v4830
    %7208 = vmatpush2.bf16.msra.mxu0 %v4829
    %7209 = vmatprep.subr.bf16.mxu0 %v4824
    %7210 = vmatpush2.bf16.msra.mxu0 %v4823
    %7211 = vmatprep.subr.bf16.mxu0 %v4818
    %7212 = vmatpush2.bf16.msra.mxu0 %v4817
    %7213 = vmatprep.subr.bf16.mxu0 %v4812
    %7214 = vmatpush2.bf16.msra.mxu0 %v4811
    %7215 = vmatprep.mubr.bf16.mxu0 %v685
    %7216 = vmatmul.mubr.bf16.gmra.mxu0 %v684
    %v7217 = vpop.f32.mrf.mxu0
    %v7218 = vadd.f32 %v7177, %v7217
    %v7219 = vpop.f32.mrf.mxu0
    %v7220 = vadd.f32 %v7179, %v7219
    %v7221 = vpop.f32.mrf.mxu0
    %v7222 = vpop.f32.mrf.mxu0
    %7223 = vdwg.mxu0
    %7224 = vmatprep.subr.bf16.mxu0 %v4902
    %7225 = vmatpush1.bf16.msra.mxu0 %v4901
    %7226 = vmatprep.subr.bf16.mxu0 %v4896
    %7227 = vmatpush1.bf16.msra.mxu0 %v4895
    %7228 = vmatprep.subr.bf16.mxu0 %v4890
    %7229 = vmatpush1.bf16.msra.mxu0 %v4889
    %7230 = vmatprep.subr.bf16.mxu0 %v4884
    %7231 = vmatpush1.bf16.msra.mxu0 %v4883
    %7232 = vmatprep.subr.bf16.mxu0 %v4878
    %7233 = vmatpush1.bf16.msra.mxu0 %v4877
    %7234 = vmatprep.subr.bf16.mxu0 %v4872
    %7235 = vmatpush1.bf16.msra.mxu0 %v4871
    %7236 = vmatprep.subr.bf16.mxu0 %v4866
    %7237 = vmatpush1.bf16.msra.mxu0 %v4865
    %7238 = vmatprep.subr.bf16.mxu0 %v4860
    %7239 = vmatpush1.bf16.msra.mxu0 %v4859
    %7240 = vmatprep.subr.bf16.mxu0 %v4950
    %7241 = vmatpush2.bf16.msra.mxu0 %v4949
    %7242 = vmatprep.subr.bf16.mxu0 %v4944
    %7243 = vmatpush2.bf16.msra.mxu0 %v4943
    %7244 = vmatprep.subr.bf16.mxu0 %v4938
    %7245 = vmatpush2.bf16.msra.mxu0 %v4937
    %7246 = vmatprep.subr.bf16.mxu0 %v4932
    %7247 = vmatpush2.bf16.msra.mxu0 %v4931
    %7248 = vmatprep.subr.bf16.mxu0 %v4926
    %7249 = vmatpush2.bf16.msra.mxu0 %v4925
    %7250 = vmatprep.subr.bf16.mxu0 %v4920
    %7251 = vmatpush2.bf16.msra.mxu0 %v4919
    %7252 = vmatprep.subr.bf16.mxu0 %v4914
    %7253 = vmatpush2.bf16.msra.mxu0 %v4913
    %7254 = vmatprep.subr.bf16.mxu0 %v4908
    %7255 = vmatpush2.bf16.msra.mxu0 %v4907
    %7256 = vmatprep.mubr.bf16.mxu0 %v687
    %7257 = vmatmul.mubr.bf16.gmra.mxu0 %v686
    %v7258 = vpop.f32.mrf.mxu0
    %v7259 = vadd.f32 %v7218, %v7258
    %v7260 = vpop.f32.mrf.mxu0
    %v7261 = vadd.f32 %v7220, %v7260
    %v7262 = vpop.f32.mrf.mxu0
    %v7263 = vpop.f32.mrf.mxu0
    %7264 = vdwg.mxu0
    %7265 = vmatprep.subr.bf16.mxu0 %v4998
    %7266 = vmatpush1.bf16.msra.mxu0 %v4997
    %7267 = vmatprep.subr.bf16.mxu0 %v4992
    %7268 = vmatpush1.bf16.msra.mxu0 %v4991
    %7269 = vmatprep.subr.bf16.mxu0 %v4986
    %7270 = vmatpush1.bf16.msra.mxu0 %v4985
    %7271 = vmatprep.subr.bf16.mxu0 %v4980
    %7272 = vmatpush1.bf16.msra.mxu0 %v4979
    %7273 = vmatprep.subr.bf16.mxu0 %v4974
    %7274 = vmatpush1.bf16.msra.mxu0 %v4973
    %7275 = vmatprep.subr.bf16.mxu0 %v4968
    %7276 = vmatpush1.bf16.msra.mxu0 %v4967
    %7277 = vmatprep.subr.bf16.mxu0 %v4962
    %7278 = vmatpush1.bf16.msra.mxu0 %v4961
    %7279 = vmatprep.subr.bf16.mxu0 %v4956
    %7280 = vmatpush1.bf16.msra.mxu0 %v4955
    %7281 = vmatprep.subr.bf16.mxu0 %v5046
    %7282 = vmatpush2.bf16.msra.mxu0 %v5045
    %7283 = vmatprep.subr.bf16.mxu0 %v5040
    %7284 = vmatpush2.bf16.msra.mxu0 %v5039
    %7285 = vmatprep.subr.bf16.mxu0 %v5034
    %7286 = vmatpush2.bf16.msra.mxu0 %v5033
    %7287 = vmatprep.subr.bf16.mxu0 %v5028
    %7288 = vmatpush2.bf16.msra.mxu0 %v5027
    %7289 = vmatprep.subr.bf16.mxu0 %v5022
    %7290 = vmatpush2.bf16.msra.mxu0 %v5021
    %7291 = vmatprep.subr.bf16.mxu0 %v5016
    %7292 = vmatpush2.bf16.msra.mxu0 %v5015
    %7293 = vmatprep.subr.bf16.mxu0 %v5010
    %7294 = vmatpush2.bf16.msra.mxu0 %v5009
    %7295 = vmatprep.subr.bf16.mxu0 %v5004
    %7296 = vmatpush2.bf16.msra.mxu0 %v5003
    %7297 = vmatprep.mubr.bf16.mxu0 %v689
    %7298 = vmatmul.mubr.bf16.gmra.mxu0 %v688
    %v7299 = vpop.f32.mrf.mxu0
    %v7300 = vadd.f32 %v7259, %v7299
    %v7301 = vpop.f32.mrf.mxu0
    %v7302 = vadd.f32 %v7261, %v7301
    %v7303 = vpop.f32.mrf.mxu0
    %v7304 = vpop.f32.mrf.mxu0
    %7305 = vdwg.mxu0
    %7306 = vmatprep.subr.bf16.mxu0 %v5094
    %7307 = vmatpush1.bf16.msra.mxu0 %v5093
    %7308 = vmatprep.subr.bf16.mxu0 %v5088
    %7309 = vmatpush1.bf16.msra.mxu0 %v5087
    %7310 = vmatprep.subr.bf16.mxu0 %v5082
    %7311 = vmatpush1.bf16.msra.mxu0 %v5081
    %7312 = vmatprep.subr.bf16.mxu0 %v5076
    %7313 = vmatpush1.bf16.msra.mxu0 %v5075
    %7314 = vmatprep.subr.bf16.mxu0 %v5070
    %7315 = vmatpush1.bf16.msra.mxu0 %v5069
    %7316 = vmatprep.subr.bf16.mxu0 %v5064
    %7317 = vmatpush1.bf16.msra.mxu0 %v5063
    %7318 = vmatprep.subr.bf16.mxu0 %v5058
    %7319 = vmatpush1.bf16.msra.mxu0 %v5057
    %7320 = vmatprep.subr.bf16.mxu0 %v5052
    %7321 = vmatpush1.bf16.msra.mxu0 %v5051
    %7322 = vmatprep.subr.bf16.mxu0 %v5142
    %7323 = vmatpush2.bf16.msra.mxu0 %v5141
    %7324 = vmatprep.subr.bf16.mxu0 %v5136
    %7325 = vmatpush2.bf16.msra.mxu0 %v5135
    %7326 = vmatprep.subr.bf16.mxu0 %v5130
    %7327 = vmatpush2.bf16.msra.mxu0 %v5129
    %7328 = vmatprep.subr.bf16.mxu0 %v5124
    %7329 = vmatpush2.bf16.msra.mxu0 %v5123
    %7330 = vmatprep.subr.bf16.mxu0 %v5118
    %7331 = vmatpush2.bf16.msra.mxu0 %v5117
    %7332 = vmatprep.subr.bf16.mxu0 %v5112
    %7333 = vmatpush2.bf16.msra.mxu0 %v5111
    %7334 = vmatprep.subr.bf16.mxu0 %v5106
    %7335 = vmatpush2.bf16.msra.mxu0 %v5105
    %7336 = vmatprep.subr.bf16.mxu0 %v5100
    %7337 = vmatpush2.bf16.msra.mxu0 %v5099
    %7338 = vmatprep.mubr.bf16.mxu0 %v691
    %7339 = vmatmul.mubr.bf16.gmra.mxu0 %v690
    %v7340 = vpop.f32.mrf.mxu0
    %v7341 = vadd.f32 %v7300, %v7340
    %v7342 = vpop.f32.mrf.mxu0
    %v7343 = vadd.f32 %v7302, %v7342
    %v7344 = vpop.f32.mrf.mxu0
    %v7345 = vpop.f32.mrf.mxu0
    %7346 = vdwg.mxu0
    %7347 = vmatprep.subr.bf16.mxu0 %v5190
    %7348 = vmatpush1.bf16.msra.mxu0 %v5189
    %7349 = vmatprep.subr.bf16.mxu0 %v5184
    %7350 = vmatpush1.bf16.msra.mxu0 %v5183
    %7351 = vmatprep.subr.bf16.mxu0 %v5178
    %7352 = vmatpush1.bf16.msra.mxu0 %v5177
    %7353 = vmatprep.subr.bf16.mxu0 %v5172
    %7354 = vmatpush1.bf16.msra.mxu0 %v5171
    %7355 = vmatprep.subr.bf16.mxu0 %v5166
    %7356 = vmatpush1.bf16.msra.mxu0 %v5165
    %7357 = vmatprep.subr.bf16.mxu0 %v5160
    %7358 = vmatpush1.bf16.msra.mxu0 %v5159
    %7359 = vmatprep.subr.bf16.mxu0 %v5154
    %7360 = vmatpush1.bf16.msra.mxu0 %v5153
    %7361 = vmatprep.subr.bf16.mxu0 %v5148
    %7362 = vmatpush1.bf16.msra.mxu0 %v5147
    %7363 = vmatprep.subr.bf16.mxu0 %v5238
    %7364 = vmatpush2.bf16.msra.mxu0 %v5237
    %7365 = vmatprep.subr.bf16.mxu0 %v5232
    %7366 = vmatpush2.bf16.msra.mxu0 %v5231
    %7367 = vmatprep.subr.bf16.mxu0 %v5226
    %7368 = vmatpush2.bf16.msra.mxu0 %v5225
    %7369 = vmatprep.subr.bf16.mxu0 %v5220
    %7370 = vmatpush2.bf16.msra.mxu0 %v5219
    %7371 = vmatprep.subr.bf16.mxu0 %v5214
    %7372 = vmatpush2.bf16.msra.mxu0 %v5213
    %7373 = vmatprep.subr.bf16.mxu0 %v5208
    %7374 = vmatpush2.bf16.msra.mxu0 %v5207
    %7375 = vmatprep.subr.bf16.mxu0 %v5202
    %7376 = vmatpush2.bf16.msra.mxu0 %v5201
    %7377 = vmatprep.subr.bf16.mxu0 %v5196
    %7378 = vmatpush2.bf16.msra.mxu0 %v5195
    %7379 = vmatprep.mubr.bf16.mxu0 %v693
    %7380 = vmatmul.mubr.bf16.gmra.mxu0 %v692
    %v7381 = vpop.f32.mrf.mxu0
    %v7382 = vadd.f32 %v7341, %v7381
    %v7383 = vpop.f32.mrf.mxu0
    %v7384 = vadd.f32 %v7343, %v7383
    %v7385 = vpop.f32.mrf.mxu0
    %v7386 = vpop.f32.mrf.mxu0
    %7387 = vdwg.mxu0
    %7388 = vmatprep.subr.bf16.mxu0 %v5286
    %7389 = vmatpush1.bf16.msra.mxu0 %v5285
    %7390 = vmatprep.subr.bf16.mxu0 %v5280
    %7391 = vmatpush1.bf16.msra.mxu0 %v5279
    %7392 = vmatprep.subr.bf16.mxu0 %v5274
    %7393 = vmatpush1.bf16.msra.mxu0 %v5273
    %7394 = vmatprep.subr.bf16.mxu0 %v5268
    %7395 = vmatpush1.bf16.msra.mxu0 %v5267
    %7396 = vmatprep.subr.bf16.mxu0 %v5262
    %7397 = vmatpush1.bf16.msra.mxu0 %v5261
    %7398 = vmatprep.subr.bf16.mxu0 %v5256
    %7399 = vmatpush1.bf16.msra.mxu0 %v5255
    %7400 = vmatprep.subr.bf16.mxu0 %v5250
    %7401 = vmatpush1.bf16.msra.mxu0 %v5249
    %7402 = vmatprep.subr.bf16.mxu0 %v5244
    %7403 = vmatpush1.bf16.msra.mxu0 %v5243
    %7404 = vmatprep.subr.bf16.mxu0 0
    %7405 = vmatpush2.bf16.msra.mxu0 0
    %7406 = vmatprep.subr.bf16.mxu0 0
    %7407 = vmatpush2.bf16.msra.mxu0 0
    %7408 = vmatprep.subr.bf16.mxu0 0
    %7409 = vmatpush2.bf16.msra.mxu0 0
    %7410 = vmatprep.subr.bf16.mxu0 0
    %7411 = vmatpush2.bf16.msra.mxu0 0
    %7412 = vmatprep.subr.bf16.mxu0 0
    %7413 = vmatpush2.bf16.msra.mxu0 0
    %7414 = vmatprep.subr.bf16.mxu0 0
    %7415 = vmatpush2.bf16.msra.mxu0 0
    %7416 = vmatprep.subr.bf16.mxu0 0
    %7417 = vmatpush2.bf16.msra.mxu0 0
    %7418 = vmatprep.subr.bf16.mxu0 0
    %7419 = vmatpush2.bf16.msra.mxu0 0
    %7420 = vmatprep.mubr.bf16.mxu0 0
    %7421 = vmatmul.mubr.bf16.gmra.mxu0 %v694
    %v7422 = vpop.f32.mrf.mxu0
    %v7423 = vadd.f32 %v7382, %v7422
    %v7424 = vpop.f32.mrf.mxu0
    %v7425 = vadd.f32 %v7384, %v7424
    %v7426 = vpop.f32.mrf.mxu0
    %v7427 = vpop.f32.mrf.mxu0
    %7428 = vdwg.mxu0
    %v7429 = vmax.f32 %v6603, 0.0
    %v7430 = vmax.f32 %v6605, 0.0
    %v7431 = vmax.f32 %v7013, 0.0
    %v7432 = vmax.f32 %v7015, 0.0
    %v7433 = vmax.f32 %v7423, 0.0
    %v7434 = vmax.f32 %v7425, 0.0
    %v7435 = vpack.c.bf16 %v7429, %v7429
    %v7436 = vpack.c.bf16 %v7430, %v7430
    %v7437 = vpack.c.bf16 %v7431, %v7431
    %v7438 = vpack.c.bf16 %v7432, %v7432
    %v7439 = vpack.c.bf16 %v7433, %v7433
    %v7440 = vpack.c.bf16 %v7434, %v7434
    %v7441 = vld [vmem:[#allocation13] sm:$0xf]
    %v7442 = vld [vmem:[#allocation13 + $0x4] sm:$0xf]
    %v7443 = vld [vmem:[#allocation13 + $0x8] sm:$0xf]
    %v7444 = vld [vmem:[#allocation13 + $0xc] sm:$0xf]
    %v7445 = vld [vmem:[#allocation13 + $0x10] sm:$0xf]
    %v7446 = vld [vmem:[#allocation13 + $0x14] sm:$0xf]
    %v7447 = vld [vmem:[#allocation13 + $0x18] sm:$0xf]
    %v7448 = vld [vmem:[#allocation13 + $0x1c] sm:$0xf]
    %v7449 = vld [vmem:[#allocation13 + $0x20] sm:$0xf]
    %v7450 = vld [vmem:[#allocation13 + $0x24] sm:$0xf]
    %v7451 = vld [vmem:[#allocation13 + $0x28] sm:$0xf]
    %v7452 = vld [vmem:[#allocation13 + $0x2c] sm:$0xf]
    %v7453 = vld [vmem:[#allocation13 + $0x30] sm:$0xf]
    %v7454 = vld [vmem:[#allocation13 + $0x34] sm:$0xf]
    %v7455 = vld [vmem:[#allocation13 + $0x38] sm:$0xf]
    %v7456 = vld [vmem:[#allocation13 + $0x3c] sm:$0xf]
    %v7457 = vld [vmem:[#allocation13 + $0x40] sm:$0xf]
    %v7458 = vld [vmem:[#allocation13 + $0x44] sm:$0xf]
    %v7459 = vld [vmem:[#allocation13 + $0x48] sm:$0xf]
    %v7460 = vld [vmem:[#allocation13 + $0x4c] sm:$0xf]
    %v7461 = vld [vmem:[#allocation13 + $0x50] sm:$0xf]
    %v7462 = vld [vmem:[#allocation13 + $0x54] sm:$0xf]
    %v7463 = vld [vmem:[#allocation13 + $0x58] sm:$0xf]
    %v7464 = vld [vmem:[#allocation13 + $0x5c] sm:$0xf]
    %v7465 = vld [vmem:[#allocation13 + $0x60] sm:$0xf]
    %v7466 = vld [vmem:[#allocation13 + $0x64] sm:$0xf]
    %v7467 = vld [vmem:[#allocation13 + $0x68] sm:$0xf]
    %v7468 = vld [vmem:[#allocation13 + $0x6c] sm:$0xf]
    %v7469 = vld [vmem:[#allocation13 + $0x70] sm:$0xf]
    %v7470 = vld [vmem:[#allocation13 + $0x74] sm:$0xf]
    %v7471 = vld [vmem:[#allocation13 + $0x78] sm:$0xf]
    %v7472 = vld [vmem:[#allocation13 + $0x7c] sm:$0xf]
    %v7473 = vld [vmem:[#allocation13 + $0x80] sm:$0xf]
    %v7474 = vld [vmem:[#allocation13 + $0x84] sm:$0xf]
    %v7475 = vld [vmem:[#allocation13 + $0x88] sm:$0xf]
    %v7476 = vld [vmem:[#allocation13 + $0x8c] sm:$0xf]
    %v7477 = vld [vmem:[#allocation13 + $0x90] sm:$0xf]
    %v7478 = vld [vmem:[#allocation13 + $0x94] sm:$0xf]
    %v7479 = vld [vmem:[#allocation13 + $0x98] sm:$0xf]
    %v7480 = vld [vmem:[#allocation13 + $0x9c] sm:$0xf]
    %v7481 = vld [vmem:[#allocation13 + $0xa0] sm:$0xf]
    %v7482 = vld [vmem:[#allocation13 + $0xa4] sm:$0xf]
    %v7483 = vld [vmem:[#allocation13 + $0xa8] sm:$0xf]
    %v7484 = vld [vmem:[#allocation13 + $0xac] sm:$0xf]
    %v7485 = vld [vmem:[#allocation13 + $0xb0] sm:$0xf]
    %v7486 = vld [vmem:[#allocation13 + $0xb4] sm:$0xf]
    %v7487 = vld [vmem:[#allocation13 + $0xb8] sm:$0xf]
    %v7488 = vld [vmem:[#allocation13 + $0xbc] sm:$0xf]
    %v7489 = vld [vmem:[#allocation13 + $0xc0] sm:$0xf]
    %v7490 = vld [vmem:[#allocation13 + $0xc4] sm:$0xf]
    %v7491 = vld [vmem:[#allocation13 + $0xc8] sm:$0xf]
    %v7492 = vld [vmem:[#allocation13 + $0xcc] sm:$0xf]
    %v7493 = vld [vmem:[#allocation13 + $0xd0] sm:$0xf]
    %v7494 = vld [vmem:[#allocation13 + $0xd4] sm:$0xf]
    %v7495 = vld [vmem:[#allocation13 + $0xd8] sm:$0xf]
    %v7496 = vld [vmem:[#allocation13 + $0xdc] sm:$0xf]
    %v7497 = vld [vmem:[#allocation13 + $0xe0] sm:$0xf]
    %v7498 = vld [vmem:[#allocation13 + $0xe4] sm:$0xf]
    %v7499 = vld [vmem:[#allocation13 + $0xe8] sm:$0xf]
    %v7500 = vld [vmem:[#allocation13 + $0xec] sm:$0xf]
    %v7501 = vld [vmem:[#allocation13 + $0xf0] sm:$0xf]
    %v7502 = vld [vmem:[#allocation13 + $0xf4] sm:$0xf]
    %v7503 = vld [vmem:[#allocation13 + $0xf8] sm:$0xf]
    %v7504 = vld [vmem:[#allocation13 + $0xfc] sm:$0xf]
    %v7505 = vld [vmem:[#allocation13 + $0x100] sm:$0xf]
    %v7506 = vld [vmem:[#allocation13 + $0x104] sm:$0xf]
    %v7507 = vld [vmem:[#allocation13 + $0x108] sm:$0xf]
    %v7508 = vld [vmem:[#allocation13 + $0x10c] sm:$0xf]
    %v7509 = vld [vmem:[#allocation13 + $0x110] sm:$0xf]
    %v7510 = vld [vmem:[#allocation13 + $0x114] sm:$0xf]
    %v7511 = vld [vmem:[#allocation13 + $0x118] sm:$0xf]
    %v7512 = vld [vmem:[#allocation13 + $0x11c] sm:$0xf]
    %v7513 = vld [vmem:[#allocation13 + $0x120] sm:$0xf]
    %v7514 = vld [vmem:[#allocation13 + $0x124] sm:$0xf]
    %v7515 = vld [vmem:[#allocation13 + $0x128] sm:$0xf]
    %v7516 = vld [vmem:[#allocation13 + $0x12c] sm:$0xf]
    %v7517 = vld [vmem:[#allocation13 + $0x130] sm:$0xf]
    %v7518 = vld [vmem:[#allocation13 + $0x134] sm:$0xf]
    %v7519 = vld [vmem:[#allocation13 + $0x138] sm:$0xf]
    %v7520 = vld [vmem:[#allocation13 + $0x13c] sm:$0xf]
    %v7521 = vld [vmem:[#allocation13 + $0x140] sm:$0xf]
    %v7522 = vld [vmem:[#allocation13 + $0x144] sm:$0xf]
    %v7523 = vld [vmem:[#allocation13 + $0x148] sm:$0xf]
    %v7524 = vld [vmem:[#allocation13 + $0x14c] sm:$0xf]
    %v7525 = vld [vmem:[#allocation13 + $0x150] sm:$0xf]
    %v7526 = vld [vmem:[#allocation13 + $0x154] sm:$0xf]
    %v7527 = vld [vmem:[#allocation13 + $0x158] sm:$0xf]
    %v7528 = vld [vmem:[#allocation13 + $0x15c] sm:$0xf]
    %v7529 = vld [vmem:[#allocation13 + $0x160] sm:$0xf]
    %v7530 = vld [vmem:[#allocation13 + $0x164] sm:$0xf]
    %v7531 = vld [vmem:[#allocation13 + $0x168] sm:$0xf]
    %v7532 = vld [vmem:[#allocation13 + $0x16c] sm:$0xf]
    %v7533 = vld [vmem:[#allocation13 + $0x170] sm:$0xf]
    %v7534 = vld [vmem:[#allocation13 + $0x174] sm:$0xf]
    %v7535 = vld [vmem:[#allocation13 + $0x178] sm:$0xf]
    %v7536 = vld [vmem:[#allocation13 + $0x17c] sm:$0xf]
    %v7537 = vld [vmem:[#allocation14] sm:$0x1]
    %v7539 = vlaneseq
    %v7540 = vshrl.u32 %v7539, 7
    %v7541 = vsub.s32 0, %v7540
    %v7542 = vrot.slane %v7537, %v7541
    %v7640 = vunpack.c.l.b16 %v7441
    %v7641 = vunpack.c.l.b16 %v7442
    %v7642 = vunpack.c.l.b16 %v7443
    %v7643 = vunpack.c.l.b16 %v7444
    %v7644 = vunpack.c.l.b16 %v7445
    %v7645 = vunpack.c.l.b16 %v7446
    %v7646 = vunpack.c.l.b16 %v7447
    %v7647 = vunpack.c.l.b16 %v7448
    %v7648 = vunpack.c.l.b16 %v7449
    %v7649 = vunpack.c.l.b16 %v7450
    %v7650 = vunpack.c.l.b16 %v7451
    %v7651 = vunpack.c.l.b16 %v7452
    %v7652 = vunpack.c.l.b16 %v7453
    %v7653 = vunpack.c.l.b16 %v7454
    %v7654 = vunpack.c.l.b16 %v7455
    %v7655 = vunpack.c.l.b16 %v7456
    %v7656 = vunpack.c.l.b16 %v7457
    %v7657 = vunpack.c.l.b16 %v7458
    %v7658 = vunpack.c.l.b16 %v7459
    %v7659 = vunpack.c.l.b16 %v7460
    %v7660 = vunpack.c.l.b16 %v7461
    %v7661 = vunpack.c.l.b16 %v7462
    %v7662 = vunpack.c.l.b16 %v7463
    %v7663 = vunpack.c.l.b16 %v7464
    %v7664 = vunpack.c.l.b16 %v7465
    %v7665 = vunpack.c.l.b16 %v7466
    %v7666 = vunpack.c.l.b16 %v7467
    %v7667 = vunpack.c.l.b16 %v7468
    %v7668 = vunpack.c.l.b16 %v7469
    %v7669 = vunpack.c.l.b16 %v7470
    %v7670 = vunpack.c.l.b16 %v7471
    %v7671 = vunpack.c.l.b16 %v7472
    %v7672 = vunpack.c.l.b16 %v7473
    %v7673 = vunpack.c.l.b16 %v7474
    %v7674 = vunpack.c.l.b16 %v7475
    %v7675 = vunpack.c.l.b16 %v7476
    %v7676 = vunpack.c.l.b16 %v7477
    %v7677 = vunpack.c.l.b16 %v7478
    %v7678 = vunpack.c.l.b16 %v7479
    %v7679 = vunpack.c.l.b16 %v7480
    %v7680 = vunpack.c.l.b16 %v7481
    %v7681 = vunpack.c.l.b16 %v7482
    %v7682 = vunpack.c.l.b16 %v7483
    %v7683 = vunpack.c.l.b16 %v7484
    %v7684 = vunpack.c.l.b16 %v7485
    %v7685 = vunpack.c.l.b16 %v7486
    %v7686 = vunpack.c.l.b16 %v7487
    %v7687 = vunpack.c.l.b16 %v7488
    %v7688 = vunpack.c.l.b16 %v7489
    %v7689 = vunpack.c.l.b16 %v7490
    %v7690 = vunpack.c.l.b16 %v7491
    %v7691 = vunpack.c.l.b16 %v7492
    %v7692 = vunpack.c.l.b16 %v7493
    %v7693 = vunpack.c.l.b16 %v7494
    %v7694 = vunpack.c.l.b16 %v7495
    %v7695 = vunpack.c.l.b16 %v7496
    %v7696 = vunpack.c.l.b16 %v7497
    %v7697 = vunpack.c.l.b16 %v7498
    %v7698 = vunpack.c.l.b16 %v7499
    %v7699 = vunpack.c.l.b16 %v7500
    %v7700 = vunpack.c.l.b16 %v7501
    %v7701 = vunpack.c.l.b16 %v7502
    %v7702 = vunpack.c.l.b16 %v7503
    %v7703 = vunpack.c.l.b16 %v7504
    %v7704 = vunpack.c.l.b16 %v7505
    %v7705 = vunpack.c.l.b16 %v7506
    %v7706 = vunpack.c.l.b16 %v7507
    %v7707 = vunpack.c.l.b16 %v7508
    %v7708 = vunpack.c.l.b16 %v7509
    %v7709 = vunpack.c.l.b16 %v7510
    %v7710 = vunpack.c.l.b16 %v7511
    %v7711 = vunpack.c.l.b16 %v7512
    %v7712 = vunpack.c.l.b16 %v7513
    %v7713 = vunpack.c.l.b16 %v7514
    %v7714 = vunpack.c.l.b16 %v7515
    %v7715 = vunpack.c.l.b16 %v7516
    %v7716 = vunpack.c.l.b16 %v7517
    %v7717 = vunpack.c.l.b16 %v7518
    %v7718 = vunpack.c.l.b16 %v7519
    %v7719 = vunpack.c.l.b16 %v7520
    %v7720 = vunpack.c.l.b16 %v7521
    %v7721 = vunpack.c.l.b16 %v7522
    %v7722 = vunpack.c.l.b16 %v7523
    %v7723 = vunpack.c.l.b16 %v7524
    %v7724 = vunpack.c.l.b16 %v7525
    %v7725 = vunpack.c.l.b16 %v7526
    %v7726 = vunpack.c.l.b16 %v7527
    %v7727 = vunpack.c.l.b16 %v7528
    %v7728 = vunpack.c.l.b16 %v7529
    %v7729 = vunpack.c.l.b16 %v7530
    %v7730 = vunpack.c.l.b16 %v7531
    %v7731 = vunpack.c.l.b16 %v7532
    %v7732 = vunpack.c.l.b16 %v7533
    %v7733 = vunpack.c.l.b16 %v7534
    %v7734 = vunpack.c.l.b16 %v7535
    %v7735 = vunpack.c.l.b16 %v7536
    %v7736 = vpack.c.b16 %v7641, %v7640
    %v7737 = vpack.c.b16 %v7643, %v7642
    %v7738 = vpack.c.b16 %v7645, %v7644
    %v7739 = vpack.c.b16 %v7647, %v7646
    %v7740 = vpack.c.b16 %v7649, %v7648
    %v7741 = vpack.c.b16 %v7651, %v7650
    %v7742 = vpack.c.b16 %v7653, %v7652
    %v7743 = vpack.c.b16 %v7655, %v7654
    %v7744 = vpack.c.b16 %v7657, %v7656
    %v7745 = vpack.c.b16 %v7659, %v7658
    %v7746 = vpack.c.b16 %v7661, %v7660
    %v7747 = vpack.c.b16 %v7663, %v7662
    %v7748 = vpack.c.b16 %v7665, %v7664
    %v7749 = vpack.c.b16 %v7667, %v7666
    %v7750 = vpack.c.b16 %v7669, %v7668
    %v7751 = vpack.c.b16 %v7671, %v7670
    %v7752 = vpack.c.b16 %v7673, %v7672
    %v7753 = vpack.c.b16 %v7675, %v7674
    %v7754 = vpack.c.b16 %v7677, %v7676
    %v7755 = vpack.c.b16 %v7679, %v7678
    %v7756 = vpack.c.b16 %v7681, %v7680
    %v7757 = vpack.c.b16 %v7683, %v7682
    %v7758 = vpack.c.b16 %v7685, %v7684
    %v7759 = vpack.c.b16 %v7687, %v7686
    %v7760 = vpack.c.b16 %v7689, %v7688
    %v7761 = vpack.c.b16 %v7691, %v7690
    %v7762 = vpack.c.b16 %v7693, %v7692
    %v7763 = vpack.c.b16 %v7695, %v7694
    %v7764 = vpack.c.b16 %v7697, %v7696
    %v7765 = vpack.c.b16 %v7699, %v7698
    %v7766 = vpack.c.b16 %v7701, %v7700
    %v7767 = vpack.c.b16 %v7703, %v7702
    %v7768 = vpack.c.b16 %v7705, %v7704
    %v7769 = vpack.c.b16 %v7707, %v7706
    %v7770 = vpack.c.b16 %v7709, %v7708
    %v7771 = vpack.c.b16 %v7711, %v7710
    %v7772 = vpack.c.b16 %v7713, %v7712
    %v7773 = vpack.c.b16 %v7715, %v7714
    %v7774 = vpack.c.b16 %v7717, %v7716
    %v7775 = vpack.c.b16 %v7719, %v7718
    %v7776 = vpack.c.b16 %v7721, %v7720
    %v7777 = vpack.c.b16 %v7723, %v7722
    %v7778 = vpack.c.b16 %v7725, %v7724
    %v7779 = vpack.c.b16 %v7727, %v7726
    %v7780 = vpack.c.b16 %v7729, %v7728
    %v7781 = vpack.c.b16 %v7731, %v7730
    %v7782 = vpack.c.b16 %v7733, %v7732
    %v7783 = vpack.c.b16 %v7735, %v7734
    %7832 = vmatprep.subr.bf16.mxu0 0
    %7833 = vmatpush1.bf16.msra.mxu0 %v7743
    %7834 = vmatprep.subr.bf16.mxu0 0
    %7835 = vmatpush1.bf16.msra.mxu0 %v7742
    %7836 = vmatprep.subr.bf16.mxu0 0
    %7837 = vmatpush1.bf16.msra.mxu0 %v7741
    %7838 = vmatprep.subr.bf16.mxu0 0
    %7839 = vmatpush1.bf16.msra.mxu0 %v7740
    %7840 = vmatprep.subr.bf16.mxu0 0
    %7841 = vmatpush1.bf16.msra.mxu0 %v7739
    %7842 = vmatprep.subr.bf16.mxu0 0
    %7843 = vmatpush1.bf16.msra.mxu0 %v7738
    %7844 = vmatprep.subr.bf16.mxu0 0
    %7845 = vmatpush1.bf16.msra.mxu0 %v7737
    %7846 = vmatprep.subr.bf16.mxu0 0
    %7847 = vmatpush1.bf16.msra.mxu0 %v7736
    %7848 = vmatprep.subr.bf16.mxu0 0
    %7849 = vmatpush2.bf16.msra.mxu0 %v7751
    %7850 = vmatprep.subr.bf16.mxu0 0
    %7851 = vmatpush2.bf16.msra.mxu0 %v7750
    %7852 = vmatprep.subr.bf16.mxu0 0
    %7853 = vmatpush2.bf16.msra.mxu0 %v7749
    %7854 = vmatprep.subr.bf16.mxu0 0
    %7855 = vmatpush2.bf16.msra.mxu0 %v7748
    %7856 = vmatprep.subr.bf16.mxu0 0
    %7857 = vmatpush2.bf16.msra.mxu0 %v7747
    %7858 = vmatprep.subr.bf16.mxu0 0
    %7859 = vmatpush2.bf16.msra.mxu0 %v7746
    %7860 = vmatprep.subr.bf16.mxu0 0
    %7861 = vmatpush2.bf16.msra.mxu0 %v7745
    %7862 = vmatprep.subr.bf16.mxu0 0
    %7863 = vmatpush2.bf16.msra.mxu0 %v7744
    %7864 = vmatprep.mubr.bf16.mxu0 %v7436
    %7865 = vmatmul.mubr.bf16.gmra.mxu0 %v7435
    %v7866 = vpop.f32.mrf.mxu0
    %v7867 = vadd.f32 %v7542, %v7866
    %v7868 = vpop.f32.mrf.mxu0
    %v7869 = vpop.f32.mrf.mxu0
    %v7870 = vpop.f32.mrf.mxu0
    %7871 = vdwg.mxu0
    %7872 = vmatprep.subr.bf16.mxu0 0
    %7873 = vmatpush1.bf16.msra.mxu0 %v7759
    %7874 = vmatprep.subr.bf16.mxu0 0
    %7875 = vmatpush1.bf16.msra.mxu0 %v7758
    %7876 = vmatprep.subr.bf16.mxu0 0
    %7877 = vmatpush1.bf16.msra.mxu0 %v7757
    %7878 = vmatprep.subr.bf16.mxu0 0
    %7879 = vmatpush1.bf16.msra.mxu0 %v7756
    %7880 = vmatprep.subr.bf16.mxu0 0
    %7881 = vmatpush1.bf16.msra.mxu0 %v7755
    %7882 = vmatprep.subr.bf16.mxu0 0
    %7883 = vmatpush1.bf16.msra.mxu0 %v7754
    %7884 = vmatprep.subr.bf16.mxu0 0
    %7885 = vmatpush1.bf16.msra.mxu0 %v7753
    %7886 = vmatprep.subr.bf16.mxu0 0
    %7887 = vmatpush1.bf16.msra.mxu0 %v7752
    %7888 = vmatprep.subr.bf16.mxu0 0
    %7889 = vmatpush2.bf16.msra.mxu0 %v7767
    %7890 = vmatprep.subr.bf16.mxu0 0
    %7891 = vmatpush2.bf16.msra.mxu0 %v7766
    %7892 = vmatprep.subr.bf16.mxu0 0
    %7893 = vmatpush2.bf16.msra.mxu0 %v7765
    %7894 = vmatprep.subr.bf16.mxu0 0
    %7895 = vmatpush2.bf16.msra.mxu0 %v7764
    %7896 = vmatprep.subr.bf16.mxu0 0
    %7897 = vmatpush2.bf16.msra.mxu0 %v7763
    %7898 = vmatprep.subr.bf16.mxu0 0
    %7899 = vmatpush2.bf16.msra.mxu0 %v7762
    %7900 = vmatprep.subr.bf16.mxu0 0
    %7901 = vmatpush2.bf16.msra.mxu0 %v7761
    %7902 = vmatprep.subr.bf16.mxu0 0
    %7903 = vmatpush2.bf16.msra.mxu0 %v7760
    %7904 = vmatprep.mubr.bf16.mxu0 %v7438
    %7905 = vmatmul.mubr.bf16.gmra.mxu0 %v7437
    %v7906 = vpop.f32.mrf.mxu0
    %v7907 = vadd.f32 %v7867, %v7906
    %v7908 = vpop.f32.mrf.mxu0
    %v7909 = vpop.f32.mrf.mxu0
    %v7910 = vpop.f32.mrf.mxu0
    %7911 = vdwg.mxu0
    %7912 = vmatprep.subr.bf16.mxu0 0
    %7913 = vmatpush1.bf16.msra.mxu0 %v7775
    %7914 = vmatprep.subr.bf16.mxu0 0
    %7915 = vmatpush1.bf16.msra.mxu0 %v7774
    %7916 = vmatprep.subr.bf16.mxu0 0
    %7917 = vmatpush1.bf16.msra.mxu0 %v7773
    %7918 = vmatprep.subr.bf16.mxu0 0
    %7919 = vmatpush1.bf16.msra.mxu0 %v7772
    %7920 = vmatprep.subr.bf16.mxu0 0
    %7921 = vmatpush1.bf16.msra.mxu0 %v7771
    %7922 = vmatprep.subr.bf16.mxu0 0
    %7923 = vmatpush1.bf16.msra.mxu0 %v7770
    %7924 = vmatprep.subr.bf16.mxu0 0
    %7925 = vmatpush1.bf16.msra.mxu0 %v7769
    %7926 = vmatprep.subr.bf16.mxu0 0
    %7927 = vmatpush1.bf16.msra.mxu0 %v7768
    %7928 = vmatprep.subr.bf16.mxu0 0
    %7929 = vmatpush2.bf16.msra.mxu0 %v7783
    %7930 = vmatprep.subr.bf16.mxu0 0
    %7931 = vmatpush2.bf16.msra.mxu0 %v7782
    %7932 = vmatprep.subr.bf16.mxu0 0
    %7933 = vmatpush2.bf16.msra.mxu0 %v7781
    %7934 = vmatprep.subr.bf16.mxu0 0
    %7935 = vmatpush2.bf16.msra.mxu0 %v7780
    %7936 = vmatprep.subr.bf16.mxu0 0
    %7937 = vmatpush2.bf16.msra.mxu0 %v7779
    %7938 = vmatprep.subr.bf16.mxu0 0
    %7939 = vmatpush2.bf16.msra.mxu0 %v7778
    %7940 = vmatprep.subr.bf16.mxu0 0
    %7941 = vmatpush2.bf16.msra.mxu0 %v7777
    %7942 = vmatprep.subr.bf16.mxu0 0
    %7943 = vmatpush2.bf16.msra.mxu0 %v7776
    %7944 = vmatprep.mubr.bf16.mxu0 %v7440
    %7945 = vmatmul.mubr.bf16.gmra.mxu0 %v7439
    %v7946 = vpop.f32.mrf.mxu0
    %v7947 = vadd.f32 %v7907, %v7946
    %v7948 = vpop.f32.mrf.mxu0
    %v7949 = vpop.f32.mrf.mxu0
    %v7950 = vpop.f32.mrf.mxu0
    %7951 = vdwg.mxu0
    %7952 = vst [vmem:[%s11] sm:$0xff] %v7947
    // Predicated region
    $region78: #{_lambda_.1} parent=1 // pred_check
      _
    $region79: #{_lambda_.1} parent=1 // pred_check_branch
      %7954 = sbr.rel (0) target = $region81
    $region80: #{_lambda_.1} parent=1 // pred_region
      _
    $region81: #{_lambda_.1} parent=1 // pred_fallthru
      _
    // Predicated region
    $region82: #{_lambda_.1} parent=1 // pred_check
      _
    $region83: #{_lambda_.1} parent=1 // pred_check_branch
      %7956 = sbr.rel (0) target = $region85
    $region84: #{_lambda_.1} parent=1 // pred_region
      _
    $region85: #{_lambda_.1} parent=1 // pred_fallthru
      _
    %7957 = vsyncpa [#allocation4], 1
    %7958 = vsyncpa [#allocation6], 1
    %7959 = vsyncpa [#allocation9], 1
    %7960 = vsyncpa [#allocation12], 1
    %7961 = vsyncpa [#allocation15], 1

</llo_original>
